<compile_context>
chip_gen: v6e
topology: v6e:2x2x1
jax: 0.10.0
libtpu: 0.0.40
codegen_flags: <defaults>
</compile_context>

<pallas_src>
import functools

import jax
import jax.numpy as jnp
from jax.experimental import pallas as pl
from jax.experimental.pallas import tpu as pltpu


# ----------------------------- Pallas kernels ------------------------------ #

def _conv_relu_pool_kernel(x_ref, w_ref, b_ref, o_ref, *, width, cin, cout):
    """One pooled output row of one image: 3x3 SAME conv + bias + ReLU + 2x2 pool.

    x_ref: (H+2, W+2, Cin)   padded input image (bf16); its BlockSpec index is
                             constant over the inner `ho` grid axis, so it stays
                             resident in VMEM across all pooled rows of an image.
    w_ref: (3, 3, Cin, Cout) conv weights (bf16).
    b_ref: (1, Cout)         bias (f32).
    o_ref: (Wo, Cout)        pooled output row `ho` (bf16).
    """
    wo = width // 2
    r0 = 2 * pl.program_id(1)                       # first conv row of this step

    bias = b_ref[...].astype(jnp.float32)           # (1, Cout)
    # The 4 padded-input rows feeding conv rows r0 and r0+1 (loaded once).
    slabs = [x_ref[r0 + j] for j in range(4)]       # each (W+2, Cin)

    def conv_row(off):
        acc = jnp.zeros((width, cout), jnp.float32)
        for ky in range(3):
            slab = slabs[off + ky]
            for kx in range(3):
                patch = slab[kx:kx + width, :]      # (W, Cin) shifted window
                wk = w_ref[ky, kx]                  # (Cin, Cout)
                if cin == 1:
                    # K=1 contraction: keep it on the VPU (outer product);
                    # the MXU would be almost pure padding here.
                    acc = acc + patch.astype(jnp.float32) * wk.astype(jnp.float32)
                else:
                    acc = acc + jnp.dot(patch, wk,
                                        preferred_element_type=jnp.float32)
        return jnp.maximum(acc + bias, 0.0)         # bias + ReLU in f32

    # Pool over height: max of the two conv rows.
    p = jnp.maximum(conv_row(0), conv_row(1))       # (W, Cout)

    # Pool over width: exact even/odd column selection via one-hot matmuls.
    rows = jax.lax.broadcasted_iota(jnp.int32, (wo, width), 0)
    cols = jax.lax.broadcasted_iota(jnp.int32, (wo, width), 1)
    s_even = (cols == 2 * rows).astype(jnp.float32)
    s_odd = (cols == 2 * rows + 1).astype(jnp.float32)
    pooled = jnp.maximum(
        jnp.dot(s_even, p, preferred_element_type=jnp.float32),
        jnp.dot(s_odd, p, preferred_element_type=jnp.float32))   # (Wo, Cout)

    o_ref[...] = pooled.astype(o_ref.dtype)


def _mlp_kernel(x_ref, w1_ref, b1_ref, w2_ref, b2_ref, o_ref):
    """Fused fc1 (+ReLU) and fc2; the (tile_n, 256) hidden stays in registers/VMEM."""
    h = jnp.dot(x_ref[...], w1_ref[...], preferred_element_type=jnp.float32)
    h = jnp.maximum(h + b1_ref[...], 0.0)
    y = jnp.dot(h.astype(w2_ref.dtype), w2_ref[...],
                preferred_element_type=jnp.float32) + b2_ref[...]
    o_ref[...] = y


# ------------------------------ Layer wrappers ----------------------------- #

def conv_relu_pool(x_nhwc, w_hwio, b):
    """x_nhwc: (N,H,W,Cin) bf16; w_hwio: (3,3,Cin,Cout) bf16; b: (1,Cout) f32."""
    n, h, w, cin = x_nhwc.shape
    cout = w_hwio.shape[-1]
    assert h % 2 == 0 and w % 2 == 0
    ho, wo = h // 2, w // 2

    # SAME padding of the small NHWC feature map (cheap; no 9x expansion).
    xpad = jnp.pad(x_nhwc, ((0, 0), (1, 1), (1, 1), (0, 0)))

    flops = 2 * n * h * w * cout * cin * 9
    bytes_accessed = (xpad.size + w_hwio.size + n * ho * wo * cout) * 2 + b.size * 4

    kernel = functools.partial(_conv_relu_pool_kernel,
                               width=w, cin=cin, cout=cout)
    return pl.pallas_call(
        kernel,
        out_shape=jax.ShapeDtypeStruct((n, ho, wo, cout), jnp.bfloat16),
        grid=(n, ho),
        in_specs=[
            # Whole padded image; block index constant over `ho` => VMEM-resident.
            pl.BlockSpec((None, h + 2, w + 2, cin), lambda i, j: (i, 0, 0, 0)),
            pl.BlockSpec((3, 3, cin, cout), lambda i, j: (0, 0, 0, 0)),
            pl.BlockSpec((1, cout), lambda i, j: (0, 0)),
        ],
        out_specs=pl.BlockSpec((None, None, wo, cout), lambda i, j: (i, j, 0, 0)),
        compiler_params=pltpu.CompilerParams(
            dimension_semantics=("parallel", "arbitrary")),
        cost_estimate=pl.CostEstimate(flops=flops, transcendentals=0,
                                      bytes_accessed=bytes_accessed),
    )(xpad, w_hwio, b)


def mlp(x, w1, b1, w2, b2, *, tile_n=256):
    """x: (N, Din) bf16; w1: (Din, Dh) bf16; w2: (Dh, Dout) bf16; biases f32."""
    n, d_in = x.shape
    d_h = w1.shape[1]
    d_out = w2.shape[1]
    tn = min(n, tile_n)
    assert n % tn == 0, "batch must divide the row tile"

    flops = 2 * n * (d_in * d_h + d_h * d_out)
    bytes_accessed = (x.size + w1.size + w2.size) * 2 + (b1.size + b2.size + n * d_out) * 4

    return pl.pallas_call(
        _mlp_kernel,
        out_shape=jax.ShapeDtypeStruct((n, d_out), jnp.float32),
        grid=(n // tn,),
        in_specs=[
            pl.BlockSpec((tn, d_in), lambda i: (i, 0)),
            pl.BlockSpec((d_in, d_h), lambda i: (0, 0)),
            pl.BlockSpec((1, d_h), lambda i: (0, 0)),
            pl.BlockSpec((d_h, d_out), lambda i: (0, 0)),
            pl.BlockSpec((1, d_out), lambda i: (0, 0)),
        ],
        out_specs=pl.BlockSpec((tn, d_out), lambda i: (i, 0)),
        compiler_params=pltpu.CompilerParams(dimension_semantics=("parallel",)),
        cost_estimate=pl.CostEstimate(flops=flops, transcendentals=0,
                                      bytes_accessed=bytes_accessed),
    )(x, w1, b1, w2, b2)


# --------------------------- One-time param prep --------------------------- #

def prepare_params(p):
    """PyTorch layouts -> kernel layouts (done once, outside the hot path).

    Conv weights -> (3,3,Cin,Cout) bf16.  fc1's input dim is permuted from the
    NCHW flatten order (c,h,w) to NHWC order (h,w,c) so the forward pass never
    transposes the conv3 activations.
    """
    def conv_w(w_pt):                              # (Cout,Cin,3,3) -> (3,3,Cin,Cout)
        return jnp.transpose(w_pt, (2, 3, 1, 0)).astype(jnp.bfloat16)

    fc1_w = p["fc1_w"]                             # (256, 128*6*6), columns (c,h,w)
    fc1_w = fc1_w.reshape(fc1_w.shape[0], 128, 6, 6).transpose(0, 2, 3, 1)
    fc1_w = fc1_w.reshape(fc1_w.shape[0], -1)      # columns now (h,w,c)

    return dict(
        conv1_w=conv_w(p["conv1_w"]), conv1_b=p["conv1_b"].reshape(1, -1).astype(jnp.float32),
        conv2_w=conv_w(p["conv2_w"]), conv2_b=p["conv2_b"].reshape(1, -1).astype(jnp.float32),
        conv3_w=conv_w(p["conv3_w"]), conv3_b=p["conv3_b"].reshape(1, -1).astype(jnp.float32),
        fc1_w=jnp.transpose(fc1_w).astype(jnp.bfloat16),        # (4608, 256)
        fc1_b=p["fc1_b"].reshape(1, -1).astype(jnp.float32),
        fc2_w=jnp.transpose(p["fc2_w"]).astype(jnp.bfloat16),   # (256, num_classes)
        fc2_b=p["fc2_b"].reshape(1, -1).astype(jnp.float32),
    )


# ------------------------------- Full forward ------------------------------ #

def emotion_cnn_forward(x_nchw, pp):
    # NCHW boundary -> NHWC bf16 (single cheap entry transpose; C == 1).
    x = jnp.transpose(x_nchw, (0, 2, 3, 1)).astype(jnp.bfloat16)
    x = conv_relu_pool(x, pp["conv1_w"], pp["conv1_b"])     # (N, 24, 24, 32)
    x = conv_relu_pool(x, pp["conv2_w"], pp["conv2_b"])     # (N, 12, 12, 64)
    x = conv_relu_pool(x, pp["conv3_w"], pp["conv3_b"])     # (N, 6, 6, 128)
    x = x.reshape(x.shape[0], -1)                           # NHWC flatten (fc1_w permuted to match)
    return mlp(x, pp["fc1_w"], pp["fc1_b"], pp["fc2_w"], pp["fc2_b"])  # (N, 7) f32


def init_params(key, num_classes=7):
    ks = jax.random.split(key, 10)

    def w(k, shape, scale):
        return (scale * jax.random.normal(k, shape)).astype(jnp.float32)

    return dict(
        conv1_w=w(ks[0], (32, 1, 3, 3), 0.10), conv1_b=w(ks[1], (32,), 0.10),
        conv2_w=w(ks[2], (64, 32, 3, 3), 0.05), conv2_b=w(ks[3], (64,), 0.05),
        conv3_w=w(ks[4], (128, 64, 3, 3), 0.05), conv3_b=w(ks[5], (128,), 0.05),
        fc1_w=w(ks[6], (256, 128 * 6 * 6), 0.02), fc1_b=w(ks[7], (256,), 0.02),
        fc2_w=w(ks[8], (num_classes, 256), 0.05), fc2_b=w(ks[9], (num_classes,), 0.05),
    )


# ------------------------- pure-JAX reference check ------------------------ #

def reference_forward(x_nchw, p):
    x = jnp.transpose(x_nchw, (0, 2, 3, 1))

    def block(x, w_pt, b):
        w_hwio = jnp.transpose(w_pt, (2, 3, 1, 0))
        y = jax.lax.conv_general_dilated(
            x, w_hwio, (1, 1), "SAME",
            dimension_numbers=("NHWC", "HWIO", "NHWC"))
        y = jnp.maximum(y + b, 0.0)
        return jax.lax.reduce_window(
            y, -jnp.inf, jax.lax.max, (1, 2, 2, 1), (1, 2, 2, 1), "VALID")

    x = block(x, p["conv1_w"], p["conv1_b"])
    x = block(x, p["conv2_w"], p["conv2_b"])
    x = block(x, p["conv3_w"], p["conv3_b"])
    x = jnp.transpose(x, (0, 3, 1, 2)).reshape(x.shape[0], -1)
    x = jnp.maximum(x @ p["fc1_w"].T + p["fc1_b"], 0.0)
    x = x @ p["fc2_w"].T + p["fc2_b"]
    return x


if __name__ == "__main__":
    # Input implied by the module: 1-channel 48x48 images (48 -> 24 -> 12 -> 6,
    # matching fc1's 128*6*6). Batch = 2. PyTorch NCHW at the boundary.
    x = jax.random.normal(jax.random.PRNGKey(0), (2, 1, 48, 48), dtype=jnp.float32)
    params = init_params(jax.random.PRNGKey(42))
    prepped = prepare_params(params)        # one-time weight layout prep

    fwd = jax.jit(emotion_cnn_forward)
    out = jax.block_until_ready(fwd(x, prepped))

    assert out.shape == (2, 7), out.shape
    ref = reference_forward(x, params)      # f32 reference; kernel path is bf16
    if not jnp.allclose(out, ref, rtol=2e-2, atol=2e-2):
        err = float(jnp.max(jnp.abs(out - ref)))
        raise AssertionError(f"Pallas output does not match JAX reference (max abs err {err})")

    print("KERNEL_OK")
</pallas_src>

<mosaic_0001>
module attributes {stable_mosaic.version = 11 : i64} {
  func.func @_conv_relu_pool_kernel(%arg0: i32, %arg1: i32, %arg2: memref<1x50x50x1xbf16, #tpu.memory_space<vmem>>, %arg3: memref<3x3x1x32xbf16, #tpu.memory_space<vmem>>, %arg4: memref<1x32xf32, #tpu.memory_space<vmem>>, %arg5: memref<1x1x24x32xbf16, #tpu.memory_space<vmem>>) attributes {dimension_semantics = [#tpu.dimension_semantics<parallel>, #tpu.dimension_semantics<arbitrary>], iteration_bounds = array<i64: 2, 24>, scalar_prefetch = 0 : i64, scratch_operands = 0 : i64, tpu.core_type = #tpu.core_type<tc>, window_params = [{transform_indices = @transform_0, window_bounds = array<i64: 1, 50, 50, 1>}, {pipeline_mode = #tpu.pipeline_mode<synchronous>, transform_indices = @transform_1, window_bounds = array<i64: 3, 3, 1, 32>}, {pipeline_mode = #tpu.pipeline_mode<synchronous>, transform_indices = @transform_2, window_bounds = array<i64: 1, 32>}, {transform_indices = @transform_3, window_bounds = array<i64: 1, 1, 24, 32>}]} {
    %c2_i32 = arith.constant 2 : i32
    %0 = arith.muli %c2_i32, %arg1 : i32
    %c0 = arith.constant 0 : index
    %c0_0 = arith.constant 0 : index
    %1 = vector.load %arg4[%c0, %c0_0] : memref<1x32xf32, #tpu.memory_space<vmem>>, vector<1x32xf32>
    %c0_i32 = arith.constant 0 : i32
    %2 = arith.addi %0, %c0_i32 : i32
    %c0_1 = arith.constant 0 : index
    %3 = arith.index_cast %2 : i32 to index
    %c0_2 = arith.constant 0 : index
    %c0_3 = arith.constant 0 : index
    %4 = vector.load %arg2[%c0_1, %3, %c0_2, %c0_3] : memref<1x50x50x1xbf16, #tpu.memory_space<vmem>>, vector<1x1x50x1xbf16>
    %5 = vector.shape_cast %4 : vector<1x1x50x1xbf16> to vector<50x1xbf16>
    %c1_i32 = arith.constant 1 : i32
    %6 = arith.addi %0, %c1_i32 : i32
    %c0_4 = arith.constant 0 : index
    %7 = arith.index_cast %6 : i32 to index
    %c0_5 = arith.constant 0 : index
    %c0_6 = arith.constant 0 : index
    %8 = vector.load %arg2[%c0_4, %7, %c0_5, %c0_6] : memref<1x50x50x1xbf16, #tpu.memory_space<vmem>>, vector<1x1x50x1xbf16>
    %9 = vector.shape_cast %8 : vector<1x1x50x1xbf16> to vector<50x1xbf16>
    %c2_i32_7 = arith.constant 2 : i32
    %10 = arith.addi %0, %c2_i32_7 : i32
    %c0_8 = arith.constant 0 : index
    %11 = arith.index_cast %10 : i32 to index
    %c0_9 = arith.constant 0 : index
    %c0_10 = arith.constant 0 : index
    %12 = vector.load %arg2[%c0_8, %11, %c0_9, %c0_10] : memref<1x50x50x1xbf16, #tpu.memory_space<vmem>>, vector<1x1x50x1xbf16>
    %13 = vector.shape_cast %12 : vector<1x1x50x1xbf16> to vector<50x1xbf16>
    %c3_i32 = arith.constant 3 : i32
    %14 = arith.addi %0, %c3_i32 : i32
    %c0_11 = arith.constant 0 : index
    %15 = arith.index_cast %14 : i32 to index
    %c0_12 = arith.constant 0 : index
    %c0_13 = arith.constant 0 : index
    %16 = vector.load %arg2[%c0_11, %15, %c0_12, %c0_13] : memref<1x50x50x1xbf16, #tpu.memory_space<vmem>>, vector<1x1x50x1xbf16>
    %17 = vector.shape_cast %16 : vector<1x1x50x1xbf16> to vector<50x1xbf16>
    %cst = arith.constant 0.000000e+00 : f32
    %18 = vector.broadcast %cst : f32 to vector<48x32xf32>
    %19 = vector.extract_strided_slice %5 {offsets = [0, 0], sizes = [48, 1], strides = [1, 1]} : vector<50x1xbf16> to vector<48x1xbf16>
    %c0_14 = arith.constant 0 : index
    %c0_15 = arith.constant 0 : index
    %c0_16 = arith.constant 0 : index
    %c0_17 = arith.constant 0 : index
    %20 = vector.load %arg3[%c0_14, %c0_15, %c0_16, %c0_17] : memref<3x3x1x32xbf16, #tpu.memory_space<vmem>>, vector<1x1x1x32xbf16>
    %21 = vector.shape_cast %20 : vector<1x1x1x32xbf16> to vector<1x32xbf16>
    %22 = arith.extf %19 : vector<48x1xbf16> to vector<48x1xf32>
    %23 = arith.extf %21 : vector<1x32xbf16> to vector<1x32xf32>
    %24 = vector.broadcast %22 : vector<48x1xf32> to vector<48x32xf32>
    %25 = vector.broadcast %23 : vector<1x32xf32> to vector<48x32xf32>
    %26 = arith.mulf %24, %25 : vector<48x32xf32>
    %27 = arith.addf %18, %26 : vector<48x32xf32>
    %28 = vector.extract_strided_slice %5 {offsets = [1, 0], sizes = [48, 1], strides = [1, 1]} : vector<50x1xbf16> to vector<48x1xbf16>
    %c0_18 = arith.constant 0 : index
    %c1 = arith.constant 1 : index
    %c0_19 = arith.constant 0 : index
    %c0_20 = arith.constant 0 : index
    %29 = vector.load %arg3[%c0_18, %c1, %c0_19, %c0_20] : memref<3x3x1x32xbf16, #tpu.memory_space<vmem>>, vector<1x1x1x32xbf16>
    %30 = vector.shape_cast %29 : vector<1x1x1x32xbf16> to vector<1x32xbf16>
    %31 = arith.extf %28 : vector<48x1xbf16> to vector<48x1xf32>
    %32 = arith.extf %30 : vector<1x32xbf16> to vector<1x32xf32>
    %33 = vector.broadcast %31 : vector<48x1xf32> to vector<48x32xf32>
    %34 = vector.broadcast %32 : vector<1x32xf32> to vector<48x32xf32>
    %35 = arith.mulf %33, %34 : vector<48x32xf32>
    %36 = arith.addf %27, %35 : vector<48x32xf32>
    %37 = vector.extract_strided_slice %5 {offsets = [2, 0], sizes = [48, 1], strides = [1, 1]} : vector<50x1xbf16> to vector<48x1xbf16>
    %c0_21 = arith.constant 0 : index
    %c2 = arith.constant 2 : index
    %c0_22 = arith.constant 0 : index
    %c0_23 = arith.constant 0 : index
    %38 = vector.load %arg3[%c0_21, %c2, %c0_22, %c0_23] : memref<3x3x1x32xbf16, #tpu.memory_space<vmem>>, vector<1x1x1x32xbf16>
    %39 = vector.shape_cast %38 : vector<1x1x1x32xbf16> to vector<1x32xbf16>
    %40 = arith.extf %37 : vector<48x1xbf16> to vector<48x1xf32>
    %41 = arith.extf %39 : vector<1x32xbf16> to vector<1x32xf32>
    %42 = vector.broadcast %40 : vector<48x1xf32> to vector<48x32xf32>
    %43 = vector.broadcast %41 : vector<1x32xf32> to vector<48x32xf32>
    %44 = arith.mulf %42, %43 : vector<48x32xf32>
    %45 = arith.addf %36, %44 : vector<48x32xf32>
    %46 = vector.extract_strided_slice %9 {offsets = [0, 0], sizes = [48, 1], strides = [1, 1]} : vector<50x1xbf16> to vector<48x1xbf16>
    %c1_24 = arith.constant 1 : index
    %c0_25 = arith.constant 0 : index
    %c0_26 = arith.constant 0 : index
    %c0_27 = arith.constant 0 : index
    %47 = vector.load %arg3[%c1_24, %c0_25, %c0_26, %c0_27] : memref<3x3x1x32xbf16, #tpu.memory_space<vmem>>, vector<1x1x1x32xbf16>
    %48 = vector.shape_cast %47 : vector<1x1x1x32xbf16> to vector<1x32xbf16>
    %49 = arith.extf %46 : vector<48x1xbf16> to vector<48x1xf32>
    %50 = arith.extf %48 : vector<1x32xbf16> to vector<1x32xf32>
    %51 = vector.broadcast %49 : vector<48x1xf32> to vector<48x32xf32>
    %52 = vector.broadcast %50 : vector<1x32xf32> to vector<48x32xf32>
    %53 = arith.mulf %51, %52 : vector<48x32xf32>
    %54 = arith.addf %45, %53 : vector<48x32xf32>
    %55 = vector.extract_strided_slice %9 {offsets = [1, 0], sizes = [48, 1], strides = [1, 1]} : vector<50x1xbf16> to vector<48x1xbf16>
    %c1_28 = arith.constant 1 : index
    %c1_29 = arith.constant 1 : index
    %c0_30 = arith.constant 0 : index
    %c0_31 = arith.constant 0 : index
    %56 = vector.load %arg3[%c1_28, %c1_29, %c0_30, %c0_31] : memref<3x3x1x32xbf16, #tpu.memory_space<vmem>>, vector<1x1x1x32xbf16>
    %57 = vector.shape_cast %56 : vector<1x1x1x32xbf16> to vector<1x32xbf16>
    %58 = arith.extf %55 : vector<48x1xbf16> to vector<48x1xf32>
    %59 = arith.extf %57 : vector<1x32xbf16> to vector<1x32xf32>
    %60 = vector.broadcast %58 : vector<48x1xf32> to vector<48x32xf32>
    %61 = vector.broadcast %59 : vector<1x32xf32> to vector<48x32xf32>
    %62 = arith.mulf %60, %61 : vector<48x32xf32>
    %63 = arith.addf %54, %62 : vector<48x32xf32>
    %64 = vector.extract_strided_slice %9 {offsets = [2, 0], sizes = [48, 1], strides = [1, 1]} : vector<50x1xbf16> to vector<48x1xbf16>
    %c1_32 = arith.constant 1 : index
    %c2_33 = arith.constant 2 : index
    %c0_34 = arith.constant 0 : index
    %c0_35 = arith.constant 0 : index
    %65 = vector.load %arg3[%c1_32, %c2_33, %c0_34, %c0_35] : memref<3x3x1x32xbf16, #tpu.memory_space<vmem>>, vector<1x1x1x32xbf16>
    %66 = vector.shape_cast %65 : vector<1x1x1x32xbf16> to vector<1x32xbf16>
    %67 = arith.extf %64 : vector<48x1xbf16> to vector<48x1xf32>
    %68 = arith.extf %66 : vector<1x32xbf16> to vector<1x32xf32>
    %69 = vector.broadcast %67 : vector<48x1xf32> to vector<48x32xf32>
    %70 = vector.broadcast %68 : vector<1x32xf32> to vector<48x32xf32>
    %71 = arith.mulf %69, %70 : vector<48x32xf32>
    %72 = arith.addf %63, %71 : vector<48x32xf32>
    %73 = vector.extract_strided_slice %13 {offsets = [0, 0], sizes = [48, 1], strides = [1, 1]} : vector<50x1xbf16> to vector<48x1xbf16>
    %c2_36 = arith.constant 2 : index
    %c0_37 = arith.constant 0 : index
    %c0_38 = arith.constant 0 : index
    %c0_39 = arith.constant 0 : index
    %74 = vector.load %arg3[%c2_36, %c0_37, %c0_38, %c0_39] : memref<3x3x1x32xbf16, #tpu.memory_space<vmem>>, vector<1x1x1x32xbf16>
    %75 = vector.shape_cast %74 : vector<1x1x1x32xbf16> to vector<1x32xbf16>
    %76 = arith.extf %73 : vector<48x1xbf16> to vector<48x1xf32>
    %77 = arith.extf %75 : vector<1x32xbf16> to vector<1x32xf32>
    %78 = vector.broadcast %76 : vector<48x1xf32> to vector<48x32xf32>
    %79 = vector.broadcast %77 : vector<1x32xf32> to vector<48x32xf32>
    %80 = arith.mulf %78, %79 : vector<48x32xf32>
    %81 = arith.addf %72, %80 : vector<48x32xf32>
    %82 = vector.extract_strided_slice %13 {offsets = [1, 0], sizes = [48, 1], strides = [1, 1]} : vector<50x1xbf16> to vector<48x1xbf16>
    %c2_40 = arith.constant 2 : index
    %c1_41 = arith.constant 1 : index
    %c0_42 = arith.constant 0 : index
    %c0_43 = arith.constant 0 : index
    %83 = vector.load %arg3[%c2_40, %c1_41, %c0_42, %c0_43] : memref<3x3x1x32xbf16, #tpu.memory_space<vmem>>, vector<1x1x1x32xbf16>
    %84 = vector.shape_cast %83 : vector<1x1x1x32xbf16> to vector<1x32xbf16>
    %85 = arith.extf %82 : vector<48x1xbf16> to vector<48x1xf32>
    %86 = arith.extf %84 : vector<1x32xbf16> to vector<1x32xf32>
    %87 = vector.broadcast %85 : vector<48x1xf32> to vector<48x32xf32>
    %88 = vector.broadcast %86 : vector<1x32xf32> to vector<48x32xf32>
    %89 = arith.mulf %87, %88 : vector<48x32xf32>
    %90 = arith.addf %81, %89 : vector<48x32xf32>
    %91 = vector.extract_strided_slice %13 {offsets = [2, 0], sizes = [48, 1], strides = [1, 1]} : vector<50x1xbf16> to vector<48x1xbf16>
    %c2_44 = arith.constant 2 : index
    %c2_45 = arith.constant 2 : index
    %c0_46 = arith.constant 0 : index
    %c0_47 = arith.constant 0 : index
    %92 = vector.load %arg3[%c2_44, %c2_45, %c0_46, %c0_47] : memref<3x3x1x32xbf16, #tpu.memory_space<vmem>>, vector<1x1x1x32xbf16>
    %93 = vector.shape_cast %92 : vector<1x1x1x32xbf16> to vector<1x32xbf16>
    %94 = arith.extf %91 : vector<48x1xbf16> to vector<48x1xf32>
    %95 = arith.extf %93 : vector<1x32xbf16> to vector<1x32xf32>
    %96 = vector.broadcast %94 : vector<48x1xf32> to vector<48x32xf32>
    %97 = vector.broadcast %95 : vector<1x32xf32> to vector<48x32xf32>
    %98 = arith.mulf %96, %97 : vector<48x32xf32>
    %99 = arith.addf %90, %98 : vector<48x32xf32>
    %100 = vector.broadcast %1 : vector<1x32xf32> to vector<48x32xf32>
    %101 = arith.addf %99, %100 : vector<48x32xf32>
    %cst_48 = arith.constant 0.000000e+00 : f32
    %102 = vector.broadcast %cst_48 : f32 to vector<48x32xf32>
    %103 = arith.maximumf %101, %102 : vector<48x32xf32>
    %cst_49 = arith.constant 0.000000e+00 : f32
    %104 = vector.broadcast %cst_49 : f32 to vector<48x32xf32>
    %105 = vector.extract_strided_slice %9 {offsets = [0, 0], sizes = [48, 1], strides = [1, 1]} : vector<50x1xbf16> to vector<48x1xbf16>
    %c0_50 = arith.constant 0 : index
    %c0_51 = arith.constant 0 : index
    %c0_52 = arith.constant 0 : index
    %c0_53 = arith.constant 0 : index
    %106 = vector.load %arg3[%c0_50, %c0_51, %c0_52, %c0_53] : memref<3x3x1x32xbf16, #tpu.memory_space<vmem>>, vector<1x1x1x32xbf16>
    %107 = vector.shape_cast %106 : vector<1x1x1x32xbf16> to vector<1x32xbf16>
    %108 = arith.extf %105 : vector<48x1xbf16> to vector<48x1xf32>
    %109 = arith.extf %107 : vector<1x32xbf16> to vector<1x32xf32>
    %110 = vector.broadcast %108 : vector<48x1xf32> to vector<48x32xf32>
    %111 = vector.broadcast %109 : vector<1x32xf32> to vector<48x32xf32>
    %112 = arith.mulf %110, %111 : vector<48x32xf32>
    %113 = arith.addf %104, %112 : vector<48x32xf32>
    %114 = vector.extract_strided_slice %9 {offsets = [1, 0], sizes = [48, 1], strides = [1, 1]} : vector<50x1xbf16> to vector<48x1xbf16>
    %c0_54 = arith.constant 0 : index
    %c1_55 = arith.constant 1 : index
    %c0_56 = arith.constant 0 : index
    %c0_57 = arith.constant 0 : index
    %115 = vector.load %arg3[%c0_54, %c1_55, %c0_56, %c0_57] : memref<3x3x1x32xbf16, #tpu.memory_space<vmem>>, vector<1x1x1x32xbf16>
    %116 = vector.shape_cast %115 : vector<1x1x1x32xbf16> to vector<1x32xbf16>
    %117 = arith.extf %114 : vector<48x1xbf16> to vector<48x1xf32>
    %118 = arith.extf %116 : vector<1x32xbf16> to vector<1x32xf32>
    %119 = vector.broadcast %117 : vector<48x1xf32> to vector<48x32xf32>
    %120 = vector.broadcast %118 : vector<1x32xf32> to vector<48x32xf32>
    %121 = arith.mulf %119, %120 : vector<48x32xf32>
    %122 = arith.addf %113, %121 : vector<48x32xf32>
    %123 = vector.extract_strided_slice %9 {offsets = [2, 0], sizes = [48, 1], strides = [1, 1]} : vector<50x1xbf16> to vector<48x1xbf16>
    %c0_58 = arith.constant 0 : index
    %c2_59 = arith.constant 2 : index
    %c0_60 = arith.constant 0 : index
    %c0_61 = arith.constant 0 : index
    %124 = vector.load %arg3[%c0_58, %c2_59, %c0_60, %c0_61] : memref<3x3x1x32xbf16, #tpu.memory_space<vmem>>, vector<1x1x1x32xbf16>
    %125 = vector.shape_cast %124 : vector<1x1x1x32xbf16> to vector<1x32xbf16>
    %126 = arith.extf %123 : vector<48x1xbf16> to vector<48x1xf32>
    %127 = arith.extf %125 : vector<1x32xbf16> to vector<1x32xf32>
    %128 = vector.broadcast %126 : vector<48x1xf32> to vector<48x32xf32>
    %129 = vector.broadcast %127 : vector<1x32xf32> to vector<48x32xf32>
    %130 = arith.mulf %128, %129 : vector<48x32xf32>
    %131 = arith.addf %122, %130 : vector<48x32xf32>
    %132 = vector.extract_strided_slice %13 {offsets = [0, 0], sizes = [48, 1], strides = [1, 1]} : vector<50x1xbf16> to vector<48x1xbf16>
    %c1_62 = arith.constant 1 : index
    %c0_63 = arith.constant 0 : index
    %c0_64 = arith.constant 0 : index
    %c0_65 = arith.constant 0 : index
    %133 = vector.load %arg3[%c1_62, %c0_63, %c0_64, %c0_65] : memref<3x3x1x32xbf16, #tpu.memory_space<vmem>>, vector<1x1x1x32xbf16>
    %134 = vector.shape_cast %133 : vector<1x1x1x32xbf16> to vector<1x32xbf16>
    %135 = arith.extf %132 : vector<48x1xbf16> to vector<48x1xf32>
    %136 = arith.extf %134 : vector<1x32xbf16> to vector<1x32xf32>
    %137 = vector.broadcast %135 : vector<48x1xf32> to vector<48x32xf32>
    %138 = vector.broadcast %136 : vector<1x32xf32> to vector<48x32xf32>
    %139 = arith.mulf %137, %138 : vector<48x32xf32>
    %140 = arith.addf %131, %139 : vector<48x32xf32>
    %141 = vector.extract_strided_slice %13 {offsets = [1, 0], sizes = [48, 1], strides = [1, 1]} : vector<50x1xbf16> to vector<48x1xbf16>
    %c1_66 = arith.constant 1 : index
    %c1_67 = arith.constant 1 : index
    %c0_68 = arith.constant 0 : index
    %c0_69 = arith.constant 0 : index
    %142 = vector.load %arg3[%c1_66, %c1_67, %c0_68, %c0_69] : memref<3x3x1x32xbf16, #tpu.memory_space<vmem>>, vector<1x1x1x32xbf16>
    %143 = vector.shape_cast %142 : vector<1x1x1x32xbf16> to vector<1x32xbf16>
    %144 = arith.extf %141 : vector<48x1xbf16> to vector<48x1xf32>
    %145 = arith.extf %143 : vector<1x32xbf16> to vector<1x32xf32>
    %146 = vector.broadcast %144 : vector<48x1xf32> to vector<48x32xf32>
    %147 = vector.broadcast %145 : vector<1x32xf32> to vector<48x32xf32>
    %148 = arith.mulf %146, %147 : vector<48x32xf32>
    %149 = arith.addf %140, %148 : vector<48x32xf32>
    %150 = vector.extract_strided_slice %13 {offsets = [2, 0], sizes = [48, 1], strides = [1, 1]} : vector<50x1xbf16> to vector<48x1xbf16>
    %c1_70 = arith.constant 1 : index
    %c2_71 = arith.constant 2 : index
    %c0_72 = arith.constant 0 : index
    %c0_73 = arith.constant 0 : index
    %151 = vector.load %arg3[%c1_70, %c2_71, %c0_72, %c0_73] : memref<3x3x1x32xbf16, #tpu.memory_space<vmem>>, vector<1x1x1x32xbf16>
    %152 = vector.shape_cast %151 : vector<1x1x1x32xbf16> to vector<1x32xbf16>
    %153 = arith.extf %150 : vector<48x1xbf16> to vector<48x1xf32>
    %154 = arith.extf %152 : vector<1x32xbf16> to vector<1x32xf32>
    %155 = vector.broadcast %153 : vector<48x1xf32> to vector<48x32xf32>
    %156 = vector.broadcast %154 : vector<1x32xf32> to vector<48x32xf32>
    %157 = arith.mulf %155, %156 : vector<48x32xf32>
    %158 = arith.addf %149, %157 : vector<48x32xf32>
    %159 = vector.extract_strided_slice %17 {offsets = [0, 0], sizes = [48, 1], strides = [1, 1]} : vector<50x1xbf16> to vector<48x1xbf16>
    %c2_74 = arith.constant 2 : index
    %c0_75 = arith.constant 0 : index
    %c0_76 = arith.constant 0 : index
    %c0_77 = arith.constant 0 : index
    %160 = vector.load %arg3[%c2_74, %c0_75, %c0_76, %c0_77] : memref<3x3x1x32xbf16, #tpu.memory_space<vmem>>, vector<1x1x1x32xbf16>
    %161 = vector.shape_cast %160 : vector<1x1x1x32xbf16> to vector<1x32xbf16>
    %162 = arith.extf %159 : vector<48x1xbf16> to vector<48x1xf32>
    %163 = arith.extf %161 : vector<1x32xbf16> to vector<1x32xf32>
    %164 = vector.broadcast %162 : vector<48x1xf32> to vector<48x32xf32>
    %165 = vector.broadcast %163 : vector<1x32xf32> to vector<48x32xf32>
    %166 = arith.mulf %164, %165 : vector<48x32xf32>
    %167 = arith.addf %158, %166 : vector<48x32xf32>
    %168 = vector.extract_strided_slice %17 {offsets = [1, 0], sizes = [48, 1], strides = [1, 1]} : vector<50x1xbf16> to vector<48x1xbf16>
    %c2_78 = arith.constant 2 : index
    %c1_79 = arith.constant 1 : index
    %c0_80 = arith.constant 0 : index
    %c0_81 = arith.constant 0 : index
    %169 = vector.load %arg3[%c2_78, %c1_79, %c0_80, %c0_81] : memref<3x3x1x32xbf16, #tpu.memory_space<vmem>>, vector<1x1x1x32xbf16>
    %170 = vector.shape_cast %169 : vector<1x1x1x32xbf16> to vector<1x32xbf16>
    %171 = arith.extf %168 : vector<48x1xbf16> to vector<48x1xf32>
    %172 = arith.extf %170 : vector<1x32xbf16> to vector<1x32xf32>
    %173 = vector.broadcast %171 : vector<48x1xf32> to vector<48x32xf32>
    %174 = vector.broadcast %172 : vector<1x32xf32> to vector<48x32xf32>
    %175 = arith.mulf %173, %174 : vector<48x32xf32>
    %176 = arith.addf %167, %175 : vector<48x32xf32>
    %177 = vector.extract_strided_slice %17 {offsets = [2, 0], sizes = [48, 1], strides = [1, 1]} : vector<50x1xbf16> to vector<48x1xbf16>
    %c2_82 = arith.constant 2 : index
    %c2_83 = arith.constant 2 : index
    %c0_84 = arith.constant 0 : index
    %c0_85 = arith.constant 0 : index
    %178 = vector.load %arg3[%c2_82, %c2_83, %c0_84, %c0_85] : memref<3x3x1x32xbf16, #tpu.memory_space<vmem>>, vector<1x1x1x32xbf16>
    %179 = vector.shape_cast %178 : vector<1x1x1x32xbf16> to vector<1x32xbf16>
    %180 = arith.extf %177 : vector<48x1xbf16> to vector<48x1xf32>
    %181 = arith.extf %179 : vector<1x32xbf16> to vector<1x32xf32>
    %182 = vector.broadcast %180 : vector<48x1xf32> to vector<48x32xf32>
    %183 = vector.broadcast %181 : vector<1x32xf32> to vector<48x32xf32>
    %184 = arith.mulf %182, %183 : vector<48x32xf32>
    %185 = arith.addf %176, %184 : vector<48x32xf32>
    %186 = vector.broadcast %1 : vector<1x32xf32> to vector<48x32xf32>
    %187 = arith.addf %185, %186 : vector<48x32xf32>
    %cst_86 = arith.constant 0.000000e+00 : f32
    %188 = vector.broadcast %cst_86 : f32 to vector<48x32xf32>
    %189 = arith.maximumf %187, %188 : vector<48x32xf32>
    %190 = arith.maximumf %103, %189 : vector<48x32xf32>
    %191 = tpu.iota {dimensions = array<i32: 0>} : vector<24x48xi32>
    %192 = tpu.iota {dimensions = array<i32: 1>} : vector<24x48xi32>
    %c2_i32_87 = arith.constant 2 : i32
    %193 = vector.broadcast %c2_i32_87 : i32 to vector<24x48xi32>
    %194 = arith.muli %193, %191 : vector<24x48xi32>
    %195 = arith.cmpi eq, %192, %194 : vector<24x48xi32>
    %196 = arith.extui %195 : vector<24x48xi1> to vector<24x48xi32>
    %197 = arith.sitofp %196 : vector<24x48xi32> to vector<24x48xf32>
    %c2_i32_88 = arith.constant 2 : i32
    %198 = vector.broadcast %c2_i32_88 : i32 to vector<24x48xi32>
    %199 = arith.muli %198, %191 : vector<24x48xi32>
    %c1_i32_89 = arith.constant 1 : i32
    %200 = vector.broadcast %c1_i32_89 : i32 to vector<24x48xi32>
    %201 = arith.addi %199, %200 : vector<24x48xi32>
    %202 = arith.cmpi eq, %192, %201 : vector<24x48xi32>
    %203 = arith.extui %202 : vector<24x48xi1> to vector<24x48xi32>
    %204 = arith.sitofp %203 : vector<24x48xi32> to vector<24x48xf32>
    %cst_90 = arith.constant dense<0.000000e+00> : vector<24x32xf32>
    %205 = tpu.matmul %197, %190, %cst_90 {dimension_numbers = #tpu.dot_dimension_numbers<[1], [0], [0], [1], [0, 0, 1, 1], [], []>} : vector<24x48xf32>, vector<48x32xf32>, vector<24x32xf32> -> vector<24x32xf32>
    %cst_91 = arith.constant dense<0.000000e+00> : vector<24x32xf32>
    %206 = tpu.matmul %204, %190, %cst_91 {dimension_numbers = #tpu.dot_dimension_numbers<[1], [0], [0], [1], [0, 0, 1, 1], [], []>} : vector<24x48xf32>, vector<48x32xf32>, vector<24x32xf32> -> vector<24x32xf32>
    %207 = arith.maximumf %205, %206 : vector<24x32xf32>
    %208 = arith.truncf %207 : vector<24x32xf32> to vector<24x32xbf16>
    %c0_92 = arith.constant 0 : index
    %c0_93 = arith.constant 0 : index
    %c0_94 = arith.constant 0 : index
    %c0_95 = arith.constant 0 : index
    %209 = vector.load %arg5[%c0_92, %c0_93, %c0_94, %c0_95] : memref<1x1x24x32xbf16, #tpu.memory_space<vmem>>, vector<1x1x24x32xbf16>
    %210 = vector.shape_cast %209 : vector<1x1x24x32xbf16> to vector<24x32xbf16>
    %211 = vector.shape_cast %208 : vector<24x32xbf16> to vector<1x1x24x32xbf16>
    tpu.vector_store %arg5[%c0_92, %c0_93, %c0_94, %c0_95], %211 {strides = array<i32>} : memref<1x1x24x32xbf16, #tpu.memory_space<vmem>>, vector<1x1x24x32xbf16>,
    return
  }
  func.func @transform_0(%arg0: i32, %arg1: i32) -> (i32, i32, i32, i32) {
    %c0_i32 = arith.constant 0 : i32
    %c0_i32_0 = arith.constant 0 : i32
    %c0_i32_1 = arith.constant 0 : i32
    %c0_i32_2 = arith.constant 0 : i32
    return %arg0, %c0_i32, %c0_i32_0, %c0_i32_1 : i32, i32, i32, i32
  }
  func.func @transform_1(%arg0: i32, %arg1: i32) -> (i32, i32, i32, i32) {
    %c0_i32 = arith.constant 0 : i32
    %c0_i32_0 = arith.constant 0 : i32
    %c0_i32_1 = arith.constant 0 : i32
    %c0_i32_2 = arith.constant 0 : i32
    %c0_i32_3 = arith.constant 0 : i32
    return %c0_i32, %c0_i32_0, %c0_i32_1, %c0_i32_2 : i32, i32, i32, i32
  }
  func.func @transform_2(%arg0: i32, %arg1: i32) -> (i32, i32) {
    %c0_i32 = arith.constant 0 : i32
    %c0_i32_0 = arith.constant 0 : i32
    %c0_i32_1 = arith.constant 0 : i32
    return %c0_i32, %c0_i32_0 : i32, i32
  }
  func.func @transform_3(%arg0: i32, %arg1: i32) -> (i32, i32, i32, i32) {
    %c0_i32 = arith.constant 0 : i32
    %c0_i32_0 = arith.constant 0 : i32
    %c0_i32_1 = arith.constant 0 : i32
    return %arg0, %arg1, %c0_i32, %c0_i32_0 : i32, i32, i32, i32
  }
}

module attributes {stable_mosaic.version = 11 : i64} {
  func.func @_conv_relu_pool_kernel(%arg0: i32, %arg1: i32, %arg2: memref<1x26x26x32xbf16, #tpu.memory_space<vmem>>, %arg3: memref<3x3x32x64xbf16, #tpu.memory_space<vmem>>, %arg4: memref<1x64xf32, #tpu.memory_space<vmem>>, %arg5: memref<1x1x12x64xbf16, #tpu.memory_space<vmem>>) attributes {dimension_semantics = [#tpu.dimension_semantics<parallel>, #tpu.dimension_semantics<arbitrary>], iteration_bounds = array<i64: 2, 12>, scalar_prefetch = 0 : i64, scratch_operands = 0 : i64, tpu.core_type = #tpu.core_type<tc>, window_params = [{transform_indices = @transform_0, window_bounds = array<i64: 1, 26, 26, 32>}, {pipeline_mode = #tpu.pipeline_mode<synchronous>, transform_indices = @transform_1, window_bounds = array<i64: 3, 3, 32, 64>}, {pipeline_mode = #tpu.pipeline_mode<synchronous>, transform_indices = @transform_2, window_bounds = array<i64: 1, 64>}, {transform_indices = @transform_3, window_bounds = array<i64: 1, 1, 12, 64>}]} {
    %c2_i32 = arith.constant 2 : i32
    %0 = arith.muli %c2_i32, %arg1 : i32
    %c0 = arith.constant 0 : index
    %c0_0 = arith.constant 0 : index
    %1 = vector.load %arg4[%c0, %c0_0] : memref<1x64xf32, #tpu.memory_space<vmem>>, vector<1x64xf32>
    %c0_i32 = arith.constant 0 : i32
    %2 = arith.addi %0, %c0_i32 : i32
    %c0_1 = arith.constant 0 : index
    %3 = arith.index_cast %2 : i32 to index
    %c0_2 = arith.constant 0 : index
    %c0_3 = arith.constant 0 : index
    %4 = vector.load %arg2[%c0_1, %3, %c0_2, %c0_3] : memref<1x26x26x32xbf16, #tpu.memory_space<vmem>>, vector<1x1x26x32xbf16>
    %5 = vector.shape_cast %4 : vector<1x1x26x32xbf16> to vector<26x32xbf16>
    %c1_i32 = arith.constant 1 : i32
    %6 = arith.addi %0, %c1_i32 : i32
    %c0_4 = arith.constant 0 : index
    %7 = arith.index_cast %6 : i32 to index
    %c0_5 = arith.constant 0 : index
    %c0_6 = arith.constant 0 : index
    %8 = vector.load %arg2[%c0_4, %7, %c0_5, %c0_6] : memref<1x26x26x32xbf16, #tpu.memory_space<vmem>>, vector<1x1x26x32xbf16>
    %9 = vector.shape_cast %8 : vector<1x1x26x32xbf16> to vector<26x32xbf16>
    %c2_i32_7 = arith.constant 2 : i32
    %10 = arith.addi %0, %c2_i32_7 : i32
    %c0_8 = arith.constant 0 : index
    %11 = arith.index_cast %10 : i32 to index
    %c0_9 = arith.constant 0 : index
    %c0_10 = arith.constant 0 : index
    %12 = vector.load %arg2[%c0_8, %11, %c0_9, %c0_10] : memref<1x26x26x32xbf16, #tpu.memory_space<vmem>>, vector<1x1x26x32xbf16>
    %13 = vector.shape_cast %12 : vector<1x1x26x32xbf16> to vector<26x32xbf16>
    %c3_i32 = arith.constant 3 : i32
    %14 = arith.addi %0, %c3_i32 : i32
    %c0_11 = arith.constant 0 : index
    %15 = arith.index_cast %14 : i32 to index
    %c0_12 = arith.constant 0 : index
    %c0_13 = arith.constant 0 : index
    %16 = vector.load %arg2[%c0_11, %15, %c0_12, %c0_13] : memref<1x26x26x32xbf16, #tpu.memory_space<vmem>>, vector<1x1x26x32xbf16>
    %17 = vector.shape_cast %16 : vector<1x1x26x32xbf16> to vector<26x32xbf16>
    %cst = arith.constant 0.000000e+00 : f32
    %18 = vector.broadcast %cst : f32 to vector<24x64xf32>
    %19 = vector.extract_strided_slice %5 {offsets = [0, 0], sizes = [24, 32], strides = [1, 1]} : vector<26x32xbf16> to vector<24x32xbf16>
    %c0_14 = arith.constant 0 : index
    %c0_15 = arith.constant 0 : index
    %c0_16 = arith.constant 0 : index
    %c0_17 = arith.constant 0 : index
    %20 = vector.load %arg3[%c0_14, %c0_15, %c0_16, %c0_17] : memref<3x3x32x64xbf16, #tpu.memory_space<vmem>>, vector<1x1x32x64xbf16>
    %21 = vector.shape_cast %20 : vector<1x1x32x64xbf16> to vector<32x64xbf16>
    %cst_18 = arith.constant dense<0.000000e+00> : vector<24x64xf32>
    %22 = tpu.matmul %19, %21, %cst_18 {dimension_numbers = #tpu.dot_dimension_numbers<[1], [0], [0], [1], [0, 0, 1, 1], [], []>} : vector<24x32xbf16>, vector<32x64xbf16>, vector<24x64xf32> -> vector<24x64xf32>
    %23 = arith.addf %18, %22 : vector<24x64xf32>
    %24 = vector.extract_strided_slice %5 {offsets = [1, 0], sizes = [24, 32], strides = [1, 1]} : vector<26x32xbf16> to vector<24x32xbf16>
    %c0_19 = arith.constant 0 : index
    %c1 = arith.constant 1 : index
    %c0_20 = arith.constant 0 : index
    %c0_21 = arith.constant 0 : index
    %25 = vector.load %arg3[%c0_19, %c1, %c0_20, %c0_21] : memref<3x3x32x64xbf16, #tpu.memory_space<vmem>>, vector<1x1x32x64xbf16>
    %26 = vector.shape_cast %25 : vector<1x1x32x64xbf16> to vector<32x64xbf16>
    %cst_22 = arith.constant dense<0.000000e+00> : vector<24x64xf32>
    %27 = tpu.matmul %24, %26, %cst_22 {dimension_numbers = #tpu.dot_dimension_numbers<[1], [0], [0], [1], [0, 0, 1, 1], [], []>} : vector<24x32xbf16>, vector<32x64xbf16>, vector<24x64xf32> -> vector<24x64xf32>
    %28 = arith.addf %23, %27 : vector<24x64xf32>
    %29 = vector.extract_strided_slice %5 {offsets = [2, 0], sizes = [24, 32], strides = [1, 1]} : vector<26x32xbf16> to vector<24x32xbf16>
    %c0_23 = arith.constant 0 : index
    %c2 = arith.constant 2 : index
    %c0_24 = arith.constant 0 : index
    %c0_25 = arith.constant 0 : index
    %30 = vector.load %arg3[%c0_23, %c2, %c0_24, %c0_25] : memref<3x3x32x64xbf16, #tpu.memory_space<vmem>>, vector<1x1x32x64xbf16>
    %31 = vector.shape_cast %30 : vector<1x1x32x64xbf16> to vector<32x64xbf16>
    %cst_26 = arith.constant dense<0.000000e+00> : vector<24x64xf32>
    %32 = tpu.matmul %29, %31, %cst_26 {dimension_numbers = #tpu.dot_dimension_numbers<[1], [0], [0], [1], [0, 0, 1, 1], [], []>} : vector<24x32xbf16>, vector<32x64xbf16>, vector<24x64xf32> -> vector<24x64xf32>
    %33 = arith.addf %28, %32 : vector<24x64xf32>
    %34 = vector.extract_strided_slice %9 {offsets = [0, 0], sizes = [24, 32], strides = [1, 1]} : vector<26x32xbf16> to vector<24x32xbf16>
    %c1_27 = arith.constant 1 : index
    %c0_28 = arith.constant 0 : index
    %c0_29 = arith.constant 0 : index
    %c0_30 = arith.constant 0 : index
    %35 = vector.load %arg3[%c1_27, %c0_28, %c0_29, %c0_30] : memref<3x3x32x64xbf16, #tpu.memory_space<vmem>>, vector<1x1x32x64xbf16>
    %36 = vector.shape_cast %35 : vector<1x1x32x64xbf16> to vector<32x64xbf16>
    %cst_31 = arith.constant dense<0.000000e+00> : vector<24x64xf32>
    %37 = tpu.matmul %34, %36, %cst_31 {dimension_numbers = #tpu.dot_dimension_numbers<[1], [0], [0], [1], [0, 0, 1, 1], [], []>} : vector<24x32xbf16>, vector<32x64xbf16>, vector<24x64xf32> -> vector<24x64xf32>
    %38 = arith.addf %33, %37 : vector<24x64xf32>
    %39 = vector.extract_strided_slice %9 {offsets = [1, 0], sizes = [24, 32], strides = [1, 1]} : vector<26x32xbf16> to vector<24x32xbf16>
    %c1_32 = arith.constant 1 : index
    %c1_33 = arith.constant 1 : index
    %c0_34 = arith.constant 0 : index
    %c0_35 = arith.constant 0 : index
    %40 = vector.load %arg3[%c1_32, %c1_33, %c0_34, %c0_35] : memref<3x3x32x64xbf16, #tpu.memory_space<vmem>>, vector<1x1x32x64xbf16>
    %41 = vector.shape_cast %40 : vector<1x1x32x64xbf16> to vector<32x64xbf16>
    %cst_36 = arith.constant dense<0.000000e+00> : vector<24x64xf32>
    %42 = tpu.matmul %39, %41, %cst_36 {dimension_numbers = #tpu.dot_dimension_numbers<[1], [0], [0], [1], [0, 0, 1, 1], [], []>} : vector<24x32xbf16>, vector<32x64xbf16>, vector<24x64xf32> -> vector<24x64xf32>
    %43 = arith.addf %38, %42 : vector<24x64xf32>
    %44 = vector.extract_strided_slice %9 {offsets = [2, 0], sizes = [24, 32], strides = [1, 1]} : vector<26x32xbf16> to vector<24x32xbf16>
    %c1_37 = arith.constant 1 : index
    %c2_38 = arith.constant 2 : index
    %c0_39 = arith.constant 0 : index
    %c0_40 = arith.constant 0 : index
    %45 = vector.load %arg3[%c1_37, %c2_38, %c0_39, %c0_40] : memref<3x3x32x64xbf16, #tpu.memory_space<vmem>>, vector<1x1x32x64xbf16>
    %46 = vector.shape_cast %45 : vector<1x1x32x64xbf16> to vector<32x64xbf16>
    %cst_41 = arith.constant dense<0.000000e+00> : vector<24x64xf32>
    %47 = tpu.matmul %44, %46, %cst_41 {dimension_numbers = #tpu.dot_dimension_numbers<[1], [0], [0], [1], [0, 0, 1, 1], [], []>} : vector<24x32xbf16>, vector<32x64xbf16>, vector<24x64xf32> -> vector<24x64xf32>
    %48 = arith.addf %43, %47 : vector<24x64xf32>
    %49 = vector.extract_strided_slice %13 {offsets = [0, 0], sizes = [24, 32], strides = [1, 1]} : vector<26x32xbf16> to vector<24x32xbf16>
    %c2_42 = arith.constant 2 : index
    %c0_43 = arith.constant 0 : index
    %c0_44 = arith.constant 0 : index
    %c0_45 = arith.constant 0 : index
    %50 = vector.load %arg3[%c2_42, %c0_43, %c0_44, %c0_45] : memref<3x3x32x64xbf16, #tpu.memory_space<vmem>>, vector<1x1x32x64xbf16>
    %51 = vector.shape_cast %50 : vector<1x1x32x64xbf16> to vector<32x64xbf16>
    %cst_46 = arith.constant dense<0.000000e+00> : vector<24x64xf32>
    %52 = tpu.matmul %49, %51, %cst_46 {dimension_numbers = #tpu.dot_dimension_numbers<[1], [0], [0], [1], [0, 0, 1, 1], [], []>} : vector<24x32xbf16>, vector<32x64xbf16>, vector<24x64xf32> -> vector<24x64xf32>
    %53 = arith.addf %48, %52 : vector<24x64xf32>
    %54 = vector.extract_strided_slice %13 {offsets = [1, 0], sizes = [24, 32], strides = [1, 1]} : vector<26x32xbf16> to vector<24x32xbf16>
    %c2_47 = arith.constant 2 : index
    %c1_48 = arith.constant 1 : index
    %c0_49 = arith.constant 0 : index
    %c0_50 = arith.constant 0 : index
    %55 = vector.load %arg3[%c2_47, %c1_48, %c0_49, %c0_50] : memref<3x3x32x64xbf16, #tpu.memory_space<vmem>>, vector<1x1x32x64xbf16>
    %56 = vector.shape_cast %55 : vector<1x1x32x64xbf16> to vector<32x64xbf16>
    %cst_51 = arith.constant dense<0.000000e+00> : vector<24x64xf32>
    %57 = tpu.matmul %54, %56, %cst_51 {dimension_numbers = #tpu.dot_dimension_numbers<[1], [0], [0], [1], [0, 0, 1, 1], [], []>} : vector<24x32xbf16>, vector<32x64xbf16>, vector<24x64xf32> -> vector<24x64xf32>
    %58 = arith.addf %53, %57 : vector<24x64xf32>
    %59 = vector.extract_strided_slice %13 {offsets = [2, 0], sizes = [24, 32], strides = [1, 1]} : vector<26x32xbf16> to vector<24x32xbf16>
    %c2_52 = arith.constant 2 : index
    %c2_53 = arith.constant 2 : index
    %c0_54 = arith.constant 0 : index
    %c0_55 = arith.constant 0 : index
    %60 = vector.load %arg3[%c2_52, %c2_53, %c0_54, %c0_55] : memref<3x3x32x64xbf16, #tpu.memory_space<vmem>>, vector<1x1x32x64xbf16>
    %61 = vector.shape_cast %60 : vector<1x1x32x64xbf16> to vector<32x64xbf16>
    %cst_56 = arith.constant dense<0.000000e+00> : vector<24x64xf32>
    %62 = tpu.matmul %59, %61, %cst_56 {dimension_numbers = #tpu.dot_dimension_numbers<[1], [0], [0], [1], [0, 0, 1, 1], [], []>} : vector<24x32xbf16>, vector<32x64xbf16>, vector<24x64xf32> -> vector<24x64xf32>
    %63 = arith.addf %58, %62 : vector<24x64xf32>
    %64 = vector.broadcast %1 : vector<1x64xf32> to vector<24x64xf32>
    %65 = arith.addf %63, %64 : vector<24x64xf32>
    %cst_57 = arith.constant 0.000000e+00 : f32
    %66 = vector.broadcast %cst_57 : f32 to vector<24x64xf32>
    %67 = arith.maximumf %65, %66 : vector<24x64xf32>
    %cst_58 = arith.constant 0.000000e+00 : f32
    %68 = vector.broadcast %cst_58 : f32 to vector<24x64xf32>
    %69 = vector.extract_strided_slice %9 {offsets = [0, 0], sizes = [24, 32], strides = [1, 1]} : vector<26x32xbf16> to vector<24x32xbf16>
    %c0_59 = arith.constant 0 : index
    %c0_60 = arith.constant 0 : index
    %c0_61 = arith.constant 0 : index
    %c0_62 = arith.constant 0 : index
    %70 = vector.load %arg3[%c0_59, %c0_60, %c0_61, %c0_62] : memref<3x3x32x64xbf16, #tpu.memory_space<vmem>>, vector<1x1x32x64xbf16>
    %71 = vector.shape_cast %70 : vector<1x1x32x64xbf16> to vector<32x64xbf16>
    %cst_63 = arith.constant dense<0.000000e+00> : vector<24x64xf32>
    %72 = tpu.matmul %69, %71, %cst_63 {dimension_numbers = #tpu.dot_dimension_numbers<[1], [0], [0], [1], [0, 0, 1, 1], [], []>} : vector<24x32xbf16>, vector<32x64xbf16>, vector<24x64xf32> -> vector<24x64xf32>
    %73 = arith.addf %68, %72 : vector<24x64xf32>
    %74 = vector.extract_strided_slice %9 {offsets = [1, 0], sizes = [24, 32], strides = [1, 1]} : vector<26x32xbf16> to vector<24x32xbf16>
    %c0_64 = arith.constant 0 : index
    %c1_65 = arith.constant 1 : index
    %c0_66 = arith.constant 0 : index
    %c0_67 = arith.constant 0 : index
    %75 = vector.load %arg3[%c0_64, %c1_65, %c0_66, %c0_67] : memref<3x3x32x64xbf16, #tpu.memory_space<vmem>>, vector<1x1x32x64xbf16>
    %76 = vector.shape_cast %75 : vector<1x1x32x64xbf16> to vector<32x64xbf16>
    %cst_68 = arith.constant dense<0.000000e+00> : vector<24x64xf32>
    %77 = tpu.matmul %74, %76, %cst_68 {dimension_numbers = #tpu.dot_dimension_numbers<[1], [0], [0], [1], [0, 0, 1, 1], [], []>} : vector<24x32xbf16>, vector<32x64xbf16>, vector<24x64xf32> -> vector<24x64xf32>
    %78 = arith.addf %73, %77 : vector<24x64xf32>
    %79 = vector.extract_strided_slice %9 {offsets = [2, 0], sizes = [24, 32], strides = [1, 1]} : vector<26x32xbf16> to vector<24x32xbf16>
    %c0_69 = arith.constant 0 : index
    %c2_70 = arith.constant 2 : index
    %c0_71 = arith.constant 0 : index
    %c0_72 = arith.constant 0 : index
    %80 = vector.load %arg3[%c0_69, %c2_70, %c0_71, %c0_72] : memref<3x3x32x64xbf16, #tpu.memory_space<vmem>>, vector<1x1x32x64xbf16>
    %81 = vector.shape_cast %80 : vector<1x1x32x64xbf16> to vector<32x64xbf16>
    %cst_73 = arith.constant dense<0.000000e+00> : vector<24x64xf32>
    %82 = tpu.matmul %79, %81, %cst_73 {dimension_numbers = #tpu.dot_dimension_numbers<[1], [0], [0], [1], [0, 0, 1, 1], [], []>} : vector<24x32xbf16>, vector<32x64xbf16>, vector<24x64xf32> -> vector<24x64xf32>
    %83 = arith.addf %78, %82 : vector<24x64xf32>
    %84 = vector.extract_strided_slice %13 {offsets = [0, 0], sizes = [24, 32], strides = [1, 1]} : vector<26x32xbf16> to vector<24x32xbf16>
    %c1_74 = arith.constant 1 : index
    %c0_75 = arith.constant 0 : index
    %c0_76 = arith.constant 0 : index
    %c0_77 = arith.constant 0 : index
    %85 = vector.load %arg3[%c1_74, %c0_75, %c0_76, %c0_77] : memref<3x3x32x64xbf16, #tpu.memory_space<vmem>>, vector<1x1x32x64xbf16>
    %86 = vector.shape_cast %85 : vector<1x1x32x64xbf16> to vector<32x64xbf16>
    %cst_78 = arith.constant dense<0.000000e+00> : vector<24x64xf32>
    %87 = tpu.matmul %84, %86, %cst_78 {dimension_numbers = #tpu.dot_dimension_numbers<[1], [0], [0], [1], [0, 0, 1, 1], [], []>} : vector<24x32xbf16>, vector<32x64xbf16>, vector<24x64xf32> -> vector<24x64xf32>
    %88 = arith.addf %83, %87 : vector<24x64xf32>
    %89 = vector.extract_strided_slice %13 {offsets = [1, 0], sizes = [24, 32], strides = [1, 1]} : vector<26x32xbf16> to vector<24x32xbf16>
    %c1_79 = arith.constant 1 : index
    %c1_80 = arith.constant 1 : index
    %c0_81 = arith.constant 0 : index
    %c0_82 = arith.constant 0 : index
    %90 = vector.load %arg3[%c1_79, %c1_80, %c0_81, %c0_82] : memref<3x3x32x64xbf16, #tpu.memory_space<vmem>>, vector<1x1x32x64xbf16>
    %91 = vector.shape_cast %90 : vector<1x1x32x64xbf16> to vector<32x64xbf16>
    %cst_83 = arith.constant dense<0.000000e+00> : vector<24x64xf32>
    %92 = tpu.matmul %89, %91, %cst_83 {dimension_numbers = #tpu.dot_dimension_numbers<[1], [0], [0], [1], [0, 0, 1, 1], [], []>} : vector<24x32xbf16>, vector<32x64xbf16>, vector<24x64xf32> -> vector<24x64xf32>
    %93 = arith.addf %88, %92 : vector<24x64xf32>
    %94 = vector.extract_strided_slice %13 {offsets = [2, 0], sizes = [24, 32], strides = [1, 1]} : vector<26x32xbf16> to vector<24x32xbf16>
    %c1_84 = arith.constant 1 : index
    %c2_85 = arith.constant 2 : index
    %c0_86 = arith.constant 0 : index
    %c0_87 = arith.constant 0 : index
    %95 = vector.load %arg3[%c1_84, %c2_85, %c0_86, %c0_87] : memref<3x3x32x64xbf16, #tpu.memory_space<vmem>>, vector<1x1x32x64xbf16>
    %96 = vector.shape_cast %95 : vector<1x1x32x64xbf16> to vector<32x64xbf16>
    %cst_88 = arith.constant dense<0.000000e+00> : vector<24x64xf32>
    %97 = tpu.matmul %94, %96, %cst_88 {dimension_numbers = #tpu.dot_dimension_numbers<[1], [0], [0], [1], [0, 0, 1, 1], [], []>} : vector<24x32xbf16>, vector<32x64xbf16>, vector<24x64xf32> -> vector<24x64xf32>
    %98 = arith.addf %93, %97 : vector<24x64xf32>
    %99 = vector.extract_strided_slice %17 {offsets = [0, 0], sizes = [24, 32], strides = [1, 1]} : vector<26x32xbf16> to vector<24x32xbf16>
    %c2_89 = arith.constant 2 : index
    %c0_90 = arith.constant 0 : index
    %c0_91 = arith.constant 0 : index
    %c0_92 = arith.constant 0 : index
    %100 = vector.load %arg3[%c2_89, %c0_90, %c0_91, %c0_92] : memref<3x3x32x64xbf16, #tpu.memory_space<vmem>>, vector<1x1x32x64xbf16>
    %101 = vector.shape_cast %100 : vector<1x1x32x64xbf16> to vector<32x64xbf16>
    %cst_93 = arith.constant dense<0.000000e+00> : vector<24x64xf32>
    %102 = tpu.matmul %99, %101, %cst_93 {dimension_numbers = #tpu.dot_dimension_numbers<[1], [0], [0], [1], [0, 0, 1, 1], [], []>} : vector<24x32xbf16>, vector<32x64xbf16>, vector<24x64xf32> -> vector<24x64xf32>
    %103 = arith.addf %98, %102 : vector<24x64xf32>
    %104 = vector.extract_strided_slice %17 {offsets = [1, 0], sizes = [24, 32], strides = [1, 1]} : vector<26x32xbf16> to vector<24x32xbf16>
    %c2_94 = arith.constant 2 : index
    %c1_95 = arith.constant 1 : index
    %c0_96 = arith.constant 0 : index
    %c0_97 = arith.constant 0 : index
    %105 = vector.load %arg3[%c2_94, %c1_95, %c0_96, %c0_97] : memref<3x3x32x64xbf16, #tpu.memory_space<vmem>>, vector<1x1x32x64xbf16>
    %106 = vector.shape_cast %105 : vector<1x1x32x64xbf16> to vector<32x64xbf16>
    %cst_98 = arith.constant dense<0.000000e+00> : vector<24x64xf32>
    %107 = tpu.matmul %104, %106, %cst_98 {dimension_numbers = #tpu.dot_dimension_numbers<[1], [0], [0], [1], [0, 0, 1, 1], [], []>} : vector<24x32xbf16>, vector<32x64xbf16>, vector<24x64xf32> -> vector<24x64xf32>
    %108 = arith.addf %103, %107 : vector<24x64xf32>
    %109 = vector.extract_strided_slice %17 {offsets = [2, 0], sizes = [24, 32], strides = [1, 1]} : vector<26x32xbf16> to vector<24x32xbf16>
    %c2_99 = arith.constant 2 : index
    %c2_100 = arith.constant 2 : index
    %c0_101 = arith.constant 0 : index
    %c0_102 = arith.constant 0 : index
    %110 = vector.load %arg3[%c2_99, %c2_100, %c0_101, %c0_102] : memref<3x3x32x64xbf16, #tpu.memory_space<vmem>>, vector<1x1x32x64xbf16>
    %111 = vector.shape_cast %110 : vector<1x1x32x64xbf16> to vector<32x64xbf16>
    %cst_103 = arith.constant dense<0.000000e+00> : vector<24x64xf32>
    %112 = tpu.matmul %109, %111, %cst_103 {dimension_numbers = #tpu.dot_dimension_numbers<[1], [0], [0], [1], [0, 0, 1, 1], [], []>} : vector<24x32xbf16>, vector<32x64xbf16>, vector<24x64xf32> -> vector<24x64xf32>
    %113 = arith.addf %108, %112 : vector<24x64xf32>
    %114 = vector.broadcast %1 : vector<1x64xf32> to vector<24x64xf32>
    %115 = arith.addf %113, %114 : vector<24x64xf32>
    %cst_104 = arith.constant 0.000000e+00 : f32
    %116 = vector.broadcast %cst_104 : f32 to vector<24x64xf32>
    %117 = arith.maximumf %115, %116 : vector<24x64xf32>
    %118 = arith.maximumf %67, %117 : vector<24x64xf32>
    %119 = tpu.iota {dimensions = array<i32: 0>} : vector<12x24xi32>
    %120 = tpu.iota {dimensions = array<i32: 1>} : vector<12x24xi32>
    %c2_i32_105 = arith.constant 2 : i32
    %121 = vector.broadcast %c2_i32_105 : i32 to vector<12x24xi32>
    %122 = arith.muli %121, %119 : vector<12x24xi32>
    %123 = arith.cmpi eq, %120, %122 : vector<12x24xi32>
    %124 = arith.extui %123 : vector<12x24xi1> to vector<12x24xi32>
    %125 = arith.sitofp %124 : vector<12x24xi32> to vector<12x24xf32>
    %c2_i32_106 = arith.constant 2 : i32
    %126 = vector.broadcast %c2_i32_106 : i32 to vector<12x24xi32>
    %127 = arith.muli %126, %119 : vector<12x24xi32>
    %c1_i32_107 = arith.constant 1 : i32
    %128 = vector.broadcast %c1_i32_107 : i32 to vector<12x24xi32>
    %129 = arith.addi %127, %128 : vector<12x24xi32>
    %130 = arith.cmpi eq, %120, %129 : vector<12x24xi32>
    %131 = arith.extui %130 : vector<12x24xi1> to vector<12x24xi32>
    %132 = arith.sitofp %131 : vector<12x24xi32> to vector<12x24xf32>
    %cst_108 = arith.constant dense<0.000000e+00> : vector<12x64xf32>
    %133 = tpu.matmul %125, %118, %cst_108 {dimension_numbers = #tpu.dot_dimension_numbers<[1], [0], [0], [1], [0, 0, 1, 1], [], []>} : vector<12x24xf32>, vector<24x64xf32>, vector<12x64xf32> -> vector<12x64xf32>
    %cst_109 = arith.constant dense<0.000000e+00> : vector<12x64xf32>
    %134 = tpu.matmul %132, %118, %cst_109 {dimension_numbers = #tpu.dot_dimension_numbers<[1], [0], [0], [1], [0, 0, 1, 1], [], []>} : vector<12x24xf32>, vector<24x64xf32>, vector<12x64xf32> -> vector<12x64xf32>
    %135 = arith.maximumf %133, %134 : vector<12x64xf32>
    %136 = arith.truncf %135 : vector<12x64xf32> to vector<12x64xbf16>
    %c0_110 = arith.constant 0 : index
    %c0_111 = arith.constant 0 : index
    %c0_112 = arith.constant 0 : index
    %c0_113 = arith.constant 0 : index
    %137 = vector.load %arg5[%c0_110, %c0_111, %c0_112, %c0_113] : memref<1x1x12x64xbf16, #tpu.memory_space<vmem>>, vector<1x1x12x64xbf16>
    %138 = vector.shape_cast %137 : vector<1x1x12x64xbf16> to vector<12x64xbf16>
    %139 = vector.shape_cast %136 : vector<12x64xbf16> to vector<1x1x12x64xbf16>
    tpu.vector_store %arg5[%c0_110, %c0_111, %c0_112, %c0_113], %139 {strides = array<i32>} : memref<1x1x12x64xbf16, #tpu.memory_space<vmem>>, vector<1x1x12x64xbf16>,
    return
  }
  func.func @transform_0(%arg0: i32, %arg1: i32) -> (i32, i32, i32, i32) {
    %c0_i32 = arith.constant 0 : i32
    %c0_i32_0 = arith.constant 0 : i32
    %c0_i32_1 = arith.constant 0 : i32
    %c0_i32_2 = arith.constant 0 : i32
    return %arg0, %c0_i32, %c0_i32_0, %c0_i32_1 : i32, i32, i32, i32
  }
  func.func @transform_1(%arg0: i32, %arg1: i32) -> (i32, i32, i32, i32) {
    %c0_i32 = arith.constant 0 : i32
    %c0_i32_0 = arith.constant 0 : i32
    %c0_i32_1 = arith.constant 0 : i32
    %c0_i32_2 = arith.constant 0 : i32
    %c0_i32_3 = arith.constant 0 : i32
    return %c0_i32, %c0_i32_0, %c0_i32_1, %c0_i32_2 : i32, i32, i32, i32
  }
  func.func @transform_2(%arg0: i32, %arg1: i32) -> (i32, i32) {
    %c0_i32 = arith.constant 0 : i32
    %c0_i32_0 = arith.constant 0 : i32
    %c0_i32_1 = arith.constant 0 : i32
    return %c0_i32, %c0_i32_0 : i32, i32
  }
  func.func @transform_3(%arg0: i32, %arg1: i32) -> (i32, i32, i32, i32) {
    %c0_i32 = arith.constant 0 : i32
    %c0_i32_0 = arith.constant 0 : i32
    %c0_i32_1 = arith.constant 0 : i32
    return %arg0, %arg1, %c0_i32, %c0_i32_0 : i32, i32, i32, i32
  }
}

module attributes {stable_mosaic.version = 11 : i64} {
  func.func @_conv_relu_pool_kernel(%arg0: i32, %arg1: i32, %arg2: memref<1x14x14x64xbf16, #tpu.memory_space<vmem>>, %arg3: memref<3x3x64x128xbf16, #tpu.memory_space<vmem>>, %arg4: memref<1x128xf32, #tpu.memory_space<vmem>>, %arg5: memref<1x1x6x128xbf16, #tpu.memory_space<vmem>>) attributes {dimension_semantics = [#tpu.dimension_semantics<parallel>, #tpu.dimension_semantics<arbitrary>], iteration_bounds = array<i64: 2, 6>, scalar_prefetch = 0 : i64, scratch_operands = 0 : i64, tpu.core_type = #tpu.core_type<tc>, window_params = [{transform_indices = @transform_0, window_bounds = array<i64: 1, 14, 14, 64>}, {pipeline_mode = #tpu.pipeline_mode<synchronous>, transform_indices = @transform_1, window_bounds = array<i64: 3, 3, 64, 128>}, {pipeline_mode = #tpu.pipeline_mode<synchronous>, transform_indices = @transform_2, window_bounds = array<i64: 1, 128>}, {transform_indices = @transform_3, window_bounds = array<i64: 1, 1, 6, 128>}]} {
    %c2_i32 = arith.constant 2 : i32
    %0 = arith.muli %c2_i32, %arg1 : i32
    %c0 = arith.constant 0 : index
    %c0_0 = arith.constant 0 : index
    %1 = vector.load %arg4[%c0, %c0_0] : memref<1x128xf32, #tpu.memory_space<vmem>>, vector<1x128xf32>
    %c0_i32 = arith.constant 0 : i32
    %2 = arith.addi %0, %c0_i32 : i32
    %c0_1 = arith.constant 0 : index
    %3 = arith.index_cast %2 : i32 to index
    %c0_2 = arith.constant 0 : index
    %c0_3 = arith.constant 0 : index
    %4 = vector.load %arg2[%c0_1, %3, %c0_2, %c0_3] : memref<1x14x14x64xbf16, #tpu.memory_space<vmem>>, vector<1x1x14x64xbf16>
    %5 = vector.shape_cast %4 : vector<1x1x14x64xbf16> to vector<14x64xbf16>
    %c1_i32 = arith.constant 1 : i32
    %6 = arith.addi %0, %c1_i32 : i32
    %c0_4 = arith.constant 0 : index
    %7 = arith.index_cast %6 : i32 to index
    %c0_5 = arith.constant 0 : index
    %c0_6 = arith.constant 0 : index
    %8 = vector.load %arg2[%c0_4, %7, %c0_5, %c0_6] : memref<1x14x14x64xbf16, #tpu.memory_space<vmem>>, vector<1x1x14x64xbf16>
    %9 = vector.shape_cast %8 : vector<1x1x14x64xbf16> to vector<14x64xbf16>
    %c2_i32_7 = arith.constant 2 : i32
    %10 = arith.addi %0, %c2_i32_7 : i32
    %c0_8 = arith.constant 0 : index
    %11 = arith.index_cast %10 : i32 to index
    %c0_9 = arith.constant 0 : index
    %c0_10 = arith.constant 0 : index
    %12 = vector.load %arg2[%c0_8, %11, %c0_9, %c0_10] : memref<1x14x14x64xbf16, #tpu.memory_space<vmem>>, vector<1x1x14x64xbf16>
    %13 = vector.shape_cast %12 : vector<1x1x14x64xbf16> to vector<14x64xbf16>
    %c3_i32 = arith.constant 3 : i32
    %14 = arith.addi %0, %c3_i32 : i32
    %c0_11 = arith.constant 0 : index
    %15 = arith.index_cast %14 : i32 to index
    %c0_12 = arith.constant 0 : index
    %c0_13 = arith.constant 0 : index
    %16 = vector.load %arg2[%c0_11, %15, %c0_12, %c0_13] : memref<1x14x14x64xbf16, #tpu.memory_space<vmem>>, vector<1x1x14x64xbf16>
    %17 = vector.shape_cast %16 : vector<1x1x14x64xbf16> to vector<14x64xbf16>
    %cst = arith.constant 0.000000e+00 : f32
    %18 = vector.broadcast %cst : f32 to vector<12x128xf32>
    %19 = vector.extract_strided_slice %5 {offsets = [0, 0], sizes = [12, 64], strides = [1, 1]} : vector<14x64xbf16> to vector<12x64xbf16>
    %c0_14 = arith.constant 0 : index
    %c0_15 = arith.constant 0 : index
    %c0_16 = arith.constant 0 : index
    %c0_17 = arith.constant 0 : index
    %20 = vector.load %arg3[%c0_14, %c0_15, %c0_16, %c0_17] : memref<3x3x64x128xbf16, #tpu.memory_space<vmem>>, vector<1x1x64x128xbf16>
    %21 = vector.shape_cast %20 : vector<1x1x64x128xbf16> to vector<64x128xbf16>
    %cst_18 = arith.constant dense<0.000000e+00> : vector<12x128xf32>
    %22 = tpu.matmul %19, %21, %cst_18 {dimension_numbers = #tpu.dot_dimension_numbers<[1], [0], [0], [1], [0, 0, 1, 1], [], []>} : vector<12x64xbf16>, vector<64x128xbf16>, vector<12x128xf32> -> vector<12x128xf32>
    %23 = arith.addf %18, %22 : vector<12x128xf32>
    %24 = vector.extract_strided_slice %5 {offsets = [1, 0], sizes = [12, 64], strides = [1, 1]} : vector<14x64xbf16> to vector<12x64xbf16>
    %c0_19 = arith.constant 0 : index
    %c1 = arith.constant 1 : index
    %c0_20 = arith.constant 0 : index
    %c0_21 = arith.constant 0 : index
    %25 = vector.load %arg3[%c0_19, %c1, %c0_20, %c0_21] : memref<3x3x64x128xbf16, #tpu.memory_space<vmem>>, vector<1x1x64x128xbf16>
    %26 = vector.shape_cast %25 : vector<1x1x64x128xbf16> to vector<64x128xbf16>
    %cst_22 = arith.constant dense<0.000000e+00> : vector<12x128xf32>
    %27 = tpu.matmul %24, %26, %cst_22 {dimension_numbers = #tpu.dot_dimension_numbers<[1], [0], [0], [1], [0, 0, 1, 1], [], []>} : vector<12x64xbf16>, vector<64x128xbf16>, vector<12x128xf32> -> vector<12x128xf32>
    %28 = arith.addf %23, %27 : vector<12x128xf32>
    %29 = vector.extract_strided_slice %5 {offsets = [2, 0], sizes = [12, 64], strides = [1, 1]} : vector<14x64xbf16> to vector<12x64xbf16>
    %c0_23 = arith.constant 0 : index
    %c2 = arith.constant 2 : index
    %c0_24 = arith.constant 0 : index
    %c0_25 = arith.constant 0 : index
    %30 = vector.load %arg3[%c0_23, %c2, %c0_24, %c0_25] : memref<3x3x64x128xbf16, #tpu.memory_space<vmem>>, vector<1x1x64x128xbf16>
    %31 = vector.shape_cast %30 : vector<1x1x64x128xbf16> to vector<64x128xbf16>
    %cst_26 = arith.constant dense<0.000000e+00> : vector<12x128xf32>
    %32 = tpu.matmul %29, %31, %cst_26 {dimension_numbers = #tpu.dot_dimension_numbers<[1], [0], [0], [1], [0, 0, 1, 1], [], []>} : vector<12x64xbf16>, vector<64x128xbf16>, vector<12x128xf32> -> vector<12x128xf32>
    %33 = arith.addf %28, %32 : vector<12x128xf32>
    %34 = vector.extract_strided_slice %9 {offsets = [0, 0], sizes = [12, 64], strides = [1, 1]} : vector<14x64xbf16> to vector<12x64xbf16>
    %c1_27 = arith.constant 1 : index
    %c0_28 = arith.constant 0 : index
    %c0_29 = arith.constant 0 : index
    %c0_30 = arith.constant 0 : index
    %35 = vector.load %arg3[%c1_27, %c0_28, %c0_29, %c0_30] : memref<3x3x64x128xbf16, #tpu.memory_space<vmem>>, vector<1x1x64x128xbf16>
    %36 = vector.shape_cast %35 : vector<1x1x64x128xbf16> to vector<64x128xbf16>
    %cst_31 = arith.constant dense<0.000000e+00> : vector<12x128xf32>
    %37 = tpu.matmul %34, %36, %cst_31 {dimension_numbers = #tpu.dot_dimension_numbers<[1], [0], [0], [1], [0, 0, 1, 1], [], []>} : vector<12x64xbf16>, vector<64x128xbf16>, vector<12x128xf32> -> vector<12x128xf32>
    %38 = arith.addf %33, %37 : vector<12x128xf32>
    %39 = vector.extract_strided_slice %9 {offsets = [1, 0], sizes = [12, 64], strides = [1, 1]} : vector<14x64xbf16> to vector<12x64xbf16>
    %c1_32 = arith.constant 1 : index
    %c1_33 = arith.constant 1 : index
    %c0_34 = arith.constant 0 : index
    %c0_35 = arith.constant 0 : index
    %40 = vector.load %arg3[%c1_32, %c1_33, %c0_34, %c0_35] : memref<3x3x64x128xbf16, #tpu.memory_space<vmem>>, vector<1x1x64x128xbf16>
    %41 = vector.shape_cast %40 : vector<1x1x64x128xbf16> to vector<64x128xbf16>
    %cst_36 = arith.constant dense<0.000000e+00> : vector<12x128xf32>
    %42 = tpu.matmul %39, %41, %cst_36 {dimension_numbers = #tpu.dot_dimension_numbers<[1], [0], [0], [1], [0, 0, 1, 1], [], []>} : vector<12x64xbf16>, vector<64x128xbf16>, vector<12x128xf32> -> vector<12x128xf32>
    %43 = arith.addf %38, %42 : vector<12x128xf32>
    %44 = vector.extract_strided_slice %9 {offsets = [2, 0], sizes = [12, 64], strides = [1, 1]} : vector<14x64xbf16> to vector<12x64xbf16>
    %c1_37 = arith.constant 1 : index
    %c2_38 = arith.constant 2 : index
    %c0_39 = arith.constant 0 : index
    %c0_40 = arith.constant 0 : index
    %45 = vector.load %arg3[%c1_37, %c2_38, %c0_39, %c0_40] : memref<3x3x64x128xbf16, #tpu.memory_space<vmem>>, vector<1x1x64x128xbf16>
    %46 = vector.shape_cast %45 : vector<1x1x64x128xbf16> to vector<64x128xbf16>
    %cst_41 = arith.constant dense<0.000000e+00> : vector<12x128xf32>
    %47 = tpu.matmul %44, %46, %cst_41 {dimension_numbers = #tpu.dot_dimension_numbers<[1], [0], [0], [1], [0, 0, 1, 1], [], []>} : vector<12x64xbf16>, vector<64x128xbf16>, vector<12x128xf32> -> vector<12x128xf32>
    %48 = arith.addf %43, %47 : vector<12x128xf32>
    %49 = vector.extract_strided_slice %13 {offsets = [0, 0], sizes = [12, 64], strides = [1, 1]} : vector<14x64xbf16> to vector<12x64xbf16>
    %c2_42 = arith.constant 2 : index
    %c0_43 = arith.constant 0 : index
    %c0_44 = arith.constant 0 : index
    %c0_45 = arith.constant 0 : index
    %50 = vector.load %arg3[%c2_42, %c0_43, %c0_44, %c0_45] : memref<3x3x64x128xbf16, #tpu.memory_space<vmem>>, vector<1x1x64x128xbf16>
    %51 = vector.shape_cast %50 : vector<1x1x64x128xbf16> to vector<64x128xbf16>
    %cst_46 = arith.constant dense<0.000000e+00> : vector<12x128xf32>
    %52 = tpu.matmul %49, %51, %cst_46 {dimension_numbers = #tpu.dot_dimension_numbers<[1], [0], [0], [1], [0, 0, 1, 1], [], []>} : vector<12x64xbf16>, vector<64x128xbf16>, vector<12x128xf32> -> vector<12x128xf32>
    %53 = arith.addf %48, %52 : vector<12x128xf32>
    %54 = vector.extract_strided_slice %13 {offsets = [1, 0], sizes = [12, 64], strides = [1, 1]} : vector<14x64xbf16> to vector<12x64xbf16>
    %c2_47 = arith.constant 2 : index
    %c1_48 = arith.constant 1 : index
    %c0_49 = arith.constant 0 : index
    %c0_50 = arith.constant 0 : index
    %55 = vector.load %arg3[%c2_47, %c1_48, %c0_49, %c0_50] : memref<3x3x64x128xbf16, #tpu.memory_space<vmem>>, vector<1x1x64x128xbf16>
    %56 = vector.shape_cast %55 : vector<1x1x64x128xbf16> to vector<64x128xbf16>
    %cst_51 = arith.constant dense<0.000000e+00> : vector<12x128xf32>
    %57 = tpu.matmul %54, %56, %cst_51 {dimension_numbers = #tpu.dot_dimension_numbers<[1], [0], [0], [1], [0, 0, 1, 1], [], []>} : vector<12x64xbf16>, vector<64x128xbf16>, vector<12x128xf32> -> vector<12x128xf32>
    %58 = arith.addf %53, %57 : vector<12x128xf32>
    %59 = vector.extract_strided_slice %13 {offsets = [2, 0], sizes = [12, 64], strides = [1, 1]} : vector<14x64xbf16> to vector<12x64xbf16>
    %c2_52 = arith.constant 2 : index
    %c2_53 = arith.constant 2 : index
    %c0_54 = arith.constant 0 : index
    %c0_55 = arith.constant 0 : index
    %60 = vector.load %arg3[%c2_52, %c2_53, %c0_54, %c0_55] : memref<3x3x64x128xbf16, #tpu.memory_space<vmem>>, vector<1x1x64x128xbf16>
    %61 = vector.shape_cast %60 : vector<1x1x64x128xbf16> to vector<64x128xbf16>
    %cst_56 = arith.constant dense<0.000000e+00> : vector<12x128xf32>
    %62 = tpu.matmul %59, %61, %cst_56 {dimension_numbers = #tpu.dot_dimension_numbers<[1], [0], [0], [1], [0, 0, 1, 1], [], []>} : vector<12x64xbf16>, vector<64x128xbf16>, vector<12x128xf32> -> vector<12x128xf32>
    %63 = arith.addf %58, %62 : vector<12x128xf32>
    %64 = vector.broadcast %1 : vector<1x128xf32> to vector<12x128xf32>
    %65 = arith.addf %63, %64 : vector<12x128xf32>
    %cst_57 = arith.constant 0.000000e+00 : f32
    %66 = vector.broadcast %cst_57 : f32 to vector<12x128xf32>
    %67 = arith.maximumf %65, %66 : vector<12x128xf32>
    %cst_58 = arith.constant 0.000000e+00 : f32
    %68 = vector.broadcast %cst_58 : f32 to vector<12x128xf32>
    %69 = vector.extract_strided_slice %9 {offsets = [0, 0], sizes = [12, 64], strides = [1, 1]} : vector<14x64xbf16> to vector<12x64xbf16>
    %c0_59 = arith.constant 0 : index
    %c0_60 = arith.constant 0 : index
    %c0_61 = arith.constant 0 : index
    %c0_62 = arith.constant 0 : index
    %70 = vector.load %arg3[%c0_59, %c0_60, %c0_61, %c0_62] : memref<3x3x64x128xbf16, #tpu.memory_space<vmem>>, vector<1x1x64x128xbf16>
    %71 = vector.shape_cast %70 : vector<1x1x64x128xbf16> to vector<64x128xbf16>
    %cst_63 = arith.constant dense<0.000000e+00> : vector<12x128xf32>
    %72 = tpu.matmul %69, %71, %cst_63 {dimension_numbers = #tpu.dot_dimension_numbers<[1], [0], [0], [1], [0, 0, 1, 1], [], []>} : vector<12x64xbf16>, vector<64x128xbf16>, vector<12x128xf32> -> vector<12x128xf32>
    %73 = arith.addf %68, %72 : vector<12x128xf32>
    %74 = vector.extract_strided_slice %9 {offsets = [1, 0], sizes = [12, 64], strides = [1, 1]} : vector<14x64xbf16> to vector<12x64xbf16>
    %c0_64 = arith.constant 0 : index
    %c1_65 = arith.constant 1 : index
    %c0_66 = arith.constant 0 : index
    %c0_67 = arith.constant 0 : index
    %75 = vector.load %arg3[%c0_64, %c1_65, %c0_66, %c0_67] : memref<3x3x64x128xbf16, #tpu.memory_space<vmem>>, vector<1x1x64x128xbf16>
    %76 = vector.shape_cast %75 : vector<1x1x64x128xbf16> to vector<64x128xbf16>
    %cst_68 = arith.constant dense<0.000000e+00> : vector<12x128xf32>
    %77 = tpu.matmul %74, %76, %cst_68 {dimension_numbers = #tpu.dot_dimension_numbers<[1], [0], [0], [1], [0, 0, 1, 1], [], []>} : vector<12x64xbf16>, vector<64x128xbf16>, vector<12x128xf32> -> vector<12x128xf32>
    %78 = arith.addf %73, %77 : vector<12x128xf32>
    %79 = vector.extract_strided_slice %9 {offsets = [2, 0], sizes = [12, 64], strides = [1, 1]} : vector<14x64xbf16> to vector<12x64xbf16>
    %c0_69 = arith.constant 0 : index
    %c2_70 = arith.constant 2 : index
    %c0_71 = arith.constant 0 : index
    %c0_72 = arith.constant 0 : index
    %80 = vector.load %arg3[%c0_69, %c2_70, %c0_71, %c0_72] : memref<3x3x64x128xbf16, #tpu.memory_space<vmem>>, vector<1x1x64x128xbf16>
    %81 = vector.shape_cast %80 : vector<1x1x64x128xbf16> to vector<64x128xbf16>
    %cst_73 = arith.constant dense<0.000000e+00> : vector<12x128xf32>
    %82 = tpu.matmul %79, %81, %cst_73 {dimension_numbers = #tpu.dot_dimension_numbers<[1], [0], [0], [1], [0, 0, 1, 1], [], []>} : vector<12x64xbf16>, vector<64x128xbf16>, vector<12x128xf32> -> vector<12x128xf32>
    %83 = arith.addf %78, %82 : vector<12x128xf32>
    %84 = vector.extract_strided_slice %13 {offsets = [0, 0], sizes = [12, 64], strides = [1, 1]} : vector<14x64xbf16> to vector<12x64xbf16>
    %c1_74 = arith.constant 1 : index
    %c0_75 = arith.constant 0 : index
    %c0_76 = arith.constant 0 : index
    %c0_77 = arith.constant 0 : index
    %85 = vector.load %arg3[%c1_74, %c0_75, %c0_76, %c0_77] : memref<3x3x64x128xbf16, #tpu.memory_space<vmem>>, vector<1x1x64x128xbf16>
    %86 = vector.shape_cast %85 : vector<1x1x64x128xbf16> to vector<64x128xbf16>
    %cst_78 = arith.constant dense<0.000000e+00> : vector<12x128xf32>
    %87 = tpu.matmul %84, %86, %cst_78 {dimension_numbers = #tpu.dot_dimension_numbers<[1], [0], [0], [1], [0, 0, 1, 1], [], []>} : vector<12x64xbf16>, vector<64x128xbf16>, vector<12x128xf32> -> vector<12x128xf32>
    %88 = arith.addf %83, %87 : vector<12x128xf32>
    %89 = vector.extract_strided_slice %13 {offsets = [1, 0], sizes = [12, 64], strides = [1, 1]} : vector<14x64xbf16> to vector<12x64xbf16>
    %c1_79 = arith.constant 1 : index
    %c1_80 = arith.constant 1 : index
    %c0_81 = arith.constant 0 : index
    %c0_82 = arith.constant 0 : index
    %90 = vector.load %arg3[%c1_79, %c1_80, %c0_81, %c0_82] : memref<3x3x64x128xbf16, #tpu.memory_space<vmem>>, vector<1x1x64x128xbf16>
    %91 = vector.shape_cast %90 : vector<1x1x64x128xbf16> to vector<64x128xbf16>
    %cst_83 = arith.constant dense<0.000000e+00> : vector<12x128xf32>
    %92 = tpu.matmul %89, %91, %cst_83 {dimension_numbers = #tpu.dot_dimension_numbers<[1], [0], [0], [1], [0, 0, 1, 1], [], []>} : vector<12x64xbf16>, vector<64x128xbf16>, vector<12x128xf32> -> vector<12x128xf32>
    %93 = arith.addf %88, %92 : vector<12x128xf32>
    %94 = vector.extract_strided_slice %13 {offsets = [2, 0], sizes = [12, 64], strides = [1, 1]} : vector<14x64xbf16> to vector<12x64xbf16>
    %c1_84 = arith.constant 1 : index
    %c2_85 = arith.constant 2 : index
    %c0_86 = arith.constant 0 : index
    %c0_87 = arith.constant 0 : index
    %95 = vector.load %arg3[%c1_84, %c2_85, %c0_86, %c0_87] : memref<3x3x64x128xbf16, #tpu.memory_space<vmem>>, vector<1x1x64x128xbf16>
    %96 = vector.shape_cast %95 : vector<1x1x64x128xbf16> to vector<64x128xbf16>
    %cst_88 = arith.constant dense<0.000000e+00> : vector<12x128xf32>
    %97 = tpu.matmul %94, %96, %cst_88 {dimension_numbers = #tpu.dot_dimension_numbers<[1], [0], [0], [1], [0, 0, 1, 1], [], []>} : vector<12x64xbf16>, vector<64x128xbf16>, vector<12x128xf32> -> vector<12x128xf32>
    %98 = arith.addf %93, %97 : vector<12x128xf32>
    %99 = vector.extract_strided_slice %17 {offsets = [0, 0], sizes = [12, 64], strides = [1, 1]} : vector<14x64xbf16> to vector<12x64xbf16>
    %c2_89 = arith.constant 2 : index
    %c0_90 = arith.constant 0 : index
    %c0_91 = arith.constant 0 : index
    %c0_92 = arith.constant 0 : index
    %100 = vector.load %arg3[%c2_89, %c0_90, %c0_91, %c0_92] : memref<3x3x64x128xbf16, #tpu.memory_space<vmem>>, vector<1x1x64x128xbf16>
    %101 = vector.shape_cast %100 : vector<1x1x64x128xbf16> to vector<64x128xbf16>
    %cst_93 = arith.constant dense<0.000000e+00> : vector<12x128xf32>
    %102 = tpu.matmul %99, %101, %cst_93 {dimension_numbers = #tpu.dot_dimension_numbers<[1], [0], [0], [1], [0, 0, 1, 1], [], []>} : vector<12x64xbf16>, vector<64x128xbf16>, vector<12x128xf32> -> vector<12x128xf32>
    %103 = arith.addf %98, %102 : vector<12x128xf32>
    %104 = vector.extract_strided_slice %17 {offsets = [1, 0], sizes = [12, 64], strides = [1, 1]} : vector<14x64xbf16> to vector<12x64xbf16>
    %c2_94 = arith.constant 2 : index
    %c1_95 = arith.constant 1 : index
    %c0_96 = arith.constant 0 : index
    %c0_97 = arith.constant 0 : index
    %105 = vector.load %arg3[%c2_94, %c1_95, %c0_96, %c0_97] : memref<3x3x64x128xbf16, #tpu.memory_space<vmem>>, vector<1x1x64x128xbf16>
    %106 = vector.shape_cast %105 : vector<1x1x64x128xbf16> to vector<64x128xbf16>
    %cst_98 = arith.constant dense<0.000000e+00> : vector<12x128xf32>
    %107 = tpu.matmul %104, %106, %cst_98 {dimension_numbers = #tpu.dot_dimension_numbers<[1], [0], [0], [1], [0, 0, 1, 1], [], []>} : vector<12x64xbf16>, vector<64x128xbf16>, vector<12x128xf32> -> vector<12x128xf32>
    %108 = arith.addf %103, %107 : vector<12x128xf32>
    %109 = vector.extract_strided_slice %17 {offsets = [2, 0], sizes = [12, 64], strides = [1, 1]} : vector<14x64xbf16> to vector<12x64xbf16>
    %c2_99 = arith.constant 2 : index
    %c2_100 = arith.constant 2 : index
    %c0_101 = arith.constant 0 : index
    %c0_102 = arith.constant 0 : index
    %110 = vector.load %arg3[%c2_99, %c2_100, %c0_101, %c0_102] : memref<3x3x64x128xbf16, #tpu.memory_space<vmem>>, vector<1x1x64x128xbf16>
    %111 = vector.shape_cast %110 : vector<1x1x64x128xbf16> to vector<64x128xbf16>
    %cst_103 = arith.constant dense<0.000000e+00> : vector<12x128xf32>
    %112 = tpu.matmul %109, %111, %cst_103 {dimension_numbers = #tpu.dot_dimension_numbers<[1], [0], [0], [1], [0, 0, 1, 1], [], []>} : vector<12x64xbf16>, vector<64x128xbf16>, vector<12x128xf32> -> vector<12x128xf32>
    %113 = arith.addf %108, %112 : vector<12x128xf32>
    %114 = vector.broadcast %1 : vector<1x128xf32> to vector<12x128xf32>
    %115 = arith.addf %113, %114 : vector<12x128xf32>
    %cst_104 = arith.constant 0.000000e+00 : f32
    %116 = vector.broadcast %cst_104 : f32 to vector<12x128xf32>
    %117 = arith.maximumf %115, %116 : vector<12x128xf32>
    %118 = arith.maximumf %67, %117 : vector<12x128xf32>
    %119 = tpu.iota {dimensions = array<i32: 0>} : vector<6x12xi32>
    %120 = tpu.iota {dimensions = array<i32: 1>} : vector<6x12xi32>
    %c2_i32_105 = arith.constant 2 : i32
    %121 = vector.broadcast %c2_i32_105 : i32 to vector<6x12xi32>
    %122 = arith.muli %121, %119 : vector<6x12xi32>
    %123 = arith.cmpi eq, %120, %122 : vector<6x12xi32>
    %124 = arith.extui %123 : vector<6x12xi1> to vector<6x12xi32>
    %125 = arith.sitofp %124 : vector<6x12xi32> to vector<6x12xf32>
    %c2_i32_106 = arith.constant 2 : i32
    %126 = vector.broadcast %c2_i32_106 : i32 to vector<6x12xi32>
    %127 = arith.muli %126, %119 : vector<6x12xi32>
    %c1_i32_107 = arith.constant 1 : i32
    %128 = vector.broadcast %c1_i32_107 : i32 to vector<6x12xi32>
    %129 = arith.addi %127, %128 : vector<6x12xi32>
    %130 = arith.cmpi eq, %120, %129 : vector<6x12xi32>
    %131 = arith.extui %130 : vector<6x12xi1> to vector<6x12xi32>
    %132 = arith.sitofp %131 : vector<6x12xi32> to vector<6x12xf32>
    %cst_108 = arith.constant dense<0.000000e+00> : vector<6x128xf32>
    %133 = tpu.matmul %125, %118, %cst_108 {dimension_numbers = #tpu.dot_dimension_numbers<[1], [0], [0], [1], [0, 0, 1, 1], [], []>} : vector<6x12xf32>, vector<12x128xf32>, vector<6x128xf32> -> vector<6x128xf32>
    %cst_109 = arith.constant dense<0.000000e+00> : vector<6x128xf32>
    %134 = tpu.matmul %132, %118, %cst_109 {dimension_numbers = #tpu.dot_dimension_numbers<[1], [0], [0], [1], [0, 0, 1, 1], [], []>} : vector<6x12xf32>, vector<12x128xf32>, vector<6x128xf32> -> vector<6x128xf32>
    %135 = arith.maximumf %133, %134 : vector<6x128xf32>
    %136 = arith.truncf %135 : vector<6x128xf32> to vector<6x128xbf16>
    %c0_110 = arith.constant 0 : index
    %c0_111 = arith.constant 0 : index
    %c0_112 = arith.constant 0 : index
    %c0_113 = arith.constant 0 : index
    %137 = vector.load %arg5[%c0_110, %c0_111, %c0_112, %c0_113] : memref<1x1x6x128xbf16, #tpu.memory_space<vmem>>, vector<1x1x6x128xbf16>
    %138 = vector.shape_cast %137 : vector<1x1x6x128xbf16> to vector<6x128xbf16>
    %139 = vector.shape_cast %136 : vector<6x128xbf16> to vector<1x1x6x128xbf16>
    tpu.vector_store %arg5[%c0_110, %c0_111, %c0_112, %c0_113], %139 {strides = array<i32>} : memref<1x1x6x128xbf16, #tpu.memory_space<vmem>>, vector<1x1x6x128xbf16>,
    return
  }
  func.func @transform_0(%arg0: i32, %arg1: i32) -> (i32, i32, i32, i32) {
    %c0_i32 = arith.constant 0 : i32
    %c0_i32_0 = arith.constant 0 : i32
    %c0_i32_1 = arith.constant 0 : i32
    %c0_i32_2 = arith.constant 0 : i32
    return %arg0, %c0_i32, %c0_i32_0, %c0_i32_1 : i32, i32, i32, i32
  }
  func.func @transform_1(%arg0: i32, %arg1: i32) -> (i32, i32, i32, i32) {
    %c0_i32 = arith.constant 0 : i32
    %c0_i32_0 = arith.constant 0 : i32
    %c0_i32_1 = arith.constant 0 : i32
    %c0_i32_2 = arith.constant 0 : i32
    %c0_i32_3 = arith.constant 0 : i32
    return %c0_i32, %c0_i32_0, %c0_i32_1, %c0_i32_2 : i32, i32, i32, i32
  }
  func.func @transform_2(%arg0: i32, %arg1: i32) -> (i32, i32) {
    %c0_i32 = arith.constant 0 : i32
    %c0_i32_0 = arith.constant 0 : i32
    %c0_i32_1 = arith.constant 0 : i32
    return %c0_i32, %c0_i32_0 : i32, i32
  }
  func.func @transform_3(%arg0: i32, %arg1: i32) -> (i32, i32, i32, i32) {
    %c0_i32 = arith.constant 0 : i32
    %c0_i32_0 = arith.constant 0 : i32
    %c0_i32_1 = arith.constant 0 : i32
    return %arg0, %arg1, %c0_i32, %c0_i32_0 : i32, i32, i32, i32
  }
}

module attributes {stable_mosaic.version = 11 : i64} {
  func.func @_mlp_kernel(%arg0: i32, %arg1: memref<2x4608xbf16, #tpu.memory_space<vmem>>, %arg2: memref<4608x256xbf16, #tpu.memory_space<vmem>>, %arg3: memref<1x256xf32, #tpu.memory_space<vmem>>, %arg4: memref<256x7xbf16, #tpu.memory_space<vmem>>, %arg5: memref<1x7xf32, #tpu.memory_space<vmem>>, %arg6: memref<2x7xf32, #tpu.memory_space<vmem>>) attributes {dimension_semantics = [#tpu.dimension_semantics<parallel>], iteration_bounds = array<i64: 1>, scalar_prefetch = 0 : i64, scratch_operands = 0 : i64, tpu.core_type = #tpu.core_type<tc>, window_params = [{transform_indices = @transform_0, window_bounds = array<i64: 2, 4608>}, {pipeline_mode = #tpu.pipeline_mode<synchronous>, transform_indices = @transform_1, window_bounds = array<i64: 4608, 256>}, {pipeline_mode = #tpu.pipeline_mode<synchronous>, transform_indices = @transform_2, window_bounds = array<i64: 1, 256>}, {pipeline_mode = #tpu.pipeline_mode<synchronous>, transform_indices = @transform_3, window_bounds = array<i64: 256, 7>}, {pipeline_mode = #tpu.pipeline_mode<synchronous>, transform_indices = @transform_4, window_bounds = array<i64: 1, 7>}, {transform_indices = @transform_5, window_bounds = array<i64: 2, 7>}]} {
    %c0 = arith.constant 0 : index
    %c0_0 = arith.constant 0 : index
    %0 = vector.load %arg1[%c0, %c0_0] : memref<2x4608xbf16, #tpu.memory_space<vmem>>, vector<2x4608xbf16>
    %c0_1 = arith.constant 0 : index
    %c0_2 = arith.constant 0 : index
    %1 = vector.load %arg2[%c0_1, %c0_2] : memref<4608x256xbf16, #tpu.memory_space<vmem>>, vector<4608x256xbf16>
    %cst = arith.constant dense<0.000000e+00> : vector<2x256xf32>
    %2 = tpu.matmul %0, %1, %cst {dimension_numbers = #tpu.dot_dimension_numbers<[1], [0], [0], [1], [0, 0, 1, 1], [], []>} : vector<2x4608xbf16>, vector<4608x256xbf16>, vector<2x256xf32> -> vector<2x256xf32>
    %c0_3 = arith.constant 0 : index
    %c0_4 = arith.constant 0 : index
    %3 = vector.load %arg3[%c0_3, %c0_4] : memref<1x256xf32, #tpu.memory_space<vmem>>, vector<1x256xf32>
    %4 = vector.broadcast %3 : vector<1x256xf32> to vector<2x256xf32>
    %5 = arith.addf %2, %4 : vector<2x256xf32>
    %cst_5 = arith.constant 0.000000e+00 : f32
    %6 = vector.broadcast %cst_5 : f32 to vector<2x256xf32>
    %7 = arith.maximumf %5, %6 : vector<2x256xf32>
    %8 = arith.truncf %7 : vector<2x256xf32> to vector<2x256xbf16>
    %c0_6 = arith.constant 0 : index
    %c0_7 = arith.constant 0 : index
    %9 = vector.load %arg4[%c0_6, %c0_7] : memref<256x7xbf16, #tpu.memory_space<vmem>>, vector<256x7xbf16>
    %cst_8 = arith.constant dense<0.000000e+00> : vector<2x7xf32>
    %10 = tpu.matmul %8, %9, %cst_8 {dimension_numbers = #tpu.dot_dimension_numbers<[1], [0], [0], [1], [0, 0, 1, 1], [], []>} : vector<2x256xbf16>, vector<256x7xbf16>, vector<2x7xf32> -> vector<2x7xf32>
    %c0_9 = arith.constant 0 : index
    %c0_10 = arith.constant 0 : index
    %11 = vector.load %arg5[%c0_9, %c0_10] : memref<1x7xf32, #tpu.memory_space<vmem>>, vector<1x7xf32>
    %12 = vector.broadcast %11 : vector<1x7xf32> to vector<2x7xf32>
    %13 = arith.addf %10, %12 : vector<2x7xf32>
    %c0_11 = arith.constant 0 : index
    %c0_12 = arith.constant 0 : index
    %14 = vector.load %arg6[%c0_11, %c0_12] : memref<2x7xf32, #tpu.memory_space<vmem>>, vector<2x7xf32>
    tpu.vector_store %arg6[%c0_11, %c0_12], %13 {strides = array<i32>} : memref<2x7xf32, #tpu.memory_space<vmem>>, vector<2x7xf32>,
    return
  }
  func.func @transform_0(%arg0: i32) -> (i32, i32) {
    %c0_i32 = arith.constant 0 : i32
    %c0_i32_0 = arith.constant 0 : i32
    return %arg0, %c0_i32 : i32, i32
  }
  func.func @transform_1(%arg0: i32) -> (i32, i32) {
    %c0_i32 = arith.constant 0 : i32
    %c0_i32_0 = arith.constant 0 : i32
    %c0_i32_1 = arith.constant 0 : i32
    return %c0_i32, %c0_i32_0 : i32, i32
  }
  func.func @transform_2(%arg0: i32) -> (i32, i32) {
    %c0_i32 = arith.constant 0 : i32
    %c0_i32_0 = arith.constant 0 : i32
    %c0_i32_1 = arith.constant 0 : i32
    return %c0_i32, %c0_i32_0 : i32, i32
  }
  func.func @transform_3(%arg0: i32) -> (i32, i32) {
    %c0_i32 = arith.constant 0 : i32
    %c0_i32_0 = arith.constant 0 : i32
    %c0_i32_1 = arith.constant 0 : i32
    return %c0_i32, %c0_i32_0 : i32, i32
  }
  func.func @transform_4(%arg0: i32) -> (i32, i32) {
    %c0_i32 = arith.constant 0 : i32
    %c0_i32_0 = arith.constant 0 : i32
    %c0_i32_1 = arith.constant 0 : i32
    return %c0_i32, %c0_i32_0 : i32, i32
  }
  func.func @transform_5(%arg0: i32) -> (i32, i32) {
    %c0_i32 = arith.constant 0 : i32
    %c0_i32_0 = arith.constant 0 : i32
    return %arg0, %c0_i32 : i32, i32
  }
}

</mosaic_0001>

<llo_original>
// kernel: emotion_cnn_forward.4
$region0: #{emotion_cnn_forward.4}
  #allocation0 [shape = 'u32[]', space=smem, size = 0x4, offset = 0x4, fixed_abs, tag = 'smem constant byte address 0x4 - core index']
  #allocation1 [shape = 'u32[144,128]{1,0:T(1,128)}', space=vmem, size = 0x12000, scoped, tag = 'internal scratch']
  %s0 = inlined_call_operand.vmem [shape: bf16[2,50,50,1], index: 0, kind: input, shape index: {}]
  %s1 = inlined_call_operand.vmem [shape: bf16[3,3,1,32], index: 1, kind: input, shape index: {}]
  %s2 = inlined_call_operand.vmem [shape: f32[1,32], index: 2, kind: input, shape index: {}]
  %s3 = inlined_call_operand.vmem [shape: bf16[2,24,24,32], index: 3, kind: output, shape index: {}]
  %s4 = sld [smem:[#allocation0]]
  $region45: #{emotion_cnn_forward.4} parent=0
    _
  %s6 = ssub.s32 1, %s4
  %s7 = scalar_select 0, %s6, %s4
  loop: start=0, step=1, limit=50
  $region2: #{emotion_cnn_forward.4} parent=0 // loop_pre_header
    _
  $region3: #{emotion_cnn_forward.4} parent=0 // loop_header
    %s9 = sphi 0, %s13
    %p10 = scmp.ge.s32.totalorder %s9, 50
    %s16 = sphi 0, %s28
    %s17 = sphi 0, %s24
    %s18 = sphi 0, %s16
    %s19 = sphi 0, %s17
    %s20 = sphi 0, %s18
    %s21 = sphi 0, %s19
    %s31 = sphi 0, %s33
    %s34 = sphi 0, %s31
    %s35 = sphi 0, %s34
    %s51 = sphi 0, %s35
    %s55 = sphi 0, %s55
    %s57 = sphi 0, %s55
    %s58 = sphi 0, %s57
    %s72 = sphi 0, %s58
    %s76 = sphi 0, %s76
    %s78 = sphi 0, %s76
    %s79 = sphi 0, %s78
    %s93 = sphi 0, %s79
    %s101 = sphi 0, %s103
    %s104 = sphi 0, %s101
    %s105 = sphi 0, %s104
    %s121 = sphi 0, %s105
  $region4: #{emotion_cnn_forward.4} parent=0 // loop_header_branch
    %12 = sbr.rel (%p10) target = $region8
  $region5: #{emotion_cnn_forward.4} parent=0 // loop_body
    %s14 = ssub.s32 %s9, 1
    %s15 = ssub.s32 %s9, 2
    %s22 = sadd.s32 1, %s17
    %p23 = scmp.ge.s32.totalorder %s22, 24
    %s24 = scalar_select %p23, 0, %s22
    %s25 = sadd.s32 1, %s16
    %s26 = scalar_select %p23, %s25, %s16
    %p27 = scmp.ge.s32.totalorder %s26, 2
    %s28 = scalar_select %p27, 0, %s26
    %s29 = ssub.s32 %s16, %s28
    %p30 = scmp.eq.s32.totalorder %s29, 0
    %s32 = sadd.s32 %s31, 1
    %s33 = scalar_select %p30, %s31, %s32
    %p36 = pneg %p30
    %p37 = scmp.eq.s32.totalorder %s9, 47
    %p38 = por %p36, %p37
    %p39 = scmp.ne.s32.totalorder %s31, %s34
    %p40 = scmp.eq.s32.totalorder %s9, 0
    %p41 = por %p39, %p40
    %p42 = scmp.ne.s32.totalorder %s31, %s34
    %p43 = scmp.eq.s32.totalorder %s14, 47
    %p44 = por %p42, %p43
    %p45 = scmp.ne.s32.totalorder %s34, %s35
    %p46 = scmp.eq.s32.totalorder %s14, 0
    %p47 = por %p45, %p46
    %p48 = scmp.ne.s32.totalorder %s34, %s35
    %p49 = scmp.eq.s32.totalorder %s15, 47
    %p50 = por %p48, %p49
    %p52 = scmp.ne.s32.totalorder %s35, %s51
    %p53 = scmp.eq.s32.totalorder %s15, 0
    %p54 = por %p52, %p53
    %s56 = sadd.s32 %s55, 1
    %p59 = scmp.eq.s32.totalorder %s9, 47
    %p60 = scmp.ne.s32.totalorder %s55, %s57
    %p61 = scmp.eq.s32.totalorder %s9, 0
    %p62 = por %p60, %p61
    %p63 = scmp.ne.s32.totalorder %s55, %s57
    %p64 = scmp.eq.s32.totalorder %s14, 47
    %p65 = por %p63, %p64
    %p66 = scmp.ne.s32.totalorder %s57, %s58
    %p67 = scmp.eq.s32.totalorder %s14, 0
    %p68 = por %p66, %p67
    %p69 = scmp.ne.s32.totalorder %s57, %s58
    %p70 = scmp.eq.s32.totalorder %s15, 47
    %p71 = por %p69, %p70
    %p73 = scmp.ne.s32.totalorder %s58, %s72
    %p74 = scmp.eq.s32.totalorder %s15, 0
    %p75 = por %p73, %p74
    %s77 = sadd.s32 %s76, 1
    %p80 = scmp.eq.s32.totalorder %s9, 47
    %p81 = scmp.ne.s32.totalorder %s76, %s78
    %p82 = scmp.eq.s32.totalorder %s9, 0
    %p83 = por %p81, %p82
    %p84 = scmp.ne.s32.totalorder %s76, %s78
    %p85 = scmp.eq.s32.totalorder %s14, 47
    %p86 = por %p84, %p85
    %p87 = scmp.ne.s32.totalorder %s78, %s79
    %p88 = scmp.eq.s32.totalorder %s14, 0
    %p89 = por %p87, %p88
    %p90 = scmp.ne.s32.totalorder %s78, %s79
    %p91 = scmp.eq.s32.totalorder %s15, 47
    %p92 = por %p90, %p91
    %p94 = scmp.ne.s32.totalorder %s79, %s93
    %p95 = scmp.eq.s32.totalorder %s15, 0
    %p96 = por %p94, %p95
    %s97 = ssub.s32 %s16, %s28
    %s98 = ssub.s32 %s17, %s24
    %s99 = sor.u32 %s97, %s98
    %p100 = scmp.eq.s32.totalorder %s99, 0
    %s102 = sadd.s32 %s101, 1
    %s103 = scalar_select %p100, %s101, %s102
    %p106 = pneg %p100
    %p107 = scmp.eq.s32.totalorder %s9, 47
    %p108 = por %p106, %p107
    %p109 = scmp.ne.s32.totalorder %s101, %s104
    %p110 = scmp.eq.s32.totalorder %s9, 0
    %p111 = por %p109, %p110
    %p112 = scmp.ne.s32.totalorder %s101, %s104
    %p113 = scmp.eq.s32.totalorder %s14, 47
    %p114 = por %p112, %p113
    %p115 = scmp.ne.s32.totalorder %s104, %s105
    %p116 = scmp.eq.s32.totalorder %s14, 0
    %p117 = por %p115, %p116
    %p118 = scmp.ne.s32.totalorder %s104, %s105
    %p119 = scmp.eq.s32.totalorder %s15, 47
    %p120 = por %p118, %p119
    %p122 = scmp.ne.s32.totalorder %s105, %s121
    %p123 = scmp.eq.s32.totalorder %s15, 0
    %p124 = por %p122, %p123
    %p125 = scmp.le.s32.totalorder 1, %s9
    %p126 = scmp.lt.s32.totalorder %s9, 49
    %p127 = pnand %p125, %p126
    %p128 = pneg %p127
    // Predicated region
    $region9: #{emotion_cnn_forward.4} parent=5 // pred_check
      _
    $region10: #{emotion_cnn_forward.4} parent=5 // pred_check_branch
      %130 = sbr.rel (%p127) target = $region12
    $region11: #{emotion_cnn_forward.4} parent=5 // pred_region
      %s131 = ssub.s32 %s9, 1
      // Predicated region
      $region13: #{emotion_cnn_forward.4} parent=11 // pred_check
        %p132 = pneg %p68
      $region14: #{emotion_cnn_forward.4} parent=11 // pred_check_branch
        %134 = sbr.rel (%p132) target = $region16
      $region15: #{emotion_cnn_forward.4} parent=11 // pred_region
        _
      $region16: #{emotion_cnn_forward.4} parent=11 // pred_fallthru
        _
      // Predicated region
      $region17: #{emotion_cnn_forward.4} parent=11 // pred_check
        %p135 = pneg %p89
      $region18: #{emotion_cnn_forward.4} parent=11 // pred_check_branch
        %137 = sbr.rel (%p135) target = $region20
      $region19: #{emotion_cnn_forward.4} parent=11 // pred_region
        _
      $region20: #{emotion_cnn_forward.4} parent=11 // pred_fallthru
        _
    $region12: #{emotion_cnn_forward.4} parent=5 // pred_fallthru
      _
    %p138 = scmp.lt.s32.totalorder %s9, 48
    // Predicated region
    $region21: #{emotion_cnn_forward.4} parent=5 // pred_check
      %p139 = pneg %p138
    $region22: #{emotion_cnn_forward.4} parent=5 // pred_check_branch
      %141 = sbr.rel (%p139) target = $region24
    $region23: #{emotion_cnn_forward.4} parent=5 // pred_region
      // Predicated region
      $region25: #{emotion_cnn_forward.4} parent=23 // pred_check
        %p142 = pneg %p41
      $region26: #{emotion_cnn_forward.4} parent=23 // pred_check_branch
        %144 = sbr.rel (%p142) target = $region28
      $region27: #{emotion_cnn_forward.4} parent=23 // pred_region
        %p145 = scmp.lt.s32.totalorder %s16, 1
        %s146 = scalar_select %p145, %s16, 1
        %s147 = smul.addr %s146, 350
        %s148 = smul.addr %s147, 4
        %s149 = scalar_lea.vmem %s0, %s148
      $region28: #{emotion_cnn_forward.4} parent=23 // pred_fallthru
        _
    $region24: #{emotion_cnn_forward.4} parent=5 // pred_fallthru
      _
    %p150 = scmp.le.s32.totalorder 1, %s9
    %p151 = scmp.lt.s32.totalorder %s9, 49
    %p152 = pnand %p150, %p151
    %p153 = pneg %p152
    // Predicated region
    $region29: #{emotion_cnn_forward.4} parent=5 // pred_check
      _
    $region30: #{emotion_cnn_forward.4} parent=5 // pred_check_branch
      %155 = sbr.rel (%p152) target = $region32
    $region31: #{emotion_cnn_forward.4} parent=5 // pred_region
      %s156 = ssub.s32 %s9, 1
      %p157 = scmp.lt.s32.totalorder %s18, 1
      %s158 = scalar_select %p157, %s18, 1
      %s159 = smul.addr %s158, 350
      %s160 = smul.addr %s159, 4
      %s161 = scalar_lea.vmem %s0, %s160
      %p162 = pneg %p47
      %p163 = pneg %p44
      %p164 = pneg %p68
      %p165 = pneg %p65
      %p166 = pneg %p89
      %p167 = pneg %p86
      %p168 = pneg %p117
      %p169 = pneg %p114
      %p170 = scmp.lt.s32.totalorder %s18, 1
      %s171 = scalar_select %p170, %s18, 1
      %p172 = scmp.lt.s32.totalorder %s19, 23
      %s173 = scalar_select %p172, %s19, 23
      %s174 = smul.addr %s173, 3
      %s175 = smul.addr %s171, 72
      %s176 = sadd.s32 %s174, %s175
      %s177 = smul.addr %s176, 4
      %s178 = scalar_lea.vmem %s3, %s177
      %p179 = scmp.lt.s32.totalorder %s18, 1
      %s180 = scalar_select %p179, %s18, 1
      %s181 = smul.addr %s180, 350
      %s182 = smul.addr %s181, 4
      %s183 = scalar_lea.vmem %s0, %s182
      %p184 = scmp.lt.s32.totalorder %s18, 1
      %s185 = scalar_select %p184, %s18, 1
      %p186 = scmp.lt.s32.totalorder %s19, 23
      %s187 = scalar_select %p186, %s19, 23
      %s188 = smul.addr %s187, 3
      %s189 = smul.addr %s185, 72
      %s190 = sadd.s32 %s188, %s189
      %s191 = smul.addr %s190, 4
      %s192 = scalar_lea.vmem %s3, %s191
      %s193 = smul.u32 %s19, 2
      %v194 = vld [vmem:[%s2] sm:$0x1]
      %s195 = smul.u32 %s193, 7
      %s196 = smul.addr %s195, 4
      %s197 = scalar_lea.vmem %s183, %s196
      %v198 = vld [vmem:[%s197] sm:$0xf]
      %v199 = vld [vmem:[%s197 + $0x4] sm:$0xf]
      %v200 = vld [vmem:[%s197 + $0x8] sm:$0xf]
      %v201 = vld [vmem:[%s197 + $0xc] sm:$0xf]
      %v202 = vld [vmem:[%s197 + $0x10] sm:$0xf]
      %v203 = vld [vmem:[%s197 + $0x14] sm:$0xf]
      %v204 = vld [vmem:[%s197 + $0x18] sm:$0x1]
      %s205 = sadd.s32 %s193, 1
      %s206 = smul.u32 %s205, 7
      %s207 = smul.addr %s206, 4
      %s208 = scalar_lea.vmem %s183, %s207
      %v209 = vld [vmem:[%s208] sm:$0xf]
      %v210 = vld [vmem:[%s208 + $0x4] sm:$0xf]
      %v211 = vld [vmem:[%s208 + $0x8] sm:$0xf]
      %v212 = vld [vmem:[%s208 + $0xc] sm:$0xf]
      %v213 = vld [vmem:[%s208 + $0x10] sm:$0xf]
      %v214 = vld [vmem:[%s208 + $0x14] sm:$0xf]
      %v215 = vld [vmem:[%s208 + $0x18] sm:$0x1]
      %s216 = sadd.s32 %s193, 2
      %s217 = smul.u32 %s216, 7
      %s218 = smul.addr %s217, 4
      %s219 = scalar_lea.vmem %s183, %s218
      %v220 = vld [vmem:[%s219] sm:$0xf]
      %v221 = vld [vmem:[%s219 + $0x4] sm:$0xf]
      %v222 = vld [vmem:[%s219 + $0x8] sm:$0xf]
      %v223 = vld [vmem:[%s219 + $0xc] sm:$0xf]
      %v224 = vld [vmem:[%s219 + $0x10] sm:$0xf]
      %v225 = vld [vmem:[%s219 + $0x14] sm:$0xf]
      %v226 = vld [vmem:[%s219 + $0x18] sm:$0x1]
      %s227 = sadd.s32 %s193, 3
      %s228 = smul.u32 %s227, 7
      %s229 = smul.addr %s228, 4
      %s230 = scalar_lea.vmem %s183, %s229
      %v231 = vld [vmem:[%s230] sm:$0xf]
      %v232 = vld [vmem:[%s230 + $0x4] sm:$0xf]
      %v233 = vld [vmem:[%s230 + $0x8] sm:$0xf]
      %v234 = vld [vmem:[%s230 + $0xc] sm:$0xf]
      %v235 = vld [vmem:[%s230 + $0x10] sm:$0xf]
      %v236 = vld [vmem:[%s230 + $0x14] sm:$0xf]
      %v237 = vld [vmem:[%s230 + $0x18] sm:$0x1]
      %v238 = vld [vmem:[%s1] sm:$0x1]
      %v239 = vunpack.c.l.bf16 %v198
      %v240 = vunpack.c.l.bf16 %v199
      %v241 = vunpack.c.l.bf16 %v200
      %v242 = vunpack.c.l.bf16 %v201
      %v243 = vunpack.c.l.bf16 %v202
      %v244 = vunpack.c.l.bf16 %v203
      %v245 = vunpack.c.l.bf16 %v238
      %247 = vset.pattern.permute.xlu0 0
      %248 = vperm.xlu0 %247, %v239
      %v249 = vpop.permute.xlu0 %248
      %252 = vset.pattern.permute.xlu0 0
      %253 = vperm.xlu0 %252, %v240
      %v254 = vpop.permute.xlu0 %253
      %257 = vset.pattern.permute.xlu0 0
      %258 = vperm.xlu0 %257, %v241
      %v259 = vpop.permute.xlu0 %258
      %262 = vset.pattern.permute.xlu0 0
      %263 = vperm.xlu0 %262, %v242
      %v264 = vpop.permute.xlu0 %263
      %267 = vset.pattern.permute.xlu0 0
      %268 = vperm.xlu0 %267, %v243
      %v269 = vpop.permute.xlu0 %268
      %272 = vset.pattern.permute.xlu0 0
      %273 = vperm.xlu0 %272, %v244
      %v274 = vpop.permute.xlu0 %273
      %v276 = vlaneseq
      %v277 = vshrl.u32 %v276, 7
      %v278 = vsub.s32 0, %v277
      %v279 = vrot.slane %v245, %v278
      %v280 = vmul.f32 %v249, %v279
      %v281 = vmul.f32 %v254, %v279
      %v282 = vmul.f32 %v259, %v279
      %v283 = vmul.f32 %v264, %v279
      %v284 = vmul.f32 %v269, %v279
      %v285 = vmul.f32 %v274, %v279
      %v286 = vadd.f32 %v280, 0.0
      %v287 = vadd.f32 %v281, 0.0
      %v288 = vadd.f32 %v282, 0.0
      %v289 = vadd.f32 %v283, 0.0
      %v290 = vadd.f32 %v284, 0.0
      %v291 = vadd.f32 %v285, 0.0
      %s292 = scalar_lea.vmem %s1, 1
      %v293 = vld [vmem:[%s292] sm:$0x1]
      %v294 = vunpack.c.l.bf16 %v204
      %v295 = vunpack.c.l.bf16 %v293
      %297 = vset.pattern.permute.xlu0 0
      %298 = vperm.xlu0 %297, %v294
      %v299 = vpop.permute.xlu0 %298
      %v301 = vlaneseq
      %v302 = vshrl.u32 %v301, 7
      %v303 = vsub.s32 0, %v302
      %v304 = vrot.slane %v295, %v303
      %v305 = vmul.f32 %v249, %v304
      %v306 = vmul.f32 %v254, %v304
      %v307 = vmul.f32 %v259, %v304
      %v308 = vmul.f32 %v264, %v304
      %v309 = vmul.f32 %v269, %v304
      %v310 = vmul.f32 %v274, %v304
      %v311 = vmul.f32 %v299, %v304
      %vm319 = vcmask 1046528
      %v320 = vrot.slane %v305, 1
      %v321 = vrot.slane %v306, 1
      %v322 = vsel %vm319, %v320, %v321
      %v323 = vrot.slane %v307, 1
      %v324 = vsel %vm319, %v321, %v323
      %v325 = vrot.slane %v308, 1
      %v326 = vsel %vm319, %v323, %v325
      %v327 = vrot.slane %v309, 1
      %v328 = vsel %vm319, %v325, %v327
      %v329 = vrot.slane %v310, 1
      %v330 = vsel %vm319, %v327, %v329
      %v331 = vrot.slane %v311, 1
      %v332 = vsel %vm319, %v329, %v331
      %v339 = vadd.f32 %v286, %v322
      %v340 = vadd.f32 %v287, %v324
      %v341 = vadd.f32 %v288, %v326
      %v342 = vadd.f32 %v289, %v328
      %v343 = vadd.f32 %v290, %v330
      %v344 = vadd.f32 %v291, %v332
      %s345 = scalar_lea.vmem %s1, 2
      %v346 = vld [vmem:[%s345] sm:$0x1]
      %v347 = vunpack.c.l.bf16 %v346
      %v348 = vlaneseq
      %v349 = vshrl.u32 %v348, 7
      %v350 = vsub.s32 0, %v349
      %v351 = vrot.slane %v347, %v350
      %v352 = vmul.f32 %v249, %v351
      %v353 = vmul.f32 %v254, %v351
      %v354 = vmul.f32 %v259, %v351
      %v355 = vmul.f32 %v264, %v351
      %v356 = vmul.f32 %v269, %v351
      %v357 = vmul.f32 %v274, %v351
      %v358 = vmul.f32 %v299, %v351
      %vm366 = vcmask 1045504
      %v367 = vrot.slane %v352, 2
      %v368 = vrot.slane %v353, 2
      %v369 = vsel %vm366, %v367, %v368
      %v370 = vrot.slane %v354, 2
      %v371 = vsel %vm366, %v368, %v370
      %v372 = vrot.slane %v355, 2
      %v373 = vsel %vm366, %v370, %v372
      %v374 = vrot.slane %v356, 2
      %v375 = vsel %vm366, %v372, %v374
      %v376 = vrot.slane %v357, 2
      %v377 = vsel %vm366, %v374, %v376
      %v378 = vrot.slane %v358, 2
      %v379 = vsel %vm366, %v376, %v378
      %v386 = vadd.f32 %v339, %v369
      %v387 = vadd.f32 %v340, %v371
      %v388 = vadd.f32 %v341, %v373
      %v389 = vadd.f32 %v342, %v375
      %v390 = vadd.f32 %v343, %v377
      %v391 = vadd.f32 %v344, %v379
      %s392 = scalar_lea.vmem %s1, 3
      %v393 = vld [vmem:[%s392] sm:$0x1]
      %v394 = vunpack.c.l.bf16 %v209
      %v395 = vunpack.c.l.bf16 %v210
      %v396 = vunpack.c.l.bf16 %v211
      %v397 = vunpack.c.l.bf16 %v212
      %v398 = vunpack.c.l.bf16 %v213
      %v399 = vunpack.c.l.bf16 %v214
      %v400 = vunpack.c.l.bf16 %v393
      %402 = vset.pattern.permute.xlu0 0
      %403 = vperm.xlu0 %402, %v394
      %v404 = vpop.permute.xlu0 %403
      %407 = vset.pattern.permute.xlu0 0
      %408 = vperm.xlu0 %407, %v395
      %v409 = vpop.permute.xlu0 %408
      %412 = vset.pattern.permute.xlu0 0
      %413 = vperm.xlu0 %412, %v396
      %v414 = vpop.permute.xlu0 %413
      %417 = vset.pattern.permute.xlu0 0
      %418 = vperm.xlu0 %417, %v397
      %v419 = vpop.permute.xlu0 %418
      %422 = vset.pattern.permute.xlu0 0
      %423 = vperm.xlu0 %422, %v398
      %v424 = vpop.permute.xlu0 %423
      %427 = vset.pattern.permute.xlu0 0
      %428 = vperm.xlu0 %427, %v399
      %v429 = vpop.permute.xlu0 %428
      %v431 = vlaneseq
      %v432 = vshrl.u32 %v431, 7
      %v433 = vsub.s32 0, %v432
      %v434 = vrot.slane %v400, %v433
      %v435 = vmul.f32 %v404, %v434
      %v436 = vmul.f32 %v409, %v434
      %v437 = vmul.f32 %v414, %v434
      %v438 = vmul.f32 %v419, %v434
      %v439 = vmul.f32 %v424, %v434
      %v440 = vmul.f32 %v429, %v434
      %v441 = vadd.f32 %v386, %v435
      %v442 = vadd.f32 %v387, %v436
      %v443 = vadd.f32 %v388, %v437
      %v444 = vadd.f32 %v389, %v438
      %v445 = vadd.f32 %v390, %v439
      %v446 = vadd.f32 %v391, %v440
      %s447 = scalar_lea.vmem %s1, 4
      %v448 = vld [vmem:[%s447] sm:$0x1]
      %v449 = vunpack.c.l.bf16 %v215
      %v450 = vunpack.c.l.bf16 %v448
      %452 = vset.pattern.permute.xlu0 0
      %453 = vperm.xlu0 %452, %v449
      %v454 = vpop.permute.xlu0 %453
      %v456 = vlaneseq
      %v457 = vshrl.u32 %v456, 7
      %v458 = vsub.s32 0, %v457
      %v459 = vrot.slane %v450, %v458
      %v460 = vmul.f32 %v404, %v459
      %v461 = vmul.f32 %v409, %v459
      %v462 = vmul.f32 %v414, %v459
      %v463 = vmul.f32 %v419, %v459
      %v464 = vmul.f32 %v424, %v459
      %v465 = vmul.f32 %v429, %v459
      %v466 = vmul.f32 %v454, %v459
      %v474 = vrot.slane %v460, 1
      %v475 = vrot.slane %v461, 1
      %v476 = vsel %vm319, %v474, %v475
      %v477 = vrot.slane %v462, 1
      %v478 = vsel %vm319, %v475, %v477
      %v479 = vrot.slane %v463, 1
      %v480 = vsel %vm319, %v477, %v479
      %v481 = vrot.slane %v464, 1
      %v482 = vsel %vm319, %v479, %v481
      %v483 = vrot.slane %v465, 1
      %v484 = vsel %vm319, %v481, %v483
      %v485 = vrot.slane %v466, 1
      %v486 = vsel %vm319, %v483, %v485
      %v493 = vadd.f32 %v441, %v476
      %v494 = vadd.f32 %v442, %v478
      %v495 = vadd.f32 %v443, %v480
      %v496 = vadd.f32 %v444, %v482
      %v497 = vadd.f32 %v445, %v484
      %v498 = vadd.f32 %v446, %v486
      %s499 = scalar_lea.vmem %s1, 5
      %v500 = vld [vmem:[%s499] sm:$0x1]
      %v501 = vunpack.c.l.bf16 %v500
      %v502 = vlaneseq
      %v503 = vshrl.u32 %v502, 7
      %v504 = vsub.s32 0, %v503
      %v505 = vrot.slane %v501, %v504
      %v506 = vmul.f32 %v404, %v505
      %v507 = vmul.f32 %v409, %v505
      %v508 = vmul.f32 %v414, %v505
      %v509 = vmul.f32 %v419, %v505
      %v510 = vmul.f32 %v424, %v505
      %v511 = vmul.f32 %v429, %v505
      %v512 = vmul.f32 %v454, %v505
      %v520 = vrot.slane %v506, 2
      %v521 = vrot.slane %v507, 2
      %v522 = vsel %vm366, %v520, %v521
      %v523 = vrot.slane %v508, 2
      %v524 = vsel %vm366, %v521, %v523
      %v525 = vrot.slane %v509, 2
      %v526 = vsel %vm366, %v523, %v525
      %v527 = vrot.slane %v510, 2
      %v528 = vsel %vm366, %v525, %v527
      %v529 = vrot.slane %v511, 2
      %v530 = vsel %vm366, %v527, %v529
      %v531 = vrot.slane %v512, 2
      %v532 = vsel %vm366, %v529, %v531
      %v539 = vadd.f32 %v493, %v522
      %v540 = vadd.f32 %v494, %v524
      %v541 = vadd.f32 %v495, %v526
      %v542 = vadd.f32 %v496, %v528
      %v543 = vadd.f32 %v497, %v530
      %v544 = vadd.f32 %v498, %v532
      %s545 = scalar_lea.vmem %s1, 6
      %v546 = vld [vmem:[%s545] sm:$0x1]
      %v547 = vunpack.c.l.bf16 %v220
      %v548 = vunpack.c.l.bf16 %v221
      %v549 = vunpack.c.l.bf16 %v222
      %v550 = vunpack.c.l.bf16 %v223
      %v551 = vunpack.c.l.bf16 %v224
      %v552 = vunpack.c.l.bf16 %v225
      %v553 = vunpack.c.l.bf16 %v546
      %555 = vset.pattern.permute.xlu0 0
      %556 = vperm.xlu0 %555, %v547
      %v557 = vpop.permute.xlu0 %556
      %560 = vset.pattern.permute.xlu0 0
      %561 = vperm.xlu0 %560, %v548
      %v562 = vpop.permute.xlu0 %561
      %565 = vset.pattern.permute.xlu0 0
      %566 = vperm.xlu0 %565, %v549
      %v567 = vpop.permute.xlu0 %566
      %570 = vset.pattern.permute.xlu0 0
      %571 = vperm.xlu0 %570, %v550
      %v572 = vpop.permute.xlu0 %571
      %575 = vset.pattern.permute.xlu0 0
      %576 = vperm.xlu0 %575, %v551
      %v577 = vpop.permute.xlu0 %576
      %580 = vset.pattern.permute.xlu0 0
      %581 = vperm.xlu0 %580, %v552
      %v582 = vpop.permute.xlu0 %581
      %v584 = vlaneseq
      %v585 = vshrl.u32 %v584, 7
      %v586 = vsub.s32 0, %v585
      %v587 = vrot.slane %v553, %v586
      %v588 = vmul.f32 %v557, %v587
      %v589 = vmul.f32 %v562, %v587
      %v590 = vmul.f32 %v567, %v587
      %v591 = vmul.f32 %v572, %v587
      %v592 = vmul.f32 %v577, %v587
      %v593 = vmul.f32 %v582, %v587
      %v594 = vadd.f32 %v539, %v588
      %v595 = vadd.f32 %v540, %v589
      %v596 = vadd.f32 %v541, %v590
      %v597 = vadd.f32 %v542, %v591
      %v598 = vadd.f32 %v543, %v592
      %v599 = vadd.f32 %v544, %v593
      %s600 = scalar_lea.vmem %s1, 7
      %v601 = vld [vmem:[%s600] sm:$0x1]
      %v602 = vunpack.c.l.bf16 %v226
      %v603 = vunpack.c.l.bf16 %v601
      %605 = vset.pattern.permute.xlu0 0
      %606 = vperm.xlu0 %605, %v602
      %v607 = vpop.permute.xlu0 %606
      %v609 = vlaneseq
      %v610 = vshrl.u32 %v609, 7
      %v611 = vsub.s32 0, %v610
      %v612 = vrot.slane %v603, %v611
      %v613 = vmul.f32 %v557, %v612
      %v614 = vmul.f32 %v562, %v612
      %v615 = vmul.f32 %v567, %v612
      %v616 = vmul.f32 %v572, %v612
      %v617 = vmul.f32 %v577, %v612
      %v618 = vmul.f32 %v582, %v612
      %v619 = vmul.f32 %v607, %v612
      %v627 = vrot.slane %v613, 1
      %v628 = vrot.slane %v614, 1
      %v629 = vsel %vm319, %v627, %v628
      %v630 = vrot.slane %v615, 1
      %v631 = vsel %vm319, %v628, %v630
      %v632 = vrot.slane %v616, 1
      %v633 = vsel %vm319, %v630, %v632
      %v634 = vrot.slane %v617, 1
      %v635 = vsel %vm319, %v632, %v634
      %v636 = vrot.slane %v618, 1
      %v637 = vsel %vm319, %v634, %v636
      %v638 = vrot.slane %v619, 1
      %v639 = vsel %vm319, %v636, %v638
      %v646 = vadd.f32 %v594, %v629
      %v647 = vadd.f32 %v595, %v631
      %v648 = vadd.f32 %v596, %v633
      %v649 = vadd.f32 %v597, %v635
      %v650 = vadd.f32 %v598, %v637
      %v651 = vadd.f32 %v599, %v639
      %s652 = scalar_lea.vmem %s1, 8
      %v653 = vld [vmem:[%s652] sm:$0x1]
      %v654 = vunpack.c.l.bf16 %v653
      %v655 = vlaneseq
      %v656 = vshrl.u32 %v655, 7
      %v657 = vsub.s32 0, %v656
      %v658 = vrot.slane %v654, %v657
      %v659 = vmul.f32 %v557, %v658
      %v660 = vmul.f32 %v562, %v658
      %v661 = vmul.f32 %v567, %v658
      %v662 = vmul.f32 %v572, %v658
      %v663 = vmul.f32 %v577, %v658
      %v664 = vmul.f32 %v582, %v658
      %v665 = vmul.f32 %v607, %v658
      %v673 = vrot.slane %v659, 2
      %v674 = vrot.slane %v660, 2
      %v675 = vsel %vm366, %v673, %v674
      %v676 = vrot.slane %v661, 2
      %v677 = vsel %vm366, %v674, %v676
      %v678 = vrot.slane %v662, 2
      %v679 = vsel %vm366, %v676, %v678
      %v680 = vrot.slane %v663, 2
      %v681 = vsel %vm366, %v678, %v680
      %v682 = vrot.slane %v664, 2
      %v683 = vsel %vm366, %v680, %v682
      %v684 = vrot.slane %v665, 2
      %v685 = vsel %vm366, %v682, %v684
      %v692 = vadd.f32 %v646, %v675
      %v693 = vadd.f32 %v647, %v677
      %v694 = vadd.f32 %v648, %v679
      %v695 = vadd.f32 %v649, %v681
      %v696 = vadd.f32 %v650, %v683
      %v697 = vadd.f32 %v651, %v685
      %v699 = vlaneseq
      %v700 = vshrl.u32 %v699, 7
      %v701 = vsub.s32 0, %v700
      %v702 = vrot.slane %v194, %v701
      %v704 = vadd.f32 %v692, %v702
      %v705 = vadd.f32 %v693, %v702
      %v706 = vadd.f32 %v694, %v702
      %v707 = vadd.f32 %v695, %v702
      %v708 = vadd.f32 %v696, %v702
      %v709 = vadd.f32 %v697, %v702
      %v710 = vmax.f32 %v704, 0.0
      %v711 = vmax.f32 %v705, 0.0
      %v712 = vmax.f32 %v706, 0.0
      %v713 = vmax.f32 %v707, 0.0
      %v714 = vmax.f32 %v708, 0.0
      %v715 = vmax.f32 %v709, 0.0
      %v716 = vmul.f32 %v404, %v279
      %v717 = vmul.f32 %v409, %v279
      %v718 = vmul.f32 %v414, %v279
      %v719 = vmul.f32 %v419, %v279
      %v720 = vmul.f32 %v424, %v279
      %v721 = vmul.f32 %v429, %v279
      %v722 = vadd.f32 %v716, 0.0
      %v723 = vadd.f32 %v717, 0.0
      %v724 = vadd.f32 %v718, 0.0
      %v725 = vadd.f32 %v719, 0.0
      %v726 = vadd.f32 %v720, 0.0
      %v727 = vadd.f32 %v721, 0.0
      %v728 = vmul.f32 %v404, %v304
      %v729 = vmul.f32 %v409, %v304
      %v730 = vmul.f32 %v414, %v304
      %v731 = vmul.f32 %v419, %v304
      %v732 = vmul.f32 %v424, %v304
      %v733 = vmul.f32 %v429, %v304
      %v734 = vmul.f32 %v454, %v304
      %v742 = vrot.slane %v728, 1
      %v743 = vrot.slane %v729, 1
      %v744 = vsel %vm319, %v742, %v743
      %v745 = vrot.slane %v730, 1
      %v746 = vsel %vm319, %v743, %v745
      %v747 = vrot.slane %v731, 1
      %v748 = vsel %vm319, %v745, %v747
      %v749 = vrot.slane %v732, 1
      %v750 = vsel %vm319, %v747, %v749
      %v751 = vrot.slane %v733, 1
      %v752 = vsel %vm319, %v749, %v751
      %v753 = vrot.slane %v734, 1
      %v754 = vsel %vm319, %v751, %v753
      %v761 = vadd.f32 %v722, %v744
      %v762 = vadd.f32 %v723, %v746
      %v763 = vadd.f32 %v724, %v748
      %v764 = vadd.f32 %v725, %v750
      %v765 = vadd.f32 %v726, %v752
      %v766 = vadd.f32 %v727, %v754
      %v767 = vmul.f32 %v404, %v351
      %v768 = vmul.f32 %v409, %v351
      %v769 = vmul.f32 %v414, %v351
      %v770 = vmul.f32 %v419, %v351
      %v771 = vmul.f32 %v424, %v351
      %v772 = vmul.f32 %v429, %v351
      %v773 = vmul.f32 %v454, %v351
      %v781 = vrot.slane %v767, 2
      %v782 = vrot.slane %v768, 2
      %v783 = vsel %vm366, %v781, %v782
      %v784 = vrot.slane %v769, 2
      %v785 = vsel %vm366, %v782, %v784
      %v786 = vrot.slane %v770, 2
      %v787 = vsel %vm366, %v784, %v786
      %v788 = vrot.slane %v771, 2
      %v789 = vsel %vm366, %v786, %v788
      %v790 = vrot.slane %v772, 2
      %v791 = vsel %vm366, %v788, %v790
      %v792 = vrot.slane %v773, 2
      %v793 = vsel %vm366, %v790, %v792
      %v800 = vadd.f32 %v761, %v783
      %v801 = vadd.f32 %v762, %v785
      %v802 = vadd.f32 %v763, %v787
      %v803 = vadd.f32 %v764, %v789
      %v804 = vadd.f32 %v765, %v791
      %v805 = vadd.f32 %v766, %v793
      %v806 = vmul.f32 %v557, %v434
      %v807 = vmul.f32 %v562, %v434
      %v808 = vmul.f32 %v567, %v434
      %v809 = vmul.f32 %v572, %v434
      %v810 = vmul.f32 %v577, %v434
      %v811 = vmul.f32 %v582, %v434
      %v812 = vadd.f32 %v800, %v806
      %v813 = vadd.f32 %v801, %v807
      %v814 = vadd.f32 %v802, %v808
      %v815 = vadd.f32 %v803, %v809
      %v816 = vadd.f32 %v804, %v810
      %v817 = vadd.f32 %v805, %v811
      %v818 = vmul.f32 %v557, %v459
      %v819 = vmul.f32 %v562, %v459
      %v820 = vmul.f32 %v567, %v459
      %v821 = vmul.f32 %v572, %v459
      %v822 = vmul.f32 %v577, %v459
      %v823 = vmul.f32 %v582, %v459
      %v824 = vmul.f32 %v607, %v459
      %v832 = vrot.slane %v818, 1
      %v833 = vrot.slane %v819, 1
      %v834 = vsel %vm319, %v832, %v833
      %v835 = vrot.slane %v820, 1
      %v836 = vsel %vm319, %v833, %v835
      %v837 = vrot.slane %v821, 1
      %v838 = vsel %vm319, %v835, %v837
      %v839 = vrot.slane %v822, 1
      %v840 = vsel %vm319, %v837, %v839
      %v841 = vrot.slane %v823, 1
      %v842 = vsel %vm319, %v839, %v841
      %v843 = vrot.slane %v824, 1
      %v844 = vsel %vm319, %v841, %v843
      %v851 = vadd.f32 %v812, %v834
      %v852 = vadd.f32 %v813, %v836
      %v853 = vadd.f32 %v814, %v838
      %v854 = vadd.f32 %v815, %v840
      %v855 = vadd.f32 %v816, %v842
      %v856 = vadd.f32 %v817, %v844
      %v857 = vmul.f32 %v557, %v505
      %v858 = vmul.f32 %v562, %v505
      %v859 = vmul.f32 %v567, %v505
      %v860 = vmul.f32 %v572, %v505
      %v861 = vmul.f32 %v577, %v505
      %v862 = vmul.f32 %v582, %v505
      %v863 = vmul.f32 %v607, %v505
      %v871 = vrot.slane %v857, 2
      %v872 = vrot.slane %v858, 2
      %v873 = vsel %vm366, %v871, %v872
      %v874 = vrot.slane %v859, 2
      %v875 = vsel %vm366, %v872, %v874
      %v876 = vrot.slane %v860, 2
      %v877 = vsel %vm366, %v874, %v876
      %v878 = vrot.slane %v861, 2
      %v879 = vsel %vm366, %v876, %v878
      %v880 = vrot.slane %v862, 2
      %v881 = vsel %vm366, %v878, %v880
      %v882 = vrot.slane %v863, 2
      %v883 = vsel %vm366, %v880, %v882
      %v890 = vadd.f32 %v851, %v873
      %v891 = vadd.f32 %v852, %v875
      %v892 = vadd.f32 %v853, %v877
      %v893 = vadd.f32 %v854, %v879
      %v894 = vadd.f32 %v855, %v881
      %v895 = vadd.f32 %v856, %v883
      %v896 = vunpack.c.l.bf16 %v231
      %v897 = vunpack.c.l.bf16 %v232
      %v898 = vunpack.c.l.bf16 %v233
      %v899 = vunpack.c.l.bf16 %v234
      %v900 = vunpack.c.l.bf16 %v235
      %v901 = vunpack.c.l.bf16 %v236
      %903 = vset.pattern.permute.xlu0 0
      %904 = vperm.xlu0 %903, %v896
      %v905 = vpop.permute.xlu0 %904
      %908 = vset.pattern.permute.xlu0 0
      %909 = vperm.xlu0 %908, %v897
      %v910 = vpop.permute.xlu0 %909
      %913 = vset.pattern.permute.xlu0 0
      %914 = vperm.xlu0 %913, %v898
      %v915 = vpop.permute.xlu0 %914
      %918 = vset.pattern.permute.xlu0 0
      %919 = vperm.xlu0 %918, %v899
      %v920 = vpop.permute.xlu0 %919
      %923 = vset.pattern.permute.xlu0 0
      %924 = vperm.xlu0 %923, %v900
      %v925 = vpop.permute.xlu0 %924
      %928 = vset.pattern.permute.xlu0 0
      %929 = vperm.xlu0 %928, %v901
      %v930 = vpop.permute.xlu0 %929
      %v932 = vmul.f32 %v905, %v587
      %v933 = vmul.f32 %v910, %v587
      %v934 = vmul.f32 %v915, %v587
      %v935 = vmul.f32 %v920, %v587
      %v936 = vmul.f32 %v925, %v587
      %v937 = vmul.f32 %v930, %v587
      %v938 = vadd.f32 %v890, %v932
      %v939 = vadd.f32 %v891, %v933
      %v940 = vadd.f32 %v892, %v934
      %v941 = vadd.f32 %v893, %v935
      %v942 = vadd.f32 %v894, %v936
      %v943 = vadd.f32 %v895, %v937
      %v944 = vunpack.c.l.bf16 %v237
      %946 = vset.pattern.permute.xlu0 0
      %947 = vperm.xlu0 %946, %v944
      %v948 = vpop.permute.xlu0 %947
      %v950 = vmul.f32 %v905, %v612
      %v951 = vmul.f32 %v910, %v612
      %v952 = vmul.f32 %v915, %v612
      %v953 = vmul.f32 %v920, %v612
      %v954 = vmul.f32 %v925, %v612
      %v955 = vmul.f32 %v930, %v612
      %v956 = vmul.f32 %v948, %v612
      %v964 = vrot.slane %v950, 1
      %v965 = vrot.slane %v951, 1
      %v966 = vsel %vm319, %v964, %v965
      %v967 = vrot.slane %v952, 1
      %v968 = vsel %vm319, %v965, %v967
      %v969 = vrot.slane %v953, 1
      %v970 = vsel %vm319, %v967, %v969
      %v971 = vrot.slane %v954, 1
      %v972 = vsel %vm319, %v969, %v971
      %v973 = vrot.slane %v955, 1
      %v974 = vsel %vm319, %v971, %v973
      %v975 = vrot.slane %v956, 1
      %v976 = vsel %vm319, %v973, %v975
      %v983 = vadd.f32 %v938, %v966
      %v984 = vadd.f32 %v939, %v968
      %v985 = vadd.f32 %v940, %v970
      %v986 = vadd.f32 %v941, %v972
      %v987 = vadd.f32 %v942, %v974
      %v988 = vadd.f32 %v943, %v976
      %v989 = vmul.f32 %v905, %v658
      %v990 = vmul.f32 %v910, %v658
      %v991 = vmul.f32 %v915, %v658
      %v992 = vmul.f32 %v920, %v658
      %v993 = vmul.f32 %v925, %v658
      %v994 = vmul.f32 %v930, %v658
      %v995 = vmul.f32 %v948, %v658
      %v1003 = vrot.slane %v989, 2
      %v1004 = vrot.slane %v990, 2
      %v1005 = vsel %vm366, %v1003, %v1004
      %v1006 = vrot.slane %v991, 2
      %v1007 = vsel %vm366, %v1004, %v1006
      %v1008 = vrot.slane %v992, 2
      %v1009 = vsel %vm366, %v1006, %v1008
      %v1010 = vrot.slane %v993, 2
      %v1011 = vsel %vm366, %v1008, %v1010
      %v1012 = vrot.slane %v994, 2
      %v1013 = vsel %vm366, %v1010, %v1012
      %v1014 = vrot.slane %v995, 2
      %v1015 = vsel %vm366, %v1012, %v1014
      %v1022 = vadd.f32 %v983, %v1005
      %v1023 = vadd.f32 %v984, %v1007
      %v1024 = vadd.f32 %v985, %v1009
      %v1025 = vadd.f32 %v986, %v1011
      %v1026 = vadd.f32 %v987, %v1013
      %v1027 = vadd.f32 %v988, %v1015
      %v1028 = vadd.f32 %v1022, %v702
      %v1029 = vadd.f32 %v1023, %v702
      %v1030 = vadd.f32 %v1024, %v702
      %v1031 = vadd.f32 %v1025, %v702
      %v1032 = vadd.f32 %v1026, %v702
      %v1033 = vadd.f32 %v1027, %v702
      %v1034 = vmax.f32 %v1028, 0.0
      %v1035 = vmax.f32 %v1029, 0.0
      %v1036 = vmax.f32 %v1030, 0.0
      %v1037 = vmax.f32 %v1031, 0.0
      %v1038 = vmax.f32 %v1032, 0.0
      %v1039 = vmax.f32 %v1033, 0.0
      %v1040 = vmax.f32 %v710, %v1034
      %v1041 = vmax.f32 %v711, %v1035
      %v1042 = vmax.f32 %v712, %v1036
      %v1043 = vmax.f32 %v713, %v1037
      %v1044 = vmax.f32 %v714, %v1038
      %v1045 = vmax.f32 %v715, %v1039
      %v1046 = vlaneseq
      %v1047 = vshrl.u32 %v1046, 7
      %v1048 = vadd.s32 %v1047, 8
      %v1049 = vadd.s32 %v1047, 16
      %v1050 = vlaneseq
      %v1051 = vand.u32 %v1050, 127
      %v1052 = vmul.u32 %v1047, 2
      %v1053 = vmul.u32 %v1048, 2
      %v1054 = vmul.u32 %v1049, 2
      %vm1055 = vcmp.eq.s32.totalorder %v1051, %v1052
      %vm1056 = vcmp.eq.s32.totalorder %v1051, %v1053
      %vm1057 = vcmp.eq.s32.totalorder %v1051, %v1054
      %v1058 = vsel %vm1055, 1, 0
      %v1059 = vsel %vm1056, 1, 0
      %v1060 = vsel %vm1057, 1, 0
      %v1061 = vcvt.s32.f32 %v1058
      %v1062 = vcvt.s32.f32 %v1059
      %v1063 = vcvt.s32.f32 %v1060
      %v1064 = vadd.s32 %v1052, 1
      %v1065 = vadd.s32 %v1053, 1
      %v1066 = vadd.s32 %v1054, 1
      %vm1067 = vcmp.eq.s32.totalorder %v1051, %v1064
      %vm1068 = vcmp.eq.s32.totalorder %v1051, %v1065
      %vm1069 = vcmp.eq.s32.totalorder %v1051, %v1066
      %v1070 = vsel %vm1067, 1, 0
      %v1071 = vsel %vm1068, 1, 0
      %v1072 = vsel %vm1069, 1, 0
      %v1073 = vcvt.s32.f32 %v1070
      %v1074 = vcvt.s32.f32 %v1071
      %v1075 = vcvt.s32.f32 %v1072
      %vm1076 = vcmask 392192
      %v1078 = vsel %vm1076, %v1061, 0
      %v1081 = vsel %vm1076, %v1062, 0
      %v1084 = vsel %vm1076, %v1063, 0
      %1086 = vmatprep.subr.mxu0 0.0
      %1087 = vmatpush1.msra.mxu0 0.0
      %1088 = vmatprep.subr.mxu0 0.0
      %1089 = vmatpush1.msra.mxu0 0.0
      %1090 = vmatprep.subr.mxu0 0.0
      %1091 = vmatpush1.msra.mxu0 0.0
      %1092 = vmatprep.subr.mxu0 0.0
      %1093 = vmatpush1.msra.mxu0 0.0
      %1094 = vmatprep.subr.mxu0 0.0
      %1095 = vmatpush1.msra.mxu0 0.0
      %1096 = vmatprep.subr.mxu0 0.0
      %1097 = vmatpush1.msra.mxu0 0.0
      %1098 = vmatprep.subr.mxu0 0.0
      %1099 = vmatpush1.msra.mxu0 0.0
      %1100 = vmatprep.subr.mxu0 0.0
      %1101 = vmatpush1.msra.mxu0 0.0
      %1102 = vmatprep.subr.mxu0 0.0
      %1103 = vmatpush1.msra.mxu0 0.0
      %1104 = vmatprep.subr.mxu0 0.0
      %1105 = vmatpush1.msra.mxu0 0.0
      %1106 = vmatprep.subr.mxu0 0.0
      %1107 = vmatpush1.msra.mxu0 %v1045
      %1108 = vmatprep.subr.mxu0 0.0
      %1109 = vmatpush1.msra.mxu0 %v1044
      %1110 = vmatprep.subr.mxu0 0.0
      %1111 = vmatpush1.msra.mxu0 %v1043
      %1112 = vmatprep.subr.mxu0 0.0
      %1113 = vmatpush1.msra.mxu0 %v1042
      %1114 = vmatprep.subr.mxu0 0.0
      %1115 = vmatpush1.msra.mxu0 %v1041
      %1116 = vmatprep.subr.mxu0 0.0
      %1117 = vmatpush1.msra.mxu0 %v1040
      %1118 = vmatprep.subr.mxu0 0.0
      %1119 = vmatpush2.msra.mxu0 0.0
      %1120 = vmatprep.subr.mxu0 0.0
      %1121 = vmatpush2.msra.mxu0 0.0
      %1122 = vmatprep.subr.mxu0 0.0
      %1123 = vmatpush2.msra.mxu0 0.0
      %1124 = vmatprep.subr.mxu0 0.0
      %1125 = vmatpush2.msra.mxu0 0.0
      %1126 = vmatprep.subr.mxu0 0.0
      %1127 = vmatpush2.msra.mxu0 0.0
      %1128 = vmatprep.subr.mxu0 0.0
      %1129 = vmatpush2.msra.mxu0 0.0
      %1130 = vmatprep.subr.mxu0 0.0
      %1131 = vmatpush2.msra.mxu0 0.0
      %1132 = vmatprep.subr.mxu0 0.0
      %1133 = vmatpush2.msra.mxu0 0.0
      %1134 = vmatprep.subr.mxu0 0.0
      %1135 = vmatpush2.msra.mxu0 0.0
      %1136 = vmatprep.subr.mxu0 0.0
      %1137 = vmatpush2.msra.mxu0 0.0
      %1138 = vmatprep.subr.mxu0 0.0
      %1139 = vmatpush2.msra.mxu0 0.0
      %1140 = vmatprep.subr.mxu0 0.0
      %1141 = vmatpush2.msra.mxu0 0.0
      %1142 = vmatprep.subr.mxu0 0.0
      %1143 = vmatpush2.msra.mxu0 0.0
      %1144 = vmatprep.subr.mxu0 0.0
      %1145 = vmatpush2.msra.mxu0 0.0
      %1146 = vmatprep.subr.mxu0 0.0
      %1147 = vmatpush2.msra.mxu0 0.0
      %1148 = vmatprep.subr.mxu0 0.0
      %1149 = vmatpush2.msra.mxu0 0.0
      %1150 = vmatprep.mubr.f32.mxu0 0.0
      %1151 = vmatmul.mubr.f32.gmra.mxu0 %v1078
      %v1152 = vpop.f32.mrf.mxu0
      %v1153 = vadd.f32 0.0, %v1152
      %v1154 = vpop.f32.mrf.mxu0
      %1155 = vmatprep.mubr.f32.mxu0 0.0
      %1156 = vmatmul.mubr.f32.gmra.mxu0 %v1081
      %v1157 = vpop.f32.mrf.mxu0
      %v1158 = vadd.f32 0.0, %v1157
      %v1159 = vpop.f32.mrf.mxu0
      %1160 = vmatprep.mubr.f32.mxu0 0.0
      %1161 = vmatmul.mubr.f32.gmra.mxu0 %v1084
      %v1162 = vpop.f32.mrf.mxu0
      %v1163 = vadd.f32 0.0, %v1162
      %v1164 = vpop.f32.mrf.mxu0
      %1165 = vdwg.mxu0
      %v1167 = vsel %vm1076, %v1073, 0
      %v1170 = vsel %vm1076, %v1074, 0
      %v1173 = vsel %vm1076, %v1075, 0
      %1175 = vmatprep.subr.mxu0 0.0
      %1176 = vmatpush1.msra.mxu0 0.0
      %1177 = vmatprep.subr.mxu0 0.0
      %1178 = vmatpush1.msra.mxu0 0.0
      %1179 = vmatprep.subr.mxu0 0.0
      %1180 = vmatpush1.msra.mxu0 0.0
      %1181 = vmatprep.subr.mxu0 0.0
      %1182 = vmatpush1.msra.mxu0 0.0
      %1183 = vmatprep.subr.mxu0 0.0
      %1184 = vmatpush1.msra.mxu0 0.0
      %1185 = vmatprep.subr.mxu0 0.0
      %1186 = vmatpush1.msra.mxu0 0.0
      %1187 = vmatprep.subr.mxu0 0.0
      %1188 = vmatpush1.msra.mxu0 0.0
      %1189 = vmatprep.subr.mxu0 0.0
      %1190 = vmatpush1.msra.mxu0 0.0
      %1191 = vmatprep.subr.mxu0 0.0
      %1192 = vmatpush1.msra.mxu0 0.0
      %1193 = vmatprep.subr.mxu0 0.0
      %1194 = vmatpush1.msra.mxu0 0.0
      %1195 = vmatprep.subr.mxu0 0.0
      %1196 = vmatpush1.msra.mxu0 %v1045
      %1197 = vmatprep.subr.mxu0 0.0
      %1198 = vmatpush1.msra.mxu0 %v1044
      %1199 = vmatprep.subr.mxu0 0.0
      %1200 = vmatpush1.msra.mxu0 %v1043
      %1201 = vmatprep.subr.mxu0 0.0
      %1202 = vmatpush1.msra.mxu0 %v1042
      %1203 = vmatprep.subr.mxu0 0.0
      %1204 = vmatpush1.msra.mxu0 %v1041
      %1205 = vmatprep.subr.mxu0 0.0
      %1206 = vmatpush1.msra.mxu0 %v1040
      %1207 = vmatprep.subr.mxu0 0.0
      %1208 = vmatpush2.msra.mxu0 0.0
      %1209 = vmatprep.subr.mxu0 0.0
      %1210 = vmatpush2.msra.mxu0 0.0
      %1211 = vmatprep.subr.mxu0 0.0
      %1212 = vmatpush2.msra.mxu0 0.0
      %1213 = vmatprep.subr.mxu0 0.0
      %1214 = vmatpush2.msra.mxu0 0.0
      %1215 = vmatprep.subr.mxu0 0.0
      %1216 = vmatpush2.msra.mxu0 0.0
      %1217 = vmatprep.subr.mxu0 0.0
      %1218 = vmatpush2.msra.mxu0 0.0
      %1219 = vmatprep.subr.mxu0 0.0
      %1220 = vmatpush2.msra.mxu0 0.0
      %1221 = vmatprep.subr.mxu0 0.0
      %1222 = vmatpush2.msra.mxu0 0.0
      %1223 = vmatprep.subr.mxu0 0.0
      %1224 = vmatpush2.msra.mxu0 0.0
      %1225 = vmatprep.subr.mxu0 0.0
      %1226 = vmatpush2.msra.mxu0 0.0
      %1227 = vmatprep.subr.mxu0 0.0
      %1228 = vmatpush2.msra.mxu0 0.0
      %1229 = vmatprep.subr.mxu0 0.0
      %1230 = vmatpush2.msra.mxu0 0.0
      %1231 = vmatprep.subr.mxu0 0.0
      %1232 = vmatpush2.msra.mxu0 0.0
      %1233 = vmatprep.subr.mxu0 0.0
      %1234 = vmatpush2.msra.mxu0 0.0
      %1235 = vmatprep.subr.mxu0 0.0
      %1236 = vmatpush2.msra.mxu0 0.0
      %1237 = vmatprep.subr.mxu0 0.0
      %1238 = vmatpush2.msra.mxu0 0.0
      %1239 = vmatprep.mubr.f32.mxu0 0.0
      %1240 = vmatmul.mubr.f32.gmra.mxu0 %v1167
      %v1241 = vpop.f32.mrf.mxu0
      %v1242 = vadd.f32 0.0, %v1241
      %v1243 = vpop.f32.mrf.mxu0
      %1244 = vmatprep.mubr.f32.mxu0 0.0
      %1245 = vmatmul.mubr.f32.gmra.mxu0 %v1170
      %v1246 = vpop.f32.mrf.mxu0
      %v1247 = vadd.f32 0.0, %v1246
      %v1248 = vpop.f32.mrf.mxu0
      %1249 = vmatprep.mubr.f32.mxu0 0.0
      %1250 = vmatmul.mubr.f32.gmra.mxu0 %v1173
      %v1251 = vpop.f32.mrf.mxu0
      %v1252 = vadd.f32 0.0, %v1251
      %v1253 = vpop.f32.mrf.mxu0
      %1254 = vdwg.mxu0
      %v1255 = vmax.f32 %v1153, %v1242
      %v1256 = vmax.f32 %v1158, %v1247
      %v1257 = vmax.f32 %v1163, %v1252
      %v1258 = vpack.c.bf16 %v1256, %v1255
      %v1259 = vpack.c.bf16 %v1257, %v1257
      %v1262 = vunpack.c.l.b16 %v1258
      %v1263 = vunpack.c.h.b16 %v1258
      %v1264 = vunpack.c.l.b16 %v1259
      %v1265 = vpack.c.b16 %v1262, %v1262
      %v1266 = vpack.c.b16 %v1263, %v1263
      %v1267 = vpack.c.b16 %v1264, %v1264
      %vm1271 = vcmask 257024
      %1272 = vst.msk [vmem:[%s192] sm:$0xf] %vm1271, %v1265
      %1273 = vst.msk [vmem:[%s192 + $0x4] sm:$0xf] %vm1271, %v1266
      %1274 = vst.msk [vmem:[%s192 + $0x8] sm:$0xf] %vm1271, %v1267
      %p1275 = scmp.lt.s32.totalorder %s18, 1
      %s1276 = scalar_select %p1275, %s18, 1
      %p1277 = scmp.lt.s32.totalorder %s19, 23
      %s1278 = scalar_select %p1277, %s19, 23
      %s1279 = smul.addr %s1278, 3
      %s1280 = smul.addr %s1276, 72
      %s1281 = sadd.s32 %s1279, %s1280
      %s1282 = smul.addr %s1281, 4
      %s1283 = scalar_lea.vmem %s3, %s1282
      // Predicated region
      $region33: #{emotion_cnn_forward.4} parent=31 // pred_check
        %p1284 = pneg %p114
      $region34: #{emotion_cnn_forward.4} parent=31 // pred_check_branch
        %1286 = sbr.rel (%p1284) target = $region36
      $region35: #{emotion_cnn_forward.4} parent=31 // pred_region
        _
      $region36: #{emotion_cnn_forward.4} parent=31 // pred_fallthru
        _
    $region32: #{emotion_cnn_forward.4} parent=5 // pred_fallthru
      _
    %p1287 = scmp.le.s32.totalorder 2, %s9
    // Predicated region
    $region37: #{emotion_cnn_forward.4} parent=5 // pred_check
      %p1288 = pneg %p1287
    $region38: #{emotion_cnn_forward.4} parent=5 // pred_check_branch
      %1290 = sbr.rel (%p1288) target = $region40
    $region39: #{emotion_cnn_forward.4} parent=5 // pred_region
      %s1291 = ssub.s32 %s9, 2
      // Predicated region
      $region41: #{emotion_cnn_forward.4} parent=39 // pred_check
        %p1292 = pneg %p120
      $region42: #{emotion_cnn_forward.4} parent=39 // pred_check_branch
        %1294 = sbr.rel (%p1292) target = $region44
      $region43: #{emotion_cnn_forward.4} parent=39 // pred_region
        %p1295 = scmp.lt.s32.totalorder %s20, 1
        %s1296 = scalar_select %p1295, %s20, 1
        %p1297 = scmp.lt.s32.totalorder %s21, 23
        %s1298 = scalar_select %p1297, %s21, 23
        %s1299 = smul.addr %s1298, 3
        %s1300 = smul.addr %s1296, 72
        %s1301 = sadd.s32 %s1299, %s1300
        %s1302 = smul.addr %s1301, 4
        %s1303 = scalar_lea.vmem %s3, %s1302
      $region44: #{emotion_cnn_forward.4} parent=39 // pred_fallthru
        _
    $region40: #{emotion_cnn_forward.4} parent=5 // pred_fallthru
      _
  $region6: #{emotion_cnn_forward.4} parent=0 // loop_footer
    %s13 = sadd.s32 1, %s9
  $region7: #{emotion_cnn_forward.4} parent=0 // loop_footer_branch
    %8 = sbr.rel target = $region3
  $region8: #{emotion_cnn_forward.4} parent=0 // loop_exit
    _

// kernel: emotion_cnn_forward.5
$region0: #{emotion_cnn_forward.5}
  #allocation0 [shape = 'u32[]', space=smem, size = 0x4, offset = 0x4, fixed_abs, tag = 'smem constant byte address 0x4 - core index']
  #allocation1 [shape = 'u32[144,128]{1,0:T(1,128)}', space=vmem, size = 0x12000, scoped, tag = 'internal scratch']
  %s0 = inlined_call_operand.vmem [shape: bf16[2,26,26,32], index: 0, kind: input, shape index: {}]
  %s1 = inlined_call_operand.vmem [shape: bf16[3,3,32,64], index: 1, kind: input, shape index: {}]
  %s2 = inlined_call_operand.vmem [shape: f32[1,64], index: 2, kind: input, shape index: {}]
  %s3 = inlined_call_operand.vmem [shape: bf16[2,12,12,64], index: 3, kind: output, shape index: {}]
  %s4 = sld [smem:[#allocation0]]
  $region45: #{emotion_cnn_forward.5} parent=0
    _
  %s6 = ssub.s32 1, %s4
  %s7 = scalar_select 0, %s6, %s4
  loop: start=0, step=1, limit=26
  $region2: #{emotion_cnn_forward.5} parent=0 // loop_pre_header
    _
  $region3: #{emotion_cnn_forward.5} parent=0 // loop_header
    %s9 = sphi 0, %s13
    %p10 = scmp.ge.s32.totalorder %s9, 26
    %s16 = sphi 0, %s28
    %s17 = sphi 0, %s24
    %s18 = sphi 0, %s16
    %s19 = sphi 0, %s17
    %s20 = sphi 0, %s18
    %s21 = sphi 0, %s19
    %s31 = sphi 0, %s33
    %s34 = sphi 0, %s31
    %s35 = sphi 0, %s34
    %s51 = sphi 0, %s35
    %s55 = sphi 0, %s55
    %s57 = sphi 0, %s55
    %s58 = sphi 0, %s57
    %s72 = sphi 0, %s58
    %s76 = sphi 0, %s76
    %s78 = sphi 0, %s76
    %s79 = sphi 0, %s78
    %s93 = sphi 0, %s79
    %s101 = sphi 0, %s103
    %s104 = sphi 0, %s101
    %s105 = sphi 0, %s104
    %s121 = sphi 0, %s105
  $region4: #{emotion_cnn_forward.5} parent=0 // loop_header_branch
    %12 = sbr.rel (%p10) target = $region8
  $region5: #{emotion_cnn_forward.5} parent=0 // loop_body
    %s14 = ssub.s32 %s9, 1
    %s15 = ssub.s32 %s9, 2
    %s22 = sadd.s32 1, %s17
    %p23 = scmp.ge.s32.totalorder %s22, 12
    %s24 = scalar_select %p23, 0, %s22
    %s25 = sadd.s32 1, %s16
    %s26 = scalar_select %p23, %s25, %s16
    %p27 = scmp.ge.s32.totalorder %s26, 2
    %s28 = scalar_select %p27, 0, %s26
    %s29 = ssub.s32 %s16, %s28
    %p30 = scmp.eq.s32.totalorder %s29, 0
    %s32 = sadd.s32 %s31, 1
    %s33 = scalar_select %p30, %s31, %s32
    %p36 = pneg %p30
    %p37 = scmp.eq.s32.totalorder %s9, 23
    %p38 = por %p36, %p37
    %p39 = scmp.ne.s32.totalorder %s31, %s34
    %p40 = scmp.eq.s32.totalorder %s9, 0
    %p41 = por %p39, %p40
    %p42 = scmp.ne.s32.totalorder %s31, %s34
    %p43 = scmp.eq.s32.totalorder %s14, 23
    %p44 = por %p42, %p43
    %p45 = scmp.ne.s32.totalorder %s34, %s35
    %p46 = scmp.eq.s32.totalorder %s14, 0
    %p47 = por %p45, %p46
    %p48 = scmp.ne.s32.totalorder %s34, %s35
    %p49 = scmp.eq.s32.totalorder %s15, 23
    %p50 = por %p48, %p49
    %p52 = scmp.ne.s32.totalorder %s35, %s51
    %p53 = scmp.eq.s32.totalorder %s15, 0
    %p54 = por %p52, %p53
    %s56 = sadd.s32 %s55, 1
    %p59 = scmp.eq.s32.totalorder %s9, 23
    %p60 = scmp.ne.s32.totalorder %s55, %s57
    %p61 = scmp.eq.s32.totalorder %s9, 0
    %p62 = por %p60, %p61
    %p63 = scmp.ne.s32.totalorder %s55, %s57
    %p64 = scmp.eq.s32.totalorder %s14, 23
    %p65 = por %p63, %p64
    %p66 = scmp.ne.s32.totalorder %s57, %s58
    %p67 = scmp.eq.s32.totalorder %s14, 0
    %p68 = por %p66, %p67
    %p69 = scmp.ne.s32.totalorder %s57, %s58
    %p70 = scmp.eq.s32.totalorder %s15, 23
    %p71 = por %p69, %p70
    %p73 = scmp.ne.s32.totalorder %s58, %s72
    %p74 = scmp.eq.s32.totalorder %s15, 0
    %p75 = por %p73, %p74
    %s77 = sadd.s32 %s76, 1
    %p80 = scmp.eq.s32.totalorder %s9, 23
    %p81 = scmp.ne.s32.totalorder %s76, %s78
    %p82 = scmp.eq.s32.totalorder %s9, 0
    %p83 = por %p81, %p82
    %p84 = scmp.ne.s32.totalorder %s76, %s78
    %p85 = scmp.eq.s32.totalorder %s14, 23
    %p86 = por %p84, %p85
    %p87 = scmp.ne.s32.totalorder %s78, %s79
    %p88 = scmp.eq.s32.totalorder %s14, 0
    %p89 = por %p87, %p88
    %p90 = scmp.ne.s32.totalorder %s78, %s79
    %p91 = scmp.eq.s32.totalorder %s15, 23
    %p92 = por %p90, %p91
    %p94 = scmp.ne.s32.totalorder %s79, %s93
    %p95 = scmp.eq.s32.totalorder %s15, 0
    %p96 = por %p94, %p95
    %s97 = ssub.s32 %s16, %s28
    %s98 = ssub.s32 %s17, %s24
    %s99 = sor.u32 %s97, %s98
    %p100 = scmp.eq.s32.totalorder %s99, 0
    %s102 = sadd.s32 %s101, 1
    %s103 = scalar_select %p100, %s101, %s102
    %p106 = pneg %p100
    %p107 = scmp.eq.s32.totalorder %s9, 23
    %p108 = por %p106, %p107
    %p109 = scmp.ne.s32.totalorder %s101, %s104
    %p110 = scmp.eq.s32.totalorder %s9, 0
    %p111 = por %p109, %p110
    %p112 = scmp.ne.s32.totalorder %s101, %s104
    %p113 = scmp.eq.s32.totalorder %s14, 23
    %p114 = por %p112, %p113
    %p115 = scmp.ne.s32.totalorder %s104, %s105
    %p116 = scmp.eq.s32.totalorder %s14, 0
    %p117 = por %p115, %p116
    %p118 = scmp.ne.s32.totalorder %s104, %s105
    %p119 = scmp.eq.s32.totalorder %s15, 23
    %p120 = por %p118, %p119
    %p122 = scmp.ne.s32.totalorder %s105, %s121
    %p123 = scmp.eq.s32.totalorder %s15, 0
    %p124 = por %p122, %p123
    %p125 = scmp.le.s32.totalorder 1, %s9
    %p126 = scmp.lt.s32.totalorder %s9, 25
    %p127 = pnand %p125, %p126
    %p128 = pneg %p127
    // Predicated region
    $region9: #{emotion_cnn_forward.5} parent=5 // pred_check
      _
    $region10: #{emotion_cnn_forward.5} parent=5 // pred_check_branch
      %130 = sbr.rel (%p127) target = $region12
    $region11: #{emotion_cnn_forward.5} parent=5 // pred_region
      %s131 = ssub.s32 %s9, 1
      // Predicated region
      $region13: #{emotion_cnn_forward.5} parent=11 // pred_check
        %p132 = pneg %p68
      $region14: #{emotion_cnn_forward.5} parent=11 // pred_check_branch
        %134 = sbr.rel (%p132) target = $region16
      $region15: #{emotion_cnn_forward.5} parent=11 // pred_region
        _
      $region16: #{emotion_cnn_forward.5} parent=11 // pred_fallthru
        _
      // Predicated region
      $region17: #{emotion_cnn_forward.5} parent=11 // pred_check
        %p135 = pneg %p89
      $region18: #{emotion_cnn_forward.5} parent=11 // pred_check_branch
        %137 = sbr.rel (%p135) target = $region20
      $region19: #{emotion_cnn_forward.5} parent=11 // pred_region
        _
      $region20: #{emotion_cnn_forward.5} parent=11 // pred_fallthru
        _
    $region12: #{emotion_cnn_forward.5} parent=5 // pred_fallthru
      _
    %p138 = scmp.lt.s32.totalorder %s9, 24
    // Predicated region
    $region21: #{emotion_cnn_forward.5} parent=5 // pred_check
      %p139 = pneg %p138
    $region22: #{emotion_cnn_forward.5} parent=5 // pred_check_branch
      %141 = sbr.rel (%p139) target = $region24
    $region23: #{emotion_cnn_forward.5} parent=5 // pred_region
      // Predicated region
      $region25: #{emotion_cnn_forward.5} parent=23 // pred_check
        %p142 = pneg %p41
      $region26: #{emotion_cnn_forward.5} parent=23 // pred_check_branch
        %144 = sbr.rel (%p142) target = $region28
      $region27: #{emotion_cnn_forward.5} parent=23 // pred_region
        %p145 = scmp.lt.s32.totalorder %s16, 1
        %s146 = scalar_select %p145, %s16, 1
        %s147 = smul.addr %s146, 104
        %s148 = smul.addr %s147, 4
        %s149 = scalar_lea.vmem %s0, %s148
      $region28: #{emotion_cnn_forward.5} parent=23 // pred_fallthru
        _
    $region24: #{emotion_cnn_forward.5} parent=5 // pred_fallthru
      _
    %p150 = scmp.le.s32.totalorder 1, %s9
    %p151 = scmp.lt.s32.totalorder %s9, 25
    %p152 = pnand %p150, %p151
    %p153 = pneg %p152
    // Predicated region
    $region29: #{emotion_cnn_forward.5} parent=5 // pred_check
      _
    $region30: #{emotion_cnn_forward.5} parent=5 // pred_check_branch
      %155 = sbr.rel (%p152) target = $region32
    $region31: #{emotion_cnn_forward.5} parent=5 // pred_region
      %s156 = ssub.s32 %s9, 1
      %p157 = scmp.lt.s32.totalorder %s18, 1
      %s158 = scalar_select %p157, %s18, 1
      %s159 = smul.addr %s158, 104
      %s160 = smul.addr %s159, 4
      %s161 = scalar_lea.vmem %s0, %s160
      %p162 = pneg %p47
      %p163 = pneg %p44
      %p164 = pneg %p68
      %p165 = pneg %p65
      %p166 = pneg %p89
      %p167 = pneg %p86
      %p168 = pneg %p117
      %p169 = pneg %p114
      %p170 = scmp.lt.s32.totalorder %s18, 1
      %s171 = scalar_select %p170, %s18, 1
      %p172 = scmp.lt.s32.totalorder %s19, 11
      %s173 = scalar_select %p172, %s19, 11
      %s174 = smul.addr %s173, 2
      %s175 = smul.addr %s171, 24
      %s176 = sadd.s32 %s174, %s175
      %s177 = smul.addr %s176, 4
      %s178 = scalar_lea.vmem %s3, %s177
      %p179 = scmp.lt.s32.totalorder %s18, 1
      %s180 = scalar_select %p179, %s18, 1
      %s181 = smul.addr %s180, 104
      %s182 = smul.addr %s181, 4
      %s183 = scalar_lea.vmem %s0, %s182
      %p184 = scmp.lt.s32.totalorder %s18, 1
      %s185 = scalar_select %p184, %s18, 1
      %p186 = scmp.lt.s32.totalorder %s19, 11
      %s187 = scalar_select %p186, %s19, 11
      %s188 = smul.addr %s187, 2
      %s189 = smul.addr %s185, 24
      %s190 = sadd.s32 %s188, %s189
      %s191 = smul.addr %s190, 4
      %s192 = scalar_lea.vmem %s3, %s191
      %s194 = smul.u32 %s19, 2
      %v195 = vld [vmem:[%s2] sm:$0x1]
      %s196 = smul.u32 %s194, 4
      %s197 = smul.addr %s196, 4
      %s198 = scalar_lea.vmem %s183, %s197
      %v199 = vld [vmem:[%s198] sm:$0xf]
      %v200 = vld [vmem:[%s198 + $0x4] sm:$0xf]
      %v201 = vld [vmem:[%s198 + $0x8] sm:$0xf]
      %v202 = vld [vmem:[%s198 + $0xc] sm:$0x1]
      %s203 = sadd.s32 %s194, 1
      %s204 = smul.u32 %s203, 4
      %s205 = smul.addr %s204, 4
      %s206 = scalar_lea.vmem %s183, %s205
      %v207 = vld [vmem:[%s206] sm:$0xf]
      %v208 = vld [vmem:[%s206 + $0x4] sm:$0xf]
      %v209 = vld [vmem:[%s206 + $0x8] sm:$0xf]
      %v210 = vld [vmem:[%s206 + $0xc] sm:$0x1]
      %s211 = sadd.s32 %s194, 2
      %s212 = smul.u32 %s211, 4
      %s213 = smul.addr %s212, 4
      %s214 = scalar_lea.vmem %s183, %s213
      %v215 = vld [vmem:[%s214] sm:$0xf]
      %v216 = vld [vmem:[%s214 + $0x4] sm:$0xf]
      %v217 = vld [vmem:[%s214 + $0x8] sm:$0xf]
      %v218 = vld [vmem:[%s214 + $0xc] sm:$0x1]
      %s219 = sadd.s32 %s194, 3
      %s220 = smul.u32 %s219, 4
      %s221 = smul.addr %s220, 4
      %s222 = scalar_lea.vmem %s183, %s221
      %v223 = vld [vmem:[%s222] sm:$0xf]
      %v224 = vld [vmem:[%s222 + $0x4] sm:$0xf]
      %v225 = vld [vmem:[%s222 + $0x8] sm:$0xf]
      %v226 = vld [vmem:[%s222 + $0xc] sm:$0x1]
      %v227 = vld [vmem:[%s1] sm:$0xf]
      %v228 = vld [vmem:[%s1 + $0x4] sm:$0xf]
      %v229 = vld [vmem:[%s1 + $0x8] sm:$0xf]
      %v230 = vld [vmem:[%s1 + $0xc] sm:$0xf]
      %s231 = scalar_lea.vmem %s1, 16
      %v232 = vld [vmem:[%s231] sm:$0xf]
      %v233 = vld [vmem:[%s231 + $0x4] sm:$0xf]
      %v234 = vld [vmem:[%s231 + $0x8] sm:$0xf]
      %v235 = vld [vmem:[%s231 + $0xc] sm:$0xf]
      %v240 = vunpack.c.l.b16 %v199
      %v241 = vunpack.c.l.b16 %v200
      %v242 = vunpack.c.l.b16 %v201
      %v243 = vunpack.c.l.b16 %v202
      %v244 = vpack.c.b16 %v241, %v240
      %v245 = vpack.c.b16 %v243, %v242
      %vm246 = vsmask.f32 7424
      %v248 = vshrl.u32 %v244, 16
      %v250 = vshll.u32 %v244, 16
      %v252 = vrot.slane %v250, 1
      %v253 = vor.u32 %v248, %v252
      %v255 = vshll.u32 %v245, 16
      %v257 = vrot.slane %v255, 1
      %v258 = vsel %vm246, %v253, %v257
      %v259 = vshrl.u32 %v245, 16
      %v261 = vor.u32 %v259, %v257
      %v266 = vunpack.c.l.b16 %v232
      %v267 = vunpack.c.l.b16 %v233
      %v268 = vunpack.c.l.b16 %v234
      %v269 = vunpack.c.l.b16 %v235
      %v270 = vpack.c.b16 %v267, %v266
      %v271 = vpack.c.b16 %v269, %v268
      %vm274 = vcmask 261120
      %v276 = vsel %vm274, %v258, 0
      %v279 = vsel %vm274, %v261, 0
      %281 = vmatprep.subr.bf16.mxu0 0
      %282 = vmatpush1.bf16.msra.mxu0 0
      %283 = vmatprep.subr.bf16.mxu0 0
      %284 = vmatpush1.bf16.msra.mxu0 0
      %285 = vmatprep.subr.bf16.mxu0 0
      %286 = vmatpush1.bf16.msra.mxu0 0
      %287 = vmatprep.subr.bf16.mxu0 0
      %288 = vmatpush1.bf16.msra.mxu0 0
      %289 = vmatprep.subr.bf16.mxu0 0
      %290 = vmatpush1.bf16.msra.mxu0 0
      %291 = vmatprep.subr.bf16.mxu0 0
      %292 = vmatpush1.bf16.msra.mxu0 0
      %293 = vmatprep.subr.bf16.mxu0 0
      %294 = vmatpush1.bf16.msra.mxu0 %v271
      %295 = vmatprep.subr.bf16.mxu0 0
      %296 = vmatpush1.bf16.msra.mxu0 %v270
      %297 = vmatprep.subr.bf16.mxu0 0
      %298 = vmatpush2.bf16.msra.mxu0 0
      %299 = vmatprep.subr.bf16.mxu0 0
      %300 = vmatpush2.bf16.msra.mxu0 0
      %301 = vmatprep.subr.bf16.mxu0 0
      %302 = vmatpush2.bf16.msra.mxu0 0
      %303 = vmatprep.subr.bf16.mxu0 0
      %304 = vmatpush2.bf16.msra.mxu0 0
      %305 = vmatprep.subr.bf16.mxu0 0
      %306 = vmatpush2.bf16.msra.mxu0 0
      %307 = vmatprep.subr.bf16.mxu0 0
      %308 = vmatpush2.bf16.msra.mxu0 0
      %309 = vmatprep.subr.bf16.mxu0 0
      %310 = vmatpush2.bf16.msra.mxu0 0
      %311 = vmatprep.subr.bf16.mxu0 0
      %312 = vmatpush2.bf16.msra.mxu0 0
      %313 = vmatprep.mubr.bf16.mxu0 0
      %314 = vmatmul.mubr.bf16.gmra.mxu0 %v276
      %v315 = vpop.f32.mrf.mxu0
      %v316 = vadd.f32 0.0, %v315
      %v317 = vpop.f32.mrf.mxu0
      %v318 = vpop.f32.mrf.mxu0
      %v319 = vadd.f32 0.0, %v318
      %v320 = vpop.f32.mrf.mxu0
      %321 = vmatprep.mubr.bf16.mxu0 0
      %322 = vmatmul.mubr.bf16.gmra.mxu0 %v279
      %v323 = vpop.f32.mrf.mxu0
      %v324 = vadd.f32 0.0, %v323
      %v325 = vpop.f32.mrf.mxu0
      %v326 = vpop.f32.mrf.mxu0
      %v327 = vpop.f32.mrf.mxu0
      %328 = vdwg.mxu0
      %v329 = vpack.c.b16 %v242, %v242
      %v334 = vunpack.c.l.b16 %v227
      %v335 = vunpack.c.l.b16 %v228
      %v336 = vunpack.c.l.b16 %v229
      %v337 = vunpack.c.l.b16 %v230
      %v338 = vpack.c.b16 %v335, %v334
      %v339 = vpack.c.b16 %v337, %v336
      %v342 = vsel %vm274, %v244, 0
      %v345 = vsel %vm274, %v329, 0
      %347 = vmatprep.subr.bf16.mxu0 0
      %348 = vmatpush1.bf16.msra.mxu0 0
      %349 = vmatprep.subr.bf16.mxu0 0
      %350 = vmatpush1.bf16.msra.mxu0 0
      %351 = vmatprep.subr.bf16.mxu0 0
      %352 = vmatpush1.bf16.msra.mxu0 0
      %353 = vmatprep.subr.bf16.mxu0 0
      %354 = vmatpush1.bf16.msra.mxu0 0
      %355 = vmatprep.subr.bf16.mxu0 0
      %356 = vmatpush1.bf16.msra.mxu0 0
      %357 = vmatprep.subr.bf16.mxu0 0
      %358 = vmatpush1.bf16.msra.mxu0 0
      %359 = vmatprep.subr.bf16.mxu0 0
      %360 = vmatpush1.bf16.msra.mxu0 %v339
      %361 = vmatprep.subr.bf16.mxu0 0
      %362 = vmatpush1.bf16.msra.mxu0 %v338
      %363 = vmatprep.subr.bf16.mxu0 0
      %364 = vmatpush2.bf16.msra.mxu0 0
      %365 = vmatprep.subr.bf16.mxu0 0
      %366 = vmatpush2.bf16.msra.mxu0 0
      %367 = vmatprep.subr.bf16.mxu0 0
      %368 = vmatpush2.bf16.msra.mxu0 0
      %369 = vmatprep.subr.bf16.mxu0 0
      %370 = vmatpush2.bf16.msra.mxu0 0
      %371 = vmatprep.subr.bf16.mxu0 0
      %372 = vmatpush2.bf16.msra.mxu0 0
      %373 = vmatprep.subr.bf16.mxu0 0
      %374 = vmatpush2.bf16.msra.mxu0 0
      %375 = vmatprep.subr.bf16.mxu0 0
      %376 = vmatpush2.bf16.msra.mxu0 0
      %377 = vmatprep.subr.bf16.mxu0 0
      %378 = vmatpush2.bf16.msra.mxu0 0
      %379 = vmatprep.mubr.bf16.mxu0 0
      %380 = vmatmul.mubr.bf16.gmra.mxu0 %v342
      %v381 = vpop.f32.mrf.mxu0
      %v382 = vadd.f32 %v316, %v381
      %v383 = vpop.f32.mrf.mxu0
      %v384 = vpop.f32.mrf.mxu0
      %v385 = vadd.f32 %v319, %v384
      %v386 = vpop.f32.mrf.mxu0
      %387 = vmatprep.mubr.bf16.mxu0 0
      %388 = vmatmul.mubr.bf16.gmra.mxu0 %v345
      %v389 = vpop.f32.mrf.mxu0
      %v390 = vadd.f32 %v324, %v389
      %v391 = vpop.f32.mrf.mxu0
      %v392 = vpop.f32.mrf.mxu0
      %v393 = vpop.f32.mrf.mxu0
      %394 = vdwg.mxu0
      %s395 = scalar_lea.vmem %s1, 32
      %v396 = vld [vmem:[%s395] sm:$0xf]
      %v397 = vld [vmem:[%s395 + $0x4] sm:$0xf]
      %v398 = vld [vmem:[%s395 + $0x8] sm:$0xf]
      %v399 = vld [vmem:[%s395 + $0xc] sm:$0xf]
      %vm400 = vcmask 1046528
      %v401 = vrot.slane %v244, 1
      %v402 = vrot.slane %v245, 1
      %v403 = vsel %vm400, %v401, %v402
      %v408 = vunpack.c.l.b16 %v396
      %v409 = vunpack.c.l.b16 %v397
      %v410 = vunpack.c.l.b16 %v398
      %v411 = vunpack.c.l.b16 %v399
      %v412 = vpack.c.b16 %v409, %v408
      %v413 = vpack.c.b16 %v411, %v410
      %v417 = vsel %vm274, %v403, 0
      %v420 = vsel %vm274, %v402, 0
      %422 = vmatprep.subr.bf16.mxu0 0
      %423 = vmatpush1.bf16.msra.mxu0 0
      %424 = vmatprep.subr.bf16.mxu0 0
      %425 = vmatpush1.bf16.msra.mxu0 0
      %426 = vmatprep.subr.bf16.mxu0 0
      %427 = vmatpush1.bf16.msra.mxu0 0
      %428 = vmatprep.subr.bf16.mxu0 0
      %429 = vmatpush1.bf16.msra.mxu0 0
      %430 = vmatprep.subr.bf16.mxu0 0
      %431 = vmatpush1.bf16.msra.mxu0 0
      %432 = vmatprep.subr.bf16.mxu0 0
      %433 = vmatpush1.bf16.msra.mxu0 0
      %434 = vmatprep.subr.bf16.mxu0 0
      %435 = vmatpush1.bf16.msra.mxu0 %v413
      %436 = vmatprep.subr.bf16.mxu0 0
      %437 = vmatpush1.bf16.msra.mxu0 %v412
      %438 = vmatprep.subr.bf16.mxu0 0
      %439 = vmatpush2.bf16.msra.mxu0 0
      %440 = vmatprep.subr.bf16.mxu0 0
      %441 = vmatpush2.bf16.msra.mxu0 0
      %442 = vmatprep.subr.bf16.mxu0 0
      %443 = vmatpush2.bf16.msra.mxu0 0
      %444 = vmatprep.subr.bf16.mxu0 0
      %445 = vmatpush2.bf16.msra.mxu0 0
      %446 = vmatprep.subr.bf16.mxu0 0
      %447 = vmatpush2.bf16.msra.mxu0 0
      %448 = vmatprep.subr.bf16.mxu0 0
      %449 = vmatpush2.bf16.msra.mxu0 0
      %450 = vmatprep.subr.bf16.mxu0 0
      %451 = vmatpush2.bf16.msra.mxu0 0
      %452 = vmatprep.subr.bf16.mxu0 0
      %453 = vmatpush2.bf16.msra.mxu0 0
      %454 = vmatprep.mubr.bf16.mxu0 0
      %455 = vmatmul.mubr.bf16.gmra.mxu0 %v417
      %v456 = vpop.f32.mrf.mxu0
      %v457 = vadd.f32 0.0, %v456
      %v458 = vpop.f32.mrf.mxu0
      %v459 = vpop.f32.mrf.mxu0
      %v460 = vadd.f32 0.0, %v459
      %v461 = vpop.f32.mrf.mxu0
      %462 = vmatprep.mubr.bf16.mxu0 0
      %463 = vmatmul.mubr.bf16.gmra.mxu0 %v420
      %v464 = vpop.f32.mrf.mxu0
      %v465 = vadd.f32 0.0, %v464
      %v466 = vpop.f32.mrf.mxu0
      %v467 = vpop.f32.mrf.mxu0
      %v468 = vpop.f32.mrf.mxu0
      %469 = vdwg.mxu0
      %v470 = vadd.f32 %v382, %v457
      %v471 = vadd.f32 %v385, %v460
      %v472 = vadd.f32 %v390, %v465
      %s473 = scalar_lea.vmem %s1, 48
      %v474 = vld [vmem:[%s473] sm:$0xf]
      %v475 = vld [vmem:[%s473 + $0x4] sm:$0xf]
      %v476 = vld [vmem:[%s473 + $0x8] sm:$0xf]
      %v477 = vld [vmem:[%s473 + $0xc] sm:$0xf]
      %v481 = vunpack.c.l.b16 %v207
      %v482 = vunpack.c.l.b16 %v208
      %v483 = vunpack.c.l.b16 %v209
      %v484 = vpack.c.b16 %v482, %v481
      %v485 = vpack.c.b16 %v483, %v483
      %v490 = vunpack.c.l.b16 %v474
      %v491 = vunpack.c.l.b16 %v475
      %v492 = vunpack.c.l.b16 %v476
      %v493 = vunpack.c.l.b16 %v477
      %v494 = vpack.c.b16 %v491, %v490
      %v495 = vpack.c.b16 %v493, %v492
      %v499 = vsel %vm274, %v484, 0
      %v502 = vsel %vm274, %v485, 0
      %504 = vmatprep.subr.bf16.mxu0 0
      %505 = vmatpush1.bf16.msra.mxu0 0
      %506 = vmatprep.subr.bf16.mxu0 0
      %507 = vmatpush1.bf16.msra.mxu0 0
      %508 = vmatprep.subr.bf16.mxu0 0
      %509 = vmatpush1.bf16.msra.mxu0 0
      %510 = vmatprep.subr.bf16.mxu0 0
      %511 = vmatpush1.bf16.msra.mxu0 0
      %512 = vmatprep.subr.bf16.mxu0 0
      %513 = vmatpush1.bf16.msra.mxu0 0
      %514 = vmatprep.subr.bf16.mxu0 0
      %515 = vmatpush1.bf16.msra.mxu0 0
      %516 = vmatprep.subr.bf16.mxu0 0
      %517 = vmatpush1.bf16.msra.mxu0 %v495
      %518 = vmatprep.subr.bf16.mxu0 0
      %519 = vmatpush1.bf16.msra.mxu0 %v494
      %520 = vmatprep.subr.bf16.mxu0 0
      %521 = vmatpush2.bf16.msra.mxu0 0
      %522 = vmatprep.subr.bf16.mxu0 0
      %523 = vmatpush2.bf16.msra.mxu0 0
      %524 = vmatprep.subr.bf16.mxu0 0
      %525 = vmatpush2.bf16.msra.mxu0 0
      %526 = vmatprep.subr.bf16.mxu0 0
      %527 = vmatpush2.bf16.msra.mxu0 0
      %528 = vmatprep.subr.bf16.mxu0 0
      %529 = vmatpush2.bf16.msra.mxu0 0
      %530 = vmatprep.subr.bf16.mxu0 0
      %531 = vmatpush2.bf16.msra.mxu0 0
      %532 = vmatprep.subr.bf16.mxu0 0
      %533 = vmatpush2.bf16.msra.mxu0 0
      %534 = vmatprep.subr.bf16.mxu0 0
      %535 = vmatpush2.bf16.msra.mxu0 0
      %536 = vmatprep.mubr.bf16.mxu0 0
      %537 = vmatmul.mubr.bf16.gmra.mxu0 %v499
      %v538 = vpop.f32.mrf.mxu0
      %v539 = vadd.f32 0.0, %v538
      %v540 = vpop.f32.mrf.mxu0
      %v541 = vpop.f32.mrf.mxu0
      %v542 = vadd.f32 0.0, %v541
      %v543 = vpop.f32.mrf.mxu0
      %544 = vmatprep.mubr.bf16.mxu0 0
      %545 = vmatmul.mubr.bf16.gmra.mxu0 %v502
      %v546 = vpop.f32.mrf.mxu0
      %v547 = vadd.f32 0.0, %v546
      %v548 = vpop.f32.mrf.mxu0
      %v549 = vpop.f32.mrf.mxu0
      %v550 = vpop.f32.mrf.mxu0
      %551 = vdwg.mxu0
      %v552 = vadd.f32 %v470, %v539
      %v553 = vadd.f32 %v471, %v542
      %v554 = vadd.f32 %v472, %v547
      %s555 = scalar_lea.vmem %s1, 64
      %v556 = vld [vmem:[%s555] sm:$0xf]
      %v557 = vld [vmem:[%s555 + $0x4] sm:$0xf]
      %v558 = vld [vmem:[%s555 + $0x8] sm:$0xf]
      %v559 = vld [vmem:[%s555 + $0xc] sm:$0xf]
      %v561 = vunpack.c.l.b16 %v210
      %v562 = vpack.c.b16 %v561, %v483
      %v563 = vshrl.u32 %v484, 16
      %v565 = vshll.u32 %v484, 16
      %v567 = vrot.slane %v565, 1
      %v568 = vor.u32 %v563, %v567
      %v570 = vshll.u32 %v562, 16
      %v572 = vrot.slane %v570, 1
      %v573 = vsel %vm246, %v568, %v572
      %v574 = vshrl.u32 %v562, 16
      %v576 = vor.u32 %v574, %v572
      %v581 = vunpack.c.l.b16 %v556
      %v582 = vunpack.c.l.b16 %v557
      %v583 = vunpack.c.l.b16 %v558
      %v584 = vunpack.c.l.b16 %v559
      %v585 = vpack.c.b16 %v582, %v581
      %v586 = vpack.c.b16 %v584, %v583
      %v590 = vsel %vm274, %v573, 0
      %v593 = vsel %vm274, %v576, 0
      %595 = vmatprep.subr.bf16.mxu0 0
      %596 = vmatpush1.bf16.msra.mxu0 0
      %597 = vmatprep.subr.bf16.mxu0 0
      %598 = vmatpush1.bf16.msra.mxu0 0
      %599 = vmatprep.subr.bf16.mxu0 0
      %600 = vmatpush1.bf16.msra.mxu0 0
      %601 = vmatprep.subr.bf16.mxu0 0
      %602 = vmatpush1.bf16.msra.mxu0 0
      %603 = vmatprep.subr.bf16.mxu0 0
      %604 = vmatpush1.bf16.msra.mxu0 0
      %605 = vmatprep.subr.bf16.mxu0 0
      %606 = vmatpush1.bf16.msra.mxu0 0
      %607 = vmatprep.subr.bf16.mxu0 0
      %608 = vmatpush1.bf16.msra.mxu0 %v586
      %609 = vmatprep.subr.bf16.mxu0 0
      %610 = vmatpush1.bf16.msra.mxu0 %v585
      %611 = vmatprep.subr.bf16.mxu0 0
      %612 = vmatpush2.bf16.msra.mxu0 0
      %613 = vmatprep.subr.bf16.mxu0 0
      %614 = vmatpush2.bf16.msra.mxu0 0
      %615 = vmatprep.subr.bf16.mxu0 0
      %616 = vmatpush2.bf16.msra.mxu0 0
      %617 = vmatprep.subr.bf16.mxu0 0
      %618 = vmatpush2.bf16.msra.mxu0 0
      %619 = vmatprep.subr.bf16.mxu0 0
      %620 = vmatpush2.bf16.msra.mxu0 0
      %621 = vmatprep.subr.bf16.mxu0 0
      %622 = vmatpush2.bf16.msra.mxu0 0
      %623 = vmatprep.subr.bf16.mxu0 0
      %624 = vmatpush2.bf16.msra.mxu0 0
      %625 = vmatprep.subr.bf16.mxu0 0
      %626 = vmatpush2.bf16.msra.mxu0 0
      %627 = vmatprep.mubr.bf16.mxu0 0
      %628 = vmatmul.mubr.bf16.gmra.mxu0 %v590
      %v629 = vpop.f32.mrf.mxu0
      %v630 = vadd.f32 0.0, %v629
      %v631 = vpop.f32.mrf.mxu0
      %v632 = vpop.f32.mrf.mxu0
      %v633 = vadd.f32 0.0, %v632
      %v634 = vpop.f32.mrf.mxu0
      %635 = vmatprep.mubr.bf16.mxu0 0
      %636 = vmatmul.mubr.bf16.gmra.mxu0 %v593
      %v637 = vpop.f32.mrf.mxu0
      %v638 = vadd.f32 0.0, %v637
      %v639 = vpop.f32.mrf.mxu0
      %v640 = vpop.f32.mrf.mxu0
      %v641 = vpop.f32.mrf.mxu0
      %642 = vdwg.mxu0
      %v643 = vadd.f32 %v552, %v630
      %v644 = vadd.f32 %v553, %v633
      %v645 = vadd.f32 %v554, %v638
      %s646 = scalar_lea.vmem %s1, 80
      %v647 = vld [vmem:[%s646] sm:$0xf]
      %v648 = vld [vmem:[%s646 + $0x4] sm:$0xf]
      %v649 = vld [vmem:[%s646 + $0x8] sm:$0xf]
      %v650 = vld [vmem:[%s646 + $0xc] sm:$0xf]
      %v651 = vrot.slane %v484, 1
      %v652 = vrot.slane %v562, 1
      %v653 = vsel %vm400, %v651, %v652
      %v658 = vunpack.c.l.b16 %v647
      %v659 = vunpack.c.l.b16 %v648
      %v660 = vunpack.c.l.b16 %v649
      %v661 = vunpack.c.l.b16 %v650
      %v662 = vpack.c.b16 %v659, %v658
      %v663 = vpack.c.b16 %v661, %v660
      %v667 = vsel %vm274, %v653, 0
      %v670 = vsel %vm274, %v652, 0
      %672 = vmatprep.subr.bf16.mxu0 0
      %673 = vmatpush1.bf16.msra.mxu0 0
      %674 = vmatprep.subr.bf16.mxu0 0
      %675 = vmatpush1.bf16.msra.mxu0 0
      %676 = vmatprep.subr.bf16.mxu0 0
      %677 = vmatpush1.bf16.msra.mxu0 0
      %678 = vmatprep.subr.bf16.mxu0 0
      %679 = vmatpush1.bf16.msra.mxu0 0
      %680 = vmatprep.subr.bf16.mxu0 0
      %681 = vmatpush1.bf16.msra.mxu0 0
      %682 = vmatprep.subr.bf16.mxu0 0
      %683 = vmatpush1.bf16.msra.mxu0 0
      %684 = vmatprep.subr.bf16.mxu0 0
      %685 = vmatpush1.bf16.msra.mxu0 %v663
      %686 = vmatprep.subr.bf16.mxu0 0
      %687 = vmatpush1.bf16.msra.mxu0 %v662
      %688 = vmatprep.subr.bf16.mxu0 0
      %689 = vmatpush2.bf16.msra.mxu0 0
      %690 = vmatprep.subr.bf16.mxu0 0
      %691 = vmatpush2.bf16.msra.mxu0 0
      %692 = vmatprep.subr.bf16.mxu0 0
      %693 = vmatpush2.bf16.msra.mxu0 0
      %694 = vmatprep.subr.bf16.mxu0 0
      %695 = vmatpush2.bf16.msra.mxu0 0
      %696 = vmatprep.subr.bf16.mxu0 0
      %697 = vmatpush2.bf16.msra.mxu0 0
      %698 = vmatprep.subr.bf16.mxu0 0
      %699 = vmatpush2.bf16.msra.mxu0 0
      %700 = vmatprep.subr.bf16.mxu0 0
      %701 = vmatpush2.bf16.msra.mxu0 0
      %702 = vmatprep.subr.bf16.mxu0 0
      %703 = vmatpush2.bf16.msra.mxu0 0
      %704 = vmatprep.mubr.bf16.mxu0 0
      %705 = vmatmul.mubr.bf16.gmra.mxu0 %v667
      %v706 = vpop.f32.mrf.mxu0
      %v707 = vadd.f32 0.0, %v706
      %v708 = vpop.f32.mrf.mxu0
      %v709 = vpop.f32.mrf.mxu0
      %v710 = vadd.f32 0.0, %v709
      %v711 = vpop.f32.mrf.mxu0
      %712 = vmatprep.mubr.bf16.mxu0 0
      %713 = vmatmul.mubr.bf16.gmra.mxu0 %v670
      %v714 = vpop.f32.mrf.mxu0
      %v715 = vadd.f32 0.0, %v714
      %v716 = vpop.f32.mrf.mxu0
      %v717 = vpop.f32.mrf.mxu0
      %v718 = vpop.f32.mrf.mxu0
      %719 = vdwg.mxu0
      %v720 = vadd.f32 %v643, %v707
      %v721 = vadd.f32 %v644, %v710
      %v722 = vadd.f32 %v645, %v715
      %s723 = scalar_lea.vmem %s1, 96
      %v724 = vld [vmem:[%s723] sm:$0xf]
      %v725 = vld [vmem:[%s723 + $0x4] sm:$0xf]
      %v726 = vld [vmem:[%s723 + $0x8] sm:$0xf]
      %v727 = vld [vmem:[%s723 + $0xc] sm:$0xf]
      %v731 = vunpack.c.l.b16 %v215
      %v732 = vunpack.c.l.b16 %v216
      %v733 = vunpack.c.l.b16 %v217
      %v734 = vpack.c.b16 %v732, %v731
      %v735 = vpack.c.b16 %v733, %v733
      %v740 = vunpack.c.l.b16 %v724
      %v741 = vunpack.c.l.b16 %v725
      %v742 = vunpack.c.l.b16 %v726
      %v743 = vunpack.c.l.b16 %v727
      %v744 = vpack.c.b16 %v741, %v740
      %v745 = vpack.c.b16 %v743, %v742
      %v749 = vsel %vm274, %v734, 0
      %v752 = vsel %vm274, %v735, 0
      %754 = vmatprep.subr.bf16.mxu0 0
      %755 = vmatpush1.bf16.msra.mxu0 0
      %756 = vmatprep.subr.bf16.mxu0 0
      %757 = vmatpush1.bf16.msra.mxu0 0
      %758 = vmatprep.subr.bf16.mxu0 0
      %759 = vmatpush1.bf16.msra.mxu0 0
      %760 = vmatprep.subr.bf16.mxu0 0
      %761 = vmatpush1.bf16.msra.mxu0 0
      %762 = vmatprep.subr.bf16.mxu0 0
      %763 = vmatpush1.bf16.msra.mxu0 0
      %764 = vmatprep.subr.bf16.mxu0 0
      %765 = vmatpush1.bf16.msra.mxu0 0
      %766 = vmatprep.subr.bf16.mxu0 0
      %767 = vmatpush1.bf16.msra.mxu0 %v745
      %768 = vmatprep.subr.bf16.mxu0 0
      %769 = vmatpush1.bf16.msra.mxu0 %v744
      %770 = vmatprep.subr.bf16.mxu0 0
      %771 = vmatpush2.bf16.msra.mxu0 0
      %772 = vmatprep.subr.bf16.mxu0 0
      %773 = vmatpush2.bf16.msra.mxu0 0
      %774 = vmatprep.subr.bf16.mxu0 0
      %775 = vmatpush2.bf16.msra.mxu0 0
      %776 = vmatprep.subr.bf16.mxu0 0
      %777 = vmatpush2.bf16.msra.mxu0 0
      %778 = vmatprep.subr.bf16.mxu0 0
      %779 = vmatpush2.bf16.msra.mxu0 0
      %780 = vmatprep.subr.bf16.mxu0 0
      %781 = vmatpush2.bf16.msra.mxu0 0
      %782 = vmatprep.subr.bf16.mxu0 0
      %783 = vmatpush2.bf16.msra.mxu0 0
      %784 = vmatprep.subr.bf16.mxu0 0
      %785 = vmatpush2.bf16.msra.mxu0 0
      %786 = vmatprep.mubr.bf16.mxu0 0
      %787 = vmatmul.mubr.bf16.gmra.mxu0 %v749
      %v788 = vpop.f32.mrf.mxu0
      %v789 = vadd.f32 0.0, %v788
      %v790 = vpop.f32.mrf.mxu0
      %v791 = vpop.f32.mrf.mxu0
      %v792 = vadd.f32 0.0, %v791
      %v793 = vpop.f32.mrf.mxu0
      %794 = vmatprep.mubr.bf16.mxu0 0
      %795 = vmatmul.mubr.bf16.gmra.mxu0 %v752
      %v796 = vpop.f32.mrf.mxu0
      %v797 = vadd.f32 0.0, %v796
      %v798 = vpop.f32.mrf.mxu0
      %v799 = vpop.f32.mrf.mxu0
      %v800 = vpop.f32.mrf.mxu0
      %801 = vdwg.mxu0
      %v802 = vadd.f32 %v720, %v789
      %v803 = vadd.f32 %v721, %v792
      %v804 = vadd.f32 %v722, %v797
      %s805 = scalar_lea.vmem %s1, 112
      %v806 = vld [vmem:[%s805] sm:$0xf]
      %v807 = vld [vmem:[%s805 + $0x4] sm:$0xf]
      %v808 = vld [vmem:[%s805 + $0x8] sm:$0xf]
      %v809 = vld [vmem:[%s805 + $0xc] sm:$0xf]
      %v811 = vunpack.c.l.b16 %v218
      %v812 = vpack.c.b16 %v811, %v733
      %v813 = vshrl.u32 %v734, 16
      %v815 = vshll.u32 %v734, 16
      %v817 = vrot.slane %v815, 1
      %v818 = vor.u32 %v813, %v817
      %v820 = vshll.u32 %v812, 16
      %v822 = vrot.slane %v820, 1
      %v823 = vsel %vm246, %v818, %v822
      %v824 = vshrl.u32 %v812, 16
      %v826 = vor.u32 %v824, %v822
      %v831 = vunpack.c.l.b16 %v806
      %v832 = vunpack.c.l.b16 %v807
      %v833 = vunpack.c.l.b16 %v808
      %v834 = vunpack.c.l.b16 %v809
      %v835 = vpack.c.b16 %v832, %v831
      %v836 = vpack.c.b16 %v834, %v833
      %v840 = vsel %vm274, %v823, 0
      %v843 = vsel %vm274, %v826, 0
      %845 = vmatprep.subr.bf16.mxu0 0
      %846 = vmatpush1.bf16.msra.mxu0 0
      %847 = vmatprep.subr.bf16.mxu0 0
      %848 = vmatpush1.bf16.msra.mxu0 0
      %849 = vmatprep.subr.bf16.mxu0 0
      %850 = vmatpush1.bf16.msra.mxu0 0
      %851 = vmatprep.subr.bf16.mxu0 0
      %852 = vmatpush1.bf16.msra.mxu0 0
      %853 = vmatprep.subr.bf16.mxu0 0
      %854 = vmatpush1.bf16.msra.mxu0 0
      %855 = vmatprep.subr.bf16.mxu0 0
      %856 = vmatpush1.bf16.msra.mxu0 0
      %857 = vmatprep.subr.bf16.mxu0 0
      %858 = vmatpush1.bf16.msra.mxu0 %v836
      %859 = vmatprep.subr.bf16.mxu0 0
      %860 = vmatpush1.bf16.msra.mxu0 %v835
      %861 = vmatprep.subr.bf16.mxu0 0
      %862 = vmatpush2.bf16.msra.mxu0 0
      %863 = vmatprep.subr.bf16.mxu0 0
      %864 = vmatpush2.bf16.msra.mxu0 0
      %865 = vmatprep.subr.bf16.mxu0 0
      %866 = vmatpush2.bf16.msra.mxu0 0
      %867 = vmatprep.subr.bf16.mxu0 0
      %868 = vmatpush2.bf16.msra.mxu0 0
      %869 = vmatprep.subr.bf16.mxu0 0
      %870 = vmatpush2.bf16.msra.mxu0 0
      %871 = vmatprep.subr.bf16.mxu0 0
      %872 = vmatpush2.bf16.msra.mxu0 0
      %873 = vmatprep.subr.bf16.mxu0 0
      %874 = vmatpush2.bf16.msra.mxu0 0
      %875 = vmatprep.subr.bf16.mxu0 0
      %876 = vmatpush2.bf16.msra.mxu0 0
      %877 = vmatprep.mubr.bf16.mxu0 0
      %878 = vmatmul.mubr.bf16.gmra.mxu0 %v840
      %v879 = vpop.f32.mrf.mxu0
      %v880 = vadd.f32 0.0, %v879
      %v881 = vpop.f32.mrf.mxu0
      %v882 = vpop.f32.mrf.mxu0
      %v883 = vadd.f32 0.0, %v882
      %v884 = vpop.f32.mrf.mxu0
      %885 = vmatprep.mubr.bf16.mxu0 0
      %886 = vmatmul.mubr.bf16.gmra.mxu0 %v843
      %v887 = vpop.f32.mrf.mxu0
      %v888 = vadd.f32 0.0, %v887
      %v889 = vpop.f32.mrf.mxu0
      %v890 = vpop.f32.mrf.mxu0
      %v891 = vpop.f32.mrf.mxu0
      %892 = vdwg.mxu0
      %v893 = vadd.f32 %v802, %v880
      %v894 = vadd.f32 %v803, %v883
      %v895 = vadd.f32 %v804, %v888
      %s896 = scalar_lea.vmem %s1, 128
      %v897 = vld [vmem:[%s896] sm:$0xf]
      %v898 = vld [vmem:[%s896 + $0x4] sm:$0xf]
      %v899 = vld [vmem:[%s896 + $0x8] sm:$0xf]
      %v900 = vld [vmem:[%s896 + $0xc] sm:$0xf]
      %v901 = vrot.slane %v734, 1
      %v902 = vrot.slane %v812, 1
      %v903 = vsel %vm400, %v901, %v902
      %v908 = vunpack.c.l.b16 %v897
      %v909 = vunpack.c.l.b16 %v898
      %v910 = vunpack.c.l.b16 %v899
      %v911 = vunpack.c.l.b16 %v900
      %v912 = vpack.c.b16 %v909, %v908
      %v913 = vpack.c.b16 %v911, %v910
      %v917 = vsel %vm274, %v903, 0
      %v920 = vsel %vm274, %v902, 0
      %922 = vmatprep.subr.bf16.mxu0 0
      %923 = vmatpush1.bf16.msra.mxu0 0
      %924 = vmatprep.subr.bf16.mxu0 0
      %925 = vmatpush1.bf16.msra.mxu0 0
      %926 = vmatprep.subr.bf16.mxu0 0
      %927 = vmatpush1.bf16.msra.mxu0 0
      %928 = vmatprep.subr.bf16.mxu0 0
      %929 = vmatpush1.bf16.msra.mxu0 0
      %930 = vmatprep.subr.bf16.mxu0 0
      %931 = vmatpush1.bf16.msra.mxu0 0
      %932 = vmatprep.subr.bf16.mxu0 0
      %933 = vmatpush1.bf16.msra.mxu0 0
      %934 = vmatprep.subr.bf16.mxu0 0
      %935 = vmatpush1.bf16.msra.mxu0 %v913
      %936 = vmatprep.subr.bf16.mxu0 0
      %937 = vmatpush1.bf16.msra.mxu0 %v912
      %938 = vmatprep.subr.bf16.mxu0 0
      %939 = vmatpush2.bf16.msra.mxu0 0
      %940 = vmatprep.subr.bf16.mxu0 0
      %941 = vmatpush2.bf16.msra.mxu0 0
      %942 = vmatprep.subr.bf16.mxu0 0
      %943 = vmatpush2.bf16.msra.mxu0 0
      %944 = vmatprep.subr.bf16.mxu0 0
      %945 = vmatpush2.bf16.msra.mxu0 0
      %946 = vmatprep.subr.bf16.mxu0 0
      %947 = vmatpush2.bf16.msra.mxu0 0
      %948 = vmatprep.subr.bf16.mxu0 0
      %949 = vmatpush2.bf16.msra.mxu0 0
      %950 = vmatprep.subr.bf16.mxu0 0
      %951 = vmatpush2.bf16.msra.mxu0 0
      %952 = vmatprep.subr.bf16.mxu0 0
      %953 = vmatpush2.bf16.msra.mxu0 0
      %954 = vmatprep.mubr.bf16.mxu0 0
      %955 = vmatmul.mubr.bf16.gmra.mxu0 %v917
      %v956 = vpop.f32.mrf.mxu0
      %v957 = vadd.f32 0.0, %v956
      %v958 = vpop.f32.mrf.mxu0
      %v959 = vpop.f32.mrf.mxu0
      %v960 = vadd.f32 0.0, %v959
      %v961 = vpop.f32.mrf.mxu0
      %962 = vmatprep.mubr.bf16.mxu0 0
      %963 = vmatmul.mubr.bf16.gmra.mxu0 %v920
      %v964 = vpop.f32.mrf.mxu0
      %v965 = vadd.f32 0.0, %v964
      %v966 = vpop.f32.mrf.mxu0
      %v967 = vpop.f32.mrf.mxu0
      %v968 = vpop.f32.mrf.mxu0
      %969 = vdwg.mxu0
      %v970 = vadd.f32 %v893, %v957
      %v971 = vadd.f32 %v894, %v960
      %v972 = vadd.f32 %v895, %v965
      %v974 = vlaneseq
      %v975 = vshrl.u32 %v974, 7
      %v976 = vsub.s32 0, %v975
      %v977 = vrot.slane %v195, %v976
      %v979 = vadd.f32 %v970, %v977
      %v980 = vadd.f32 %v971, %v977
      %v981 = vadd.f32 %v972, %v977
      %v982 = vmax.f32 %v979, 0.0
      %v983 = vmax.f32 %v980, 0.0
      %v984 = vmax.f32 %v981, 0.0
      %985 = vmatprep.subr.bf16.mxu0 0
      %986 = vmatpush1.bf16.msra.mxu0 0
      %987 = vmatprep.subr.bf16.mxu0 0
      %988 = vmatpush1.bf16.msra.mxu0 0
      %989 = vmatprep.subr.bf16.mxu0 0
      %990 = vmatpush1.bf16.msra.mxu0 0
      %991 = vmatprep.subr.bf16.mxu0 0
      %992 = vmatpush1.bf16.msra.mxu0 0
      %993 = vmatprep.subr.bf16.mxu0 0
      %994 = vmatpush1.bf16.msra.mxu0 0
      %995 = vmatprep.subr.bf16.mxu0 0
      %996 = vmatpush1.bf16.msra.mxu0 0
      %997 = vmatprep.subr.bf16.mxu0 0
      %998 = vmatpush1.bf16.msra.mxu0 %v271
      %999 = vmatprep.subr.bf16.mxu0 0
      %1000 = vmatpush1.bf16.msra.mxu0 %v270
      %1001 = vmatprep.subr.bf16.mxu0 0
      %1002 = vmatpush2.bf16.msra.mxu0 0
      %1003 = vmatprep.subr.bf16.mxu0 0
      %1004 = vmatpush2.bf16.msra.mxu0 0
      %1005 = vmatprep.subr.bf16.mxu0 0
      %1006 = vmatpush2.bf16.msra.mxu0 0
      %1007 = vmatprep.subr.bf16.mxu0 0
      %1008 = vmatpush2.bf16.msra.mxu0 0
      %1009 = vmatprep.subr.bf16.mxu0 0
      %1010 = vmatpush2.bf16.msra.mxu0 0
      %1011 = vmatprep.subr.bf16.mxu0 0
      %1012 = vmatpush2.bf16.msra.mxu0 0
      %1013 = vmatprep.subr.bf16.mxu0 0
      %1014 = vmatpush2.bf16.msra.mxu0 0
      %1015 = vmatprep.subr.bf16.mxu0 0
      %1016 = vmatpush2.bf16.msra.mxu0 0
      %1017 = vmatprep.mubr.bf16.mxu0 0
      %1018 = vmatmul.mubr.bf16.gmra.mxu0 %v590
      %v1019 = vpop.f32.mrf.mxu0
      %v1020 = vadd.f32 0.0, %v1019
      %v1021 = vpop.f32.mrf.mxu0
      %v1022 = vpop.f32.mrf.mxu0
      %v1023 = vadd.f32 0.0, %v1022
      %v1024 = vpop.f32.mrf.mxu0
      %1025 = vmatprep.mubr.bf16.mxu0 0
      %1026 = vmatmul.mubr.bf16.gmra.mxu0 %v593
      %v1027 = vpop.f32.mrf.mxu0
      %v1028 = vadd.f32 0.0, %v1027
      %v1029 = vpop.f32.mrf.mxu0
      %v1030 = vpop.f32.mrf.mxu0
      %v1031 = vpop.f32.mrf.mxu0
      %1032 = vdwg.mxu0
      %1033 = vmatprep.subr.bf16.mxu0 0
      %1034 = vmatpush1.bf16.msra.mxu0 0
      %1035 = vmatprep.subr.bf16.mxu0 0
      %1036 = vmatpush1.bf16.msra.mxu0 0
      %1037 = vmatprep.subr.bf16.mxu0 0
      %1038 = vmatpush1.bf16.msra.mxu0 0
      %1039 = vmatprep.subr.bf16.mxu0 0
      %1040 = vmatpush1.bf16.msra.mxu0 0
      %1041 = vmatprep.subr.bf16.mxu0 0
      %1042 = vmatpush1.bf16.msra.mxu0 0
      %1043 = vmatprep.subr.bf16.mxu0 0
      %1044 = vmatpush1.bf16.msra.mxu0 0
      %1045 = vmatprep.subr.bf16.mxu0 0
      %1046 = vmatpush1.bf16.msra.mxu0 %v339
      %1047 = vmatprep.subr.bf16.mxu0 0
      %1048 = vmatpush1.bf16.msra.mxu0 %v338
      %1049 = vmatprep.subr.bf16.mxu0 0
      %1050 = vmatpush2.bf16.msra.mxu0 0
      %1051 = vmatprep.subr.bf16.mxu0 0
      %1052 = vmatpush2.bf16.msra.mxu0 0
      %1053 = vmatprep.subr.bf16.mxu0 0
      %1054 = vmatpush2.bf16.msra.mxu0 0
      %1055 = vmatprep.subr.bf16.mxu0 0
      %1056 = vmatpush2.bf16.msra.mxu0 0
      %1057 = vmatprep.subr.bf16.mxu0 0
      %1058 = vmatpush2.bf16.msra.mxu0 0
      %1059 = vmatprep.subr.bf16.mxu0 0
      %1060 = vmatpush2.bf16.msra.mxu0 0
      %1061 = vmatprep.subr.bf16.mxu0 0
      %1062 = vmatpush2.bf16.msra.mxu0 0
      %1063 = vmatprep.subr.bf16.mxu0 0
      %1064 = vmatpush2.bf16.msra.mxu0 0
      %1065 = vmatprep.mubr.bf16.mxu0 0
      %1066 = vmatmul.mubr.bf16.gmra.mxu0 %v499
      %v1067 = vpop.f32.mrf.mxu0
      %v1068 = vadd.f32 %v1020, %v1067
      %v1069 = vpop.f32.mrf.mxu0
      %v1070 = vpop.f32.mrf.mxu0
      %v1071 = vadd.f32 %v1023, %v1070
      %v1072 = vpop.f32.mrf.mxu0
      %1073 = vmatprep.mubr.bf16.mxu0 0
      %1074 = vmatmul.mubr.bf16.gmra.mxu0 %v502
      %v1075 = vpop.f32.mrf.mxu0
      %v1076 = vadd.f32 %v1028, %v1075
      %v1077 = vpop.f32.mrf.mxu0
      %v1078 = vpop.f32.mrf.mxu0
      %v1079 = vpop.f32.mrf.mxu0
      %1080 = vdwg.mxu0
      %1081 = vmatprep.subr.bf16.mxu0 0
      %1082 = vmatpush1.bf16.msra.mxu0 0
      %1083 = vmatprep.subr.bf16.mxu0 0
      %1084 = vmatpush1.bf16.msra.mxu0 0
      %1085 = vmatprep.subr.bf16.mxu0 0
      %1086 = vmatpush1.bf16.msra.mxu0 0
      %1087 = vmatprep.subr.bf16.mxu0 0
      %1088 = vmatpush1.bf16.msra.mxu0 0
      %1089 = vmatprep.subr.bf16.mxu0 0
      %1090 = vmatpush1.bf16.msra.mxu0 0
      %1091 = vmatprep.subr.bf16.mxu0 0
      %1092 = vmatpush1.bf16.msra.mxu0 0
      %1093 = vmatprep.subr.bf16.mxu0 0
      %1094 = vmatpush1.bf16.msra.mxu0 %v413
      %1095 = vmatprep.subr.bf16.mxu0 0
      %1096 = vmatpush1.bf16.msra.mxu0 %v412
      %1097 = vmatprep.subr.bf16.mxu0 0
      %1098 = vmatpush2.bf16.msra.mxu0 0
      %1099 = vmatprep.subr.bf16.mxu0 0
      %1100 = vmatpush2.bf16.msra.mxu0 0
      %1101 = vmatprep.subr.bf16.mxu0 0
      %1102 = vmatpush2.bf16.msra.mxu0 0
      %1103 = vmatprep.subr.bf16.mxu0 0
      %1104 = vmatpush2.bf16.msra.mxu0 0
      %1105 = vmatprep.subr.bf16.mxu0 0
      %1106 = vmatpush2.bf16.msra.mxu0 0
      %1107 = vmatprep.subr.bf16.mxu0 0
      %1108 = vmatpush2.bf16.msra.mxu0 0
      %1109 = vmatprep.subr.bf16.mxu0 0
      %1110 = vmatpush2.bf16.msra.mxu0 0
      %1111 = vmatprep.subr.bf16.mxu0 0
      %1112 = vmatpush2.bf16.msra.mxu0 0
      %1113 = vmatprep.mubr.bf16.mxu0 0
      %1114 = vmatmul.mubr.bf16.gmra.mxu0 %v667
      %v1115 = vpop.f32.mrf.mxu0
      %v1116 = vadd.f32 0.0, %v1115
      %v1117 = vpop.f32.mrf.mxu0
      %v1118 = vpop.f32.mrf.mxu0
      %v1119 = vadd.f32 0.0, %v1118
      %v1120 = vpop.f32.mrf.mxu0
      %1121 = vmatprep.mubr.bf16.mxu0 0
      %1122 = vmatmul.mubr.bf16.gmra.mxu0 %v670
      %v1123 = vpop.f32.mrf.mxu0
      %v1124 = vadd.f32 0.0, %v1123
      %v1125 = vpop.f32.mrf.mxu0
      %v1126 = vpop.f32.mrf.mxu0
      %v1127 = vpop.f32.mrf.mxu0
      %1128 = vdwg.mxu0
      %v1129 = vadd.f32 %v1068, %v1116
      %v1130 = vadd.f32 %v1071, %v1119
      %v1131 = vadd.f32 %v1076, %v1124
      %1132 = vmatprep.subr.bf16.mxu0 0
      %1133 = vmatpush1.bf16.msra.mxu0 0
      %1134 = vmatprep.subr.bf16.mxu0 0
      %1135 = vmatpush1.bf16.msra.mxu0 0
      %1136 = vmatprep.subr.bf16.mxu0 0
      %1137 = vmatpush1.bf16.msra.mxu0 0
      %1138 = vmatprep.subr.bf16.mxu0 0
      %1139 = vmatpush1.bf16.msra.mxu0 0
      %1140 = vmatprep.subr.bf16.mxu0 0
      %1141 = vmatpush1.bf16.msra.mxu0 0
      %1142 = vmatprep.subr.bf16.mxu0 0
      %1143 = vmatpush1.bf16.msra.mxu0 0
      %1144 = vmatprep.subr.bf16.mxu0 0
      %1145 = vmatpush1.bf16.msra.mxu0 %v495
      %1146 = vmatprep.subr.bf16.mxu0 0
      %1147 = vmatpush1.bf16.msra.mxu0 %v494
      %1148 = vmatprep.subr.bf16.mxu0 0
      %1149 = vmatpush2.bf16.msra.mxu0 0
      %1150 = vmatprep.subr.bf16.mxu0 0
      %1151 = vmatpush2.bf16.msra.mxu0 0
      %1152 = vmatprep.subr.bf16.mxu0 0
      %1153 = vmatpush2.bf16.msra.mxu0 0
      %1154 = vmatprep.subr.bf16.mxu0 0
      %1155 = vmatpush2.bf16.msra.mxu0 0
      %1156 = vmatprep.subr.bf16.mxu0 0
      %1157 = vmatpush2.bf16.msra.mxu0 0
      %1158 = vmatprep.subr.bf16.mxu0 0
      %1159 = vmatpush2.bf16.msra.mxu0 0
      %1160 = vmatprep.subr.bf16.mxu0 0
      %1161 = vmatpush2.bf16.msra.mxu0 0
      %1162 = vmatprep.subr.bf16.mxu0 0
      %1163 = vmatpush2.bf16.msra.mxu0 0
      %1164 = vmatprep.mubr.bf16.mxu0 0
      %1165 = vmatmul.mubr.bf16.gmra.mxu0 %v749
      %v1166 = vpop.f32.mrf.mxu0
      %v1167 = vadd.f32 0.0, %v1166
      %v1168 = vpop.f32.mrf.mxu0
      %v1169 = vpop.f32.mrf.mxu0
      %v1170 = vadd.f32 0.0, %v1169
      %v1171 = vpop.f32.mrf.mxu0
      %1172 = vmatprep.mubr.bf16.mxu0 0
      %1173 = vmatmul.mubr.bf16.gmra.mxu0 %v752
      %v1174 = vpop.f32.mrf.mxu0
      %v1175 = vadd.f32 0.0, %v1174
      %v1176 = vpop.f32.mrf.mxu0
      %v1177 = vpop.f32.mrf.mxu0
      %v1178 = vpop.f32.mrf.mxu0
      %1179 = vdwg.mxu0
      %v1180 = vadd.f32 %v1129, %v1167
      %v1181 = vadd.f32 %v1130, %v1170
      %v1182 = vadd.f32 %v1131, %v1175
      %1183 = vmatprep.subr.bf16.mxu0 0
      %1184 = vmatpush1.bf16.msra.mxu0 0
      %1185 = vmatprep.subr.bf16.mxu0 0
      %1186 = vmatpush1.bf16.msra.mxu0 0
      %1187 = vmatprep.subr.bf16.mxu0 0
      %1188 = vmatpush1.bf16.msra.mxu0 0
      %1189 = vmatprep.subr.bf16.mxu0 0
      %1190 = vmatpush1.bf16.msra.mxu0 0
      %1191 = vmatprep.subr.bf16.mxu0 0
      %1192 = vmatpush1.bf16.msra.mxu0 0
      %1193 = vmatprep.subr.bf16.mxu0 0
      %1194 = vmatpush1.bf16.msra.mxu0 0
      %1195 = vmatprep.subr.bf16.mxu0 0
      %1196 = vmatpush1.bf16.msra.mxu0 %v586
      %1197 = vmatprep.subr.bf16.mxu0 0
      %1198 = vmatpush1.bf16.msra.mxu0 %v585
      %1199 = vmatprep.subr.bf16.mxu0 0
      %1200 = vmatpush2.bf16.msra.mxu0 0
      %1201 = vmatprep.subr.bf16.mxu0 0
      %1202 = vmatpush2.bf16.msra.mxu0 0
      %1203 = vmatprep.subr.bf16.mxu0 0
      %1204 = vmatpush2.bf16.msra.mxu0 0
      %1205 = vmatprep.subr.bf16.mxu0 0
      %1206 = vmatpush2.bf16.msra.mxu0 0
      %1207 = vmatprep.subr.bf16.mxu0 0
      %1208 = vmatpush2.bf16.msra.mxu0 0
      %1209 = vmatprep.subr.bf16.mxu0 0
      %1210 = vmatpush2.bf16.msra.mxu0 0
      %1211 = vmatprep.subr.bf16.mxu0 0
      %1212 = vmatpush2.bf16.msra.mxu0 0
      %1213 = vmatprep.subr.bf16.mxu0 0
      %1214 = vmatpush2.bf16.msra.mxu0 0
      %1215 = vmatprep.mubr.bf16.mxu0 0
      %1216 = vmatmul.mubr.bf16.gmra.mxu0 %v840
      %v1217 = vpop.f32.mrf.mxu0
      %v1218 = vadd.f32 0.0, %v1217
      %v1219 = vpop.f32.mrf.mxu0
      %v1220 = vpop.f32.mrf.mxu0
      %v1221 = vadd.f32 0.0, %v1220
      %v1222 = vpop.f32.mrf.mxu0
      %1223 = vmatprep.mubr.bf16.mxu0 0
      %1224 = vmatmul.mubr.bf16.gmra.mxu0 %v843
      %v1225 = vpop.f32.mrf.mxu0
      %v1226 = vadd.f32 0.0, %v1225
      %v1227 = vpop.f32.mrf.mxu0
      %v1228 = vpop.f32.mrf.mxu0
      %v1229 = vpop.f32.mrf.mxu0
      %1230 = vdwg.mxu0
      %v1231 = vadd.f32 %v1180, %v1218
      %v1232 = vadd.f32 %v1181, %v1221
      %v1233 = vadd.f32 %v1182, %v1226
      %1234 = vmatprep.subr.bf16.mxu0 0
      %1235 = vmatpush1.bf16.msra.mxu0 0
      %1236 = vmatprep.subr.bf16.mxu0 0
      %1237 = vmatpush1.bf16.msra.mxu0 0
      %1238 = vmatprep.subr.bf16.mxu0 0
      %1239 = vmatpush1.bf16.msra.mxu0 0
      %1240 = vmatprep.subr.bf16.mxu0 0
      %1241 = vmatpush1.bf16.msra.mxu0 0
      %1242 = vmatprep.subr.bf16.mxu0 0
      %1243 = vmatpush1.bf16.msra.mxu0 0
      %1244 = vmatprep.subr.bf16.mxu0 0
      %1245 = vmatpush1.bf16.msra.mxu0 0
      %1246 = vmatprep.subr.bf16.mxu0 0
      %1247 = vmatpush1.bf16.msra.mxu0 %v663
      %1248 = vmatprep.subr.bf16.mxu0 0
      %1249 = vmatpush1.bf16.msra.mxu0 %v662
      %1250 = vmatprep.subr.bf16.mxu0 0
      %1251 = vmatpush2.bf16.msra.mxu0 0
      %1252 = vmatprep.subr.bf16.mxu0 0
      %1253 = vmatpush2.bf16.msra.mxu0 0
      %1254 = vmatprep.subr.bf16.mxu0 0
      %1255 = vmatpush2.bf16.msra.mxu0 0
      %1256 = vmatprep.subr.bf16.mxu0 0
      %1257 = vmatpush2.bf16.msra.mxu0 0
      %1258 = vmatprep.subr.bf16.mxu0 0
      %1259 = vmatpush2.bf16.msra.mxu0 0
      %1260 = vmatprep.subr.bf16.mxu0 0
      %1261 = vmatpush2.bf16.msra.mxu0 0
      %1262 = vmatprep.subr.bf16.mxu0 0
      %1263 = vmatpush2.bf16.msra.mxu0 0
      %1264 = vmatprep.subr.bf16.mxu0 0
      %1265 = vmatpush2.bf16.msra.mxu0 0
      %1266 = vmatprep.mubr.bf16.mxu0 0
      %1267 = vmatmul.mubr.bf16.gmra.mxu0 %v917
      %v1268 = vpop.f32.mrf.mxu0
      %v1269 = vadd.f32 0.0, %v1268
      %v1270 = vpop.f32.mrf.mxu0
      %v1271 = vpop.f32.mrf.mxu0
      %v1272 = vadd.f32 0.0, %v1271
      %v1273 = vpop.f32.mrf.mxu0
      %1274 = vmatprep.mubr.bf16.mxu0 0
      %1275 = vmatmul.mubr.bf16.gmra.mxu0 %v920
      %v1276 = vpop.f32.mrf.mxu0
      %v1277 = vadd.f32 0.0, %v1276
      %v1278 = vpop.f32.mrf.mxu0
      %v1279 = vpop.f32.mrf.mxu0
      %v1280 = vpop.f32.mrf.mxu0
      %1281 = vdwg.mxu0
      %v1282 = vadd.f32 %v1231, %v1269
      %v1283 = vadd.f32 %v1232, %v1272
      %v1284 = vadd.f32 %v1233, %v1277
      %v1288 = vunpack.c.l.b16 %v223
      %v1289 = vunpack.c.l.b16 %v224
      %v1290 = vunpack.c.l.b16 %v225
      %v1291 = vpack.c.b16 %v1289, %v1288
      %v1292 = vpack.c.b16 %v1290, %v1290
      %v1294 = vsel %vm274, %v1291, 0
      %v1297 = vsel %vm274, %v1292, 0
      %1299 = vmatprep.subr.bf16.mxu0 0
      %1300 = vmatpush1.bf16.msra.mxu0 0
      %1301 = vmatprep.subr.bf16.mxu0 0
      %1302 = vmatpush1.bf16.msra.mxu0 0
      %1303 = vmatprep.subr.bf16.mxu0 0
      %1304 = vmatpush1.bf16.msra.mxu0 0
      %1305 = vmatprep.subr.bf16.mxu0 0
      %1306 = vmatpush1.bf16.msra.mxu0 0
      %1307 = vmatprep.subr.bf16.mxu0 0
      %1308 = vmatpush1.bf16.msra.mxu0 0
      %1309 = vmatprep.subr.bf16.mxu0 0
      %1310 = vmatpush1.bf16.msra.mxu0 0
      %1311 = vmatprep.subr.bf16.mxu0 0
      %1312 = vmatpush1.bf16.msra.mxu0 %v745
      %1313 = vmatprep.subr.bf16.mxu0 0
      %1314 = vmatpush1.bf16.msra.mxu0 %v744
      %1315 = vmatprep.subr.bf16.mxu0 0
      %1316 = vmatpush2.bf16.msra.mxu0 0
      %1317 = vmatprep.subr.bf16.mxu0 0
      %1318 = vmatpush2.bf16.msra.mxu0 0
      %1319 = vmatprep.subr.bf16.mxu0 0
      %1320 = vmatpush2.bf16.msra.mxu0 0
      %1321 = vmatprep.subr.bf16.mxu0 0
      %1322 = vmatpush2.bf16.msra.mxu0 0
      %1323 = vmatprep.subr.bf16.mxu0 0
      %1324 = vmatpush2.bf16.msra.mxu0 0
      %1325 = vmatprep.subr.bf16.mxu0 0
      %1326 = vmatpush2.bf16.msra.mxu0 0
      %1327 = vmatprep.subr.bf16.mxu0 0
      %1328 = vmatpush2.bf16.msra.mxu0 0
      %1329 = vmatprep.subr.bf16.mxu0 0
      %1330 = vmatpush2.bf16.msra.mxu0 0
      %1331 = vmatprep.mubr.bf16.mxu0 0
      %1332 = vmatmul.mubr.bf16.gmra.mxu0 %v1294
      %v1333 = vpop.f32.mrf.mxu0
      %v1334 = vadd.f32 0.0, %v1333
      %v1335 = vpop.f32.mrf.mxu0
      %v1336 = vpop.f32.mrf.mxu0
      %v1337 = vadd.f32 0.0, %v1336
      %v1338 = vpop.f32.mrf.mxu0
      %1339 = vmatprep.mubr.bf16.mxu0 0
      %1340 = vmatmul.mubr.bf16.gmra.mxu0 %v1297
      %v1341 = vpop.f32.mrf.mxu0
      %v1342 = vadd.f32 0.0, %v1341
      %v1343 = vpop.f32.mrf.mxu0
      %v1344 = vpop.f32.mrf.mxu0
      %v1345 = vpop.f32.mrf.mxu0
      %1346 = vdwg.mxu0
      %v1347 = vadd.f32 %v1282, %v1334
      %v1348 = vadd.f32 %v1283, %v1337
      %v1349 = vadd.f32 %v1284, %v1342
      %v1351 = vunpack.c.l.b16 %v226
      %v1352 = vpack.c.b16 %v1351, %v1290
      %v1353 = vshrl.u32 %v1291, 16
      %v1355 = vshll.u32 %v1291, 16
      %v1357 = vrot.slane %v1355, 1
      %v1358 = vor.u32 %v1353, %v1357
      %v1360 = vshll.u32 %v1352, 16
      %v1362 = vrot.slane %v1360, 1
      %v1363 = vsel %vm246, %v1358, %v1362
      %v1364 = vshrl.u32 %v1352, 16
      %v1366 = vor.u32 %v1364, %v1362
      %v1368 = vsel %vm274, %v1363, 0
      %v1371 = vsel %vm274, %v1366, 0
      %1373 = vmatprep.subr.bf16.mxu0 0
      %1374 = vmatpush1.bf16.msra.mxu0 0
      %1375 = vmatprep.subr.bf16.mxu0 0
      %1376 = vmatpush1.bf16.msra.mxu0 0
      %1377 = vmatprep.subr.bf16.mxu0 0
      %1378 = vmatpush1.bf16.msra.mxu0 0
      %1379 = vmatprep.subr.bf16.mxu0 0
      %1380 = vmatpush1.bf16.msra.mxu0 0
      %1381 = vmatprep.subr.bf16.mxu0 0
      %1382 = vmatpush1.bf16.msra.mxu0 0
      %1383 = vmatprep.subr.bf16.mxu0 0
      %1384 = vmatpush1.bf16.msra.mxu0 0
      %1385 = vmatprep.subr.bf16.mxu0 0
      %1386 = vmatpush1.bf16.msra.mxu0 %v836
      %1387 = vmatprep.subr.bf16.mxu0 0
      %1388 = vmatpush1.bf16.msra.mxu0 %v835
      %1389 = vmatprep.subr.bf16.mxu0 0
      %1390 = vmatpush2.bf16.msra.mxu0 0
      %1391 = vmatprep.subr.bf16.mxu0 0
      %1392 = vmatpush2.bf16.msra.mxu0 0
      %1393 = vmatprep.subr.bf16.mxu0 0
      %1394 = vmatpush2.bf16.msra.mxu0 0
      %1395 = vmatprep.subr.bf16.mxu0 0
      %1396 = vmatpush2.bf16.msra.mxu0 0
      %1397 = vmatprep.subr.bf16.mxu0 0
      %1398 = vmatpush2.bf16.msra.mxu0 0
      %1399 = vmatprep.subr.bf16.mxu0 0
      %1400 = vmatpush2.bf16.msra.mxu0 0
      %1401 = vmatprep.subr.bf16.mxu0 0
      %1402 = vmatpush2.bf16.msra.mxu0 0
      %1403 = vmatprep.subr.bf16.mxu0 0
      %1404 = vmatpush2.bf16.msra.mxu0 0
      %1405 = vmatprep.mubr.bf16.mxu0 0
      %1406 = vmatmul.mubr.bf16.gmra.mxu0 %v1368
      %v1407 = vpop.f32.mrf.mxu0
      %v1408 = vadd.f32 0.0, %v1407
      %v1409 = vpop.f32.mrf.mxu0
      %v1410 = vpop.f32.mrf.mxu0
      %v1411 = vadd.f32 0.0, %v1410
      %v1412 = vpop.f32.mrf.mxu0
      %1413 = vmatprep.mubr.bf16.mxu0 0
      %1414 = vmatmul.mubr.bf16.gmra.mxu0 %v1371
      %v1415 = vpop.f32.mrf.mxu0
      %v1416 = vadd.f32 0.0, %v1415
      %v1417 = vpop.f32.mrf.mxu0
      %v1418 = vpop.f32.mrf.mxu0
      %v1419 = vpop.f32.mrf.mxu0
      %1420 = vdwg.mxu0
      %v1421 = vadd.f32 %v1347, %v1408
      %v1422 = vadd.f32 %v1348, %v1411
      %v1423 = vadd.f32 %v1349, %v1416
      %v1424 = vrot.slane %v1291, 1
      %v1425 = vrot.slane %v1352, 1
      %v1426 = vsel %vm400, %v1424, %v1425
      %v1428 = vsel %vm274, %v1426, 0
      %v1431 = vsel %vm274, %v1425, 0
      %1433 = vmatprep.subr.bf16.mxu0 0
      %1434 = vmatpush1.bf16.msra.mxu0 0
      %1435 = vmatprep.subr.bf16.mxu0 0
      %1436 = vmatpush1.bf16.msra.mxu0 0
      %1437 = vmatprep.subr.bf16.mxu0 0
      %1438 = vmatpush1.bf16.msra.mxu0 0
      %1439 = vmatprep.subr.bf16.mxu0 0
      %1440 = vmatpush1.bf16.msra.mxu0 0
      %1441 = vmatprep.subr.bf16.mxu0 0
      %1442 = vmatpush1.bf16.msra.mxu0 0
      %1443 = vmatprep.subr.bf16.mxu0 0
      %1444 = vmatpush1.bf16.msra.mxu0 0
      %1445 = vmatprep.subr.bf16.mxu0 0
      %1446 = vmatpush1.bf16.msra.mxu0 %v913
      %1447 = vmatprep.subr.bf16.mxu0 0
      %1448 = vmatpush1.bf16.msra.mxu0 %v912
      %1449 = vmatprep.subr.bf16.mxu0 0
      %1450 = vmatpush2.bf16.msra.mxu0 0
      %1451 = vmatprep.subr.bf16.mxu0 0
      %1452 = vmatpush2.bf16.msra.mxu0 0
      %1453 = vmatprep.subr.bf16.mxu0 0
      %1454 = vmatpush2.bf16.msra.mxu0 0
      %1455 = vmatprep.subr.bf16.mxu0 0
      %1456 = vmatpush2.bf16.msra.mxu0 0
      %1457 = vmatprep.subr.bf16.mxu0 0
      %1458 = vmatpush2.bf16.msra.mxu0 0
      %1459 = vmatprep.subr.bf16.mxu0 0
      %1460 = vmatpush2.bf16.msra.mxu0 0
      %1461 = vmatprep.subr.bf16.mxu0 0
      %1462 = vmatpush2.bf16.msra.mxu0 0
      %1463 = vmatprep.subr.bf16.mxu0 0
      %1464 = vmatpush2.bf16.msra.mxu0 0
      %1465 = vmatprep.mubr.bf16.mxu0 0
      %1466 = vmatmul.mubr.bf16.gmra.mxu0 %v1428
      %v1467 = vpop.f32.mrf.mxu0
      %v1468 = vadd.f32 0.0, %v1467
      %v1469 = vpop.f32.mrf.mxu0
      %v1470 = vpop.f32.mrf.mxu0
      %v1471 = vadd.f32 0.0, %v1470
      %v1472 = vpop.f32.mrf.mxu0
      %1473 = vmatprep.mubr.bf16.mxu0 0
      %1474 = vmatmul.mubr.bf16.gmra.mxu0 %v1431
      %v1475 = vpop.f32.mrf.mxu0
      %v1476 = vadd.f32 0.0, %v1475
      %v1477 = vpop.f32.mrf.mxu0
      %v1478 = vpop.f32.mrf.mxu0
      %v1479 = vpop.f32.mrf.mxu0
      %1480 = vdwg.mxu0
      %v1481 = vadd.f32 %v1421, %v1468
      %v1482 = vadd.f32 %v1422, %v1471
      %v1483 = vadd.f32 %v1423, %v1476
      %v1484 = vadd.f32 %v1481, %v977
      %v1485 = vadd.f32 %v1482, %v977
      %v1486 = vadd.f32 %v1483, %v977
      %v1487 = vmax.f32 %v1484, 0.0
      %v1488 = vmax.f32 %v1485, 0.0
      %v1489 = vmax.f32 %v1486, 0.0
      %v1490 = vmax.f32 %v982, %v1487
      %v1491 = vmax.f32 %v983, %v1488
      %v1492 = vmax.f32 %v984, %v1489
      %v1493 = vlaneseq
      %v1494 = vshrl.u32 %v1493, 7
      %v1495 = vadd.s32 %v1494, 8
      %v1496 = vlaneseq
      %v1497 = vand.u32 %v1496, 127
      %v1498 = vmul.u32 %v1494, 2
      %v1499 = vmul.u32 %v1495, 2
      %vm1500 = vcmp.eq.s32.totalorder %v1497, %v1498
      %vm1501 = vcmp.eq.s32.totalorder %v1497, %v1499
      %v1502 = vsel %vm1500, 1, 0
      %v1503 = vsel %vm1501, 1, 0
      %v1504 = vcvt.s32.f32 %v1502
      %v1505 = vcvt.s32.f32 %v1503
      %v1506 = vadd.s32 %v1498, 1
      %v1507 = vadd.s32 %v1499, 1
      %vm1508 = vcmp.eq.s32.totalorder %v1497, %v1506
      %vm1509 = vcmp.eq.s32.totalorder %v1497, %v1507
      %v1510 = vsel %vm1508, 1, 0
      %v1511 = vsel %vm1509, 1, 0
      %v1512 = vcvt.s32.f32 %v1510
      %v1513 = vcvt.s32.f32 %v1511
      %vm1514 = vcmask 195584
      %v1516 = vsel %vm1514, %v1504, 0
      %v1519 = vsel %vm1514, %v1505, 0
      %1521 = vmatprep.subr.mxu0 0.0
      %1522 = vmatpush1.msra.mxu0 0.0
      %1523 = vmatprep.subr.mxu0 0.0
      %1524 = vmatpush1.msra.mxu0 0.0
      %1525 = vmatprep.subr.mxu0 0.0
      %1526 = vmatpush1.msra.mxu0 0.0
      %1527 = vmatprep.subr.mxu0 0.0
      %1528 = vmatpush1.msra.mxu0 0.0
      %1529 = vmatprep.subr.mxu0 0.0
      %1530 = vmatpush1.msra.mxu0 0.0
      %1531 = vmatprep.subr.mxu0 0.0
      %1532 = vmatpush1.msra.mxu0 0.0
      %1533 = vmatprep.subr.mxu0 0.0
      %1534 = vmatpush1.msra.mxu0 0.0
      %1535 = vmatprep.subr.mxu0 0.0
      %1536 = vmatpush1.msra.mxu0 0.0
      %1537 = vmatprep.subr.mxu0 0.0
      %1538 = vmatpush1.msra.mxu0 0.0
      %1539 = vmatprep.subr.mxu0 0.0
      %1540 = vmatpush1.msra.mxu0 0.0
      %1541 = vmatprep.subr.mxu0 0.0
      %1542 = vmatpush1.msra.mxu0 0.0
      %1543 = vmatprep.subr.mxu0 0.0
      %1544 = vmatpush1.msra.mxu0 0.0
      %1545 = vmatprep.subr.mxu0 0.0
      %1546 = vmatpush1.msra.mxu0 0.0
      %1547 = vmatprep.subr.mxu0 0.0
      %1548 = vmatpush1.msra.mxu0 %v1492
      %1549 = vmatprep.subr.mxu0 0.0
      %1550 = vmatpush1.msra.mxu0 %v1491
      %1551 = vmatprep.subr.mxu0 0.0
      %1552 = vmatpush1.msra.mxu0 %v1490
      %1553 = vmatprep.subr.mxu0 0.0
      %1554 = vmatpush2.msra.mxu0 0.0
      %1555 = vmatprep.subr.mxu0 0.0
      %1556 = vmatpush2.msra.mxu0 0.0
      %1557 = vmatprep.subr.mxu0 0.0
      %1558 = vmatpush2.msra.mxu0 0.0
      %1559 = vmatprep.subr.mxu0 0.0
      %1560 = vmatpush2.msra.mxu0 0.0
      %1561 = vmatprep.subr.mxu0 0.0
      %1562 = vmatpush2.msra.mxu0 0.0
      %1563 = vmatprep.subr.mxu0 0.0
      %1564 = vmatpush2.msra.mxu0 0.0
      %1565 = vmatprep.subr.mxu0 0.0
      %1566 = vmatpush2.msra.mxu0 0.0
      %1567 = vmatprep.subr.mxu0 0.0
      %1568 = vmatpush2.msra.mxu0 0.0
      %1569 = vmatprep.subr.mxu0 0.0
      %1570 = vmatpush2.msra.mxu0 0.0
      %1571 = vmatprep.subr.mxu0 0.0
      %1572 = vmatpush2.msra.mxu0 0.0
      %1573 = vmatprep.subr.mxu0 0.0
      %1574 = vmatpush2.msra.mxu0 0.0
      %1575 = vmatprep.subr.mxu0 0.0
      %1576 = vmatpush2.msra.mxu0 0.0
      %1577 = vmatprep.subr.mxu0 0.0
      %1578 = vmatpush2.msra.mxu0 0.0
      %1579 = vmatprep.subr.mxu0 0.0
      %1580 = vmatpush2.msra.mxu0 0.0
      %1581 = vmatprep.subr.mxu0 0.0
      %1582 = vmatpush2.msra.mxu0 0.0
      %1583 = vmatprep.subr.mxu0 0.0
      %1584 = vmatpush2.msra.mxu0 0.0
      %1585 = vmatprep.mubr.f32.mxu0 0.0
      %1586 = vmatmul.mubr.f32.gmra.mxu0 %v1516
      %v1587 = vpop.f32.mrf.mxu0
      %v1588 = vadd.f32 0.0, %v1587
      %v1589 = vpop.f32.mrf.mxu0
      %1590 = vmatprep.mubr.f32.mxu0 0.0
      %1591 = vmatmul.mubr.f32.gmra.mxu0 %v1519
      %v1592 = vpop.f32.mrf.mxu0
      %v1593 = vadd.f32 0.0, %v1592
      %v1594 = vpop.f32.mrf.mxu0
      %1595 = vdwg.mxu0
      %v1597 = vsel %vm1514, %v1512, 0
      %v1600 = vsel %vm1514, %v1513, 0
      %1602 = vmatprep.subr.mxu0 0.0
      %1603 = vmatpush1.msra.mxu0 0.0
      %1604 = vmatprep.subr.mxu0 0.0
      %1605 = vmatpush1.msra.mxu0 0.0
      %1606 = vmatprep.subr.mxu0 0.0
      %1607 = vmatpush1.msra.mxu0 0.0
      %1608 = vmatprep.subr.mxu0 0.0
      %1609 = vmatpush1.msra.mxu0 0.0
      %1610 = vmatprep.subr.mxu0 0.0
      %1611 = vmatpush1.msra.mxu0 0.0
      %1612 = vmatprep.subr.mxu0 0.0
      %1613 = vmatpush1.msra.mxu0 0.0
      %1614 = vmatprep.subr.mxu0 0.0
      %1615 = vmatpush1.msra.mxu0 0.0
      %1616 = vmatprep.subr.mxu0 0.0
      %1617 = vmatpush1.msra.mxu0 0.0
      %1618 = vmatprep.subr.mxu0 0.0
      %1619 = vmatpush1.msra.mxu0 0.0
      %1620 = vmatprep.subr.mxu0 0.0
      %1621 = vmatpush1.msra.mxu0 0.0
      %1622 = vmatprep.subr.mxu0 0.0
      %1623 = vmatpush1.msra.mxu0 0.0
      %1624 = vmatprep.subr.mxu0 0.0
      %1625 = vmatpush1.msra.mxu0 0.0
      %1626 = vmatprep.subr.mxu0 0.0
      %1627 = vmatpush1.msra.mxu0 0.0
      %1628 = vmatprep.subr.mxu0 0.0
      %1629 = vmatpush1.msra.mxu0 %v1492
      %1630 = vmatprep.subr.mxu0 0.0
      %1631 = vmatpush1.msra.mxu0 %v1491
      %1632 = vmatprep.subr.mxu0 0.0
      %1633 = vmatpush1.msra.mxu0 %v1490
      %1634 = vmatprep.subr.mxu0 0.0
      %1635 = vmatpush2.msra.mxu0 0.0
      %1636 = vmatprep.subr.mxu0 0.0
      %1637 = vmatpush2.msra.mxu0 0.0
      %1638 = vmatprep.subr.mxu0 0.0
      %1639 = vmatpush2.msra.mxu0 0.0
      %1640 = vmatprep.subr.mxu0 0.0
      %1641 = vmatpush2.msra.mxu0 0.0
      %1642 = vmatprep.subr.mxu0 0.0
      %1643 = vmatpush2.msra.mxu0 0.0
      %1644 = vmatprep.subr.mxu0 0.0
      %1645 = vmatpush2.msra.mxu0 0.0
      %1646 = vmatprep.subr.mxu0 0.0
      %1647 = vmatpush2.msra.mxu0 0.0
      %1648 = vmatprep.subr.mxu0 0.0
      %1649 = vmatpush2.msra.mxu0 0.0
      %1650 = vmatprep.subr.mxu0 0.0
      %1651 = vmatpush2.msra.mxu0 0.0
      %1652 = vmatprep.subr.mxu0 0.0
      %1653 = vmatpush2.msra.mxu0 0.0
      %1654 = vmatprep.subr.mxu0 0.0
      %1655 = vmatpush2.msra.mxu0 0.0
      %1656 = vmatprep.subr.mxu0 0.0
      %1657 = vmatpush2.msra.mxu0 0.0
      %1658 = vmatprep.subr.mxu0 0.0
      %1659 = vmatpush2.msra.mxu0 0.0
      %1660 = vmatprep.subr.mxu0 0.0
      %1661 = vmatpush2.msra.mxu0 0.0
      %1662 = vmatprep.subr.mxu0 0.0
      %1663 = vmatpush2.msra.mxu0 0.0
      %1664 = vmatprep.subr.mxu0 0.0
      %1665 = vmatpush2.msra.mxu0 0.0
      %1666 = vmatprep.mubr.f32.mxu0 0.0
      %1667 = vmatmul.mubr.f32.gmra.mxu0 %v1597
      %v1668 = vpop.f32.mrf.mxu0
      %v1669 = vadd.f32 0.0, %v1668
      %v1670 = vpop.f32.mrf.mxu0
      %1671 = vmatprep.mubr.f32.mxu0 0.0
      %1672 = vmatmul.mubr.f32.gmra.mxu0 %v1600
      %v1673 = vpop.f32.mrf.mxu0
      %v1674 = vadd.f32 0.0, %v1673
      %v1675 = vpop.f32.mrf.mxu0
      %1676 = vdwg.mxu0
      %v1677 = vmax.f32 %v1588, %v1669
      %v1678 = vmax.f32 %v1593, %v1674
      %v1679 = vpack.c.bf16 %v1678, %v1677
      %v1681 = vunpack.c.l.b16 %v1679
      %v1682 = vunpack.c.h.b16 %v1679
      %v1683 = vpack.c.b16 %v1681, %v1681
      %v1684 = vpack.c.b16 %v1682, %v1682
      %vm1687 = vcmask 519168
      %1688 = vst.msk [vmem:[%s192] sm:$0xf] %vm1687, %v1683
      %vm1689 = vcmask 517120
      %1690 = vst.msk [vmem:[%s192 + $0x4] sm:$0x3] %vm1689, %v1684
      %p1691 = scmp.lt.s32.totalorder %s18, 1
      %s1692 = scalar_select %p1691, %s18, 1
      %p1693 = scmp.lt.s32.totalorder %s19, 11
      %s1694 = scalar_select %p1693, %s19, 11
      %s1695 = smul.addr %s1694, 2
      %s1696 = smul.addr %s1692, 24
      %s1697 = sadd.s32 %s1695, %s1696
      %s1698 = smul.addr %s1697, 4
      %s1699 = scalar_lea.vmem %s3, %s1698
      // Predicated region
      $region33: #{emotion_cnn_forward.5} parent=31 // pred_check
        %p1700 = pneg %p114
      $region34: #{emotion_cnn_forward.5} parent=31 // pred_check_branch
        %1702 = sbr.rel (%p1700) target = $region36
      $region35: #{emotion_cnn_forward.5} parent=31 // pred_region
        _
      $region36: #{emotion_cnn_forward.5} parent=31 // pred_fallthru
        _
    $region32: #{emotion_cnn_forward.5} parent=5 // pred_fallthru
      _
    %p1703 = scmp.le.s32.totalorder 2, %s9
    // Predicated region
    $region37: #{emotion_cnn_forward.5} parent=5 // pred_check
      %p1704 = pneg %p1703
    $region38: #{emotion_cnn_forward.5} parent=5 // pred_check_branch
      %1706 = sbr.rel (%p1704) target = $region40
    $region39: #{emotion_cnn_forward.5} parent=5 // pred_region
      %s1707 = ssub.s32 %s9, 2
      // Predicated region
      $region41: #{emotion_cnn_forward.5} parent=39 // pred_check
        %p1708 = pneg %p120
      $region42: #{emotion_cnn_forward.5} parent=39 // pred_check_branch
        %1710 = sbr.rel (%p1708) target = $region44
      $region43: #{emotion_cnn_forward.5} parent=39 // pred_region
        %p1711 = scmp.lt.s32.totalorder %s20, 1
        %s1712 = scalar_select %p1711, %s20, 1
        %p1713 = scmp.lt.s32.totalorder %s21, 11
        %s1714 = scalar_select %p1713, %s21, 11
        %s1715 = smul.addr %s1714, 2
        %s1716 = smul.addr %s1712, 24
        %s1717 = sadd.s32 %s1715, %s1716
        %s1718 = smul.addr %s1717, 4
        %s1719 = scalar_lea.vmem %s3, %s1718
      $region44: #{emotion_cnn_forward.5} parent=39 // pred_fallthru
        _
    $region40: #{emotion_cnn_forward.5} parent=5 // pred_fallthru
      _
  $region6: #{emotion_cnn_forward.5} parent=0 // loop_footer
    %s13 = sadd.s32 1, %s9
  $region7: #{emotion_cnn_forward.5} parent=0 // loop_footer_branch
    %8 = sbr.rel target = $region3
  $region8: #{emotion_cnn_forward.5} parent=0 // loop_exit
    _

// kernel: emotion_cnn_forward.6
$region0: #{emotion_cnn_forward.6}
  #allocation0 [shape = 'u32[]', space=smem, size = 0x4, offset = 0x4, fixed_abs, tag = 'smem constant byte address 0x4 - core index']
  #allocation1 [shape = 'u32[144,128]{1,0:T(1,128)}', space=vmem, size = 0x12000, scoped, tag = 'internal scratch']
  %s0 = inlined_call_operand.vmem [shape: bf16[2,14,14,64], index: 0, kind: input, shape index: {}]
  %s1 = inlined_call_operand.vmem [shape: bf16[3,3,64,128], index: 1, kind: input, shape index: {}]
  %s2 = inlined_call_operand.vmem [shape: f32[1,128], index: 2, kind: input, shape index: {}]
  %s3 = inlined_call_operand.vmem [shape: bf16[2,6,6,128], index: 3, kind: output, shape index: {}]
  %s4 = sld [smem:[#allocation0]]
  $region45: #{emotion_cnn_forward.6} parent=0
    _
  %s6 = ssub.s32 1, %s4
  %s7 = scalar_select 0, %s6, %s4
  loop: start=0, step=1, limit=14
  $region2: #{emotion_cnn_forward.6} parent=0 // loop_pre_header
    _
  $region3: #{emotion_cnn_forward.6} parent=0 // loop_header
    %s9 = sphi 0, %s13
    %p10 = scmp.ge.s32.totalorder %s9, 14
    %s16 = sphi 0, %s28
    %s17 = sphi 0, %s24
    %s18 = sphi 0, %s16
    %s19 = sphi 0, %s17
    %s20 = sphi 0, %s18
    %s21 = sphi 0, %s19
    %s31 = sphi 0, %s33
    %s34 = sphi 0, %s31
    %s35 = sphi 0, %s34
    %s51 = sphi 0, %s35
    %s55 = sphi 0, %s55
    %s57 = sphi 0, %s55
    %s58 = sphi 0, %s57
    %s72 = sphi 0, %s58
    %s76 = sphi 0, %s76
    %s78 = sphi 0, %s76
    %s79 = sphi 0, %s78
    %s93 = sphi 0, %s79
    %s101 = sphi 0, %s103
    %s104 = sphi 0, %s101
    %s105 = sphi 0, %s104
    %s121 = sphi 0, %s105
  $region4: #{emotion_cnn_forward.6} parent=0 // loop_header_branch
    %12 = sbr.rel (%p10) target = $region8
  $region5: #{emotion_cnn_forward.6} parent=0 // loop_body
    %s14 = ssub.s32 %s9, 1
    %s15 = ssub.s32 %s9, 2
    %s22 = sadd.s32 1, %s17
    %p23 = scmp.ge.s32.totalorder %s22, 6
    %s24 = scalar_select %p23, 0, %s22
    %s25 = sadd.s32 1, %s16
    %s26 = scalar_select %p23, %s25, %s16
    %p27 = scmp.ge.s32.totalorder %s26, 2
    %s28 = scalar_select %p27, 0, %s26
    %s29 = ssub.s32 %s16, %s28
    %p30 = scmp.eq.s32.totalorder %s29, 0
    %s32 = sadd.s32 %s31, 1
    %s33 = scalar_select %p30, %s31, %s32
    %p36 = pneg %p30
    %p37 = scmp.eq.s32.totalorder %s9, 11
    %p38 = por %p36, %p37
    %p39 = scmp.ne.s32.totalorder %s31, %s34
    %p40 = scmp.eq.s32.totalorder %s9, 0
    %p41 = por %p39, %p40
    %p42 = scmp.ne.s32.totalorder %s31, %s34
    %p43 = scmp.eq.s32.totalorder %s14, 11
    %p44 = por %p42, %p43
    %p45 = scmp.ne.s32.totalorder %s34, %s35
    %p46 = scmp.eq.s32.totalorder %s14, 0
    %p47 = por %p45, %p46
    %p48 = scmp.ne.s32.totalorder %s34, %s35
    %p49 = scmp.eq.s32.totalorder %s15, 11
    %p50 = por %p48, %p49
    %p52 = scmp.ne.s32.totalorder %s35, %s51
    %p53 = scmp.eq.s32.totalorder %s15, 0
    %p54 = por %p52, %p53
    %s56 = sadd.s32 %s55, 1
    %p59 = scmp.eq.s32.totalorder %s9, 11
    %p60 = scmp.ne.s32.totalorder %s55, %s57
    %p61 = scmp.eq.s32.totalorder %s9, 0
    %p62 = por %p60, %p61
    %p63 = scmp.ne.s32.totalorder %s55, %s57
    %p64 = scmp.eq.s32.totalorder %s14, 11
    %p65 = por %p63, %p64
    %p66 = scmp.ne.s32.totalorder %s57, %s58
    %p67 = scmp.eq.s32.totalorder %s14, 0
    %p68 = por %p66, %p67
    %p69 = scmp.ne.s32.totalorder %s57, %s58
    %p70 = scmp.eq.s32.totalorder %s15, 11
    %p71 = por %p69, %p70
    %p73 = scmp.ne.s32.totalorder %s58, %s72
    %p74 = scmp.eq.s32.totalorder %s15, 0
    %p75 = por %p73, %p74
    %s77 = sadd.s32 %s76, 1
    %p80 = scmp.eq.s32.totalorder %s9, 11
    %p81 = scmp.ne.s32.totalorder %s76, %s78
    %p82 = scmp.eq.s32.totalorder %s9, 0
    %p83 = por %p81, %p82
    %p84 = scmp.ne.s32.totalorder %s76, %s78
    %p85 = scmp.eq.s32.totalorder %s14, 11
    %p86 = por %p84, %p85
    %p87 = scmp.ne.s32.totalorder %s78, %s79
    %p88 = scmp.eq.s32.totalorder %s14, 0
    %p89 = por %p87, %p88
    %p90 = scmp.ne.s32.totalorder %s78, %s79
    %p91 = scmp.eq.s32.totalorder %s15, 11
    %p92 = por %p90, %p91
    %p94 = scmp.ne.s32.totalorder %s79, %s93
    %p95 = scmp.eq.s32.totalorder %s15, 0
    %p96 = por %p94, %p95
    %s97 = ssub.s32 %s16, %s28
    %s98 = ssub.s32 %s17, %s24
    %s99 = sor.u32 %s97, %s98
    %p100 = scmp.eq.s32.totalorder %s99, 0
    %s102 = sadd.s32 %s101, 1
    %s103 = scalar_select %p100, %s101, %s102
    %p106 = pneg %p100
    %p107 = scmp.eq.s32.totalorder %s9, 11
    %p108 = por %p106, %p107
    %p109 = scmp.ne.s32.totalorder %s101, %s104
    %p110 = scmp.eq.s32.totalorder %s9, 0
    %p111 = por %p109, %p110
    %p112 = scmp.ne.s32.totalorder %s101, %s104
    %p113 = scmp.eq.s32.totalorder %s14, 11
    %p114 = por %p112, %p113
    %p115 = scmp.ne.s32.totalorder %s104, %s105
    %p116 = scmp.eq.s32.totalorder %s14, 0
    %p117 = por %p115, %p116
    %p118 = scmp.ne.s32.totalorder %s104, %s105
    %p119 = scmp.eq.s32.totalorder %s15, 11
    %p120 = por %p118, %p119
    %p122 = scmp.ne.s32.totalorder %s105, %s121
    %p123 = scmp.eq.s32.totalorder %s15, 0
    %p124 = por %p122, %p123
    %p125 = scmp.le.s32.totalorder 1, %s9
    %p126 = scmp.lt.s32.totalorder %s9, 13
    %p127 = pnand %p125, %p126
    %p128 = pneg %p127
    // Predicated region
    $region9: #{emotion_cnn_forward.6} parent=5 // pred_check
      _
    $region10: #{emotion_cnn_forward.6} parent=5 // pred_check_branch
      %130 = sbr.rel (%p127) target = $region12
    $region11: #{emotion_cnn_forward.6} parent=5 // pred_region
      %s131 = ssub.s32 %s9, 1
      // Predicated region
      $region13: #{emotion_cnn_forward.6} parent=11 // pred_check
        %p132 = pneg %p68
      $region14: #{emotion_cnn_forward.6} parent=11 // pred_check_branch
        %134 = sbr.rel (%p132) target = $region16
      $region15: #{emotion_cnn_forward.6} parent=11 // pred_region
        _
      $region16: #{emotion_cnn_forward.6} parent=11 // pred_fallthru
        _
      // Predicated region
      $region17: #{emotion_cnn_forward.6} parent=11 // pred_check
        %p135 = pneg %p89
      $region18: #{emotion_cnn_forward.6} parent=11 // pred_check_branch
        %137 = sbr.rel (%p135) target = $region20
      $region19: #{emotion_cnn_forward.6} parent=11 // pred_region
        _
      $region20: #{emotion_cnn_forward.6} parent=11 // pred_fallthru
        _
    $region12: #{emotion_cnn_forward.6} parent=5 // pred_fallthru
      _
    %p138 = scmp.lt.s32.totalorder %s9, 12
    // Predicated region
    $region21: #{emotion_cnn_forward.6} parent=5 // pred_check
      %p139 = pneg %p138
    $region22: #{emotion_cnn_forward.6} parent=5 // pred_check_branch
      %141 = sbr.rel (%p139) target = $region24
    $region23: #{emotion_cnn_forward.6} parent=5 // pred_region
      // Predicated region
      $region25: #{emotion_cnn_forward.6} parent=23 // pred_check
        %p142 = pneg %p41
      $region26: #{emotion_cnn_forward.6} parent=23 // pred_check_branch
        %144 = sbr.rel (%p142) target = $region28
      $region27: #{emotion_cnn_forward.6} parent=23 // pred_region
        %p145 = scmp.lt.s32.totalorder %s16, 1
        %s146 = scalar_select %p145, %s16, 1
        %s147 = smul.addr %s146, 28
        %s148 = smul.addr %s147, 4
        %s149 = scalar_lea.vmem %s0, %s148
      $region28: #{emotion_cnn_forward.6} parent=23 // pred_fallthru
        _
    $region24: #{emotion_cnn_forward.6} parent=5 // pred_fallthru
      _
    %p150 = scmp.le.s32.totalorder 1, %s9
    %p151 = scmp.lt.s32.totalorder %s9, 13
    %p152 = pnand %p150, %p151
    %p153 = pneg %p152
    // Predicated region
    $region29: #{emotion_cnn_forward.6} parent=5 // pred_check
      _
    $region30: #{emotion_cnn_forward.6} parent=5 // pred_check_branch
      %155 = sbr.rel (%p152) target = $region32
    $region31: #{emotion_cnn_forward.6} parent=5 // pred_region
      %s156 = ssub.s32 %s9, 1
      %p157 = scmp.lt.s32.totalorder %s18, 1
      %s158 = scalar_select %p157, %s18, 1
      %s159 = smul.addr %s158, 28
      %s160 = smul.addr %s159, 4
      %s161 = scalar_lea.vmem %s0, %s160
      %p162 = pneg %p47
      %p163 = pneg %p44
      %p164 = pneg %p68
      %p165 = pneg %p65
      %p166 = pneg %p89
      %p167 = pneg %p86
      %p168 = pneg %p117
      %p169 = pneg %p114
      %p170 = scmp.lt.s32.totalorder %s18, 1
      %s171 = scalar_select %p170, %s18, 1
      %p172 = scmp.lt.s32.totalorder %s19, 5
      %s173 = scalar_select %p172, %s19, 5
      %s174 = smul.addr %s171, 6
      %s175 = sadd.s32 %s173, %s174
      %s176 = smul.addr %s175, 4
      %s177 = scalar_lea.vmem %s3, %s176
      %p178 = scmp.lt.s32.totalorder %s18, 1
      %s179 = scalar_select %p178, %s18, 1
      %s180 = smul.addr %s179, 28
      %s181 = smul.addr %s180, 4
      %s182 = scalar_lea.vmem %s0, %s181
      %p183 = scmp.lt.s32.totalorder %s18, 1
      %s184 = scalar_select %p183, %s18, 1
      %p185 = scmp.lt.s32.totalorder %s19, 5
      %s186 = scalar_select %p185, %s19, 5
      %s187 = smul.addr %s184, 6
      %s188 = sadd.s32 %s186, %s187
      %s189 = smul.addr %s188, 4
      %s190 = scalar_lea.vmem %s3, %s189
      %s192 = smul.u32 %s19, 2
      %v193 = vld [vmem:[%s2] sm:$0x1]
      %s194 = smul.u32 %s192, 2
      %s195 = smul.addr %s194, 4
      %s196 = scalar_lea.vmem %s182, %s195
      %v197 = vld [vmem:[%s196] sm:$0xf]
      %v198 = vld [vmem:[%s196 + $0x4] sm:$0x7]
      %s199 = sadd.s32 %s192, 1
      %s200 = smul.u32 %s199, 2
      %s201 = smul.addr %s200, 4
      %s202 = scalar_lea.vmem %s182, %s201
      %v203 = vld [vmem:[%s202] sm:$0xf]
      %v204 = vld [vmem:[%s202 + $0x4] sm:$0x7]
      %s205 = sadd.s32 %s192, 2
      %s206 = smul.u32 %s205, 2
      %s207 = smul.addr %s206, 4
      %s208 = scalar_lea.vmem %s182, %s207
      %v209 = vld [vmem:[%s208] sm:$0xf]
      %v210 = vld [vmem:[%s208 + $0x4] sm:$0x7]
      %s211 = sadd.s32 %s192, 3
      %s212 = smul.u32 %s211, 2
      %s213 = smul.addr %s212, 4
      %s214 = scalar_lea.vmem %s182, %s213
      %v215 = vld [vmem:[%s214] sm:$0xf]
      %v216 = vld [vmem:[%s214 + $0x4] sm:$0x7]
      %v217 = vld [vmem:[%s1] sm:$0xf]
      %v218 = vld [vmem:[%s1 + $0x4] sm:$0xf]
      %v219 = vld [vmem:[%s1 + $0x8] sm:$0xf]
      %v220 = vld [vmem:[%s1 + $0xc] sm:$0xf]
      %v221 = vld [vmem:[%s1 + $0x10] sm:$0xf]
      %v222 = vld [vmem:[%s1 + $0x14] sm:$0xf]
      %v223 = vld [vmem:[%s1 + $0x18] sm:$0xf]
      %v224 = vld [vmem:[%s1 + $0x1c] sm:$0xf]
      %s225 = scalar_lea.vmem %s1, 32
      %v226 = vld [vmem:[%s225] sm:$0xf]
      %v227 = vld [vmem:[%s225 + $0x4] sm:$0xf]
      %v228 = vld [vmem:[%s225 + $0x8] sm:$0xf]
      %v229 = vld [vmem:[%s225 + $0xc] sm:$0xf]
      %v230 = vld [vmem:[%s225 + $0x10] sm:$0xf]
      %v231 = vld [vmem:[%s225 + $0x14] sm:$0xf]
      %v232 = vld [vmem:[%s225 + $0x18] sm:$0xf]
      %v233 = vld [vmem:[%s225 + $0x1c] sm:$0xf]
      %v236 = vunpack.c.l.b16 %v197
      %v237 = vunpack.c.l.b16 %v198
      %v238 = vpack.c.b16 %v237, %v236
      %v240 = vshrl.u32 %v238, 16
      %v242 = vshll.u32 %v238, 16
      %v244 = vrot.slane %v242, 1
      %v245 = vor.u32 %v240, %v244
      %v254 = vunpack.c.l.b16 %v226
      %v255 = vunpack.c.l.b16 %v227
      %v256 = vunpack.c.l.b16 %v228
      %v257 = vunpack.c.l.b16 %v229
      %v258 = vunpack.c.l.b16 %v230
      %v259 = vunpack.c.l.b16 %v231
      %v260 = vunpack.c.l.b16 %v232
      %v261 = vunpack.c.l.b16 %v233
      %v262 = vpack.c.b16 %v255, %v254
      %v263 = vpack.c.b16 %v257, %v256
      %v264 = vpack.c.b16 %v259, %v258
      %v265 = vpack.c.b16 %v261, %v260
      %vm270 = vcmask 523264
      %v272 = vsel %vm270, %v245, 0
      %274 = vmatprep.subr.bf16.mxu0 0
      %275 = vmatpush1.bf16.msra.mxu0 0
      %276 = vmatprep.subr.bf16.mxu0 0
      %277 = vmatpush1.bf16.msra.mxu0 0
      %278 = vmatprep.subr.bf16.mxu0 0
      %279 = vmatpush1.bf16.msra.mxu0 0
      %280 = vmatprep.subr.bf16.mxu0 0
      %281 = vmatpush1.bf16.msra.mxu0 0
      %282 = vmatprep.subr.bf16.mxu0 0
      %283 = vmatpush1.bf16.msra.mxu0 %v265
      %284 = vmatprep.subr.bf16.mxu0 0
      %285 = vmatpush1.bf16.msra.mxu0 %v264
      %286 = vmatprep.subr.bf16.mxu0 0
      %287 = vmatpush1.bf16.msra.mxu0 %v263
      %288 = vmatprep.subr.bf16.mxu0 0
      %289 = vmatpush1.bf16.msra.mxu0 %v262
      %290 = vmatprep.subr.bf16.mxu0 0
      %291 = vmatpush2.bf16.msra.mxu0 0
      %292 = vmatprep.subr.bf16.mxu0 0
      %293 = vmatpush2.bf16.msra.mxu0 0
      %294 = vmatprep.subr.bf16.mxu0 0
      %295 = vmatpush2.bf16.msra.mxu0 0
      %296 = vmatprep.subr.bf16.mxu0 0
      %297 = vmatpush2.bf16.msra.mxu0 0
      %298 = vmatprep.subr.bf16.mxu0 0
      %299 = vmatpush2.bf16.msra.mxu0 0
      %300 = vmatprep.subr.bf16.mxu0 0
      %301 = vmatpush2.bf16.msra.mxu0 0
      %302 = vmatprep.subr.bf16.mxu0 0
      %303 = vmatpush2.bf16.msra.mxu0 0
      %304 = vmatprep.subr.bf16.mxu0 0
      %305 = vmatpush2.bf16.msra.mxu0 0
      %306 = vmatprep.mubr.bf16.mxu0 0
      %307 = vmatmul.mubr.bf16.gmra.mxu0 %v272
      %v308 = vpop.f32.mrf.mxu0
      %v309 = vadd.f32 0.0, %v308
      %v310 = vpop.f32.mrf.mxu0
      %v311 = vpop.f32.mrf.mxu0
      %v312 = vadd.f32 0.0, %v311
      %v313 = vpop.f32.mrf.mxu0
      %314 = vdwg.mxu0
      %v323 = vunpack.c.l.b16 %v217
      %v324 = vunpack.c.l.b16 %v218
      %v325 = vunpack.c.l.b16 %v219
      %v326 = vunpack.c.l.b16 %v220
      %v327 = vunpack.c.l.b16 %v221
      %v328 = vunpack.c.l.b16 %v222
      %v329 = vunpack.c.l.b16 %v223
      %v330 = vunpack.c.l.b16 %v224
      %v331 = vpack.c.b16 %v324, %v323
      %v332 = vpack.c.b16 %v326, %v325
      %v333 = vpack.c.b16 %v328, %v327
      %v334 = vpack.c.b16 %v330, %v329
      %v339 = vsel %vm270, %v238, 0
      %341 = vmatprep.subr.bf16.mxu0 0
      %342 = vmatpush1.bf16.msra.mxu0 0
      %343 = vmatprep.subr.bf16.mxu0 0
      %344 = vmatpush1.bf16.msra.mxu0 0
      %345 = vmatprep.subr.bf16.mxu0 0
      %346 = vmatpush1.bf16.msra.mxu0 0
      %347 = vmatprep.subr.bf16.mxu0 0
      %348 = vmatpush1.bf16.msra.mxu0 0
      %349 = vmatprep.subr.bf16.mxu0 0
      %350 = vmatpush1.bf16.msra.mxu0 %v334
      %351 = vmatprep.subr.bf16.mxu0 0
      %352 = vmatpush1.bf16.msra.mxu0 %v333
      %353 = vmatprep.subr.bf16.mxu0 0
      %354 = vmatpush1.bf16.msra.mxu0 %v332
      %355 = vmatprep.subr.bf16.mxu0 0
      %356 = vmatpush1.bf16.msra.mxu0 %v331
      %357 = vmatprep.subr.bf16.mxu0 0
      %358 = vmatpush2.bf16.msra.mxu0 0
      %359 = vmatprep.subr.bf16.mxu0 0
      %360 = vmatpush2.bf16.msra.mxu0 0
      %361 = vmatprep.subr.bf16.mxu0 0
      %362 = vmatpush2.bf16.msra.mxu0 0
      %363 = vmatprep.subr.bf16.mxu0 0
      %364 = vmatpush2.bf16.msra.mxu0 0
      %365 = vmatprep.subr.bf16.mxu0 0
      %366 = vmatpush2.bf16.msra.mxu0 0
      %367 = vmatprep.subr.bf16.mxu0 0
      %368 = vmatpush2.bf16.msra.mxu0 0
      %369 = vmatprep.subr.bf16.mxu0 0
      %370 = vmatpush2.bf16.msra.mxu0 0
      %371 = vmatprep.subr.bf16.mxu0 0
      %372 = vmatpush2.bf16.msra.mxu0 0
      %373 = vmatprep.mubr.bf16.mxu0 0
      %374 = vmatmul.mubr.bf16.gmra.mxu0 %v339
      %v375 = vpop.f32.mrf.mxu0
      %v376 = vadd.f32 %v309, %v375
      %v377 = vpop.f32.mrf.mxu0
      %v378 = vpop.f32.mrf.mxu0
      %v379 = vadd.f32 %v312, %v378
      %v380 = vpop.f32.mrf.mxu0
      %381 = vdwg.mxu0
      %s382 = scalar_lea.vmem %s1, 64
      %v383 = vld [vmem:[%s382] sm:$0xf]
      %v384 = vld [vmem:[%s382 + $0x4] sm:$0xf]
      %v385 = vld [vmem:[%s382 + $0x8] sm:$0xf]
      %v386 = vld [vmem:[%s382 + $0xc] sm:$0xf]
      %v387 = vld [vmem:[%s382 + $0x10] sm:$0xf]
      %v388 = vld [vmem:[%s382 + $0x14] sm:$0xf]
      %v389 = vld [vmem:[%s382 + $0x18] sm:$0xf]
      %v390 = vld [vmem:[%s382 + $0x1c] sm:$0xf]
      %v391 = vrot.slane %v238, 1
      %v400 = vunpack.c.l.b16 %v383
      %v401 = vunpack.c.l.b16 %v384
      %v402 = vunpack.c.l.b16 %v385
      %v403 = vunpack.c.l.b16 %v386
      %v404 = vunpack.c.l.b16 %v387
      %v405 = vunpack.c.l.b16 %v388
      %v406 = vunpack.c.l.b16 %v389
      %v407 = vunpack.c.l.b16 %v390
      %v408 = vpack.c.b16 %v401, %v400
      %v409 = vpack.c.b16 %v403, %v402
      %v410 = vpack.c.b16 %v405, %v404
      %v411 = vpack.c.b16 %v407, %v406
      %v417 = vsel %vm270, %v391, 0
      %419 = vmatprep.subr.bf16.mxu0 0
      %420 = vmatpush1.bf16.msra.mxu0 0
      %421 = vmatprep.subr.bf16.mxu0 0
      %422 = vmatpush1.bf16.msra.mxu0 0
      %423 = vmatprep.subr.bf16.mxu0 0
      %424 = vmatpush1.bf16.msra.mxu0 0
      %425 = vmatprep.subr.bf16.mxu0 0
      %426 = vmatpush1.bf16.msra.mxu0 0
      %427 = vmatprep.subr.bf16.mxu0 0
      %428 = vmatpush1.bf16.msra.mxu0 %v411
      %429 = vmatprep.subr.bf16.mxu0 0
      %430 = vmatpush1.bf16.msra.mxu0 %v410
      %431 = vmatprep.subr.bf16.mxu0 0
      %432 = vmatpush1.bf16.msra.mxu0 %v409
      %433 = vmatprep.subr.bf16.mxu0 0
      %434 = vmatpush1.bf16.msra.mxu0 %v408
      %435 = vmatprep.subr.bf16.mxu0 0
      %436 = vmatpush2.bf16.msra.mxu0 0
      %437 = vmatprep.subr.bf16.mxu0 0
      %438 = vmatpush2.bf16.msra.mxu0 0
      %439 = vmatprep.subr.bf16.mxu0 0
      %440 = vmatpush2.bf16.msra.mxu0 0
      %441 = vmatprep.subr.bf16.mxu0 0
      %442 = vmatpush2.bf16.msra.mxu0 0
      %443 = vmatprep.subr.bf16.mxu0 0
      %444 = vmatpush2.bf16.msra.mxu0 0
      %445 = vmatprep.subr.bf16.mxu0 0
      %446 = vmatpush2.bf16.msra.mxu0 0
      %447 = vmatprep.subr.bf16.mxu0 0
      %448 = vmatpush2.bf16.msra.mxu0 0
      %449 = vmatprep.subr.bf16.mxu0 0
      %450 = vmatpush2.bf16.msra.mxu0 0
      %451 = vmatprep.mubr.bf16.mxu0 0
      %452 = vmatmul.mubr.bf16.gmra.mxu0 %v417
      %v453 = vpop.f32.mrf.mxu0
      %v454 = vadd.f32 0.0, %v453
      %v455 = vpop.f32.mrf.mxu0
      %v456 = vpop.f32.mrf.mxu0
      %v457 = vadd.f32 0.0, %v456
      %v458 = vpop.f32.mrf.mxu0
      %459 = vdwg.mxu0
      %v460 = vadd.f32 %v376, %v454
      %v461 = vadd.f32 %v379, %v457
      %s462 = scalar_lea.vmem %s1, 96
      %v463 = vld [vmem:[%s462] sm:$0xf]
      %v464 = vld [vmem:[%s462 + $0x4] sm:$0xf]
      %v465 = vld [vmem:[%s462 + $0x8] sm:$0xf]
      %v466 = vld [vmem:[%s462 + $0xc] sm:$0xf]
      %v467 = vld [vmem:[%s462 + $0x10] sm:$0xf]
      %v468 = vld [vmem:[%s462 + $0x14] sm:$0xf]
      %v469 = vld [vmem:[%s462 + $0x18] sm:$0xf]
      %v470 = vld [vmem:[%s462 + $0x1c] sm:$0xf]
      %v473 = vunpack.c.l.b16 %v203
      %v474 = vunpack.c.l.b16 %v204
      %v475 = vpack.c.b16 %v474, %v473
      %v484 = vunpack.c.l.b16 %v463
      %v485 = vunpack.c.l.b16 %v464
      %v486 = vunpack.c.l.b16 %v465
      %v487 = vunpack.c.l.b16 %v466
      %v488 = vunpack.c.l.b16 %v467
      %v489 = vunpack.c.l.b16 %v468
      %v490 = vunpack.c.l.b16 %v469
      %v491 = vunpack.c.l.b16 %v470
      %v492 = vpack.c.b16 %v485, %v484
      %v493 = vpack.c.b16 %v487, %v486
      %v494 = vpack.c.b16 %v489, %v488
      %v495 = vpack.c.b16 %v491, %v490
      %v501 = vsel %vm270, %v475, 0
      %503 = vmatprep.subr.bf16.mxu0 0
      %504 = vmatpush1.bf16.msra.mxu0 0
      %505 = vmatprep.subr.bf16.mxu0 0
      %506 = vmatpush1.bf16.msra.mxu0 0
      %507 = vmatprep.subr.bf16.mxu0 0
      %508 = vmatpush1.bf16.msra.mxu0 0
      %509 = vmatprep.subr.bf16.mxu0 0
      %510 = vmatpush1.bf16.msra.mxu0 0
      %511 = vmatprep.subr.bf16.mxu0 0
      %512 = vmatpush1.bf16.msra.mxu0 %v495
      %513 = vmatprep.subr.bf16.mxu0 0
      %514 = vmatpush1.bf16.msra.mxu0 %v494
      %515 = vmatprep.subr.bf16.mxu0 0
      %516 = vmatpush1.bf16.msra.mxu0 %v493
      %517 = vmatprep.subr.bf16.mxu0 0
      %518 = vmatpush1.bf16.msra.mxu0 %v492
      %519 = vmatprep.subr.bf16.mxu0 0
      %520 = vmatpush2.bf16.msra.mxu0 0
      %521 = vmatprep.subr.bf16.mxu0 0
      %522 = vmatpush2.bf16.msra.mxu0 0
      %523 = vmatprep.subr.bf16.mxu0 0
      %524 = vmatpush2.bf16.msra.mxu0 0
      %525 = vmatprep.subr.bf16.mxu0 0
      %526 = vmatpush2.bf16.msra.mxu0 0
      %527 = vmatprep.subr.bf16.mxu0 0
      %528 = vmatpush2.bf16.msra.mxu0 0
      %529 = vmatprep.subr.bf16.mxu0 0
      %530 = vmatpush2.bf16.msra.mxu0 0
      %531 = vmatprep.subr.bf16.mxu0 0
      %532 = vmatpush2.bf16.msra.mxu0 0
      %533 = vmatprep.subr.bf16.mxu0 0
      %534 = vmatpush2.bf16.msra.mxu0 0
      %535 = vmatprep.mubr.bf16.mxu0 0
      %536 = vmatmul.mubr.bf16.gmra.mxu0 %v501
      %v537 = vpop.f32.mrf.mxu0
      %v538 = vadd.f32 0.0, %v537
      %v539 = vpop.f32.mrf.mxu0
      %v540 = vpop.f32.mrf.mxu0
      %v541 = vadd.f32 0.0, %v540
      %v542 = vpop.f32.mrf.mxu0
      %543 = vdwg.mxu0
      %v544 = vadd.f32 %v460, %v538
      %v545 = vadd.f32 %v461, %v541
      %s546 = scalar_lea.vmem %s1, 128
      %v547 = vld [vmem:[%s546] sm:$0xf]
      %v548 = vld [vmem:[%s546 + $0x4] sm:$0xf]
      %v549 = vld [vmem:[%s546 + $0x8] sm:$0xf]
      %v550 = vld [vmem:[%s546 + $0xc] sm:$0xf]
      %v551 = vld [vmem:[%s546 + $0x10] sm:$0xf]
      %v552 = vld [vmem:[%s546 + $0x14] sm:$0xf]
      %v553 = vld [vmem:[%s546 + $0x18] sm:$0xf]
      %v554 = vld [vmem:[%s546 + $0x1c] sm:$0xf]
      %v555 = vshrl.u32 %v475, 16
      %v557 = vshll.u32 %v475, 16
      %v559 = vrot.slane %v557, 1
      %v560 = vor.u32 %v555, %v559
      %v569 = vunpack.c.l.b16 %v547
      %v570 = vunpack.c.l.b16 %v548
      %v571 = vunpack.c.l.b16 %v549
      %v572 = vunpack.c.l.b16 %v550
      %v573 = vunpack.c.l.b16 %v551
      %v574 = vunpack.c.l.b16 %v552
      %v575 = vunpack.c.l.b16 %v553
      %v576 = vunpack.c.l.b16 %v554
      %v577 = vpack.c.b16 %v570, %v569
      %v578 = vpack.c.b16 %v572, %v571
      %v579 = vpack.c.b16 %v574, %v573
      %v580 = vpack.c.b16 %v576, %v575
      %v586 = vsel %vm270, %v560, 0
      %588 = vmatprep.subr.bf16.mxu0 0
      %589 = vmatpush1.bf16.msra.mxu0 0
      %590 = vmatprep.subr.bf16.mxu0 0
      %591 = vmatpush1.bf16.msra.mxu0 0
      %592 = vmatprep.subr.bf16.mxu0 0
      %593 = vmatpush1.bf16.msra.mxu0 0
      %594 = vmatprep.subr.bf16.mxu0 0
      %595 = vmatpush1.bf16.msra.mxu0 0
      %596 = vmatprep.subr.bf16.mxu0 0
      %597 = vmatpush1.bf16.msra.mxu0 %v580
      %598 = vmatprep.subr.bf16.mxu0 0
      %599 = vmatpush1.bf16.msra.mxu0 %v579
      %600 = vmatprep.subr.bf16.mxu0 0
      %601 = vmatpush1.bf16.msra.mxu0 %v578
      %602 = vmatprep.subr.bf16.mxu0 0
      %603 = vmatpush1.bf16.msra.mxu0 %v577
      %604 = vmatprep.subr.bf16.mxu0 0
      %605 = vmatpush2.bf16.msra.mxu0 0
      %606 = vmatprep.subr.bf16.mxu0 0
      %607 = vmatpush2.bf16.msra.mxu0 0
      %608 = vmatprep.subr.bf16.mxu0 0
      %609 = vmatpush2.bf16.msra.mxu0 0
      %610 = vmatprep.subr.bf16.mxu0 0
      %611 = vmatpush2.bf16.msra.mxu0 0
      %612 = vmatprep.subr.bf16.mxu0 0
      %613 = vmatpush2.bf16.msra.mxu0 0
      %614 = vmatprep.subr.bf16.mxu0 0
      %615 = vmatpush2.bf16.msra.mxu0 0
      %616 = vmatprep.subr.bf16.mxu0 0
      %617 = vmatpush2.bf16.msra.mxu0 0
      %618 = vmatprep.subr.bf16.mxu0 0
      %619 = vmatpush2.bf16.msra.mxu0 0
      %620 = vmatprep.mubr.bf16.mxu0 0
      %621 = vmatmul.mubr.bf16.gmra.mxu0 %v586
      %v622 = vpop.f32.mrf.mxu0
      %v623 = vadd.f32 0.0, %v622
      %v624 = vpop.f32.mrf.mxu0
      %v625 = vpop.f32.mrf.mxu0
      %v626 = vadd.f32 0.0, %v625
      %v627 = vpop.f32.mrf.mxu0
      %628 = vdwg.mxu0
      %v629 = vadd.f32 %v544, %v623
      %v630 = vadd.f32 %v545, %v626
      %s631 = scalar_lea.vmem %s1, 160
      %v632 = vld [vmem:[%s631] sm:$0xf]
      %v633 = vld [vmem:[%s631 + $0x4] sm:$0xf]
      %v634 = vld [vmem:[%s631 + $0x8] sm:$0xf]
      %v635 = vld [vmem:[%s631 + $0xc] sm:$0xf]
      %v636 = vld [vmem:[%s631 + $0x10] sm:$0xf]
      %v637 = vld [vmem:[%s631 + $0x14] sm:$0xf]
      %v638 = vld [vmem:[%s631 + $0x18] sm:$0xf]
      %v639 = vld [vmem:[%s631 + $0x1c] sm:$0xf]
      %v640 = vrot.slane %v475, 1
      %v649 = vunpack.c.l.b16 %v632
      %v650 = vunpack.c.l.b16 %v633
      %v651 = vunpack.c.l.b16 %v634
      %v652 = vunpack.c.l.b16 %v635
      %v653 = vunpack.c.l.b16 %v636
      %v654 = vunpack.c.l.b16 %v637
      %v655 = vunpack.c.l.b16 %v638
      %v656 = vunpack.c.l.b16 %v639
      %v657 = vpack.c.b16 %v650, %v649
      %v658 = vpack.c.b16 %v652, %v651
      %v659 = vpack.c.b16 %v654, %v653
      %v660 = vpack.c.b16 %v656, %v655
      %v666 = vsel %vm270, %v640, 0
      %668 = vmatprep.subr.bf16.mxu0 0
      %669 = vmatpush1.bf16.msra.mxu0 0
      %670 = vmatprep.subr.bf16.mxu0 0
      %671 = vmatpush1.bf16.msra.mxu0 0
      %672 = vmatprep.subr.bf16.mxu0 0
      %673 = vmatpush1.bf16.msra.mxu0 0
      %674 = vmatprep.subr.bf16.mxu0 0
      %675 = vmatpush1.bf16.msra.mxu0 0
      %676 = vmatprep.subr.bf16.mxu0 0
      %677 = vmatpush1.bf16.msra.mxu0 %v660
      %678 = vmatprep.subr.bf16.mxu0 0
      %679 = vmatpush1.bf16.msra.mxu0 %v659
      %680 = vmatprep.subr.bf16.mxu0 0
      %681 = vmatpush1.bf16.msra.mxu0 %v658
      %682 = vmatprep.subr.bf16.mxu0 0
      %683 = vmatpush1.bf16.msra.mxu0 %v657
      %684 = vmatprep.subr.bf16.mxu0 0
      %685 = vmatpush2.bf16.msra.mxu0 0
      %686 = vmatprep.subr.bf16.mxu0 0
      %687 = vmatpush2.bf16.msra.mxu0 0
      %688 = vmatprep.subr.bf16.mxu0 0
      %689 = vmatpush2.bf16.msra.mxu0 0
      %690 = vmatprep.subr.bf16.mxu0 0
      %691 = vmatpush2.bf16.msra.mxu0 0
      %692 = vmatprep.subr.bf16.mxu0 0
      %693 = vmatpush2.bf16.msra.mxu0 0
      %694 = vmatprep.subr.bf16.mxu0 0
      %695 = vmatpush2.bf16.msra.mxu0 0
      %696 = vmatprep.subr.bf16.mxu0 0
      %697 = vmatpush2.bf16.msra.mxu0 0
      %698 = vmatprep.subr.bf16.mxu0 0
      %699 = vmatpush2.bf16.msra.mxu0 0
      %700 = vmatprep.mubr.bf16.mxu0 0
      %701 = vmatmul.mubr.bf16.gmra.mxu0 %v666
      %v702 = vpop.f32.mrf.mxu0
      %v703 = vadd.f32 0.0, %v702
      %v704 = vpop.f32.mrf.mxu0
      %v705 = vpop.f32.mrf.mxu0
      %v706 = vadd.f32 0.0, %v705
      %v707 = vpop.f32.mrf.mxu0
      %708 = vdwg.mxu0
      %v709 = vadd.f32 %v629, %v703
      %v710 = vadd.f32 %v630, %v706
      %s711 = scalar_lea.vmem %s1, 192
      %v712 = vld [vmem:[%s711] sm:$0xf]
      %v713 = vld [vmem:[%s711 + $0x4] sm:$0xf]
      %v714 = vld [vmem:[%s711 + $0x8] sm:$0xf]
      %v715 = vld [vmem:[%s711 + $0xc] sm:$0xf]
      %v716 = vld [vmem:[%s711 + $0x10] sm:$0xf]
      %v717 = vld [vmem:[%s711 + $0x14] sm:$0xf]
      %v718 = vld [vmem:[%s711 + $0x18] sm:$0xf]
      %v719 = vld [vmem:[%s711 + $0x1c] sm:$0xf]
      %v722 = vunpack.c.l.b16 %v209
      %v723 = vunpack.c.l.b16 %v210
      %v724 = vpack.c.b16 %v723, %v722
      %v733 = vunpack.c.l.b16 %v712
      %v734 = vunpack.c.l.b16 %v713
      %v735 = vunpack.c.l.b16 %v714
      %v736 = vunpack.c.l.b16 %v715
      %v737 = vunpack.c.l.b16 %v716
      %v738 = vunpack.c.l.b16 %v717
      %v739 = vunpack.c.l.b16 %v718
      %v740 = vunpack.c.l.b16 %v719
      %v741 = vpack.c.b16 %v734, %v733
      %v742 = vpack.c.b16 %v736, %v735
      %v743 = vpack.c.b16 %v738, %v737
      %v744 = vpack.c.b16 %v740, %v739
      %v750 = vsel %vm270, %v724, 0
      %752 = vmatprep.subr.bf16.mxu0 0
      %753 = vmatpush1.bf16.msra.mxu0 0
      %754 = vmatprep.subr.bf16.mxu0 0
      %755 = vmatpush1.bf16.msra.mxu0 0
      %756 = vmatprep.subr.bf16.mxu0 0
      %757 = vmatpush1.bf16.msra.mxu0 0
      %758 = vmatprep.subr.bf16.mxu0 0
      %759 = vmatpush1.bf16.msra.mxu0 0
      %760 = vmatprep.subr.bf16.mxu0 0
      %761 = vmatpush1.bf16.msra.mxu0 %v744
      %762 = vmatprep.subr.bf16.mxu0 0
      %763 = vmatpush1.bf16.msra.mxu0 %v743
      %764 = vmatprep.subr.bf16.mxu0 0
      %765 = vmatpush1.bf16.msra.mxu0 %v742
      %766 = vmatprep.subr.bf16.mxu0 0
      %767 = vmatpush1.bf16.msra.mxu0 %v741
      %768 = vmatprep.subr.bf16.mxu0 0
      %769 = vmatpush2.bf16.msra.mxu0 0
      %770 = vmatprep.subr.bf16.mxu0 0
      %771 = vmatpush2.bf16.msra.mxu0 0
      %772 = vmatprep.subr.bf16.mxu0 0
      %773 = vmatpush2.bf16.msra.mxu0 0
      %774 = vmatprep.subr.bf16.mxu0 0
      %775 = vmatpush2.bf16.msra.mxu0 0
      %776 = vmatprep.subr.bf16.mxu0 0
      %777 = vmatpush2.bf16.msra.mxu0 0
      %778 = vmatprep.subr.bf16.mxu0 0
      %779 = vmatpush2.bf16.msra.mxu0 0
      %780 = vmatprep.subr.bf16.mxu0 0
      %781 = vmatpush2.bf16.msra.mxu0 0
      %782 = vmatprep.subr.bf16.mxu0 0
      %783 = vmatpush2.bf16.msra.mxu0 0
      %784 = vmatprep.mubr.bf16.mxu0 0
      %785 = vmatmul.mubr.bf16.gmra.mxu0 %v750
      %v786 = vpop.f32.mrf.mxu0
      %v787 = vadd.f32 0.0, %v786
      %v788 = vpop.f32.mrf.mxu0
      %v789 = vpop.f32.mrf.mxu0
      %v790 = vadd.f32 0.0, %v789
      %v791 = vpop.f32.mrf.mxu0
      %792 = vdwg.mxu0
      %v793 = vadd.f32 %v709, %v787
      %v794 = vadd.f32 %v710, %v790
      %s795 = scalar_lea.vmem %s1, 224
      %v796 = vld [vmem:[%s795] sm:$0xf]
      %v797 = vld [vmem:[%s795 + $0x4] sm:$0xf]
      %v798 = vld [vmem:[%s795 + $0x8] sm:$0xf]
      %v799 = vld [vmem:[%s795 + $0xc] sm:$0xf]
      %v800 = vld [vmem:[%s795 + $0x10] sm:$0xf]
      %v801 = vld [vmem:[%s795 + $0x14] sm:$0xf]
      %v802 = vld [vmem:[%s795 + $0x18] sm:$0xf]
      %v803 = vld [vmem:[%s795 + $0x1c] sm:$0xf]
      %v804 = vshrl.u32 %v724, 16
      %v806 = vshll.u32 %v724, 16
      %v808 = vrot.slane %v806, 1
      %v809 = vor.u32 %v804, %v808
      %v818 = vunpack.c.l.b16 %v796
      %v819 = vunpack.c.l.b16 %v797
      %v820 = vunpack.c.l.b16 %v798
      %v821 = vunpack.c.l.b16 %v799
      %v822 = vunpack.c.l.b16 %v800
      %v823 = vunpack.c.l.b16 %v801
      %v824 = vunpack.c.l.b16 %v802
      %v825 = vunpack.c.l.b16 %v803
      %v826 = vpack.c.b16 %v819, %v818
      %v827 = vpack.c.b16 %v821, %v820
      %v828 = vpack.c.b16 %v823, %v822
      %v829 = vpack.c.b16 %v825, %v824
      %v835 = vsel %vm270, %v809, 0
      %837 = vmatprep.subr.bf16.mxu0 0
      %838 = vmatpush1.bf16.msra.mxu0 0
      %839 = vmatprep.subr.bf16.mxu0 0
      %840 = vmatpush1.bf16.msra.mxu0 0
      %841 = vmatprep.subr.bf16.mxu0 0
      %842 = vmatpush1.bf16.msra.mxu0 0
      %843 = vmatprep.subr.bf16.mxu0 0
      %844 = vmatpush1.bf16.msra.mxu0 0
      %845 = vmatprep.subr.bf16.mxu0 0
      %846 = vmatpush1.bf16.msra.mxu0 %v829
      %847 = vmatprep.subr.bf16.mxu0 0
      %848 = vmatpush1.bf16.msra.mxu0 %v828
      %849 = vmatprep.subr.bf16.mxu0 0
      %850 = vmatpush1.bf16.msra.mxu0 %v827
      %851 = vmatprep.subr.bf16.mxu0 0
      %852 = vmatpush1.bf16.msra.mxu0 %v826
      %853 = vmatprep.subr.bf16.mxu0 0
      %854 = vmatpush2.bf16.msra.mxu0 0
      %855 = vmatprep.subr.bf16.mxu0 0
      %856 = vmatpush2.bf16.msra.mxu0 0
      %857 = vmatprep.subr.bf16.mxu0 0
      %858 = vmatpush2.bf16.msra.mxu0 0
      %859 = vmatprep.subr.bf16.mxu0 0
      %860 = vmatpush2.bf16.msra.mxu0 0
      %861 = vmatprep.subr.bf16.mxu0 0
      %862 = vmatpush2.bf16.msra.mxu0 0
      %863 = vmatprep.subr.bf16.mxu0 0
      %864 = vmatpush2.bf16.msra.mxu0 0
      %865 = vmatprep.subr.bf16.mxu0 0
      %866 = vmatpush2.bf16.msra.mxu0 0
      %867 = vmatprep.subr.bf16.mxu0 0
      %868 = vmatpush2.bf16.msra.mxu0 0
      %869 = vmatprep.mubr.bf16.mxu0 0
      %870 = vmatmul.mubr.bf16.gmra.mxu0 %v835
      %v871 = vpop.f32.mrf.mxu0
      %v872 = vadd.f32 0.0, %v871
      %v873 = vpop.f32.mrf.mxu0
      %v874 = vpop.f32.mrf.mxu0
      %v875 = vadd.f32 0.0, %v874
      %v876 = vpop.f32.mrf.mxu0
      %877 = vdwg.mxu0
      %v878 = vadd.f32 %v793, %v872
      %v879 = vadd.f32 %v794, %v875
      %s880 = scalar_lea.vmem %s1, 256
      %v881 = vld [vmem:[%s880] sm:$0xf]
      %v882 = vld [vmem:[%s880 + $0x4] sm:$0xf]
      %v883 = vld [vmem:[%s880 + $0x8] sm:$0xf]
      %v884 = vld [vmem:[%s880 + $0xc] sm:$0xf]
      %v885 = vld [vmem:[%s880 + $0x10] sm:$0xf]
      %v886 = vld [vmem:[%s880 + $0x14] sm:$0xf]
      %v887 = vld [vmem:[%s880 + $0x18] sm:$0xf]
      %v888 = vld [vmem:[%s880 + $0x1c] sm:$0xf]
      %v889 = vrot.slane %v724, 1
      %v898 = vunpack.c.l.b16 %v881
      %v899 = vunpack.c.l.b16 %v882
      %v900 = vunpack.c.l.b16 %v883
      %v901 = vunpack.c.l.b16 %v884
      %v902 = vunpack.c.l.b16 %v885
      %v903 = vunpack.c.l.b16 %v886
      %v904 = vunpack.c.l.b16 %v887
      %v905 = vunpack.c.l.b16 %v888
      %v906 = vpack.c.b16 %v899, %v898
      %v907 = vpack.c.b16 %v901, %v900
      %v908 = vpack.c.b16 %v903, %v902
      %v909 = vpack.c.b16 %v905, %v904
      %v915 = vsel %vm270, %v889, 0
      %917 = vmatprep.subr.bf16.mxu0 0
      %918 = vmatpush1.bf16.msra.mxu0 0
      %919 = vmatprep.subr.bf16.mxu0 0
      %920 = vmatpush1.bf16.msra.mxu0 0
      %921 = vmatprep.subr.bf16.mxu0 0
      %922 = vmatpush1.bf16.msra.mxu0 0
      %923 = vmatprep.subr.bf16.mxu0 0
      %924 = vmatpush1.bf16.msra.mxu0 0
      %925 = vmatprep.subr.bf16.mxu0 0
      %926 = vmatpush1.bf16.msra.mxu0 %v909
      %927 = vmatprep.subr.bf16.mxu0 0
      %928 = vmatpush1.bf16.msra.mxu0 %v908
      %929 = vmatprep.subr.bf16.mxu0 0
      %930 = vmatpush1.bf16.msra.mxu0 %v907
      %931 = vmatprep.subr.bf16.mxu0 0
      %932 = vmatpush1.bf16.msra.mxu0 %v906
      %933 = vmatprep.subr.bf16.mxu0 0
      %934 = vmatpush2.bf16.msra.mxu0 0
      %935 = vmatprep.subr.bf16.mxu0 0
      %936 = vmatpush2.bf16.msra.mxu0 0
      %937 = vmatprep.subr.bf16.mxu0 0
      %938 = vmatpush2.bf16.msra.mxu0 0
      %939 = vmatprep.subr.bf16.mxu0 0
      %940 = vmatpush2.bf16.msra.mxu0 0
      %941 = vmatprep.subr.bf16.mxu0 0
      %942 = vmatpush2.bf16.msra.mxu0 0
      %943 = vmatprep.subr.bf16.mxu0 0
      %944 = vmatpush2.bf16.msra.mxu0 0
      %945 = vmatprep.subr.bf16.mxu0 0
      %946 = vmatpush2.bf16.msra.mxu0 0
      %947 = vmatprep.subr.bf16.mxu0 0
      %948 = vmatpush2.bf16.msra.mxu0 0
      %949 = vmatprep.mubr.bf16.mxu0 0
      %950 = vmatmul.mubr.bf16.gmra.mxu0 %v915
      %v951 = vpop.f32.mrf.mxu0
      %v952 = vadd.f32 0.0, %v951
      %v953 = vpop.f32.mrf.mxu0
      %v954 = vpop.f32.mrf.mxu0
      %v955 = vadd.f32 0.0, %v954
      %v956 = vpop.f32.mrf.mxu0
      %957 = vdwg.mxu0
      %v958 = vadd.f32 %v878, %v952
      %v959 = vadd.f32 %v879, %v955
      %v961 = vlaneseq
      %v962 = vshrl.u32 %v961, 7
      %v963 = vsub.s32 0, %v962
      %v964 = vrot.slane %v193, %v963
      %v966 = vadd.f32 %v958, %v964
      %v967 = vadd.f32 %v959, %v964
      %v968 = vmax.f32 %v966, 0.0
      %v969 = vmax.f32 %v967, 0.0
      %970 = vmatprep.subr.bf16.mxu0 0
      %971 = vmatpush1.bf16.msra.mxu0 0
      %972 = vmatprep.subr.bf16.mxu0 0
      %973 = vmatpush1.bf16.msra.mxu0 0
      %974 = vmatprep.subr.bf16.mxu0 0
      %975 = vmatpush1.bf16.msra.mxu0 0
      %976 = vmatprep.subr.bf16.mxu0 0
      %977 = vmatpush1.bf16.msra.mxu0 0
      %978 = vmatprep.subr.bf16.mxu0 0
      %979 = vmatpush1.bf16.msra.mxu0 %v265
      %980 = vmatprep.subr.bf16.mxu0 0
      %981 = vmatpush1.bf16.msra.mxu0 %v264
      %982 = vmatprep.subr.bf16.mxu0 0
      %983 = vmatpush1.bf16.msra.mxu0 %v263
      %984 = vmatprep.subr.bf16.mxu0 0
      %985 = vmatpush1.bf16.msra.mxu0 %v262
      %986 = vmatprep.subr.bf16.mxu0 0
      %987 = vmatpush2.bf16.msra.mxu0 0
      %988 = vmatprep.subr.bf16.mxu0 0
      %989 = vmatpush2.bf16.msra.mxu0 0
      %990 = vmatprep.subr.bf16.mxu0 0
      %991 = vmatpush2.bf16.msra.mxu0 0
      %992 = vmatprep.subr.bf16.mxu0 0
      %993 = vmatpush2.bf16.msra.mxu0 0
      %994 = vmatprep.subr.bf16.mxu0 0
      %995 = vmatpush2.bf16.msra.mxu0 0
      %996 = vmatprep.subr.bf16.mxu0 0
      %997 = vmatpush2.bf16.msra.mxu0 0
      %998 = vmatprep.subr.bf16.mxu0 0
      %999 = vmatpush2.bf16.msra.mxu0 0
      %1000 = vmatprep.subr.bf16.mxu0 0
      %1001 = vmatpush2.bf16.msra.mxu0 0
      %1002 = vmatprep.mubr.bf16.mxu0 0
      %1003 = vmatmul.mubr.bf16.gmra.mxu0 %v586
      %v1004 = vpop.f32.mrf.mxu0
      %v1005 = vadd.f32 0.0, %v1004
      %v1006 = vpop.f32.mrf.mxu0
      %v1007 = vpop.f32.mrf.mxu0
      %v1008 = vadd.f32 0.0, %v1007
      %v1009 = vpop.f32.mrf.mxu0
      %1010 = vdwg.mxu0
      %1011 = vmatprep.subr.bf16.mxu0 0
      %1012 = vmatpush1.bf16.msra.mxu0 0
      %1013 = vmatprep.subr.bf16.mxu0 0
      %1014 = vmatpush1.bf16.msra.mxu0 0
      %1015 = vmatprep.subr.bf16.mxu0 0
      %1016 = vmatpush1.bf16.msra.mxu0 0
      %1017 = vmatprep.subr.bf16.mxu0 0
      %1018 = vmatpush1.bf16.msra.mxu0 0
      %1019 = vmatprep.subr.bf16.mxu0 0
      %1020 = vmatpush1.bf16.msra.mxu0 %v334
      %1021 = vmatprep.subr.bf16.mxu0 0
      %1022 = vmatpush1.bf16.msra.mxu0 %v333
      %1023 = vmatprep.subr.bf16.mxu0 0
      %1024 = vmatpush1.bf16.msra.mxu0 %v332
      %1025 = vmatprep.subr.bf16.mxu0 0
      %1026 = vmatpush1.bf16.msra.mxu0 %v331
      %1027 = vmatprep.subr.bf16.mxu0 0
      %1028 = vmatpush2.bf16.msra.mxu0 0
      %1029 = vmatprep.subr.bf16.mxu0 0
      %1030 = vmatpush2.bf16.msra.mxu0 0
      %1031 = vmatprep.subr.bf16.mxu0 0
      %1032 = vmatpush2.bf16.msra.mxu0 0
      %1033 = vmatprep.subr.bf16.mxu0 0
      %1034 = vmatpush2.bf16.msra.mxu0 0
      %1035 = vmatprep.subr.bf16.mxu0 0
      %1036 = vmatpush2.bf16.msra.mxu0 0
      %1037 = vmatprep.subr.bf16.mxu0 0
      %1038 = vmatpush2.bf16.msra.mxu0 0
      %1039 = vmatprep.subr.bf16.mxu0 0
      %1040 = vmatpush2.bf16.msra.mxu0 0
      %1041 = vmatprep.subr.bf16.mxu0 0
      %1042 = vmatpush2.bf16.msra.mxu0 0
      %1043 = vmatprep.mubr.bf16.mxu0 0
      %1044 = vmatmul.mubr.bf16.gmra.mxu0 %v501
      %v1045 = vpop.f32.mrf.mxu0
      %v1046 = vadd.f32 %v1005, %v1045
      %v1047 = vpop.f32.mrf.mxu0
      %v1048 = vpop.f32.mrf.mxu0
      %v1049 = vadd.f32 %v1008, %v1048
      %v1050 = vpop.f32.mrf.mxu0
      %1051 = vdwg.mxu0
      %1052 = vmatprep.subr.bf16.mxu0 0
      %1053 = vmatpush1.bf16.msra.mxu0 0
      %1054 = vmatprep.subr.bf16.mxu0 0
      %1055 = vmatpush1.bf16.msra.mxu0 0
      %1056 = vmatprep.subr.bf16.mxu0 0
      %1057 = vmatpush1.bf16.msra.mxu0 0
      %1058 = vmatprep.subr.bf16.mxu0 0
      %1059 = vmatpush1.bf16.msra.mxu0 0
      %1060 = vmatprep.subr.bf16.mxu0 0
      %1061 = vmatpush1.bf16.msra.mxu0 %v411
      %1062 = vmatprep.subr.bf16.mxu0 0
      %1063 = vmatpush1.bf16.msra.mxu0 %v410
      %1064 = vmatprep.subr.bf16.mxu0 0
      %1065 = vmatpush1.bf16.msra.mxu0 %v409
      %1066 = vmatprep.subr.bf16.mxu0 0
      %1067 = vmatpush1.bf16.msra.mxu0 %v408
      %1068 = vmatprep.subr.bf16.mxu0 0
      %1069 = vmatpush2.bf16.msra.mxu0 0
      %1070 = vmatprep.subr.bf16.mxu0 0
      %1071 = vmatpush2.bf16.msra.mxu0 0
      %1072 = vmatprep.subr.bf16.mxu0 0
      %1073 = vmatpush2.bf16.msra.mxu0 0
      %1074 = vmatprep.subr.bf16.mxu0 0
      %1075 = vmatpush2.bf16.msra.mxu0 0
      %1076 = vmatprep.subr.bf16.mxu0 0
      %1077 = vmatpush2.bf16.msra.mxu0 0
      %1078 = vmatprep.subr.bf16.mxu0 0
      %1079 = vmatpush2.bf16.msra.mxu0 0
      %1080 = vmatprep.subr.bf16.mxu0 0
      %1081 = vmatpush2.bf16.msra.mxu0 0
      %1082 = vmatprep.subr.bf16.mxu0 0
      %1083 = vmatpush2.bf16.msra.mxu0 0
      %1084 = vmatprep.mubr.bf16.mxu0 0
      %1085 = vmatmul.mubr.bf16.gmra.mxu0 %v666
      %v1086 = vpop.f32.mrf.mxu0
      %v1087 = vadd.f32 0.0, %v1086
      %v1088 = vpop.f32.mrf.mxu0
      %v1089 = vpop.f32.mrf.mxu0
      %v1090 = vadd.f32 0.0, %v1089
      %v1091 = vpop.f32.mrf.mxu0
      %1092 = vdwg.mxu0
      %v1093 = vadd.f32 %v1046, %v1087
      %v1094 = vadd.f32 %v1049, %v1090
      %1095 = vmatprep.subr.bf16.mxu0 0
      %1096 = vmatpush1.bf16.msra.mxu0 0
      %1097 = vmatprep.subr.bf16.mxu0 0
      %1098 = vmatpush1.bf16.msra.mxu0 0
      %1099 = vmatprep.subr.bf16.mxu0 0
      %1100 = vmatpush1.bf16.msra.mxu0 0
      %1101 = vmatprep.subr.bf16.mxu0 0
      %1102 = vmatpush1.bf16.msra.mxu0 0
      %1103 = vmatprep.subr.bf16.mxu0 0
      %1104 = vmatpush1.bf16.msra.mxu0 %v495
      %1105 = vmatprep.subr.bf16.mxu0 0
      %1106 = vmatpush1.bf16.msra.mxu0 %v494
      %1107 = vmatprep.subr.bf16.mxu0 0
      %1108 = vmatpush1.bf16.msra.mxu0 %v493
      %1109 = vmatprep.subr.bf16.mxu0 0
      %1110 = vmatpush1.bf16.msra.mxu0 %v492
      %1111 = vmatprep.subr.bf16.mxu0 0
      %1112 = vmatpush2.bf16.msra.mxu0 0
      %1113 = vmatprep.subr.bf16.mxu0 0
      %1114 = vmatpush2.bf16.msra.mxu0 0
      %1115 = vmatprep.subr.bf16.mxu0 0
      %1116 = vmatpush2.bf16.msra.mxu0 0
      %1117 = vmatprep.subr.bf16.mxu0 0
      %1118 = vmatpush2.bf16.msra.mxu0 0
      %1119 = vmatprep.subr.bf16.mxu0 0
      %1120 = vmatpush2.bf16.msra.mxu0 0
      %1121 = vmatprep.subr.bf16.mxu0 0
      %1122 = vmatpush2.bf16.msra.mxu0 0
      %1123 = vmatprep.subr.bf16.mxu0 0
      %1124 = vmatpush2.bf16.msra.mxu0 0
      %1125 = vmatprep.subr.bf16.mxu0 0
      %1126 = vmatpush2.bf16.msra.mxu0 0
      %1127 = vmatprep.mubr.bf16.mxu0 0
      %1128 = vmatmul.mubr.bf16.gmra.mxu0 %v750
      %v1129 = vpop.f32.mrf.mxu0
      %v1130 = vadd.f32 0.0, %v1129
      %v1131 = vpop.f32.mrf.mxu0
      %v1132 = vpop.f32.mrf.mxu0
      %v1133 = vadd.f32 0.0, %v1132
      %v1134 = vpop.f32.mrf.mxu0
      %1135 = vdwg.mxu0
      %v1136 = vadd.f32 %v1093, %v1130
      %v1137 = vadd.f32 %v1094, %v1133
      %1138 = vmatprep.subr.bf16.mxu0 0
      %1139 = vmatpush1.bf16.msra.mxu0 0
      %1140 = vmatprep.subr.bf16.mxu0 0
      %1141 = vmatpush1.bf16.msra.mxu0 0
      %1142 = vmatprep.subr.bf16.mxu0 0
      %1143 = vmatpush1.bf16.msra.mxu0 0
      %1144 = vmatprep.subr.bf16.mxu0 0
      %1145 = vmatpush1.bf16.msra.mxu0 0
      %1146 = vmatprep.subr.bf16.mxu0 0
      %1147 = vmatpush1.bf16.msra.mxu0 %v580
      %1148 = vmatprep.subr.bf16.mxu0 0
      %1149 = vmatpush1.bf16.msra.mxu0 %v579
      %1150 = vmatprep.subr.bf16.mxu0 0
      %1151 = vmatpush1.bf16.msra.mxu0 %v578
      %1152 = vmatprep.subr.bf16.mxu0 0
      %1153 = vmatpush1.bf16.msra.mxu0 %v577
      %1154 = vmatprep.subr.bf16.mxu0 0
      %1155 = vmatpush2.bf16.msra.mxu0 0
      %1156 = vmatprep.subr.bf16.mxu0 0
      %1157 = vmatpush2.bf16.msra.mxu0 0
      %1158 = vmatprep.subr.bf16.mxu0 0
      %1159 = vmatpush2.bf16.msra.mxu0 0
      %1160 = vmatprep.subr.bf16.mxu0 0
      %1161 = vmatpush2.bf16.msra.mxu0 0
      %1162 = vmatprep.subr.bf16.mxu0 0
      %1163 = vmatpush2.bf16.msra.mxu0 0
      %1164 = vmatprep.subr.bf16.mxu0 0
      %1165 = vmatpush2.bf16.msra.mxu0 0
      %1166 = vmatprep.subr.bf16.mxu0 0
      %1167 = vmatpush2.bf16.msra.mxu0 0
      %1168 = vmatprep.subr.bf16.mxu0 0
      %1169 = vmatpush2.bf16.msra.mxu0 0
      %1170 = vmatprep.mubr.bf16.mxu0 0
      %1171 = vmatmul.mubr.bf16.gmra.mxu0 %v835
      %v1172 = vpop.f32.mrf.mxu0
      %v1173 = vadd.f32 0.0, %v1172
      %v1174 = vpop.f32.mrf.mxu0
      %v1175 = vpop.f32.mrf.mxu0
      %v1176 = vadd.f32 0.0, %v1175
      %v1177 = vpop.f32.mrf.mxu0
      %1178 = vdwg.mxu0
      %v1179 = vadd.f32 %v1136, %v1173
      %v1180 = vadd.f32 %v1137, %v1176
      %1181 = vmatprep.subr.bf16.mxu0 0
      %1182 = vmatpush1.bf16.msra.mxu0 0
      %1183 = vmatprep.subr.bf16.mxu0 0
      %1184 = vmatpush1.bf16.msra.mxu0 0
      %1185 = vmatprep.subr.bf16.mxu0 0
      %1186 = vmatpush1.bf16.msra.mxu0 0
      %1187 = vmatprep.subr.bf16.mxu0 0
      %1188 = vmatpush1.bf16.msra.mxu0 0
      %1189 = vmatprep.subr.bf16.mxu0 0
      %1190 = vmatpush1.bf16.msra.mxu0 %v660
      %1191 = vmatprep.subr.bf16.mxu0 0
      %1192 = vmatpush1.bf16.msra.mxu0 %v659
      %1193 = vmatprep.subr.bf16.mxu0 0
      %1194 = vmatpush1.bf16.msra.mxu0 %v658
      %1195 = vmatprep.subr.bf16.mxu0 0
      %1196 = vmatpush1.bf16.msra.mxu0 %v657
      %1197 = vmatprep.subr.bf16.mxu0 0
      %1198 = vmatpush2.bf16.msra.mxu0 0
      %1199 = vmatprep.subr.bf16.mxu0 0
      %1200 = vmatpush2.bf16.msra.mxu0 0
      %1201 = vmatprep.subr.bf16.mxu0 0
      %1202 = vmatpush2.bf16.msra.mxu0 0
      %1203 = vmatprep.subr.bf16.mxu0 0
      %1204 = vmatpush2.bf16.msra.mxu0 0
      %1205 = vmatprep.subr.bf16.mxu0 0
      %1206 = vmatpush2.bf16.msra.mxu0 0
      %1207 = vmatprep.subr.bf16.mxu0 0
      %1208 = vmatpush2.bf16.msra.mxu0 0
      %1209 = vmatprep.subr.bf16.mxu0 0
      %1210 = vmatpush2.bf16.msra.mxu0 0
      %1211 = vmatprep.subr.bf16.mxu0 0
      %1212 = vmatpush2.bf16.msra.mxu0 0
      %1213 = vmatprep.mubr.bf16.mxu0 0
      %1214 = vmatmul.mubr.bf16.gmra.mxu0 %v915
      %v1215 = vpop.f32.mrf.mxu0
      %v1216 = vadd.f32 0.0, %v1215
      %v1217 = vpop.f32.mrf.mxu0
      %v1218 = vpop.f32.mrf.mxu0
      %v1219 = vadd.f32 0.0, %v1218
      %v1220 = vpop.f32.mrf.mxu0
      %1221 = vdwg.mxu0
      %v1222 = vadd.f32 %v1179, %v1216
      %v1223 = vadd.f32 %v1180, %v1219
      %v1226 = vunpack.c.l.b16 %v215
      %v1227 = vunpack.c.l.b16 %v216
      %v1228 = vpack.c.b16 %v1227, %v1226
      %v1230 = vsel %vm270, %v1228, 0
      %1232 = vmatprep.subr.bf16.mxu0 0
      %1233 = vmatpush1.bf16.msra.mxu0 0
      %1234 = vmatprep.subr.bf16.mxu0 0
      %1235 = vmatpush1.bf16.msra.mxu0 0
      %1236 = vmatprep.subr.bf16.mxu0 0
      %1237 = vmatpush1.bf16.msra.mxu0 0
      %1238 = vmatprep.subr.bf16.mxu0 0
      %1239 = vmatpush1.bf16.msra.mxu0 0
      %1240 = vmatprep.subr.bf16.mxu0 0
      %1241 = vmatpush1.bf16.msra.mxu0 %v744
      %1242 = vmatprep.subr.bf16.mxu0 0
      %1243 = vmatpush1.bf16.msra.mxu0 %v743
      %1244 = vmatprep.subr.bf16.mxu0 0
      %1245 = vmatpush1.bf16.msra.mxu0 %v742
      %1246 = vmatprep.subr.bf16.mxu0 0
      %1247 = vmatpush1.bf16.msra.mxu0 %v741
      %1248 = vmatprep.subr.bf16.mxu0 0
      %1249 = vmatpush2.bf16.msra.mxu0 0
      %1250 = vmatprep.subr.bf16.mxu0 0
      %1251 = vmatpush2.bf16.msra.mxu0 0
      %1252 = vmatprep.subr.bf16.mxu0 0
      %1253 = vmatpush2.bf16.msra.mxu0 0
      %1254 = vmatprep.subr.bf16.mxu0 0
      %1255 = vmatpush2.bf16.msra.mxu0 0
      %1256 = vmatprep.subr.bf16.mxu0 0
      %1257 = vmatpush2.bf16.msra.mxu0 0
      %1258 = vmatprep.subr.bf16.mxu0 0
      %1259 = vmatpush2.bf16.msra.mxu0 0
      %1260 = vmatprep.subr.bf16.mxu0 0
      %1261 = vmatpush2.bf16.msra.mxu0 0
      %1262 = vmatprep.subr.bf16.mxu0 0
      %1263 = vmatpush2.bf16.msra.mxu0 0
      %1264 = vmatprep.mubr.bf16.mxu0 0
      %1265 = vmatmul.mubr.bf16.gmra.mxu0 %v1230
      %v1266 = vpop.f32.mrf.mxu0
      %v1267 = vadd.f32 0.0, %v1266
      %v1268 = vpop.f32.mrf.mxu0
      %v1269 = vpop.f32.mrf.mxu0
      %v1270 = vadd.f32 0.0, %v1269
      %v1271 = vpop.f32.mrf.mxu0
      %1272 = vdwg.mxu0
      %v1273 = vadd.f32 %v1222, %v1267
      %v1274 = vadd.f32 %v1223, %v1270
      %v1275 = vshrl.u32 %v1228, 16
      %v1277 = vshll.u32 %v1228, 16
      %v1279 = vrot.slane %v1277, 1
      %v1280 = vor.u32 %v1275, %v1279
      %v1282 = vsel %vm270, %v1280, 0
      %1284 = vmatprep.subr.bf16.mxu0 0
      %1285 = vmatpush1.bf16.msra.mxu0 0
      %1286 = vmatprep.subr.bf16.mxu0 0
      %1287 = vmatpush1.bf16.msra.mxu0 0
      %1288 = vmatprep.subr.bf16.mxu0 0
      %1289 = vmatpush1.bf16.msra.mxu0 0
      %1290 = vmatprep.subr.bf16.mxu0 0
      %1291 = vmatpush1.bf16.msra.mxu0 0
      %1292 = vmatprep.subr.bf16.mxu0 0
      %1293 = vmatpush1.bf16.msra.mxu0 %v829
      %1294 = vmatprep.subr.bf16.mxu0 0
      %1295 = vmatpush1.bf16.msra.mxu0 %v828
      %1296 = vmatprep.subr.bf16.mxu0 0
      %1297 = vmatpush1.bf16.msra.mxu0 %v827
      %1298 = vmatprep.subr.bf16.mxu0 0
      %1299 = vmatpush1.bf16.msra.mxu0 %v826
      %1300 = vmatprep.subr.bf16.mxu0 0
      %1301 = vmatpush2.bf16.msra.mxu0 0
      %1302 = vmatprep.subr.bf16.mxu0 0
      %1303 = vmatpush2.bf16.msra.mxu0 0
      %1304 = vmatprep.subr.bf16.mxu0 0
      %1305 = vmatpush2.bf16.msra.mxu0 0
      %1306 = vmatprep.subr.bf16.mxu0 0
      %1307 = vmatpush2.bf16.msra.mxu0 0
      %1308 = vmatprep.subr.bf16.mxu0 0
      %1309 = vmatpush2.bf16.msra.mxu0 0
      %1310 = vmatprep.subr.bf16.mxu0 0
      %1311 = vmatpush2.bf16.msra.mxu0 0
      %1312 = vmatprep.subr.bf16.mxu0 0
      %1313 = vmatpush2.bf16.msra.mxu0 0
      %1314 = vmatprep.subr.bf16.mxu0 0
      %1315 = vmatpush2.bf16.msra.mxu0 0
      %1316 = vmatprep.mubr.bf16.mxu0 0
      %1317 = vmatmul.mubr.bf16.gmra.mxu0 %v1282
      %v1318 = vpop.f32.mrf.mxu0
      %v1319 = vadd.f32 0.0, %v1318
      %v1320 = vpop.f32.mrf.mxu0
      %v1321 = vpop.f32.mrf.mxu0
      %v1322 = vadd.f32 0.0, %v1321
      %v1323 = vpop.f32.mrf.mxu0
      %1324 = vdwg.mxu0
      %v1325 = vadd.f32 %v1273, %v1319
      %v1326 = vadd.f32 %v1274, %v1322
      %v1327 = vrot.slane %v1228, 1
      %v1329 = vsel %vm270, %v1327, 0
      %1331 = vmatprep.subr.bf16.mxu0 0
      %1332 = vmatpush1.bf16.msra.mxu0 0
      %1333 = vmatprep.subr.bf16.mxu0 0
      %1334 = vmatpush1.bf16.msra.mxu0 0
      %1335 = vmatprep.subr.bf16.mxu0 0
      %1336 = vmatpush1.bf16.msra.mxu0 0
      %1337 = vmatprep.subr.bf16.mxu0 0
      %1338 = vmatpush1.bf16.msra.mxu0 0
      %1339 = vmatprep.subr.bf16.mxu0 0
      %1340 = vmatpush1.bf16.msra.mxu0 %v909
      %1341 = vmatprep.subr.bf16.mxu0 0
      %1342 = vmatpush1.bf16.msra.mxu0 %v908
      %1343 = vmatprep.subr.bf16.mxu0 0
      %1344 = vmatpush1.bf16.msra.mxu0 %v907
      %1345 = vmatprep.subr.bf16.mxu0 0
      %1346 = vmatpush1.bf16.msra.mxu0 %v906
      %1347 = vmatprep.subr.bf16.mxu0 0
      %1348 = vmatpush2.bf16.msra.mxu0 0
      %1349 = vmatprep.subr.bf16.mxu0 0
      %1350 = vmatpush2.bf16.msra.mxu0 0
      %1351 = vmatprep.subr.bf16.mxu0 0
      %1352 = vmatpush2.bf16.msra.mxu0 0
      %1353 = vmatprep.subr.bf16.mxu0 0
      %1354 = vmatpush2.bf16.msra.mxu0 0
      %1355 = vmatprep.subr.bf16.mxu0 0
      %1356 = vmatpush2.bf16.msra.mxu0 0
      %1357 = vmatprep.subr.bf16.mxu0 0
      %1358 = vmatpush2.bf16.msra.mxu0 0
      %1359 = vmatprep.subr.bf16.mxu0 0
      %1360 = vmatpush2.bf16.msra.mxu0 0
      %1361 = vmatprep.subr.bf16.mxu0 0
      %1362 = vmatpush2.bf16.msra.mxu0 0
      %1363 = vmatprep.mubr.bf16.mxu0 0
      %1364 = vmatmul.mubr.bf16.gmra.mxu0 %v1329
      %v1365 = vpop.f32.mrf.mxu0
      %v1366 = vadd.f32 0.0, %v1365
      %v1367 = vpop.f32.mrf.mxu0
      %v1368 = vpop.f32.mrf.mxu0
      %v1369 = vadd.f32 0.0, %v1368
      %v1370 = vpop.f32.mrf.mxu0
      %1371 = vdwg.mxu0
      %v1372 = vadd.f32 %v1325, %v1366
      %v1373 = vadd.f32 %v1326, %v1369
      %v1374 = vadd.f32 %v1372, %v964
      %v1375 = vadd.f32 %v1373, %v964
      %v1376 = vmax.f32 %v1374, 0.0
      %v1377 = vmax.f32 %v1375, 0.0
      %v1378 = vmax.f32 %v968, %v1376
      %v1379 = vmax.f32 %v969, %v1377
      %v1380 = vlaneseq
      %v1381 = vshrl.u32 %v1380, 7
      %v1382 = vlaneseq
      %v1383 = vand.u32 %v1382, 127
      %v1384 = vmul.u32 %v1381, 2
      %vm1385 = vcmp.eq.s32.totalorder %v1383, %v1384
      %v1386 = vsel %vm1385, 1, 0
      %v1387 = vcvt.s32.f32 %v1386
      %v1388 = vadd.s32 %v1384, 1
      %vm1389 = vcmp.eq.s32.totalorder %v1383, %v1388
      %v1390 = vsel %vm1389, 1, 0
      %v1391 = vcvt.s32.f32 %v1390
      %vm1392 = vcmask 97280
      %v1394 = vsel %vm1392, %v1387, 0
      %vm1396 = vcmask 1043456
      %v1398 = vsel %vm1396, %v1379, 0
      %1400 = vmatprep.subr.mxu0 0.0
      %1401 = vmatpush1.msra.mxu0 0.0
      %1402 = vmatprep.subr.mxu0 0.0
      %1403 = vmatpush1.msra.mxu0 0.0
      %1404 = vmatprep.subr.mxu0 0.0
      %1405 = vmatpush1.msra.mxu0 0.0
      %1406 = vmatprep.subr.mxu0 0.0
      %1407 = vmatpush1.msra.mxu0 0.0
      %1408 = vmatprep.subr.mxu0 0.0
      %1409 = vmatpush1.msra.mxu0 0.0
      %1410 = vmatprep.subr.mxu0 0.0
      %1411 = vmatpush1.msra.mxu0 0.0
      %1412 = vmatprep.subr.mxu0 0.0
      %1413 = vmatpush1.msra.mxu0 0.0
      %1414 = vmatprep.subr.mxu0 0.0
      %1415 = vmatpush1.msra.mxu0 0.0
      %1416 = vmatprep.subr.mxu0 0.0
      %1417 = vmatpush1.msra.mxu0 0.0
      %1418 = vmatprep.subr.mxu0 0.0
      %1419 = vmatpush1.msra.mxu0 0.0
      %1420 = vmatprep.subr.mxu0 0.0
      %1421 = vmatpush1.msra.mxu0 0.0
      %1422 = vmatprep.subr.mxu0 0.0
      %1423 = vmatpush1.msra.mxu0 0.0
      %1424 = vmatprep.subr.mxu0 0.0
      %1425 = vmatpush1.msra.mxu0 0.0
      %1426 = vmatprep.subr.mxu0 0.0
      %1427 = vmatpush1.msra.mxu0 0.0
      %1428 = vmatprep.subr.mxu0 0.0
      %1429 = vmatpush1.msra.mxu0 %v1398
      %1430 = vmatprep.subr.mxu0 0.0
      %1431 = vmatpush1.msra.mxu0 %v1378
      %1432 = vmatprep.subr.mxu0 0.0
      %1433 = vmatpush2.msra.mxu0 0.0
      %1434 = vmatprep.subr.mxu0 0.0
      %1435 = vmatpush2.msra.mxu0 0.0
      %1436 = vmatprep.subr.mxu0 0.0
      %1437 = vmatpush2.msra.mxu0 0.0
      %1438 = vmatprep.subr.mxu0 0.0
      %1439 = vmatpush2.msra.mxu0 0.0
      %1440 = vmatprep.subr.mxu0 0.0
      %1441 = vmatpush2.msra.mxu0 0.0
      %1442 = vmatprep.subr.mxu0 0.0
      %1443 = vmatpush2.msra.mxu0 0.0
      %1444 = vmatprep.subr.mxu0 0.0
      %1445 = vmatpush2.msra.mxu0 0.0
      %1446 = vmatprep.subr.mxu0 0.0
      %1447 = vmatpush2.msra.mxu0 0.0
      %1448 = vmatprep.subr.mxu0 0.0
      %1449 = vmatpush2.msra.mxu0 0.0
      %1450 = vmatprep.subr.mxu0 0.0
      %1451 = vmatpush2.msra.mxu0 0.0
      %1452 = vmatprep.subr.mxu0 0.0
      %1453 = vmatpush2.msra.mxu0 0.0
      %1454 = vmatprep.subr.mxu0 0.0
      %1455 = vmatpush2.msra.mxu0 0.0
      %1456 = vmatprep.subr.mxu0 0.0
      %1457 = vmatpush2.msra.mxu0 0.0
      %1458 = vmatprep.subr.mxu0 0.0
      %1459 = vmatpush2.msra.mxu0 0.0
      %1460 = vmatprep.subr.mxu0 0.0
      %1461 = vmatpush2.msra.mxu0 0.0
      %1462 = vmatprep.subr.mxu0 0.0
      %1463 = vmatpush2.msra.mxu0 0.0
      %1464 = vmatprep.mubr.f32.mxu0 0.0
      %1465 = vmatmul.mubr.f32.gmra.mxu0 %v1394
      %v1466 = vpop.f32.mrf.mxu0
      %v1467 = vadd.f32 0.0, %v1466
      %v1468 = vpop.f32.mrf.mxu0
      %1469 = vdwg.mxu0
      %v1471 = vsel %vm1392, %v1391, 0
      %1473 = vmatprep.subr.mxu0 0.0
      %1474 = vmatpush1.msra.mxu0 0.0
      %1475 = vmatprep.subr.mxu0 0.0
      %1476 = vmatpush1.msra.mxu0 0.0
      %1477 = vmatprep.subr.mxu0 0.0
      %1478 = vmatpush1.msra.mxu0 0.0
      %1479 = vmatprep.subr.mxu0 0.0
      %1480 = vmatpush1.msra.mxu0 0.0
      %1481 = vmatprep.subr.mxu0 0.0
      %1482 = vmatpush1.msra.mxu0 0.0
      %1483 = vmatprep.subr.mxu0 0.0
      %1484 = vmatpush1.msra.mxu0 0.0
      %1485 = vmatprep.subr.mxu0 0.0
      %1486 = vmatpush1.msra.mxu0 0.0
      %1487 = vmatprep.subr.mxu0 0.0
      %1488 = vmatpush1.msra.mxu0 0.0
      %1489 = vmatprep.subr.mxu0 0.0
      %1490 = vmatpush1.msra.mxu0 0.0
      %1491 = vmatprep.subr.mxu0 0.0
      %1492 = vmatpush1.msra.mxu0 0.0
      %1493 = vmatprep.subr.mxu0 0.0
      %1494 = vmatpush1.msra.mxu0 0.0
      %1495 = vmatprep.subr.mxu0 0.0
      %1496 = vmatpush1.msra.mxu0 0.0
      %1497 = vmatprep.subr.mxu0 0.0
      %1498 = vmatpush1.msra.mxu0 0.0
      %1499 = vmatprep.subr.mxu0 0.0
      %1500 = vmatpush1.msra.mxu0 0.0
      %1501 = vmatprep.subr.mxu0 0.0
      %1502 = vmatpush1.msra.mxu0 %v1398
      %1503 = vmatprep.subr.mxu0 0.0
      %1504 = vmatpush1.msra.mxu0 %v1378
      %1505 = vmatprep.subr.mxu0 0.0
      %1506 = vmatpush2.msra.mxu0 0.0
      %1507 = vmatprep.subr.mxu0 0.0
      %1508 = vmatpush2.msra.mxu0 0.0
      %1509 = vmatprep.subr.mxu0 0.0
      %1510 = vmatpush2.msra.mxu0 0.0
      %1511 = vmatprep.subr.mxu0 0.0
      %1512 = vmatpush2.msra.mxu0 0.0
      %1513 = vmatprep.subr.mxu0 0.0
      %1514 = vmatpush2.msra.mxu0 0.0
      %1515 = vmatprep.subr.mxu0 0.0
      %1516 = vmatpush2.msra.mxu0 0.0
      %1517 = vmatprep.subr.mxu0 0.0
      %1518 = vmatpush2.msra.mxu0 0.0
      %1519 = vmatprep.subr.mxu0 0.0
      %1520 = vmatpush2.msra.mxu0 0.0
      %1521 = vmatprep.subr.mxu0 0.0
      %1522 = vmatpush2.msra.mxu0 0.0
      %1523 = vmatprep.subr.mxu0 0.0
      %1524 = vmatpush2.msra.mxu0 0.0
      %1525 = vmatprep.subr.mxu0 0.0
      %1526 = vmatpush2.msra.mxu0 0.0
      %1527 = vmatprep.subr.mxu0 0.0
      %1528 = vmatpush2.msra.mxu0 0.0
      %1529 = vmatprep.subr.mxu0 0.0
      %1530 = vmatpush2.msra.mxu0 0.0
      %1531 = vmatprep.subr.mxu0 0.0
      %1532 = vmatpush2.msra.mxu0 0.0
      %1533 = vmatprep.subr.mxu0 0.0
      %1534 = vmatpush2.msra.mxu0 0.0
      %1535 = vmatprep.subr.mxu0 0.0
      %1536 = vmatpush2.msra.mxu0 0.0
      %1537 = vmatprep.mubr.f32.mxu0 0.0
      %1538 = vmatmul.mubr.f32.gmra.mxu0 %v1471
      %v1539 = vpop.f32.mrf.mxu0
      %v1540 = vadd.f32 0.0, %v1539
      %v1541 = vpop.f32.mrf.mxu0
      %1542 = vdwg.mxu0
      %v1543 = vmax.f32 %v1467, %v1540
      %v1544 = vpack.c.bf16 %v1543, %v1543
      %1545 = vst [vmem:[%s190] sm:$0x7] %v1544
      %p1546 = scmp.lt.s32.totalorder %s18, 1
      %s1547 = scalar_select %p1546, %s18, 1
      %p1548 = scmp.lt.s32.totalorder %s19, 5
      %s1549 = scalar_select %p1548, %s19, 5
      %s1550 = smul.addr %s1547, 6
      %s1551 = sadd.s32 %s1549, %s1550
      %s1552 = smul.addr %s1551, 4
      %s1553 = scalar_lea.vmem %s3, %s1552
      // Predicated region
      $region33: #{emotion_cnn_forward.6} parent=31 // pred_check
        %p1554 = pneg %p114
      $region34: #{emotion_cnn_forward.6} parent=31 // pred_check_branch
        %1556 = sbr.rel (%p1554) target = $region36
      $region35: #{emotion_cnn_forward.6} parent=31 // pred_region
        _
      $region36: #{emotion_cnn_forward.6} parent=31 // pred_fallthru
        _
    $region32: #{emotion_cnn_forward.6} parent=5 // pred_fallthru
      _
    %p1557 = scmp.le.s32.totalorder 2, %s9
    // Predicated region
    $region37: #{emotion_cnn_forward.6} parent=5 // pred_check
      %p1558 = pneg %p1557
    $region38: #{emotion_cnn_forward.6} parent=5 // pred_check_branch
      %1560 = sbr.rel (%p1558) target = $region40
    $region39: #{emotion_cnn_forward.6} parent=5 // pred_region
      %s1561 = ssub.s32 %s9, 2
      // Predicated region
      $region41: #{emotion_cnn_forward.6} parent=39 // pred_check
        %p1562 = pneg %p120
      $region42: #{emotion_cnn_forward.6} parent=39 // pred_check_branch
        %1564 = sbr.rel (%p1562) target = $region44
      $region43: #{emotion_cnn_forward.6} parent=39 // pred_region
        %p1565 = scmp.lt.s32.totalorder %s20, 1
        %s1566 = scalar_select %p1565, %s20, 1
        %p1567 = scmp.lt.s32.totalorder %s21, 5
        %s1568 = scalar_select %p1567, %s21, 5
        %s1569 = smul.addr %s1566, 6
        %s1570 = sadd.s32 %s1568, %s1569
        %s1571 = smul.addr %s1570, 4
        %s1572 = scalar_lea.vmem %s3, %s1571
      $region44: #{emotion_cnn_forward.6} parent=39 // pred_fallthru
        _
    $region40: #{emotion_cnn_forward.6} parent=5 // pred_fallthru
      _
  $region6: #{emotion_cnn_forward.6} parent=0 // loop_footer
    %s13 = sadd.s32 1, %s9
  $region7: #{emotion_cnn_forward.6} parent=0 // loop_footer_branch
    %8 = sbr.rel target = $region3
  $region8: #{emotion_cnn_forward.6} parent=0 // loop_exit
    _

// kernel: emotion_cnn_forward.7
$region0: #{emotion_cnn_forward.7}
  #allocation0 [shape = 'u32[]', space=smem, size = 0x4, offset = 0x4, fixed_abs, tag = 'smem constant byte address 0x4 - core index']
  #allocation1 [shape = 'u32[144,128]{1,0:T(1,128)}', space=vmem, size = 0x12000, scoped, tag = 'internal scratch']
  %s0 = inlined_call_operand.vmem [shape: bf16[2,4608], index: 0, kind: input, shape index: {}]
  %s1 = inlined_call_operand.vmem [shape: bf16[4608,256], index: 1, kind: input, shape index: {}]
  %s2 = inlined_call_operand.vmem [shape: f32[1,256], index: 2, kind: input, shape index: {}]
  %s3 = inlined_call_operand.vmem [shape: bf16[256,7], index: 3, kind: input, shape index: {}]
  %s4 = inlined_call_operand.vmem [shape: f32[1,7], index: 4, kind: input, shape index: {}]
  %s5 = inlined_call_operand.hbm [shape: f32[2,7], index: 5, kind: output, shape index: {}]
  %s6 = sld [smem:[#allocation0]]
  $region30: #{emotion_cnn_forward.7} parent=0
    _
  %s8 = ssub.s32 1, %s6
  %s9 = scalar_select 0, %s8, %s6
  $region1: #{emotion_cnn_forward.7} parent=0
    #allocation2 [shape = 'u8[1024]{0}', space=vmem, size = 0x400, scoped, tag = 'output window, operand 0, single buffered']
    #allocation3 [shape = 's32[1]{0}', space=sflag, size = 0x4, scoped, tag = 'scoped memory for emotion_cnn_forward.7']
    %10 = vsyncpa [#allocation3], 0
    // Predicated region
    $region2: #{emotion_cnn_forward.7} parent=1 // pred_check
      _
    $region3: #{emotion_cnn_forward.7} parent=1 // pred_check_branch
      %12 = sbr.rel (0) target = $region5
    $region4: #{emotion_cnn_forward.7} parent=1 // pred_region
      _
    $region5: #{emotion_cnn_forward.7} parent=1 // pred_fallthru
      _
    // Predicated region
    $region6: #{emotion_cnn_forward.7} parent=1 // pred_check
      _
    $region7: #{emotion_cnn_forward.7} parent=1 // pred_check_branch
      %14 = sbr.rel (0) target = $region9
    $region8: #{emotion_cnn_forward.7} parent=1 // pred_region
      _
    $region9: #{emotion_cnn_forward.7} parent=1 // pred_fallthru
      _
    // Predicated region
    $region10: #{emotion_cnn_forward.7} parent=1 // pred_check
      _
    $region11: #{emotion_cnn_forward.7} parent=1 // pred_check_branch
      %16 = sbr.rel (0) target = $region13
    $region12: #{emotion_cnn_forward.7} parent=1 // pred_region
      _
    $region13: #{emotion_cnn_forward.7} parent=1 // pred_fallthru
      _
    // Predicated region
    $region14: #{emotion_cnn_forward.7} parent=1 // pred_check
      _
    $region15: #{emotion_cnn_forward.7} parent=1 // pred_check_branch
      %18 = sbr.rel (0) target = $region17
    $region16: #{emotion_cnn_forward.7} parent=1 // pred_region
      _
    $region17: #{emotion_cnn_forward.7} parent=1 // pred_fallthru
      _
    // Predicated region
    $region18: #{emotion_cnn_forward.7} parent=1 // pred_check
      _
    $region19: #{emotion_cnn_forward.7} parent=1 // pred_check_branch
      %20 = sbr.rel (0) target = $region21
    $region20: #{emotion_cnn_forward.7} parent=1 // pred_region
      _
    $region21: #{emotion_cnn_forward.7} parent=1 // pred_fallthru
      _
    %v22 = vld [vmem:[%s0] sm:$0xff]
    %v23 = vld [vmem:[%s0 + $0x8] sm:$0xff]
    %v24 = vld [vmem:[%s0 + $0x10] sm:$0xff]
    %v25 = vld [vmem:[%s0 + $0x18] sm:$0xff]
    %v26 = vld [vmem:[%s0 + $0x20] sm:$0xf]
    %v27 = vld [vmem:[%s1] sm:$0xff]
    %v28 = vld [vmem:[%s1 + $0x8] sm:$0xff]
    %v29 = vld [vmem:[%s1 + $0x10] sm:$0xff]
    %v30 = vld [vmem:[%s1 + $0x18] sm:$0xff]
    %v31 = vld [vmem:[%s1 + $0x20] sm:$0xff]
    %v32 = vld [vmem:[%s1 + $0x28] sm:$0xff]
    %v33 = vld [vmem:[%s1 + $0x30] sm:$0xff]
    %v34 = vld [vmem:[%s1 + $0x38] sm:$0xff]
    %v35 = vld [vmem:[%s1 + $0x40] sm:$0xff]
    %v36 = vld [vmem:[%s1 + $0x48] sm:$0xff]
    %v37 = vld [vmem:[%s1 + $0x50] sm:$0xff]
    %v38 = vld [vmem:[%s1 + $0x58] sm:$0xff]
    %v39 = vld [vmem:[%s1 + $0x60] sm:$0xff]
    %v40 = vld [vmem:[%s1 + $0x68] sm:$0xff]
    %v41 = vld [vmem:[%s1 + $0x70] sm:$0xff]
    %v42 = vld [vmem:[%s1 + $0x78] sm:$0xff]
    %v43 = vld [vmem:[%s1 + $0x80] sm:$0xff]
    %v44 = vld [vmem:[%s1 + $0x88] sm:$0xff]
    %v45 = vld [vmem:[%s1 + $0x90] sm:$0xff]
    %v46 = vld [vmem:[%s1 + $0x98] sm:$0xff]
    %v47 = vld [vmem:[%s1 + $0xa0] sm:$0xff]
    %v48 = vld [vmem:[%s1 + $0xa8] sm:$0xff]
    %v49 = vld [vmem:[%s1 + $0xb0] sm:$0xff]
    %v50 = vld [vmem:[%s1 + $0xb8] sm:$0xff]
    %v51 = vld [vmem:[%s1 + $0xc0] sm:$0xff]
    %v52 = vld [vmem:[%s1 + $0xc8] sm:$0xff]
    %v53 = vld [vmem:[%s1 + $0xd0] sm:$0xff]
    %v54 = vld [vmem:[%s1 + $0xd8] sm:$0xff]
    %v55 = vld [vmem:[%s1 + $0xe0] sm:$0xff]
    %v56 = vld [vmem:[%s1 + $0xe8] sm:$0xff]
    %v57 = vld [vmem:[%s1 + $0xf0] sm:$0xff]
    %v58 = vld [vmem:[%s1 + $0xf8] sm:$0xff]
    %v59 = vld [vmem:[%s1 + $0x100] sm:$0xff]
    %v60 = vld [vmem:[%s1 + $0x108] sm:$0xff]
    %v61 = vld [vmem:[%s1 + $0x110] sm:$0xff]
    %v62 = vld [vmem:[%s1 + $0x118] sm:$0xff]
    %v63 = vld [vmem:[%s1 + $0x120] sm:$0xff]
    %v64 = vld [vmem:[%s1 + $0x128] sm:$0xff]
    %v65 = vld [vmem:[%s1 + $0x130] sm:$0xff]
    %v66 = vld [vmem:[%s1 + $0x138] sm:$0xff]
    %v67 = vld [vmem:[%s1 + $0x140] sm:$0xff]
    %v68 = vld [vmem:[%s1 + $0x148] sm:$0xff]
    %v69 = vld [vmem:[%s1 + $0x150] sm:$0xff]
    %v70 = vld [vmem:[%s1 + $0x158] sm:$0xff]
    %v71 = vld [vmem:[%s1 + $0x160] sm:$0xff]
    %v72 = vld [vmem:[%s1 + $0x168] sm:$0xff]
    %v73 = vld [vmem:[%s1 + $0x170] sm:$0xff]
    %v74 = vld [vmem:[%s1 + $0x178] sm:$0xff]
    %v75 = vld [vmem:[%s1 + $0x180] sm:$0xff]
    %v76 = vld [vmem:[%s1 + $0x188] sm:$0xff]
    %v77 = vld [vmem:[%s1 + $0x190] sm:$0xff]
    %v78 = vld [vmem:[%s1 + $0x198] sm:$0xff]
    %v79 = vld [vmem:[%s1 + $0x1a0] sm:$0xff]
    %v80 = vld [vmem:[%s1 + $0x1a8] sm:$0xff]
    %v81 = vld [vmem:[%s1 + $0x1b0] sm:$0xff]
    %v82 = vld [vmem:[%s1 + $0x1b8] sm:$0xff]
    %v83 = vld [vmem:[%s1 + $0x1c0] sm:$0xff]
    %v84 = vld [vmem:[%s1 + $0x1c8] sm:$0xff]
    %v85 = vld [vmem:[%s1 + $0x1d0] sm:$0xff]
    %v86 = vld [vmem:[%s1 + $0x1d8] sm:$0xff]
    %v87 = vld [vmem:[%s1 + $0x1e0] sm:$0xff]
    %v88 = vld [vmem:[%s1 + $0x1e8] sm:$0xff]
    %v89 = vld [vmem:[%s1 + $0x1f0] sm:$0xff]
    %v90 = vld [vmem:[%s1 + $0x1f8] sm:$0xff]
    %v91 = vld [vmem:[%s1 + $0x200] sm:$0xff]
    %v92 = vld [vmem:[%s1 + $0x208] sm:$0xff]
    %v93 = vld [vmem:[%s1 + $0x210] sm:$0xff]
    %v94 = vld [vmem:[%s1 + $0x218] sm:$0xff]
    %v95 = vld [vmem:[%s1 + $0x220] sm:$0xff]
    %v96 = vld [vmem:[%s1 + $0x228] sm:$0xff]
    %v97 = vld [vmem:[%s1 + $0x230] sm:$0xff]
    %v98 = vld [vmem:[%s1 + $0x238] sm:$0xff]
    %v99 = vld [vmem:[%s1 + $0x240] sm:$0xff]
    %v100 = vld [vmem:[%s1 + $0x248] sm:$0xff]
    %v101 = vld [vmem:[%s1 + $0x250] sm:$0xff]
    %v102 = vld [vmem:[%s1 + $0x258] sm:$0xff]
    %v103 = vld [vmem:[%s1 + $0x260] sm:$0xff]
    %v104 = vld [vmem:[%s1 + $0x268] sm:$0xff]
    %v105 = vld [vmem:[%s1 + $0x270] sm:$0xff]
    %v106 = vld [vmem:[%s1 + $0x278] sm:$0xff]
    %v107 = vld [vmem:[%s1 + $0x280] sm:$0xff]
    %v108 = vld [vmem:[%s1 + $0x288] sm:$0xff]
    %v109 = vld [vmem:[%s1 + $0x290] sm:$0xff]
    %v110 = vld [vmem:[%s1 + $0x298] sm:$0xff]
    %v111 = vld [vmem:[%s1 + $0x2a0] sm:$0xff]
    %v112 = vld [vmem:[%s1 + $0x2a8] sm:$0xff]
    %v113 = vld [vmem:[%s1 + $0x2b0] sm:$0xff]
    %v114 = vld [vmem:[%s1 + $0x2b8] sm:$0xff]
    %v115 = vld [vmem:[%s1 + $0x2c0] sm:$0xff]
    %v116 = vld [vmem:[%s1 + $0x2c8] sm:$0xff]
    %v117 = vld [vmem:[%s1 + $0x2d0] sm:$0xff]
    %v118 = vld [vmem:[%s1 + $0x2d8] sm:$0xff]
    %v119 = vld [vmem:[%s1 + $0x2e0] sm:$0xff]
    %v120 = vld [vmem:[%s1 + $0x2e8] sm:$0xff]
    %v121 = vld [vmem:[%s1 + $0x2f0] sm:$0xff]
    %v122 = vld [vmem:[%s1 + $0x2f8] sm:$0xff]
    %v123 = vld [vmem:[%s1 + $0x300] sm:$0xff]
    %v124 = vld [vmem:[%s1 + $0x308] sm:$0xff]
    %v125 = vld [vmem:[%s1 + $0x310] sm:$0xff]
    %v126 = vld [vmem:[%s1 + $0x318] sm:$0xff]
    %v127 = vld [vmem:[%s1 + $0x320] sm:$0xff]
    %v128 = vld [vmem:[%s1 + $0x328] sm:$0xff]
    %v129 = vld [vmem:[%s1 + $0x330] sm:$0xff]
    %v130 = vld [vmem:[%s1 + $0x338] sm:$0xff]
    %v131 = vld [vmem:[%s1 + $0x340] sm:$0xff]
    %v132 = vld [vmem:[%s1 + $0x348] sm:$0xff]
    %v133 = vld [vmem:[%s1 + $0x350] sm:$0xff]
    %v134 = vld [vmem:[%s1 + $0x358] sm:$0xff]
    %v135 = vld [vmem:[%s1 + $0x360] sm:$0xff]
    %v136 = vld [vmem:[%s1 + $0x368] sm:$0xff]
    %v137 = vld [vmem:[%s1 + $0x370] sm:$0xff]
    %v138 = vld [vmem:[%s1 + $0x378] sm:$0xff]
    %v139 = vld [vmem:[%s1 + $0x380] sm:$0xff]
    %v140 = vld [vmem:[%s1 + $0x388] sm:$0xff]
    %v141 = vld [vmem:[%s1 + $0x390] sm:$0xff]
    %v142 = vld [vmem:[%s1 + $0x398] sm:$0xff]
    %v143 = vld [vmem:[%s1 + $0x3a0] sm:$0xff]
    %v144 = vld [vmem:[%s1 + $0x3a8] sm:$0xff]
    %v145 = vld [vmem:[%s1 + $0x3b0] sm:$0xff]
    %v146 = vld [vmem:[%s1 + $0x3b8] sm:$0xff]
    %v147 = vld [vmem:[%s1 + $0x3c0] sm:$0xff]
    %v148 = vld [vmem:[%s1 + $0x3c8] sm:$0xff]
    %v149 = vld [vmem:[%s1 + $0x3d0] sm:$0xff]
    %v150 = vld [vmem:[%s1 + $0x3d8] sm:$0xff]
    %v151 = vld [vmem:[%s1 + $0x3e0] sm:$0xff]
    %v152 = vld [vmem:[%s1 + $0x3e8] sm:$0xff]
    %v153 = vld [vmem:[%s1 + $0x3f0] sm:$0xff]
    %v154 = vld [vmem:[%s1 + $0x3f8] sm:$0xff]
    %v155 = vld [vmem:[%s1 + $0x400] sm:$0xff]
    %v156 = vld [vmem:[%s1 + $0x408] sm:$0xff]
    %v157 = vld [vmem:[%s1 + $0x410] sm:$0xff]
    %v158 = vld [vmem:[%s1 + $0x418] sm:$0xff]
    %v159 = vld [vmem:[%s1 + $0x420] sm:$0xff]
    %v160 = vld [vmem:[%s1 + $0x428] sm:$0xff]
    %v161 = vld [vmem:[%s1 + $0x430] sm:$0xff]
    %v162 = vld [vmem:[%s1 + $0x438] sm:$0xff]
    %v163 = vld [vmem:[%s1 + $0x440] sm:$0xff]
    %v164 = vld [vmem:[%s1 + $0x448] sm:$0xff]
    %v165 = vld [vmem:[%s1 + $0x450] sm:$0xff]
    %v166 = vld [vmem:[%s1 + $0x458] sm:$0xff]
    %v167 = vld [vmem:[%s1 + $0x460] sm:$0xff]
    %v168 = vld [vmem:[%s1 + $0x468] sm:$0xff]
    %v169 = vld [vmem:[%s1 + $0x470] sm:$0xff]
    %v170 = vld [vmem:[%s1 + $0x478] sm:$0xff]
    %v171 = vld [vmem:[%s1 + $0x480] sm:$0xff]
    %v172 = vld [vmem:[%s1 + $0x488] sm:$0xff]
    %v173 = vld [vmem:[%s1 + $0x490] sm:$0xff]
    %v174 = vld [vmem:[%s1 + $0x498] sm:$0xff]
    %v175 = vld [vmem:[%s1 + $0x4a0] sm:$0xff]
    %v176 = vld [vmem:[%s1 + $0x4a8] sm:$0xff]
    %v177 = vld [vmem:[%s1 + $0x4b0] sm:$0xff]
    %v178 = vld [vmem:[%s1 + $0x4b8] sm:$0xff]
    %v179 = vld [vmem:[%s1 + $0x4c0] sm:$0xff]
    %v180 = vld [vmem:[%s1 + $0x4c8] sm:$0xff]
    %v181 = vld [vmem:[%s1 + $0x4d0] sm:$0xff]
    %v182 = vld [vmem:[%s1 + $0x4d8] sm:$0xff]
    %v183 = vld [vmem:[%s1 + $0x4e0] sm:$0xff]
    %v184 = vld [vmem:[%s1 + $0x4e8] sm:$0xff]
    %v185 = vld [vmem:[%s1 + $0x4f0] sm:$0xff]
    %v186 = vld [vmem:[%s1 + $0x4f8] sm:$0xff]
    %v187 = vld [vmem:[%s1 + $0x500] sm:$0xff]
    %v188 = vld [vmem:[%s1 + $0x508] sm:$0xff]
    %v189 = vld [vmem:[%s1 + $0x510] sm:$0xff]
    %v190 = vld [vmem:[%s1 + $0x518] sm:$0xff]
    %v191 = vld [vmem:[%s1 + $0x520] sm:$0xff]
    %v192 = vld [vmem:[%s1 + $0x528] sm:$0xff]
    %v193 = vld [vmem:[%s1 + $0x530] sm:$0xff]
    %v194 = vld [vmem:[%s1 + $0x538] sm:$0xff]
    %v195 = vld [vmem:[%s1 + $0x540] sm:$0xff]
    %v196 = vld [vmem:[%s1 + $0x548] sm:$0xff]
    %v197 = vld [vmem:[%s1 + $0x550] sm:$0xff]
    %v198 = vld [vmem:[%s1 + $0x558] sm:$0xff]
    %v199 = vld [vmem:[%s1 + $0x560] sm:$0xff]
    %v200 = vld [vmem:[%s1 + $0x568] sm:$0xff]
    %v201 = vld [vmem:[%s1 + $0x570] sm:$0xff]
    %v202 = vld [vmem:[%s1 + $0x578] sm:$0xff]
    %v203 = vld [vmem:[%s1 + $0x580] sm:$0xff]
    %v204 = vld [vmem:[%s1 + $0x588] sm:$0xff]
    %v205 = vld [vmem:[%s1 + $0x590] sm:$0xff]
    %v206 = vld [vmem:[%s1 + $0x598] sm:$0xff]
    %v207 = vld [vmem:[%s1 + $0x5a0] sm:$0xff]
    %v208 = vld [vmem:[%s1 + $0x5a8] sm:$0xff]
    %v209 = vld [vmem:[%s1 + $0x5b0] sm:$0xff]
    %v210 = vld [vmem:[%s1 + $0x5b8] sm:$0xff]
    %v211 = vld [vmem:[%s1 + $0x5c0] sm:$0xff]
    %v212 = vld [vmem:[%s1 + $0x5c8] sm:$0xff]
    %v213 = vld [vmem:[%s1 + $0x5d0] sm:$0xff]
    %v214 = vld [vmem:[%s1 + $0x5d8] sm:$0xff]
    %v215 = vld [vmem:[%s1 + $0x5e0] sm:$0xff]
    %v216 = vld [vmem:[%s1 + $0x5e8] sm:$0xff]
    %v217 = vld [vmem:[%s1 + $0x5f0] sm:$0xff]
    %v218 = vld [vmem:[%s1 + $0x5f8] sm:$0xff]
    %v219 = vld [vmem:[%s1 + $0x600] sm:$0xff]
    %v220 = vld [vmem:[%s1 + $0x608] sm:$0xff]
    %v221 = vld [vmem:[%s1 + $0x610] sm:$0xff]
    %v222 = vld [vmem:[%s1 + $0x618] sm:$0xff]
    %v223 = vld [vmem:[%s1 + $0x620] sm:$0xff]
    %v224 = vld [vmem:[%s1 + $0x628] sm:$0xff]
    %v225 = vld [vmem:[%s1 + $0x630] sm:$0xff]
    %v226 = vld [vmem:[%s1 + $0x638] sm:$0xff]
    %v227 = vld [vmem:[%s1 + $0x640] sm:$0xff]
    %v228 = vld [vmem:[%s1 + $0x648] sm:$0xff]
    %v229 = vld [vmem:[%s1 + $0x650] sm:$0xff]
    %v230 = vld [vmem:[%s1 + $0x658] sm:$0xff]
    %v231 = vld [vmem:[%s1 + $0x660] sm:$0xff]
    %v232 = vld [vmem:[%s1 + $0x668] sm:$0xff]
    %v233 = vld [vmem:[%s1 + $0x670] sm:$0xff]
    %v234 = vld [vmem:[%s1 + $0x678] sm:$0xff]
    %v235 = vld [vmem:[%s1 + $0x680] sm:$0xff]
    %v236 = vld [vmem:[%s1 + $0x688] sm:$0xff]
    %v237 = vld [vmem:[%s1 + $0x690] sm:$0xff]
    %v238 = vld [vmem:[%s1 + $0x698] sm:$0xff]
    %v239 = vld [vmem:[%s1 + $0x6a0] sm:$0xff]
    %v240 = vld [vmem:[%s1 + $0x6a8] sm:$0xff]
    %v241 = vld [vmem:[%s1 + $0x6b0] sm:$0xff]
    %v242 = vld [vmem:[%s1 + $0x6b8] sm:$0xff]
    %v243 = vld [vmem:[%s1 + $0x6c0] sm:$0xff]
    %v244 = vld [vmem:[%s1 + $0x6c8] sm:$0xff]
    %v245 = vld [vmem:[%s1 + $0x6d0] sm:$0xff]
    %v246 = vld [vmem:[%s1 + $0x6d8] sm:$0xff]
    %v247 = vld [vmem:[%s1 + $0x6e0] sm:$0xff]
    %v248 = vld [vmem:[%s1 + $0x6e8] sm:$0xff]
    %v249 = vld [vmem:[%s1 + $0x6f0] sm:$0xff]
    %v250 = vld [vmem:[%s1 + $0x6f8] sm:$0xff]
    %v251 = vld [vmem:[%s1 + $0x700] sm:$0xff]
    %v252 = vld [vmem:[%s1 + $0x708] sm:$0xff]
    %v253 = vld [vmem:[%s1 + $0x710] sm:$0xff]
    %v254 = vld [vmem:[%s1 + $0x718] sm:$0xff]
    %v255 = vld [vmem:[%s1 + $0x720] sm:$0xff]
    %v256 = vld [vmem:[%s1 + $0x728] sm:$0xff]
    %v257 = vld [vmem:[%s1 + $0x730] sm:$0xff]
    %v258 = vld [vmem:[%s1 + $0x738] sm:$0xff]
    %v259 = vld [vmem:[%s1 + $0x740] sm:$0xff]
    %v260 = vld [vmem:[%s1 + $0x748] sm:$0xff]
    %v261 = vld [vmem:[%s1 + $0x750] sm:$0xff]
    %v262 = vld [vmem:[%s1 + $0x758] sm:$0xff]
    %v263 = vld [vmem:[%s1 + $0x760] sm:$0xff]
    %v264 = vld [vmem:[%s1 + $0x768] sm:$0xff]
    %v265 = vld [vmem:[%s1 + $0x770] sm:$0xff]
    %v266 = vld [vmem:[%s1 + $0x778] sm:$0xff]
    %v267 = vld [vmem:[%s1 + $0x780] sm:$0xff]
    %v268 = vld [vmem:[%s1 + $0x788] sm:$0xff]
    %v269 = vld [vmem:[%s1 + $0x790] sm:$0xff]
    %v270 = vld [vmem:[%s1 + $0x798] sm:$0xff]
    %v271 = vld [vmem:[%s1 + $0x7a0] sm:$0xff]
    %v272 = vld [vmem:[%s1 + $0x7a8] sm:$0xff]
    %v273 = vld [vmem:[%s1 + $0x7b0] sm:$0xff]
    %v274 = vld [vmem:[%s1 + $0x7b8] sm:$0xff]
    %v275 = vld [vmem:[%s1 + $0x7c0] sm:$0xff]
    %v276 = vld [vmem:[%s1 + $0x7c8] sm:$0xff]
    %v277 = vld [vmem:[%s1 + $0x7d0] sm:$0xff]
    %v278 = vld [vmem:[%s1 + $0x7d8] sm:$0xff]
    %v279 = vld [vmem:[%s1 + $0x7e0] sm:$0xff]
    %v280 = vld [vmem:[%s1 + $0x7e8] sm:$0xff]
    %v281 = vld [vmem:[%s1 + $0x7f0] sm:$0xff]
    %v282 = vld [vmem:[%s1 + $0x7f8] sm:$0xff]
    %v283 = vld [vmem:[%s1 + $0x800] sm:$0xff]
    %v284 = vld [vmem:[%s1 + $0x808] sm:$0xff]
    %v285 = vld [vmem:[%s1 + $0x810] sm:$0xff]
    %v286 = vld [vmem:[%s1 + $0x818] sm:$0xff]
    %v287 = vld [vmem:[%s1 + $0x820] sm:$0xff]
    %v288 = vld [vmem:[%s1 + $0x828] sm:$0xff]
    %v289 = vld [vmem:[%s1 + $0x830] sm:$0xff]
    %v290 = vld [vmem:[%s1 + $0x838] sm:$0xff]
    %v291 = vld [vmem:[%s1 + $0x840] sm:$0xff]
    %v292 = vld [vmem:[%s1 + $0x848] sm:$0xff]
    %v293 = vld [vmem:[%s1 + $0x850] sm:$0xff]
    %v294 = vld [vmem:[%s1 + $0x858] sm:$0xff]
    %v295 = vld [vmem:[%s1 + $0x860] sm:$0xff]
    %v296 = vld [vmem:[%s1 + $0x868] sm:$0xff]
    %v297 = vld [vmem:[%s1 + $0x870] sm:$0xff]
    %v298 = vld [vmem:[%s1 + $0x878] sm:$0xff]
    %v299 = vld [vmem:[%s1 + $0x880] sm:$0xff]
    %v300 = vld [vmem:[%s1 + $0x888] sm:$0xff]
    %v301 = vld [vmem:[%s1 + $0x890] sm:$0xff]
    %v302 = vld [vmem:[%s1 + $0x898] sm:$0xff]
    %v303 = vld [vmem:[%s1 + $0x8a0] sm:$0xff]
    %v304 = vld [vmem:[%s1 + $0x8a8] sm:$0xff]
    %v305 = vld [vmem:[%s1 + $0x8b0] sm:$0xff]
    %v306 = vld [vmem:[%s1 + $0x8b8] sm:$0xff]
    %v307 = vld [vmem:[%s1 + $0x8c0] sm:$0xff]
    %v308 = vld [vmem:[%s1 + $0x8c8] sm:$0xff]
    %v309 = vld [vmem:[%s1 + $0x8d0] sm:$0xff]
    %v310 = vld [vmem:[%s1 + $0x8d8] sm:$0xff]
    %v311 = vld [vmem:[%s1 + $0x8e0] sm:$0xff]
    %v312 = vld [vmem:[%s1 + $0x8e8] sm:$0xff]
    %v313 = vld [vmem:[%s1 + $0x8f0] sm:$0xff]
    %v314 = vld [vmem:[%s1 + $0x8f8] sm:$0xff]
    %v315 = vld [vmem:[%s1 + $0x900] sm:$0xff]
    %v316 = vld [vmem:[%s1 + $0x908] sm:$0xff]
    %v317 = vld [vmem:[%s1 + $0x910] sm:$0xff]
    %v318 = vld [vmem:[%s1 + $0x918] sm:$0xff]
    %v319 = vld [vmem:[%s1 + $0x920] sm:$0xff]
    %v320 = vld [vmem:[%s1 + $0x928] sm:$0xff]
    %v321 = vld [vmem:[%s1 + $0x930] sm:$0xff]
    %v322 = vld [vmem:[%s1 + $0x938] sm:$0xff]
    %v323 = vld [vmem:[%s1 + $0x940] sm:$0xff]
    %v324 = vld [vmem:[%s1 + $0x948] sm:$0xff]
    %v325 = vld [vmem:[%s1 + $0x950] sm:$0xff]
    %v326 = vld [vmem:[%s1 + $0x958] sm:$0xff]
    %v327 = vld [vmem:[%s1 + $0x960] sm:$0xff]
    %v328 = vld [vmem:[%s1 + $0x968] sm:$0xff]
    %v329 = vld [vmem:[%s1 + $0x970] sm:$0xff]
    %v330 = vld [vmem:[%s1 + $0x978] sm:$0xff]
    %v331 = vld [vmem:[%s1 + $0x980] sm:$0xff]
    %v332 = vld [vmem:[%s1 + $0x988] sm:$0xff]
    %v333 = vld [vmem:[%s1 + $0x990] sm:$0xff]
    %v334 = vld [vmem:[%s1 + $0x998] sm:$0xff]
    %v335 = vld [vmem:[%s1 + $0x9a0] sm:$0xff]
    %v336 = vld [vmem:[%s1 + $0x9a8] sm:$0xff]
    %v337 = vld [vmem:[%s1 + $0x9b0] sm:$0xff]
    %v338 = vld [vmem:[%s1 + $0x9b8] sm:$0xff]
    %v339 = vld [vmem:[%s1 + $0x9c0] sm:$0xff]
    %v340 = vld [vmem:[%s1 + $0x9c8] sm:$0xff]
    %v341 = vld [vmem:[%s1 + $0x9d0] sm:$0xff]
    %v342 = vld [vmem:[%s1 + $0x9d8] sm:$0xff]
    %v343 = vld [vmem:[%s1 + $0x9e0] sm:$0xff]
    %v344 = vld [vmem:[%s1 + $0x9e8] sm:$0xff]
    %v345 = vld [vmem:[%s1 + $0x9f0] sm:$0xff]
    %v346 = vld [vmem:[%s1 + $0x9f8] sm:$0xff]
    %v347 = vld [vmem:[%s1 + $0xa00] sm:$0xff]
    %v348 = vld [vmem:[%s1 + $0xa08] sm:$0xff]
    %v349 = vld [vmem:[%s1 + $0xa10] sm:$0xff]
    %v350 = vld [vmem:[%s1 + $0xa18] sm:$0xff]
    %v351 = vld [vmem:[%s1 + $0xa20] sm:$0xff]
    %v352 = vld [vmem:[%s1 + $0xa28] sm:$0xff]
    %v353 = vld [vmem:[%s1 + $0xa30] sm:$0xff]
    %v354 = vld [vmem:[%s1 + $0xa38] sm:$0xff]
    %v355 = vld [vmem:[%s1 + $0xa40] sm:$0xff]
    %v356 = vld [vmem:[%s1 + $0xa48] sm:$0xff]
    %v357 = vld [vmem:[%s1 + $0xa50] sm:$0xff]
    %v358 = vld [vmem:[%s1 + $0xa58] sm:$0xff]
    %v359 = vld [vmem:[%s1 + $0xa60] sm:$0xff]
    %v360 = vld [vmem:[%s1 + $0xa68] sm:$0xff]
    %v361 = vld [vmem:[%s1 + $0xa70] sm:$0xff]
    %v362 = vld [vmem:[%s1 + $0xa78] sm:$0xff]
    %v363 = vld [vmem:[%s1 + $0xa80] sm:$0xff]
    %v364 = vld [vmem:[%s1 + $0xa88] sm:$0xff]
    %v365 = vld [vmem:[%s1 + $0xa90] sm:$0xff]
    %v366 = vld [vmem:[%s1 + $0xa98] sm:$0xff]
    %v367 = vld [vmem:[%s1 + $0xaa0] sm:$0xff]
    %v368 = vld [vmem:[%s1 + $0xaa8] sm:$0xff]
    %v369 = vld [vmem:[%s1 + $0xab0] sm:$0xff]
    %v370 = vld [vmem:[%s1 + $0xab8] sm:$0xff]
    %v371 = vld [vmem:[%s1 + $0xac0] sm:$0xff]
    %v372 = vld [vmem:[%s1 + $0xac8] sm:$0xff]
    %v373 = vld [vmem:[%s1 + $0xad0] sm:$0xff]
    %v374 = vld [vmem:[%s1 + $0xad8] sm:$0xff]
    %v375 = vld [vmem:[%s1 + $0xae0] sm:$0xff]
    %v376 = vld [vmem:[%s1 + $0xae8] sm:$0xff]
    %v377 = vld [vmem:[%s1 + $0xaf0] sm:$0xff]
    %v378 = vld [vmem:[%s1 + $0xaf8] sm:$0xff]
    %v379 = vld [vmem:[%s1 + $0xb00] sm:$0xff]
    %v380 = vld [vmem:[%s1 + $0xb08] sm:$0xff]
    %v381 = vld [vmem:[%s1 + $0xb10] sm:$0xff]
    %v382 = vld [vmem:[%s1 + $0xb18] sm:$0xff]
    %v383 = vld [vmem:[%s1 + $0xb20] sm:$0xff]
    %v384 = vld [vmem:[%s1 + $0xb28] sm:$0xff]
    %v385 = vld [vmem:[%s1 + $0xb30] sm:$0xff]
    %v386 = vld [vmem:[%s1 + $0xb38] sm:$0xff]
    %v387 = vld [vmem:[%s1 + $0xb40] sm:$0xff]
    %v388 = vld [vmem:[%s1 + $0xb48] sm:$0xff]
    %v389 = vld [vmem:[%s1 + $0xb50] sm:$0xff]
    %v390 = vld [vmem:[%s1 + $0xb58] sm:$0xff]
    %v391 = vld [vmem:[%s1 + $0xb60] sm:$0xff]
    %v392 = vld [vmem:[%s1 + $0xb68] sm:$0xff]
    %v393 = vld [vmem:[%s1 + $0xb70] sm:$0xff]
    %v394 = vld [vmem:[%s1 + $0xb78] sm:$0xff]
    %v395 = vld [vmem:[%s1 + $0xb80] sm:$0xff]
    %v396 = vld [vmem:[%s1 + $0xb88] sm:$0xff]
    %v397 = vld [vmem:[%s1 + $0xb90] sm:$0xff]
    %v398 = vld [vmem:[%s1 + $0xb98] sm:$0xff]
    %v399 = vld [vmem:[%s1 + $0xba0] sm:$0xff]
    %v400 = vld [vmem:[%s1 + $0xba8] sm:$0xff]
    %v401 = vld [vmem:[%s1 + $0xbb0] sm:$0xff]
    %v402 = vld [vmem:[%s1 + $0xbb8] sm:$0xff]
    %v403 = vld [vmem:[%s1 + $0xbc0] sm:$0xff]
    %v404 = vld [vmem:[%s1 + $0xbc8] sm:$0xff]
    %v405 = vld [vmem:[%s1 + $0xbd0] sm:$0xff]
    %v406 = vld [vmem:[%s1 + $0xbd8] sm:$0xff]
    %v407 = vld [vmem:[%s1 + $0xbe0] sm:$0xff]
    %v408 = vld [vmem:[%s1 + $0xbe8] sm:$0xff]
    %v409 = vld [vmem:[%s1 + $0xbf0] sm:$0xff]
    %v410 = vld [vmem:[%s1 + $0xbf8] sm:$0xff]
    %v411 = vld [vmem:[%s1 + $0xc00] sm:$0xff]
    %v412 = vld [vmem:[%s1 + $0xc08] sm:$0xff]
    %v413 = vld [vmem:[%s1 + $0xc10] sm:$0xff]
    %v414 = vld [vmem:[%s1 + $0xc18] sm:$0xff]
    %v415 = vld [vmem:[%s1 + $0xc20] sm:$0xff]
    %v416 = vld [vmem:[%s1 + $0xc28] sm:$0xff]
    %v417 = vld [vmem:[%s1 + $0xc30] sm:$0xff]
    %v418 = vld [vmem:[%s1 + $0xc38] sm:$0xff]
    %v419 = vld [vmem:[%s1 + $0xc40] sm:$0xff]
    %v420 = vld [vmem:[%s1 + $0xc48] sm:$0xff]
    %v421 = vld [vmem:[%s1 + $0xc50] sm:$0xff]
    %v422 = vld [vmem:[%s1 + $0xc58] sm:$0xff]
    %v423 = vld [vmem:[%s1 + $0xc60] sm:$0xff]
    %v424 = vld [vmem:[%s1 + $0xc68] sm:$0xff]
    %v425 = vld [vmem:[%s1 + $0xc70] sm:$0xff]
    %v426 = vld [vmem:[%s1 + $0xc78] sm:$0xff]
    %v427 = vld [vmem:[%s1 + $0xc80] sm:$0xff]
    %v428 = vld [vmem:[%s1 + $0xc88] sm:$0xff]
    %v429 = vld [vmem:[%s1 + $0xc90] sm:$0xff]
    %v430 = vld [vmem:[%s1 + $0xc98] sm:$0xff]
    %v431 = vld [vmem:[%s1 + $0xca0] sm:$0xff]
    %v432 = vld [vmem:[%s1 + $0xca8] sm:$0xff]
    %v433 = vld [vmem:[%s1 + $0xcb0] sm:$0xff]
    %v434 = vld [vmem:[%s1 + $0xcb8] sm:$0xff]
    %v435 = vld [vmem:[%s1 + $0xcc0] sm:$0xff]
    %v436 = vld [vmem:[%s1 + $0xcc8] sm:$0xff]
    %v437 = vld [vmem:[%s1 + $0xcd0] sm:$0xff]
    %v438 = vld [vmem:[%s1 + $0xcd8] sm:$0xff]
    %v439 = vld [vmem:[%s1 + $0xce0] sm:$0xff]
    %v440 = vld [vmem:[%s1 + $0xce8] sm:$0xff]
    %v441 = vld [vmem:[%s1 + $0xcf0] sm:$0xff]
    %v442 = vld [vmem:[%s1 + $0xcf8] sm:$0xff]
    %v443 = vld [vmem:[%s1 + $0xd00] sm:$0xff]
    %v444 = vld [vmem:[%s1 + $0xd08] sm:$0xff]
    %v445 = vld [vmem:[%s1 + $0xd10] sm:$0xff]
    %v446 = vld [vmem:[%s1 + $0xd18] sm:$0xff]
    %v447 = vld [vmem:[%s1 + $0xd20] sm:$0xff]
    %v448 = vld [vmem:[%s1 + $0xd28] sm:$0xff]
    %v449 = vld [vmem:[%s1 + $0xd30] sm:$0xff]
    %v450 = vld [vmem:[%s1 + $0xd38] sm:$0xff]
    %v451 = vld [vmem:[%s1 + $0xd40] sm:$0xff]
    %v452 = vld [vmem:[%s1 + $0xd48] sm:$0xff]
    %v453 = vld [vmem:[%s1 + $0xd50] sm:$0xff]
    %v454 = vld [vmem:[%s1 + $0xd58] sm:$0xff]
    %v455 = vld [vmem:[%s1 + $0xd60] sm:$0xff]
    %v456 = vld [vmem:[%s1 + $0xd68] sm:$0xff]
    %v457 = vld [vmem:[%s1 + $0xd70] sm:$0xff]
    %v458 = vld [vmem:[%s1 + $0xd78] sm:$0xff]
    %v459 = vld [vmem:[%s1 + $0xd80] sm:$0xff]
    %v460 = vld [vmem:[%s1 + $0xd88] sm:$0xff]
    %v461 = vld [vmem:[%s1 + $0xd90] sm:$0xff]
    %v462 = vld [vmem:[%s1 + $0xd98] sm:$0xff]
    %v463 = vld [vmem:[%s1 + $0xda0] sm:$0xff]
    %v464 = vld [vmem:[%s1 + $0xda8] sm:$0xff]
    %v465 = vld [vmem:[%s1 + $0xdb0] sm:$0xff]
    %v466 = vld [vmem:[%s1 + $0xdb8] sm:$0xff]
    %v467 = vld [vmem:[%s1 + $0xdc0] sm:$0xff]
    %v468 = vld [vmem:[%s1 + $0xdc8] sm:$0xff]
    %v469 = vld [vmem:[%s1 + $0xdd0] sm:$0xff]
    %v470 = vld [vmem:[%s1 + $0xdd8] sm:$0xff]
    %v471 = vld [vmem:[%s1 + $0xde0] sm:$0xff]
    %v472 = vld [vmem:[%s1 + $0xde8] sm:$0xff]
    %v473 = vld [vmem:[%s1 + $0xdf0] sm:$0xff]
    %v474 = vld [vmem:[%s1 + $0xdf8] sm:$0xff]
    %v475 = vld [vmem:[%s1 + $0xe00] sm:$0xff]
    %v476 = vld [vmem:[%s1 + $0xe08] sm:$0xff]
    %v477 = vld [vmem:[%s1 + $0xe10] sm:$0xff]
    %v478 = vld [vmem:[%s1 + $0xe18] sm:$0xff]
    %v479 = vld [vmem:[%s1 + $0xe20] sm:$0xff]
    %v480 = vld [vmem:[%s1 + $0xe28] sm:$0xff]
    %v481 = vld [vmem:[%s1 + $0xe30] sm:$0xff]
    %v482 = vld [vmem:[%s1 + $0xe38] sm:$0xff]
    %v483 = vld [vmem:[%s1 + $0xe40] sm:$0xff]
    %v484 = vld [vmem:[%s1 + $0xe48] sm:$0xff]
    %v485 = vld [vmem:[%s1 + $0xe50] sm:$0xff]
    %v486 = vld [vmem:[%s1 + $0xe58] sm:$0xff]
    %v487 = vld [vmem:[%s1 + $0xe60] sm:$0xff]
    %v488 = vld [vmem:[%s1 + $0xe68] sm:$0xff]
    %v489 = vld [vmem:[%s1 + $0xe70] sm:$0xff]
    %v490 = vld [vmem:[%s1 + $0xe78] sm:$0xff]
    %v491 = vld [vmem:[%s1 + $0xe80] sm:$0xff]
    %v492 = vld [vmem:[%s1 + $0xe88] sm:$0xff]
    %v493 = vld [vmem:[%s1 + $0xe90] sm:$0xff]
    %v494 = vld [vmem:[%s1 + $0xe98] sm:$0xff]
    %v495 = vld [vmem:[%s1 + $0xea0] sm:$0xff]
    %v496 = vld [vmem:[%s1 + $0xea8] sm:$0xff]
    %v497 = vld [vmem:[%s1 + $0xeb0] sm:$0xff]
    %v498 = vld [vmem:[%s1 + $0xeb8] sm:$0xff]
    %v499 = vld [vmem:[%s1 + $0xec0] sm:$0xff]
    %v500 = vld [vmem:[%s1 + $0xec8] sm:$0xff]
    %v501 = vld [vmem:[%s1 + $0xed0] sm:$0xff]
    %v502 = vld [vmem:[%s1 + $0xed8] sm:$0xff]
    %v503 = vld [vmem:[%s1 + $0xee0] sm:$0xff]
    %v504 = vld [vmem:[%s1 + $0xee8] sm:$0xff]
    %v505 = vld [vmem:[%s1 + $0xef0] sm:$0xff]
    %v506 = vld [vmem:[%s1 + $0xef8] sm:$0xff]
    %v507 = vld [vmem:[%s1 + $0xf00] sm:$0xff]
    %v508 = vld [vmem:[%s1 + $0xf08] sm:$0xff]
    %v509 = vld [vmem:[%s1 + $0xf10] sm:$0xff]
    %v510 = vld [vmem:[%s1 + $0xf18] sm:$0xff]
    %v511 = vld [vmem:[%s1 + $0xf20] sm:$0xff]
    %v512 = vld [vmem:[%s1 + $0xf28] sm:$0xff]
    %v513 = vld [vmem:[%s1 + $0xf30] sm:$0xff]
    %v514 = vld [vmem:[%s1 + $0xf38] sm:$0xff]
    %v515 = vld [vmem:[%s1 + $0xf40] sm:$0xff]
    %v516 = vld [vmem:[%s1 + $0xf48] sm:$0xff]
    %v517 = vld [vmem:[%s1 + $0xf50] sm:$0xff]
    %v518 = vld [vmem:[%s1 + $0xf58] sm:$0xff]
    %v519 = vld [vmem:[%s1 + $0xf60] sm:$0xff]
    %v520 = vld [vmem:[%s1 + $0xf68] sm:$0xff]
    %v521 = vld [vmem:[%s1 + $0xf70] sm:$0xff]
    %v522 = vld [vmem:[%s1 + $0xf78] sm:$0xff]
    %v523 = vld [vmem:[%s1 + $0xf80] sm:$0xff]
    %v524 = vld [vmem:[%s1 + $0xf88] sm:$0xff]
    %v525 = vld [vmem:[%s1 + $0xf90] sm:$0xff]
    %v526 = vld [vmem:[%s1 + $0xf98] sm:$0xff]
    %v527 = vld [vmem:[%s1 + $0xfa0] sm:$0xff]
    %v528 = vld [vmem:[%s1 + $0xfa8] sm:$0xff]
    %v529 = vld [vmem:[%s1 + $0xfb0] sm:$0xff]
    %v530 = vld [vmem:[%s1 + $0xfb8] sm:$0xff]
    %v531 = vld [vmem:[%s1 + $0xfc0] sm:$0xff]
    %v532 = vld [vmem:[%s1 + $0xfc8] sm:$0xff]
    %v533 = vld [vmem:[%s1 + $0xfd0] sm:$0xff]
    %v534 = vld [vmem:[%s1 + $0xfd8] sm:$0xff]
    %v535 = vld [vmem:[%s1 + $0xfe0] sm:$0xff]
    %v536 = vld [vmem:[%s1 + $0xfe8] sm:$0xff]
    %v537 = vld [vmem:[%s1 + $0xff0] sm:$0xff]
    %v538 = vld [vmem:[%s1 + $0xff8] sm:$0xff]
    %v539 = vld [vmem:[%s1 + $0x1000] sm:$0xff]
    %v540 = vld [vmem:[%s1 + $0x1008] sm:$0xff]
    %v541 = vld [vmem:[%s1 + $0x1010] sm:$0xff]
    %v542 = vld [vmem:[%s1 + $0x1018] sm:$0xff]
    %v543 = vld [vmem:[%s1 + $0x1020] sm:$0xff]
    %v544 = vld [vmem:[%s1 + $0x1028] sm:$0xff]
    %v545 = vld [vmem:[%s1 + $0x1030] sm:$0xff]
    %v546 = vld [vmem:[%s1 + $0x1038] sm:$0xff]
    %v547 = vld [vmem:[%s1 + $0x1040] sm:$0xff]
    %v548 = vld [vmem:[%s1 + $0x1048] sm:$0xff]
    %v549 = vld [vmem:[%s1 + $0x1050] sm:$0xff]
    %v550 = vld [vmem:[%s1 + $0x1058] sm:$0xff]
    %v551 = vld [vmem:[%s1 + $0x1060] sm:$0xff]
    %v552 = vld [vmem:[%s1 + $0x1068] sm:$0xff]
    %v553 = vld [vmem:[%s1 + $0x1070] sm:$0xff]
    %v554 = vld [vmem:[%s1 + $0x1078] sm:$0xff]
    %v555 = vld [vmem:[%s1 + $0x1080] sm:$0xff]
    %v556 = vld [vmem:[%s1 + $0x1088] sm:$0xff]
    %v557 = vld [vmem:[%s1 + $0x1090] sm:$0xff]
    %v558 = vld [vmem:[%s1 + $0x1098] sm:$0xff]
    %v559 = vld [vmem:[%s1 + $0x10a0] sm:$0xff]
    %v560 = vld [vmem:[%s1 + $0x10a8] sm:$0xff]
    %v561 = vld [vmem:[%s1 + $0x10b0] sm:$0xff]
    %v562 = vld [vmem:[%s1 + $0x10b8] sm:$0xff]
    %v563 = vld [vmem:[%s1 + $0x10c0] sm:$0xff]
    %v564 = vld [vmem:[%s1 + $0x10c8] sm:$0xff]
    %v565 = vld [vmem:[%s1 + $0x10d0] sm:$0xff]
    %v566 = vld [vmem:[%s1 + $0x10d8] sm:$0xff]
    %v567 = vld [vmem:[%s1 + $0x10e0] sm:$0xff]
    %v568 = vld [vmem:[%s1 + $0x10e8] sm:$0xff]
    %v569 = vld [vmem:[%s1 + $0x10f0] sm:$0xff]
    %v570 = vld [vmem:[%s1 + $0x10f8] sm:$0xff]
    %v571 = vld [vmem:[%s1 + $0x1100] sm:$0xff]
    %v572 = vld [vmem:[%s1 + $0x1108] sm:$0xff]
    %v573 = vld [vmem:[%s1 + $0x1110] sm:$0xff]
    %v574 = vld [vmem:[%s1 + $0x1118] sm:$0xff]
    %v575 = vld [vmem:[%s1 + $0x1120] sm:$0xff]
    %v576 = vld [vmem:[%s1 + $0x1128] sm:$0xff]
    %v577 = vld [vmem:[%s1 + $0x1130] sm:$0xff]
    %v578 = vld [vmem:[%s1 + $0x1138] sm:$0xff]
    %v579 = vld [vmem:[%s1 + $0x1140] sm:$0xff]
    %v580 = vld [vmem:[%s1 + $0x1148] sm:$0xff]
    %v581 = vld [vmem:[%s1 + $0x1150] sm:$0xff]
    %v582 = vld [vmem:[%s1 + $0x1158] sm:$0xff]
    %v583 = vld [vmem:[%s1 + $0x1160] sm:$0xff]
    %v584 = vld [vmem:[%s1 + $0x1168] sm:$0xff]
    %v585 = vld [vmem:[%s1 + $0x1170] sm:$0xff]
    %v586 = vld [vmem:[%s1 + $0x1178] sm:$0xff]
    %v587 = vld [vmem:[%s1 + $0x1180] sm:$0xff]
    %v588 = vld [vmem:[%s1 + $0x1188] sm:$0xff]
    %v589 = vld [vmem:[%s1 + $0x1190] sm:$0xff]
    %v590 = vld [vmem:[%s1 + $0x1198] sm:$0xff]
    %v591 = vld [vmem:[%s1 + $0x11a0] sm:$0xff]
    %v592 = vld [vmem:[%s1 + $0x11a8] sm:$0xff]
    %v593 = vld [vmem:[%s1 + $0x11b0] sm:$0xff]
    %v594 = vld [vmem:[%s1 + $0x11b8] sm:$0xff]
    %v595 = vld [vmem:[%s1 + $0x11c0] sm:$0xff]
    %v596 = vld [vmem:[%s1 + $0x11c8] sm:$0xff]
    %v597 = vld [vmem:[%s1 + $0x11d0] sm:$0xff]
    %v598 = vld [vmem:[%s1 + $0x11d8] sm:$0xff]
    %v599 = vld [vmem:[%s1 + $0x11e0] sm:$0xff]
    %v600 = vld [vmem:[%s1 + $0x11e8] sm:$0xff]
    %v601 = vld [vmem:[%s1 + $0x11f0] sm:$0xff]
    %v602 = vld [vmem:[%s1 + $0x11f8] sm:$0xff]
    %v603 = vld [vmem:[%s2] sm:$0x3]
    %v605 = vlaneseq
    %v606 = vshrl.u32 %v605, 7
    %v607 = vsub.s32 0, %v606
    %v608 = vrot.slane %v603, %v607
    %v609 = vlaneseq
    %v610 = vshrl.u32 %v609, 7
    %v611 = vsub.s32 1, %v610
    %v612 = vrot.slane %v603, %v611
    %v620 = vcombine.high %v22, %v22
    %v622 = vunpack.c.l.s4 1966171168
    %v623 = vunpack.c.0.s8 %v622
    %v624 = vlaneseq
    %v625 = vshrl.u32 %v624, 7
    %v626 = vsub.s32 %v623, %v625
    %v627 = vrot.slane %v22, %v626
    %v629 = vunpack.c.l.s4 1966171168
    %v630 = vunpack.c.0.s8 %v629
    %v631 = vlaneseq
    %v632 = vshrl.u32 %v631, 7
    %v633 = vsub.s32 %v630, %v632
    %v634 = vrot.slane %v620, %v633
    %v635 = vcombine.high %v627, %v627
    %v636 = vcombine.high %v634, %v634
    %v638 = vunpack.c.l.s4 1966171168
    %v639 = vunpack.c.0.s8 %v638
    %v640 = vlaneseq
    %v641 = vshrl.u32 %v640, 7
    %v642 = vsub.s32 %v639, %v641
    %v643 = vrot.slane %v627, %v642
    %v645 = vunpack.c.l.s4 1966171168
    %v646 = vunpack.c.0.s8 %v645
    %v647 = vlaneseq
    %v648 = vshrl.u32 %v647, 7
    %v649 = vsub.s32 %v646, %v648
    %v650 = vrot.slane %v634, %v649
    %v652 = vunpack.c.l.s4 1966171168
    %v653 = vunpack.c.0.s8 %v652
    %v654 = vlaneseq
    %v655 = vshrl.u32 %v654, 7
    %v656 = vsub.s32 %v653, %v655
    %v657 = vrot.slane %v635, %v656
    %v659 = vunpack.c.l.s4 1966171168
    %v660 = vunpack.c.0.s8 %v659
    %v661 = vlaneseq
    %v662 = vshrl.u32 %v661, 7
    %v663 = vsub.s32 %v660, %v662
    %v664 = vrot.slane %v636, %v663
    %v665 = vcombine.high %v643, %v643
    %v666 = vcombine.high %v650, %v650
    %v667 = vcombine.high %v657, %v657
    %v668 = vcombine.high %v664, %v664
    %v669 = vcombine.high %v23, %v23
    %v671 = vunpack.c.l.s4 1966171168
    %v672 = vunpack.c.0.s8 %v671
    %v673 = vlaneseq
    %v674 = vshrl.u32 %v673, 7
    %v675 = vsub.s32 %v672, %v674
    %v676 = vrot.slane %v23, %v675
    %v678 = vunpack.c.l.s4 1966171168
    %v679 = vunpack.c.0.s8 %v678
    %v680 = vlaneseq
    %v681 = vshrl.u32 %v680, 7
    %v682 = vsub.s32 %v679, %v681
    %v683 = vrot.slane %v669, %v682
    %v684 = vcombine.high %v676, %v676
    %v685 = vcombine.high %v683, %v683
    %v687 = vunpack.c.l.s4 1966171168
    %v688 = vunpack.c.0.s8 %v687
    %v689 = vlaneseq
    %v690 = vshrl.u32 %v689, 7
    %v691 = vsub.s32 %v688, %v690
    %v692 = vrot.slane %v676, %v691
    %v694 = vunpack.c.l.s4 1966171168
    %v695 = vunpack.c.0.s8 %v694
    %v696 = vlaneseq
    %v697 = vshrl.u32 %v696, 7
    %v698 = vsub.s32 %v695, %v697
    %v699 = vrot.slane %v683, %v698
    %v701 = vunpack.c.l.s4 1966171168
    %v702 = vunpack.c.0.s8 %v701
    %v703 = vlaneseq
    %v704 = vshrl.u32 %v703, 7
    %v705 = vsub.s32 %v702, %v704
    %v706 = vrot.slane %v684, %v705
    %v708 = vunpack.c.l.s4 1966171168
    %v709 = vunpack.c.0.s8 %v708
    %v710 = vlaneseq
    %v711 = vshrl.u32 %v710, 7
    %v712 = vsub.s32 %v709, %v711
    %v713 = vrot.slane %v685, %v712
    %v714 = vcombine.high %v692, %v692
    %v715 = vcombine.high %v699, %v699
    %v716 = vcombine.high %v706, %v706
    %v717 = vcombine.high %v713, %v713
    %v718 = vcombine.high %v24, %v24
    %v720 = vunpack.c.l.s4 1966171168
    %v721 = vunpack.c.0.s8 %v720
    %v722 = vlaneseq
    %v723 = vshrl.u32 %v722, 7
    %v724 = vsub.s32 %v721, %v723
    %v725 = vrot.slane %v24, %v724
    %v727 = vunpack.c.l.s4 1966171168
    %v728 = vunpack.c.0.s8 %v727
    %v729 = vlaneseq
    %v730 = vshrl.u32 %v729, 7
    %v731 = vsub.s32 %v728, %v730
    %v732 = vrot.slane %v718, %v731
    %v733 = vcombine.high %v725, %v725
    %v734 = vcombine.high %v732, %v732
    %v736 = vunpack.c.l.s4 1966171168
    %v737 = vunpack.c.0.s8 %v736
    %v738 = vlaneseq
    %v739 = vshrl.u32 %v738, 7
    %v740 = vsub.s32 %v737, %v739
    %v741 = vrot.slane %v725, %v740
    %v743 = vunpack.c.l.s4 1966171168
    %v744 = vunpack.c.0.s8 %v743
    %v745 = vlaneseq
    %v746 = vshrl.u32 %v745, 7
    %v747 = vsub.s32 %v744, %v746
    %v748 = vrot.slane %v732, %v747
    %v750 = vunpack.c.l.s4 1966171168
    %v751 = vunpack.c.0.s8 %v750
    %v752 = vlaneseq
    %v753 = vshrl.u32 %v752, 7
    %v754 = vsub.s32 %v751, %v753
    %v755 = vrot.slane %v733, %v754
    %v757 = vunpack.c.l.s4 1966171168
    %v758 = vunpack.c.0.s8 %v757
    %v759 = vlaneseq
    %v760 = vshrl.u32 %v759, 7
    %v761 = vsub.s32 %v758, %v760
    %v762 = vrot.slane %v734, %v761
    %v763 = vcombine.high %v741, %v741
    %v764 = vcombine.high %v748, %v748
    %v765 = vcombine.high %v755, %v755
    %v766 = vcombine.high %v762, %v762
    %v767 = vcombine.high %v25, %v25
    %v769 = vunpack.c.l.s4 1966171168
    %v770 = vunpack.c.0.s8 %v769
    %v771 = vlaneseq
    %v772 = vshrl.u32 %v771, 7
    %v773 = vsub.s32 %v770, %v772
    %v774 = vrot.slane %v25, %v773
    %v776 = vunpack.c.l.s4 1966171168
    %v777 = vunpack.c.0.s8 %v776
    %v778 = vlaneseq
    %v779 = vshrl.u32 %v778, 7
    %v780 = vsub.s32 %v777, %v779
    %v781 = vrot.slane %v767, %v780
    %v782 = vcombine.high %v774, %v774
    %v783 = vcombine.high %v781, %v781
    %v785 = vunpack.c.l.s4 1966171168
    %v786 = vunpack.c.0.s8 %v785
    %v787 = vlaneseq
    %v788 = vshrl.u32 %v787, 7
    %v789 = vsub.s32 %v786, %v788
    %v790 = vrot.slane %v774, %v789
    %v792 = vunpack.c.l.s4 1966171168
    %v793 = vunpack.c.0.s8 %v792
    %v794 = vlaneseq
    %v795 = vshrl.u32 %v794, 7
    %v796 = vsub.s32 %v793, %v795
    %v797 = vrot.slane %v781, %v796
    %v799 = vunpack.c.l.s4 1966171168
    %v800 = vunpack.c.0.s8 %v799
    %v801 = vlaneseq
    %v802 = vshrl.u32 %v801, 7
    %v803 = vsub.s32 %v800, %v802
    %v804 = vrot.slane %v782, %v803
    %v806 = vunpack.c.l.s4 1966171168
    %v807 = vunpack.c.0.s8 %v806
    %v808 = vlaneseq
    %v809 = vshrl.u32 %v808, 7
    %v810 = vsub.s32 %v807, %v809
    %v811 = vrot.slane %v783, %v810
    %v812 = vcombine.high %v790, %v790
    %v813 = vcombine.high %v797, %v797
    %v814 = vcombine.high %v804, %v804
    %v815 = vcombine.high %v811, %v811
    %v817 = vunpack.c.l.s4 1966171168
    %v818 = vunpack.c.0.s8 %v817
    %v819 = vlaneseq
    %v820 = vshrl.u32 %v819, 7
    %v821 = vsub.s32 %v818, %v820
    %v822 = vrot.slane %v26, %v821
    %v823 = vcombine.high %v822, %v822
    %v825 = vunpack.c.l.s4 1966171168
    %v826 = vunpack.c.0.s8 %v825
    %v827 = vlaneseq
    %v828 = vshrl.u32 %v827, 7
    %v829 = vsub.s32 %v826, %v828
    %v830 = vrot.slane %v822, %v829
    %v832 = vunpack.c.l.s4 1966171168
    %v833 = vunpack.c.0.s8 %v832
    %v834 = vlaneseq
    %v835 = vshrl.u32 %v834, 7
    %v836 = vsub.s32 %v833, %v835
    %v837 = vrot.slane %v823, %v836
    %v838 = vcombine.high %v830, %v830
    %v839 = vcombine.high %v837, %v837
    %v1452 = vunpack.c.l.b16 %v27
    %v1453 = vunpack.c.h.b16 %v27
    %v1454 = vunpack.c.l.b16 %v28
    %v1455 = vunpack.c.h.b16 %v28
    %v1456 = vunpack.c.l.b16 %v29
    %v1457 = vunpack.c.h.b16 %v29
    %v1458 = vunpack.c.l.b16 %v30
    %v1459 = vunpack.c.h.b16 %v30
    %v1460 = vunpack.c.l.b16 %v31
    %v1461 = vunpack.c.h.b16 %v31
    %v1462 = vunpack.c.l.b16 %v32
    %v1463 = vunpack.c.h.b16 %v32
    %v1464 = vunpack.c.l.b16 %v33
    %v1465 = vunpack.c.h.b16 %v33
    %v1466 = vunpack.c.l.b16 %v34
    %v1467 = vunpack.c.h.b16 %v34
    %v1468 = vunpack.c.l.b16 %v35
    %v1469 = vunpack.c.h.b16 %v35
    %v1470 = vunpack.c.l.b16 %v36
    %v1471 = vunpack.c.h.b16 %v36
    %v1472 = vunpack.c.l.b16 %v37
    %v1473 = vunpack.c.h.b16 %v37
    %v1474 = vunpack.c.l.b16 %v38
    %v1475 = vunpack.c.h.b16 %v38
    %v1476 = vunpack.c.l.b16 %v39
    %v1477 = vunpack.c.h.b16 %v39
    %v1478 = vunpack.c.l.b16 %v40
    %v1479 = vunpack.c.h.b16 %v40
    %v1480 = vunpack.c.l.b16 %v41
    %v1481 = vunpack.c.h.b16 %v41
    %v1482 = vunpack.c.l.b16 %v42
    %v1483 = vunpack.c.h.b16 %v42
    %v1484 = vunpack.c.l.b16 %v43
    %v1485 = vunpack.c.h.b16 %v43
    %v1486 = vunpack.c.l.b16 %v44
    %v1487 = vunpack.c.h.b16 %v44
    %v1488 = vunpack.c.l.b16 %v45
    %v1489 = vunpack.c.h.b16 %v45
    %v1490 = vunpack.c.l.b16 %v46
    %v1491 = vunpack.c.h.b16 %v46
    %v1492 = vunpack.c.l.b16 %v47
    %v1493 = vunpack.c.h.b16 %v47
    %v1494 = vunpack.c.l.b16 %v48
    %v1495 = vunpack.c.h.b16 %v48
    %v1496 = vunpack.c.l.b16 %v49
    %v1497 = vunpack.c.h.b16 %v49
    %v1498 = vunpack.c.l.b16 %v50
    %v1499 = vunpack.c.h.b16 %v50
    %v1500 = vunpack.c.l.b16 %v51
    %v1501 = vunpack.c.h.b16 %v51
    %v1502 = vunpack.c.l.b16 %v52
    %v1503 = vunpack.c.h.b16 %v52
    %v1504 = vunpack.c.l.b16 %v53
    %v1505 = vunpack.c.h.b16 %v53
    %v1506 = vunpack.c.l.b16 %v54
    %v1507 = vunpack.c.h.b16 %v54
    %v1508 = vunpack.c.l.b16 %v55
    %v1509 = vunpack.c.h.b16 %v55
    %v1510 = vunpack.c.l.b16 %v56
    %v1511 = vunpack.c.h.b16 %v56
    %v1512 = vunpack.c.l.b16 %v57
    %v1513 = vunpack.c.h.b16 %v57
    %v1514 = vunpack.c.l.b16 %v58
    %v1515 = vunpack.c.h.b16 %v58
    %v1516 = vunpack.c.l.b16 %v59
    %v1517 = vunpack.c.h.b16 %v59
    %v1518 = vunpack.c.l.b16 %v60
    %v1519 = vunpack.c.h.b16 %v60
    %v1520 = vunpack.c.l.b16 %v61
    %v1521 = vunpack.c.h.b16 %v61
    %v1522 = vunpack.c.l.b16 %v62
    %v1523 = vunpack.c.h.b16 %v62
    %v1524 = vunpack.c.l.b16 %v63
    %v1525 = vunpack.c.h.b16 %v63
    %v1526 = vunpack.c.l.b16 %v64
    %v1527 = vunpack.c.h.b16 %v64
    %v1528 = vunpack.c.l.b16 %v65
    %v1529 = vunpack.c.h.b16 %v65
    %v1530 = vunpack.c.l.b16 %v66
    %v1531 = vunpack.c.h.b16 %v66
    %v1532 = vunpack.c.l.b16 %v67
    %v1533 = vunpack.c.h.b16 %v67
    %v1534 = vunpack.c.l.b16 %v68
    %v1535 = vunpack.c.h.b16 %v68
    %v1536 = vunpack.c.l.b16 %v69
    %v1537 = vunpack.c.h.b16 %v69
    %v1538 = vunpack.c.l.b16 %v70
    %v1539 = vunpack.c.h.b16 %v70
    %v1540 = vunpack.c.l.b16 %v71
    %v1541 = vunpack.c.h.b16 %v71
    %v1542 = vunpack.c.l.b16 %v72
    %v1543 = vunpack.c.h.b16 %v72
    %v1544 = vunpack.c.l.b16 %v73
    %v1545 = vunpack.c.h.b16 %v73
    %v1546 = vunpack.c.l.b16 %v74
    %v1547 = vunpack.c.h.b16 %v74
    %v1548 = vunpack.c.l.b16 %v75
    %v1549 = vunpack.c.h.b16 %v75
    %v1550 = vunpack.c.l.b16 %v76
    %v1551 = vunpack.c.h.b16 %v76
    %v1552 = vunpack.c.l.b16 %v77
    %v1553 = vunpack.c.h.b16 %v77
    %v1554 = vunpack.c.l.b16 %v78
    %v1555 = vunpack.c.h.b16 %v78
    %v1556 = vunpack.c.l.b16 %v79
    %v1557 = vunpack.c.h.b16 %v79
    %v1558 = vunpack.c.l.b16 %v80
    %v1559 = vunpack.c.h.b16 %v80
    %v1560 = vunpack.c.l.b16 %v81
    %v1561 = vunpack.c.h.b16 %v81
    %v1562 = vunpack.c.l.b16 %v82
    %v1563 = vunpack.c.h.b16 %v82
    %v1564 = vunpack.c.l.b16 %v83
    %v1565 = vunpack.c.h.b16 %v83
    %v1566 = vunpack.c.l.b16 %v84
    %v1567 = vunpack.c.h.b16 %v84
    %v1568 = vunpack.c.l.b16 %v85
    %v1569 = vunpack.c.h.b16 %v85
    %v1570 = vunpack.c.l.b16 %v86
    %v1571 = vunpack.c.h.b16 %v86
    %v1572 = vunpack.c.l.b16 %v87
    %v1573 = vunpack.c.h.b16 %v87
    %v1574 = vunpack.c.l.b16 %v88
    %v1575 = vunpack.c.h.b16 %v88
    %v1576 = vunpack.c.l.b16 %v89
    %v1577 = vunpack.c.h.b16 %v89
    %v1578 = vunpack.c.l.b16 %v90
    %v1579 = vunpack.c.h.b16 %v90
    %v1580 = vunpack.c.l.b16 %v91
    %v1581 = vunpack.c.h.b16 %v91
    %v1582 = vunpack.c.l.b16 %v92
    %v1583 = vunpack.c.h.b16 %v92
    %v1584 = vunpack.c.l.b16 %v93
    %v1585 = vunpack.c.h.b16 %v93
    %v1586 = vunpack.c.l.b16 %v94
    %v1587 = vunpack.c.h.b16 %v94
    %v1588 = vunpack.c.l.b16 %v95
    %v1589 = vunpack.c.h.b16 %v95
    %v1590 = vunpack.c.l.b16 %v96
    %v1591 = vunpack.c.h.b16 %v96
    %v1592 = vunpack.c.l.b16 %v97
    %v1593 = vunpack.c.h.b16 %v97
    %v1594 = vunpack.c.l.b16 %v98
    %v1595 = vunpack.c.h.b16 %v98
    %v1596 = vunpack.c.l.b16 %v99
    %v1597 = vunpack.c.h.b16 %v99
    %v1598 = vunpack.c.l.b16 %v100
    %v1599 = vunpack.c.h.b16 %v100
    %v1600 = vunpack.c.l.b16 %v101
    %v1601 = vunpack.c.h.b16 %v101
    %v1602 = vunpack.c.l.b16 %v102
    %v1603 = vunpack.c.h.b16 %v102
    %v1604 = vunpack.c.l.b16 %v103
    %v1605 = vunpack.c.h.b16 %v103
    %v1606 = vunpack.c.l.b16 %v104
    %v1607 = vunpack.c.h.b16 %v104
    %v1608 = vunpack.c.l.b16 %v105
    %v1609 = vunpack.c.h.b16 %v105
    %v1610 = vunpack.c.l.b16 %v106
    %v1611 = vunpack.c.h.b16 %v106
    %v1612 = vunpack.c.l.b16 %v107
    %v1613 = vunpack.c.h.b16 %v107
    %v1614 = vunpack.c.l.b16 %v108
    %v1615 = vunpack.c.h.b16 %v108
    %v1616 = vunpack.c.l.b16 %v109
    %v1617 = vunpack.c.h.b16 %v109
    %v1618 = vunpack.c.l.b16 %v110
    %v1619 = vunpack.c.h.b16 %v110
    %v1620 = vunpack.c.l.b16 %v111
    %v1621 = vunpack.c.h.b16 %v111
    %v1622 = vunpack.c.l.b16 %v112
    %v1623 = vunpack.c.h.b16 %v112
    %v1624 = vunpack.c.l.b16 %v113
    %v1625 = vunpack.c.h.b16 %v113
    %v1626 = vunpack.c.l.b16 %v114
    %v1627 = vunpack.c.h.b16 %v114
    %v1628 = vunpack.c.l.b16 %v115
    %v1629 = vunpack.c.h.b16 %v115
    %v1630 = vunpack.c.l.b16 %v116
    %v1631 = vunpack.c.h.b16 %v116
    %v1632 = vunpack.c.l.b16 %v117
    %v1633 = vunpack.c.h.b16 %v117
    %v1634 = vunpack.c.l.b16 %v118
    %v1635 = vunpack.c.h.b16 %v118
    %v1636 = vunpack.c.l.b16 %v119
    %v1637 = vunpack.c.h.b16 %v119
    %v1638 = vunpack.c.l.b16 %v120
    %v1639 = vunpack.c.h.b16 %v120
    %v1640 = vunpack.c.l.b16 %v121
    %v1641 = vunpack.c.h.b16 %v121
    %v1642 = vunpack.c.l.b16 %v122
    %v1643 = vunpack.c.h.b16 %v122
    %v1644 = vunpack.c.l.b16 %v123
    %v1645 = vunpack.c.h.b16 %v123
    %v1646 = vunpack.c.l.b16 %v124
    %v1647 = vunpack.c.h.b16 %v124
    %v1648 = vunpack.c.l.b16 %v125
    %v1649 = vunpack.c.h.b16 %v125
    %v1650 = vunpack.c.l.b16 %v126
    %v1651 = vunpack.c.h.b16 %v126
    %v1652 = vunpack.c.l.b16 %v127
    %v1653 = vunpack.c.h.b16 %v127
    %v1654 = vunpack.c.l.b16 %v128
    %v1655 = vunpack.c.h.b16 %v128
    %v1656 = vunpack.c.l.b16 %v129
    %v1657 = vunpack.c.h.b16 %v129
    %v1658 = vunpack.c.l.b16 %v130
    %v1659 = vunpack.c.h.b16 %v130
    %v1660 = vunpack.c.l.b16 %v131
    %v1661 = vunpack.c.h.b16 %v131
    %v1662 = vunpack.c.l.b16 %v132
    %v1663 = vunpack.c.h.b16 %v132
    %v1664 = vunpack.c.l.b16 %v133
    %v1665 = vunpack.c.h.b16 %v133
    %v1666 = vunpack.c.l.b16 %v134
    %v1667 = vunpack.c.h.b16 %v134
    %v1668 = vunpack.c.l.b16 %v135
    %v1669 = vunpack.c.h.b16 %v135
    %v1670 = vunpack.c.l.b16 %v136
    %v1671 = vunpack.c.h.b16 %v136
    %v1672 = vunpack.c.l.b16 %v137
    %v1673 = vunpack.c.h.b16 %v137
    %v1674 = vunpack.c.l.b16 %v138
    %v1675 = vunpack.c.h.b16 %v138
    %v1676 = vunpack.c.l.b16 %v139
    %v1677 = vunpack.c.h.b16 %v139
    %v1678 = vunpack.c.l.b16 %v140
    %v1679 = vunpack.c.h.b16 %v140
    %v1680 = vunpack.c.l.b16 %v141
    %v1681 = vunpack.c.h.b16 %v141
    %v1682 = vunpack.c.l.b16 %v142
    %v1683 = vunpack.c.h.b16 %v142
    %v1684 = vunpack.c.l.b16 %v143
    %v1685 = vunpack.c.h.b16 %v143
    %v1686 = vunpack.c.l.b16 %v144
    %v1687 = vunpack.c.h.b16 %v144
    %v1688 = vunpack.c.l.b16 %v145
    %v1689 = vunpack.c.h.b16 %v145
    %v1690 = vunpack.c.l.b16 %v146
    %v1691 = vunpack.c.h.b16 %v146
    %v1692 = vunpack.c.l.b16 %v147
    %v1693 = vunpack.c.h.b16 %v147
    %v1694 = vunpack.c.l.b16 %v148
    %v1695 = vunpack.c.h.b16 %v148
    %v1696 = vunpack.c.l.b16 %v149
    %v1697 = vunpack.c.h.b16 %v149
    %v1698 = vunpack.c.l.b16 %v150
    %v1699 = vunpack.c.h.b16 %v150
    %v1700 = vunpack.c.l.b16 %v151
    %v1701 = vunpack.c.h.b16 %v151
    %v1702 = vunpack.c.l.b16 %v152
    %v1703 = vunpack.c.h.b16 %v152
    %v1704 = vunpack.c.l.b16 %v153
    %v1705 = vunpack.c.h.b16 %v153
    %v1706 = vunpack.c.l.b16 %v154
    %v1707 = vunpack.c.h.b16 %v154
    %v1708 = vunpack.c.l.b16 %v155
    %v1709 = vunpack.c.h.b16 %v155
    %v1710 = vunpack.c.l.b16 %v156
    %v1711 = vunpack.c.h.b16 %v156
    %v1712 = vunpack.c.l.b16 %v157
    %v1713 = vunpack.c.h.b16 %v157
    %v1714 = vunpack.c.l.b16 %v158
    %v1715 = vunpack.c.h.b16 %v158
    %v1716 = vunpack.c.l.b16 %v159
    %v1717 = vunpack.c.h.b16 %v159
    %v1718 = vunpack.c.l.b16 %v160
    %v1719 = vunpack.c.h.b16 %v160
    %v1720 = vunpack.c.l.b16 %v161
    %v1721 = vunpack.c.h.b16 %v161
    %v1722 = vunpack.c.l.b16 %v162
    %v1723 = vunpack.c.h.b16 %v162
    %v1724 = vunpack.c.l.b16 %v163
    %v1725 = vunpack.c.h.b16 %v163
    %v1726 = vunpack.c.l.b16 %v164
    %v1727 = vunpack.c.h.b16 %v164
    %v1728 = vunpack.c.l.b16 %v165
    %v1729 = vunpack.c.h.b16 %v165
    %v1730 = vunpack.c.l.b16 %v166
    %v1731 = vunpack.c.h.b16 %v166
    %v1732 = vunpack.c.l.b16 %v167
    %v1733 = vunpack.c.h.b16 %v167
    %v1734 = vunpack.c.l.b16 %v168
    %v1735 = vunpack.c.h.b16 %v168
    %v1736 = vunpack.c.l.b16 %v169
    %v1737 = vunpack.c.h.b16 %v169
    %v1738 = vunpack.c.l.b16 %v170
    %v1739 = vunpack.c.h.b16 %v170
    %v1740 = vunpack.c.l.b16 %v171
    %v1741 = vunpack.c.h.b16 %v171
    %v1742 = vunpack.c.l.b16 %v172
    %v1743 = vunpack.c.h.b16 %v172
    %v1744 = vunpack.c.l.b16 %v173
    %v1745 = vunpack.c.h.b16 %v173
    %v1746 = vunpack.c.l.b16 %v174
    %v1747 = vunpack.c.h.b16 %v174
    %v1748 = vunpack.c.l.b16 %v175
    %v1749 = vunpack.c.h.b16 %v175
    %v1750 = vunpack.c.l.b16 %v176
    %v1751 = vunpack.c.h.b16 %v176
    %v1752 = vunpack.c.l.b16 %v177
    %v1753 = vunpack.c.h.b16 %v177
    %v1754 = vunpack.c.l.b16 %v178
    %v1755 = vunpack.c.h.b16 %v178
    %v1756 = vunpack.c.l.b16 %v179
    %v1757 = vunpack.c.h.b16 %v179
    %v1758 = vunpack.c.l.b16 %v180
    %v1759 = vunpack.c.h.b16 %v180
    %v1760 = vunpack.c.l.b16 %v181
    %v1761 = vunpack.c.h.b16 %v181
    %v1762 = vunpack.c.l.b16 %v182
    %v1763 = vunpack.c.h.b16 %v182
    %v1764 = vunpack.c.l.b16 %v183
    %v1765 = vunpack.c.h.b16 %v183
    %v1766 = vunpack.c.l.b16 %v184
    %v1767 = vunpack.c.h.b16 %v184
    %v1768 = vunpack.c.l.b16 %v185
    %v1769 = vunpack.c.h.b16 %v185
    %v1770 = vunpack.c.l.b16 %v186
    %v1771 = vunpack.c.h.b16 %v186
    %v1772 = vunpack.c.l.b16 %v187
    %v1773 = vunpack.c.h.b16 %v187
    %v1774 = vunpack.c.l.b16 %v188
    %v1775 = vunpack.c.h.b16 %v188
    %v1776 = vunpack.c.l.b16 %v189
    %v1777 = vunpack.c.h.b16 %v189
    %v1778 = vunpack.c.l.b16 %v190
    %v1779 = vunpack.c.h.b16 %v190
    %v1780 = vunpack.c.l.b16 %v191
    %v1781 = vunpack.c.h.b16 %v191
    %v1782 = vunpack.c.l.b16 %v192
    %v1783 = vunpack.c.h.b16 %v192
    %v1784 = vunpack.c.l.b16 %v193
    %v1785 = vunpack.c.h.b16 %v193
    %v1786 = vunpack.c.l.b16 %v194
    %v1787 = vunpack.c.h.b16 %v194
    %v1788 = vunpack.c.l.b16 %v195
    %v1789 = vunpack.c.h.b16 %v195
    %v1790 = vunpack.c.l.b16 %v196
    %v1791 = vunpack.c.h.b16 %v196
    %v1792 = vunpack.c.l.b16 %v197
    %v1793 = vunpack.c.h.b16 %v197
    %v1794 = vunpack.c.l.b16 %v198
    %v1795 = vunpack.c.h.b16 %v198
    %v1796 = vunpack.c.l.b16 %v199
    %v1797 = vunpack.c.h.b16 %v199
    %v1798 = vunpack.c.l.b16 %v200
    %v1799 = vunpack.c.h.b16 %v200
    %v1800 = vunpack.c.l.b16 %v201
    %v1801 = vunpack.c.h.b16 %v201
    %v1802 = vunpack.c.l.b16 %v202
    %v1803 = vunpack.c.h.b16 %v202
    %v1804 = vunpack.c.l.b16 %v203
    %v1805 = vunpack.c.h.b16 %v203
    %v1806 = vunpack.c.l.b16 %v204
    %v1807 = vunpack.c.h.b16 %v204
    %v1808 = vunpack.c.l.b16 %v205
    %v1809 = vunpack.c.h.b16 %v205
    %v1810 = vunpack.c.l.b16 %v206
    %v1811 = vunpack.c.h.b16 %v206
    %v1812 = vunpack.c.l.b16 %v207
    %v1813 = vunpack.c.h.b16 %v207
    %v1814 = vunpack.c.l.b16 %v208
    %v1815 = vunpack.c.h.b16 %v208
    %v1816 = vunpack.c.l.b16 %v209
    %v1817 = vunpack.c.h.b16 %v209
    %v1818 = vunpack.c.l.b16 %v210
    %v1819 = vunpack.c.h.b16 %v210
    %v1820 = vunpack.c.l.b16 %v211
    %v1821 = vunpack.c.h.b16 %v211
    %v1822 = vunpack.c.l.b16 %v212
    %v1823 = vunpack.c.h.b16 %v212
    %v1824 = vunpack.c.l.b16 %v213
    %v1825 = vunpack.c.h.b16 %v213
    %v1826 = vunpack.c.l.b16 %v214
    %v1827 = vunpack.c.h.b16 %v214
    %v1828 = vunpack.c.l.b16 %v215
    %v1829 = vunpack.c.h.b16 %v215
    %v1830 = vunpack.c.l.b16 %v216
    %v1831 = vunpack.c.h.b16 %v216
    %v1832 = vunpack.c.l.b16 %v217
    %v1833 = vunpack.c.h.b16 %v217
    %v1834 = vunpack.c.l.b16 %v218
    %v1835 = vunpack.c.h.b16 %v218
    %v1836 = vunpack.c.l.b16 %v219
    %v1837 = vunpack.c.h.b16 %v219
    %v1838 = vunpack.c.l.b16 %v220
    %v1839 = vunpack.c.h.b16 %v220
    %v1840 = vunpack.c.l.b16 %v221
    %v1841 = vunpack.c.h.b16 %v221
    %v1842 = vunpack.c.l.b16 %v222
    %v1843 = vunpack.c.h.b16 %v222
    %v1844 = vunpack.c.l.b16 %v223
    %v1845 = vunpack.c.h.b16 %v223
    %v1846 = vunpack.c.l.b16 %v224
    %v1847 = vunpack.c.h.b16 %v224
    %v1848 = vunpack.c.l.b16 %v225
    %v1849 = vunpack.c.h.b16 %v225
    %v1850 = vunpack.c.l.b16 %v226
    %v1851 = vunpack.c.h.b16 %v226
    %v1852 = vunpack.c.l.b16 %v227
    %v1853 = vunpack.c.h.b16 %v227
    %v1854 = vunpack.c.l.b16 %v228
    %v1855 = vunpack.c.h.b16 %v228
    %v1856 = vunpack.c.l.b16 %v229
    %v1857 = vunpack.c.h.b16 %v229
    %v1858 = vunpack.c.l.b16 %v230
    %v1859 = vunpack.c.h.b16 %v230
    %v1860 = vunpack.c.l.b16 %v231
    %v1861 = vunpack.c.h.b16 %v231
    %v1862 = vunpack.c.l.b16 %v232
    %v1863 = vunpack.c.h.b16 %v232
    %v1864 = vunpack.c.l.b16 %v233
    %v1865 = vunpack.c.h.b16 %v233
    %v1866 = vunpack.c.l.b16 %v234
    %v1867 = vunpack.c.h.b16 %v234
    %v1868 = vunpack.c.l.b16 %v235
    %v1869 = vunpack.c.h.b16 %v235
    %v1870 = vunpack.c.l.b16 %v236
    %v1871 = vunpack.c.h.b16 %v236
    %v1872 = vunpack.c.l.b16 %v237
    %v1873 = vunpack.c.h.b16 %v237
    %v1874 = vunpack.c.l.b16 %v238
    %v1875 = vunpack.c.h.b16 %v238
    %v1876 = vunpack.c.l.b16 %v239
    %v1877 = vunpack.c.h.b16 %v239
    %v1878 = vunpack.c.l.b16 %v240
    %v1879 = vunpack.c.h.b16 %v240
    %v1880 = vunpack.c.l.b16 %v241
    %v1881 = vunpack.c.h.b16 %v241
    %v1882 = vunpack.c.l.b16 %v242
    %v1883 = vunpack.c.h.b16 %v242
    %v1884 = vunpack.c.l.b16 %v243
    %v1885 = vunpack.c.h.b16 %v243
    %v1886 = vunpack.c.l.b16 %v244
    %v1887 = vunpack.c.h.b16 %v244
    %v1888 = vunpack.c.l.b16 %v245
    %v1889 = vunpack.c.h.b16 %v245
    %v1890 = vunpack.c.l.b16 %v246
    %v1891 = vunpack.c.h.b16 %v246
    %v1892 = vunpack.c.l.b16 %v247
    %v1893 = vunpack.c.h.b16 %v247
    %v1894 = vunpack.c.l.b16 %v248
    %v1895 = vunpack.c.h.b16 %v248
    %v1896 = vunpack.c.l.b16 %v249
    %v1897 = vunpack.c.h.b16 %v249
    %v1898 = vunpack.c.l.b16 %v250
    %v1899 = vunpack.c.h.b16 %v250
    %v1900 = vunpack.c.l.b16 %v251
    %v1901 = vunpack.c.h.b16 %v251
    %v1902 = vunpack.c.l.b16 %v252
    %v1903 = vunpack.c.h.b16 %v252
    %v1904 = vunpack.c.l.b16 %v253
    %v1905 = vunpack.c.h.b16 %v253
    %v1906 = vunpack.c.l.b16 %v254
    %v1907 = vunpack.c.h.b16 %v254
    %v1908 = vunpack.c.l.b16 %v255
    %v1909 = vunpack.c.h.b16 %v255
    %v1910 = vunpack.c.l.b16 %v256
    %v1911 = vunpack.c.h.b16 %v256
    %v1912 = vunpack.c.l.b16 %v257
    %v1913 = vunpack.c.h.b16 %v257
    %v1914 = vunpack.c.l.b16 %v258
    %v1915 = vunpack.c.h.b16 %v258
    %v1916 = vunpack.c.l.b16 %v259
    %v1917 = vunpack.c.h.b16 %v259
    %v1918 = vunpack.c.l.b16 %v260
    %v1919 = vunpack.c.h.b16 %v260
    %v1920 = vunpack.c.l.b16 %v261
    %v1921 = vunpack.c.h.b16 %v261
    %v1922 = vunpack.c.l.b16 %v262
    %v1923 = vunpack.c.h.b16 %v262
    %v1924 = vunpack.c.l.b16 %v263
    %v1925 = vunpack.c.h.b16 %v263
    %v1926 = vunpack.c.l.b16 %v264
    %v1927 = vunpack.c.h.b16 %v264
    %v1928 = vunpack.c.l.b16 %v265
    %v1929 = vunpack.c.h.b16 %v265
    %v1930 = vunpack.c.l.b16 %v266
    %v1931 = vunpack.c.h.b16 %v266
    %v1932 = vunpack.c.l.b16 %v267
    %v1933 = vunpack.c.h.b16 %v267
    %v1934 = vunpack.c.l.b16 %v268
    %v1935 = vunpack.c.h.b16 %v268
    %v1936 = vunpack.c.l.b16 %v269
    %v1937 = vunpack.c.h.b16 %v269
    %v1938 = vunpack.c.l.b16 %v270
    %v1939 = vunpack.c.h.b16 %v270
    %v1940 = vunpack.c.l.b16 %v271
    %v1941 = vunpack.c.h.b16 %v271
    %v1942 = vunpack.c.l.b16 %v272
    %v1943 = vunpack.c.h.b16 %v272
    %v1944 = vunpack.c.l.b16 %v273
    %v1945 = vunpack.c.h.b16 %v273
    %v1946 = vunpack.c.l.b16 %v274
    %v1947 = vunpack.c.h.b16 %v274
    %v1948 = vunpack.c.l.b16 %v275
    %v1949 = vunpack.c.h.b16 %v275
    %v1950 = vunpack.c.l.b16 %v276
    %v1951 = vunpack.c.h.b16 %v276
    %v1952 = vunpack.c.l.b16 %v277
    %v1953 = vunpack.c.h.b16 %v277
    %v1954 = vunpack.c.l.b16 %v278
    %v1955 = vunpack.c.h.b16 %v278
    %v1956 = vunpack.c.l.b16 %v279
    %v1957 = vunpack.c.h.b16 %v279
    %v1958 = vunpack.c.l.b16 %v280
    %v1959 = vunpack.c.h.b16 %v280
    %v1960 = vunpack.c.l.b16 %v281
    %v1961 = vunpack.c.h.b16 %v281
    %v1962 = vunpack.c.l.b16 %v282
    %v1963 = vunpack.c.h.b16 %v282
    %v1964 = vunpack.c.l.b16 %v283
    %v1965 = vunpack.c.h.b16 %v283
    %v1966 = vunpack.c.l.b16 %v284
    %v1967 = vunpack.c.h.b16 %v284
    %v1968 = vunpack.c.l.b16 %v285
    %v1969 = vunpack.c.h.b16 %v285
    %v1970 = vunpack.c.l.b16 %v286
    %v1971 = vunpack.c.h.b16 %v286
    %v1972 = vunpack.c.l.b16 %v287
    %v1973 = vunpack.c.h.b16 %v287
    %v1974 = vunpack.c.l.b16 %v288
    %v1975 = vunpack.c.h.b16 %v288
    %v1976 = vunpack.c.l.b16 %v289
    %v1977 = vunpack.c.h.b16 %v289
    %v1978 = vunpack.c.l.b16 %v290
    %v1979 = vunpack.c.h.b16 %v290
    %v1980 = vunpack.c.l.b16 %v291
    %v1981 = vunpack.c.h.b16 %v291
    %v1982 = vunpack.c.l.b16 %v292
    %v1983 = vunpack.c.h.b16 %v292
    %v1984 = vunpack.c.l.b16 %v293
    %v1985 = vunpack.c.h.b16 %v293
    %v1986 = vunpack.c.l.b16 %v294
    %v1987 = vunpack.c.h.b16 %v294
    %v1988 = vunpack.c.l.b16 %v295
    %v1989 = vunpack.c.h.b16 %v295
    %v1990 = vunpack.c.l.b16 %v296
    %v1991 = vunpack.c.h.b16 %v296
    %v1992 = vunpack.c.l.b16 %v297
    %v1993 = vunpack.c.h.b16 %v297
    %v1994 = vunpack.c.l.b16 %v298
    %v1995 = vunpack.c.h.b16 %v298
    %v1996 = vunpack.c.l.b16 %v299
    %v1997 = vunpack.c.h.b16 %v299
    %v1998 = vunpack.c.l.b16 %v300
    %v1999 = vunpack.c.h.b16 %v300
    %v2000 = vunpack.c.l.b16 %v301
    %v2001 = vunpack.c.h.b16 %v301
    %v2002 = vunpack.c.l.b16 %v302
    %v2003 = vunpack.c.h.b16 %v302
    %v2004 = vunpack.c.l.b16 %v303
    %v2005 = vunpack.c.h.b16 %v303
    %v2006 = vunpack.c.l.b16 %v304
    %v2007 = vunpack.c.h.b16 %v304
    %v2008 = vunpack.c.l.b16 %v305
    %v2009 = vunpack.c.h.b16 %v305
    %v2010 = vunpack.c.l.b16 %v306
    %v2011 = vunpack.c.h.b16 %v306
    %v2012 = vunpack.c.l.b16 %v307
    %v2013 = vunpack.c.h.b16 %v307
    %v2014 = vunpack.c.l.b16 %v308
    %v2015 = vunpack.c.h.b16 %v308
    %v2016 = vunpack.c.l.b16 %v309
    %v2017 = vunpack.c.h.b16 %v309
    %v2018 = vunpack.c.l.b16 %v310
    %v2019 = vunpack.c.h.b16 %v310
    %v2020 = vunpack.c.l.b16 %v311
    %v2021 = vunpack.c.h.b16 %v311
    %v2022 = vunpack.c.l.b16 %v312
    %v2023 = vunpack.c.h.b16 %v312
    %v2024 = vunpack.c.l.b16 %v313
    %v2025 = vunpack.c.h.b16 %v313
    %v2026 = vunpack.c.l.b16 %v314
    %v2027 = vunpack.c.h.b16 %v314
    %v2028 = vunpack.c.l.b16 %v315
    %v2029 = vunpack.c.h.b16 %v315
    %v2030 = vunpack.c.l.b16 %v316
    %v2031 = vunpack.c.h.b16 %v316
    %v2032 = vunpack.c.l.b16 %v317
    %v2033 = vunpack.c.h.b16 %v317
    %v2034 = vunpack.c.l.b16 %v318
    %v2035 = vunpack.c.h.b16 %v318
    %v2036 = vunpack.c.l.b16 %v319
    %v2037 = vunpack.c.h.b16 %v319
    %v2038 = vunpack.c.l.b16 %v320
    %v2039 = vunpack.c.h.b16 %v320
    %v2040 = vunpack.c.l.b16 %v321
    %v2041 = vunpack.c.h.b16 %v321
    %v2042 = vunpack.c.l.b16 %v322
    %v2043 = vunpack.c.h.b16 %v322
    %v2044 = vunpack.c.l.b16 %v323
    %v2045 = vunpack.c.h.b16 %v323
    %v2046 = vunpack.c.l.b16 %v324
    %v2047 = vunpack.c.h.b16 %v324
    %v2048 = vunpack.c.l.b16 %v325
    %v2049 = vunpack.c.h.b16 %v325
    %v2050 = vunpack.c.l.b16 %v326
    %v2051 = vunpack.c.h.b16 %v326
    %v2052 = vunpack.c.l.b16 %v327
    %v2053 = vunpack.c.h.b16 %v327
    %v2054 = vunpack.c.l.b16 %v328
    %v2055 = vunpack.c.h.b16 %v328
    %v2056 = vunpack.c.l.b16 %v329
    %v2057 = vunpack.c.h.b16 %v329
    %v2058 = vunpack.c.l.b16 %v330
    %v2059 = vunpack.c.h.b16 %v330
    %v2060 = vunpack.c.l.b16 %v331
    %v2061 = vunpack.c.h.b16 %v331
    %v2062 = vunpack.c.l.b16 %v332
    %v2063 = vunpack.c.h.b16 %v332
    %v2064 = vunpack.c.l.b16 %v333
    %v2065 = vunpack.c.h.b16 %v333
    %v2066 = vunpack.c.l.b16 %v334
    %v2067 = vunpack.c.h.b16 %v334
    %v2068 = vunpack.c.l.b16 %v335
    %v2069 = vunpack.c.h.b16 %v335
    %v2070 = vunpack.c.l.b16 %v336
    %v2071 = vunpack.c.h.b16 %v336
    %v2072 = vunpack.c.l.b16 %v337
    %v2073 = vunpack.c.h.b16 %v337
    %v2074 = vunpack.c.l.b16 %v338
    %v2075 = vunpack.c.h.b16 %v338
    %v2076 = vunpack.c.l.b16 %v339
    %v2077 = vunpack.c.h.b16 %v339
    %v2078 = vunpack.c.l.b16 %v340
    %v2079 = vunpack.c.h.b16 %v340
    %v2080 = vunpack.c.l.b16 %v341
    %v2081 = vunpack.c.h.b16 %v341
    %v2082 = vunpack.c.l.b16 %v342
    %v2083 = vunpack.c.h.b16 %v342
    %v2084 = vunpack.c.l.b16 %v343
    %v2085 = vunpack.c.h.b16 %v343
    %v2086 = vunpack.c.l.b16 %v344
    %v2087 = vunpack.c.h.b16 %v344
    %v2088 = vunpack.c.l.b16 %v345
    %v2089 = vunpack.c.h.b16 %v345
    %v2090 = vunpack.c.l.b16 %v346
    %v2091 = vunpack.c.h.b16 %v346
    %v2092 = vunpack.c.l.b16 %v347
    %v2093 = vunpack.c.h.b16 %v347
    %v2094 = vunpack.c.l.b16 %v348
    %v2095 = vunpack.c.h.b16 %v348
    %v2096 = vunpack.c.l.b16 %v349
    %v2097 = vunpack.c.h.b16 %v349
    %v2098 = vunpack.c.l.b16 %v350
    %v2099 = vunpack.c.h.b16 %v350
    %v2100 = vunpack.c.l.b16 %v351
    %v2101 = vunpack.c.h.b16 %v351
    %v2102 = vunpack.c.l.b16 %v352
    %v2103 = vunpack.c.h.b16 %v352
    %v2104 = vunpack.c.l.b16 %v353
    %v2105 = vunpack.c.h.b16 %v353
    %v2106 = vunpack.c.l.b16 %v354
    %v2107 = vunpack.c.h.b16 %v354
    %v2108 = vunpack.c.l.b16 %v355
    %v2109 = vunpack.c.h.b16 %v355
    %v2110 = vunpack.c.l.b16 %v356
    %v2111 = vunpack.c.h.b16 %v356
    %v2112 = vunpack.c.l.b16 %v357
    %v2113 = vunpack.c.h.b16 %v357
    %v2114 = vunpack.c.l.b16 %v358
    %v2115 = vunpack.c.h.b16 %v358
    %v2116 = vunpack.c.l.b16 %v359
    %v2117 = vunpack.c.h.b16 %v359
    %v2118 = vunpack.c.l.b16 %v360
    %v2119 = vunpack.c.h.b16 %v360
    %v2120 = vunpack.c.l.b16 %v361
    %v2121 = vunpack.c.h.b16 %v361
    %v2122 = vunpack.c.l.b16 %v362
    %v2123 = vunpack.c.h.b16 %v362
    %v2124 = vunpack.c.l.b16 %v363
    %v2125 = vunpack.c.h.b16 %v363
    %v2126 = vunpack.c.l.b16 %v364
    %v2127 = vunpack.c.h.b16 %v364
    %v2128 = vunpack.c.l.b16 %v365
    %v2129 = vunpack.c.h.b16 %v365
    %v2130 = vunpack.c.l.b16 %v366
    %v2131 = vunpack.c.h.b16 %v366
    %v2132 = vunpack.c.l.b16 %v367
    %v2133 = vunpack.c.h.b16 %v367
    %v2134 = vunpack.c.l.b16 %v368
    %v2135 = vunpack.c.h.b16 %v368
    %v2136 = vunpack.c.l.b16 %v369
    %v2137 = vunpack.c.h.b16 %v369
    %v2138 = vunpack.c.l.b16 %v370
    %v2139 = vunpack.c.h.b16 %v370
    %v2140 = vunpack.c.l.b16 %v371
    %v2141 = vunpack.c.h.b16 %v371
    %v2142 = vunpack.c.l.b16 %v372
    %v2143 = vunpack.c.h.b16 %v372
    %v2144 = vunpack.c.l.b16 %v373
    %v2145 = vunpack.c.h.b16 %v373
    %v2146 = vunpack.c.l.b16 %v374
    %v2147 = vunpack.c.h.b16 %v374
    %v2148 = vunpack.c.l.b16 %v375
    %v2149 = vunpack.c.h.b16 %v375
    %v2150 = vunpack.c.l.b16 %v376
    %v2151 = vunpack.c.h.b16 %v376
    %v2152 = vunpack.c.l.b16 %v377
    %v2153 = vunpack.c.h.b16 %v377
    %v2154 = vunpack.c.l.b16 %v378
    %v2155 = vunpack.c.h.b16 %v378
    %v2156 = vunpack.c.l.b16 %v379
    %v2157 = vunpack.c.h.b16 %v379
    %v2158 = vunpack.c.l.b16 %v380
    %v2159 = vunpack.c.h.b16 %v380
    %v2160 = vunpack.c.l.b16 %v381
    %v2161 = vunpack.c.h.b16 %v381
    %v2162 = vunpack.c.l.b16 %v382
    %v2163 = vunpack.c.h.b16 %v382
    %v2164 = vunpack.c.l.b16 %v383
    %v2165 = vunpack.c.h.b16 %v383
    %v2166 = vunpack.c.l.b16 %v384
    %v2167 = vunpack.c.h.b16 %v384
    %v2168 = vunpack.c.l.b16 %v385
    %v2169 = vunpack.c.h.b16 %v385
    %v2170 = vunpack.c.l.b16 %v386
    %v2171 = vunpack.c.h.b16 %v386
    %v2172 = vunpack.c.l.b16 %v387
    %v2173 = vunpack.c.h.b16 %v387
    %v2174 = vunpack.c.l.b16 %v388
    %v2175 = vunpack.c.h.b16 %v388
    %v2176 = vunpack.c.l.b16 %v389
    %v2177 = vunpack.c.h.b16 %v389
    %v2178 = vunpack.c.l.b16 %v390
    %v2179 = vunpack.c.h.b16 %v390
    %v2180 = vunpack.c.l.b16 %v391
    %v2181 = vunpack.c.h.b16 %v391
    %v2182 = vunpack.c.l.b16 %v392
    %v2183 = vunpack.c.h.b16 %v392
    %v2184 = vunpack.c.l.b16 %v393
    %v2185 = vunpack.c.h.b16 %v393
    %v2186 = vunpack.c.l.b16 %v394
    %v2187 = vunpack.c.h.b16 %v394
    %v2188 = vunpack.c.l.b16 %v395
    %v2189 = vunpack.c.h.b16 %v395
    %v2190 = vunpack.c.l.b16 %v396
    %v2191 = vunpack.c.h.b16 %v396
    %v2192 = vunpack.c.l.b16 %v397
    %v2193 = vunpack.c.h.b16 %v397
    %v2194 = vunpack.c.l.b16 %v398
    %v2195 = vunpack.c.h.b16 %v398
    %v2196 = vunpack.c.l.b16 %v399
    %v2197 = vunpack.c.h.b16 %v399
    %v2198 = vunpack.c.l.b16 %v400
    %v2199 = vunpack.c.h.b16 %v400
    %v2200 = vunpack.c.l.b16 %v401
    %v2201 = vunpack.c.h.b16 %v401
    %v2202 = vunpack.c.l.b16 %v402
    %v2203 = vunpack.c.h.b16 %v402
    %v2204 = vunpack.c.l.b16 %v403
    %v2205 = vunpack.c.h.b16 %v403
    %v2206 = vunpack.c.l.b16 %v404
    %v2207 = vunpack.c.h.b16 %v404
    %v2208 = vunpack.c.l.b16 %v405
    %v2209 = vunpack.c.h.b16 %v405
    %v2210 = vunpack.c.l.b16 %v406
    %v2211 = vunpack.c.h.b16 %v406
    %v2212 = vunpack.c.l.b16 %v407
    %v2213 = vunpack.c.h.b16 %v407
    %v2214 = vunpack.c.l.b16 %v408
    %v2215 = vunpack.c.h.b16 %v408
    %v2216 = vunpack.c.l.b16 %v409
    %v2217 = vunpack.c.h.b16 %v409
    %v2218 = vunpack.c.l.b16 %v410
    %v2219 = vunpack.c.h.b16 %v410
    %v2220 = vunpack.c.l.b16 %v411
    %v2221 = vunpack.c.h.b16 %v411
    %v2222 = vunpack.c.l.b16 %v412
    %v2223 = vunpack.c.h.b16 %v412
    %v2224 = vunpack.c.l.b16 %v413
    %v2225 = vunpack.c.h.b16 %v413
    %v2226 = vunpack.c.l.b16 %v414
    %v2227 = vunpack.c.h.b16 %v414
    %v2228 = vunpack.c.l.b16 %v415
    %v2229 = vunpack.c.h.b16 %v415
    %v2230 = vunpack.c.l.b16 %v416
    %v2231 = vunpack.c.h.b16 %v416
    %v2232 = vunpack.c.l.b16 %v417
    %v2233 = vunpack.c.h.b16 %v417
    %v2234 = vunpack.c.l.b16 %v418
    %v2235 = vunpack.c.h.b16 %v418
    %v2236 = vunpack.c.l.b16 %v419
    %v2237 = vunpack.c.h.b16 %v419
    %v2238 = vunpack.c.l.b16 %v420
    %v2239 = vunpack.c.h.b16 %v420
    %v2240 = vunpack.c.l.b16 %v421
    %v2241 = vunpack.c.h.b16 %v421
    %v2242 = vunpack.c.l.b16 %v422
    %v2243 = vunpack.c.h.b16 %v422
    %v2244 = vunpack.c.l.b16 %v423
    %v2245 = vunpack.c.h.b16 %v423
    %v2246 = vunpack.c.l.b16 %v424
    %v2247 = vunpack.c.h.b16 %v424
    %v2248 = vunpack.c.l.b16 %v425
    %v2249 = vunpack.c.h.b16 %v425
    %v2250 = vunpack.c.l.b16 %v426
    %v2251 = vunpack.c.h.b16 %v426
    %v2252 = vunpack.c.l.b16 %v427
    %v2253 = vunpack.c.h.b16 %v427
    %v2254 = vunpack.c.l.b16 %v428
    %v2255 = vunpack.c.h.b16 %v428
    %v2256 = vunpack.c.l.b16 %v429
    %v2257 = vunpack.c.h.b16 %v429
    %v2258 = vunpack.c.l.b16 %v430
    %v2259 = vunpack.c.h.b16 %v430
    %v2260 = vunpack.c.l.b16 %v431
    %v2261 = vunpack.c.h.b16 %v431
    %v2262 = vunpack.c.l.b16 %v432
    %v2263 = vunpack.c.h.b16 %v432
    %v2264 = vunpack.c.l.b16 %v433
    %v2265 = vunpack.c.h.b16 %v433
    %v2266 = vunpack.c.l.b16 %v434
    %v2267 = vunpack.c.h.b16 %v434
    %v2268 = vunpack.c.l.b16 %v435
    %v2269 = vunpack.c.h.b16 %v435
    %v2270 = vunpack.c.l.b16 %v436
    %v2271 = vunpack.c.h.b16 %v436
    %v2272 = vunpack.c.l.b16 %v437
    %v2273 = vunpack.c.h.b16 %v437
    %v2274 = vunpack.c.l.b16 %v438
    %v2275 = vunpack.c.h.b16 %v438
    %v2276 = vunpack.c.l.b16 %v439
    %v2277 = vunpack.c.h.b16 %v439
    %v2278 = vunpack.c.l.b16 %v440
    %v2279 = vunpack.c.h.b16 %v440
    %v2280 = vunpack.c.l.b16 %v441
    %v2281 = vunpack.c.h.b16 %v441
    %v2282 = vunpack.c.l.b16 %v442
    %v2283 = vunpack.c.h.b16 %v442
    %v2284 = vunpack.c.l.b16 %v443
    %v2285 = vunpack.c.h.b16 %v443
    %v2286 = vunpack.c.l.b16 %v444
    %v2287 = vunpack.c.h.b16 %v444
    %v2288 = vunpack.c.l.b16 %v445
    %v2289 = vunpack.c.h.b16 %v445
    %v2290 = vunpack.c.l.b16 %v446
    %v2291 = vunpack.c.h.b16 %v446
    %v2292 = vunpack.c.l.b16 %v447
    %v2293 = vunpack.c.h.b16 %v447
    %v2294 = vunpack.c.l.b16 %v448
    %v2295 = vunpack.c.h.b16 %v448
    %v2296 = vunpack.c.l.b16 %v449
    %v2297 = vunpack.c.h.b16 %v449
    %v2298 = vunpack.c.l.b16 %v450
    %v2299 = vunpack.c.h.b16 %v450
    %v2300 = vunpack.c.l.b16 %v451
    %v2301 = vunpack.c.h.b16 %v451
    %v2302 = vunpack.c.l.b16 %v452
    %v2303 = vunpack.c.h.b16 %v452
    %v2304 = vunpack.c.l.b16 %v453
    %v2305 = vunpack.c.h.b16 %v453
    %v2306 = vunpack.c.l.b16 %v454
    %v2307 = vunpack.c.h.b16 %v454
    %v2308 = vunpack.c.l.b16 %v455
    %v2309 = vunpack.c.h.b16 %v455
    %v2310 = vunpack.c.l.b16 %v456
    %v2311 = vunpack.c.h.b16 %v456
    %v2312 = vunpack.c.l.b16 %v457
    %v2313 = vunpack.c.h.b16 %v457
    %v2314 = vunpack.c.l.b16 %v458
    %v2315 = vunpack.c.h.b16 %v458
    %v2316 = vunpack.c.l.b16 %v459
    %v2317 = vunpack.c.h.b16 %v459
    %v2318 = vunpack.c.l.b16 %v460
    %v2319 = vunpack.c.h.b16 %v460
    %v2320 = vunpack.c.l.b16 %v461
    %v2321 = vunpack.c.h.b16 %v461
    %v2322 = vunpack.c.l.b16 %v462
    %v2323 = vunpack.c.h.b16 %v462
    %v2324 = vunpack.c.l.b16 %v463
    %v2325 = vunpack.c.h.b16 %v463
    %v2326 = vunpack.c.l.b16 %v464
    %v2327 = vunpack.c.h.b16 %v464
    %v2328 = vunpack.c.l.b16 %v465
    %v2329 = vunpack.c.h.b16 %v465
    %v2330 = vunpack.c.l.b16 %v466
    %v2331 = vunpack.c.h.b16 %v466
    %v2332 = vunpack.c.l.b16 %v467
    %v2333 = vunpack.c.h.b16 %v467
    %v2334 = vunpack.c.l.b16 %v468
    %v2335 = vunpack.c.h.b16 %v468
    %v2336 = vunpack.c.l.b16 %v469
    %v2337 = vunpack.c.h.b16 %v469
    %v2338 = vunpack.c.l.b16 %v470
    %v2339 = vunpack.c.h.b16 %v470
    %v2340 = vunpack.c.l.b16 %v471
    %v2341 = vunpack.c.h.b16 %v471
    %v2342 = vunpack.c.l.b16 %v472
    %v2343 = vunpack.c.h.b16 %v472
    %v2344 = vunpack.c.l.b16 %v473
    %v2345 = vunpack.c.h.b16 %v473
    %v2346 = vunpack.c.l.b16 %v474
    %v2347 = vunpack.c.h.b16 %v474
    %v2348 = vunpack.c.l.b16 %v475
    %v2349 = vunpack.c.h.b16 %v475
    %v2350 = vunpack.c.l.b16 %v476
    %v2351 = vunpack.c.h.b16 %v476
    %v2352 = vunpack.c.l.b16 %v477
    %v2353 = vunpack.c.h.b16 %v477
    %v2354 = vunpack.c.l.b16 %v478
    %v2355 = vunpack.c.h.b16 %v478
    %v2356 = vunpack.c.l.b16 %v479
    %v2357 = vunpack.c.h.b16 %v479
    %v2358 = vunpack.c.l.b16 %v480
    %v2359 = vunpack.c.h.b16 %v480
    %v2360 = vunpack.c.l.b16 %v481
    %v2361 = vunpack.c.h.b16 %v481
    %v2362 = vunpack.c.l.b16 %v482
    %v2363 = vunpack.c.h.b16 %v482
    %v2364 = vunpack.c.l.b16 %v483
    %v2365 = vunpack.c.h.b16 %v483
    %v2366 = vunpack.c.l.b16 %v484
    %v2367 = vunpack.c.h.b16 %v484
    %v2368 = vunpack.c.l.b16 %v485
    %v2369 = vunpack.c.h.b16 %v485
    %v2370 = vunpack.c.l.b16 %v486
    %v2371 = vunpack.c.h.b16 %v486
    %v2372 = vunpack.c.l.b16 %v487
    %v2373 = vunpack.c.h.b16 %v487
    %v2374 = vunpack.c.l.b16 %v488
    %v2375 = vunpack.c.h.b16 %v488
    %v2376 = vunpack.c.l.b16 %v489
    %v2377 = vunpack.c.h.b16 %v489
    %v2378 = vunpack.c.l.b16 %v490
    %v2379 = vunpack.c.h.b16 %v490
    %v2380 = vunpack.c.l.b16 %v491
    %v2381 = vunpack.c.h.b16 %v491
    %v2382 = vunpack.c.l.b16 %v492
    %v2383 = vunpack.c.h.b16 %v492
    %v2384 = vunpack.c.l.b16 %v493
    %v2385 = vunpack.c.h.b16 %v493
    %v2386 = vunpack.c.l.b16 %v494
    %v2387 = vunpack.c.h.b16 %v494
    %v2388 = vunpack.c.l.b16 %v495
    %v2389 = vunpack.c.h.b16 %v495
    %v2390 = vunpack.c.l.b16 %v496
    %v2391 = vunpack.c.h.b16 %v496
    %v2392 = vunpack.c.l.b16 %v497
    %v2393 = vunpack.c.h.b16 %v497
    %v2394 = vunpack.c.l.b16 %v498
    %v2395 = vunpack.c.h.b16 %v498
    %v2396 = vunpack.c.l.b16 %v499
    %v2397 = vunpack.c.h.b16 %v499
    %v2398 = vunpack.c.l.b16 %v500
    %v2399 = vunpack.c.h.b16 %v500
    %v2400 = vunpack.c.l.b16 %v501
    %v2401 = vunpack.c.h.b16 %v501
    %v2402 = vunpack.c.l.b16 %v502
    %v2403 = vunpack.c.h.b16 %v502
    %v2404 = vunpack.c.l.b16 %v503
    %v2405 = vunpack.c.h.b16 %v503
    %v2406 = vunpack.c.l.b16 %v504
    %v2407 = vunpack.c.h.b16 %v504
    %v2408 = vunpack.c.l.b16 %v505
    %v2409 = vunpack.c.h.b16 %v505
    %v2410 = vunpack.c.l.b16 %v506
    %v2411 = vunpack.c.h.b16 %v506
    %v2412 = vunpack.c.l.b16 %v507
    %v2413 = vunpack.c.h.b16 %v507
    %v2414 = vunpack.c.l.b16 %v508
    %v2415 = vunpack.c.h.b16 %v508
    %v2416 = vunpack.c.l.b16 %v509
    %v2417 = vunpack.c.h.b16 %v509
    %v2418 = vunpack.c.l.b16 %v510
    %v2419 = vunpack.c.h.b16 %v510
    %v2420 = vunpack.c.l.b16 %v511
    %v2421 = vunpack.c.h.b16 %v511
    %v2422 = vunpack.c.l.b16 %v512
    %v2423 = vunpack.c.h.b16 %v512
    %v2424 = vunpack.c.l.b16 %v513
    %v2425 = vunpack.c.h.b16 %v513
    %v2426 = vunpack.c.l.b16 %v514
    %v2427 = vunpack.c.h.b16 %v514
    %v2428 = vunpack.c.l.b16 %v515
    %v2429 = vunpack.c.h.b16 %v515
    %v2430 = vunpack.c.l.b16 %v516
    %v2431 = vunpack.c.h.b16 %v516
    %v2432 = vunpack.c.l.b16 %v517
    %v2433 = vunpack.c.h.b16 %v517
    %v2434 = vunpack.c.l.b16 %v518
    %v2435 = vunpack.c.h.b16 %v518
    %v2436 = vunpack.c.l.b16 %v519
    %v2437 = vunpack.c.h.b16 %v519
    %v2438 = vunpack.c.l.b16 %v520
    %v2439 = vunpack.c.h.b16 %v520
    %v2440 = vunpack.c.l.b16 %v521
    %v2441 = vunpack.c.h.b16 %v521
    %v2442 = vunpack.c.l.b16 %v522
    %v2443 = vunpack.c.h.b16 %v522
    %v2444 = vunpack.c.l.b16 %v523
    %v2445 = vunpack.c.h.b16 %v523
    %v2446 = vunpack.c.l.b16 %v524
    %v2447 = vunpack.c.h.b16 %v524
    %v2448 = vunpack.c.l.b16 %v525
    %v2449 = vunpack.c.h.b16 %v525
    %v2450 = vunpack.c.l.b16 %v526
    %v2451 = vunpack.c.h.b16 %v526
    %v2452 = vunpack.c.l.b16 %v527
    %v2453 = vunpack.c.h.b16 %v527
    %v2454 = vunpack.c.l.b16 %v528
    %v2455 = vunpack.c.h.b16 %v528
    %v2456 = vunpack.c.l.b16 %v529
    %v2457 = vunpack.c.h.b16 %v529
    %v2458 = vunpack.c.l.b16 %v530
    %v2459 = vunpack.c.h.b16 %v530
    %v2460 = vunpack.c.l.b16 %v531
    %v2461 = vunpack.c.h.b16 %v531
    %v2462 = vunpack.c.l.b16 %v532
    %v2463 = vunpack.c.h.b16 %v532
    %v2464 = vunpack.c.l.b16 %v533
    %v2465 = vunpack.c.h.b16 %v533
    %v2466 = vunpack.c.l.b16 %v534
    %v2467 = vunpack.c.h.b16 %v534
    %v2468 = vunpack.c.l.b16 %v535
    %v2469 = vunpack.c.h.b16 %v535
    %v2470 = vunpack.c.l.b16 %v536
    %v2471 = vunpack.c.h.b16 %v536
    %v2472 = vunpack.c.l.b16 %v537
    %v2473 = vunpack.c.h.b16 %v537
    %v2474 = vunpack.c.l.b16 %v538
    %v2475 = vunpack.c.h.b16 %v538
    %v2476 = vunpack.c.l.b16 %v539
    %v2477 = vunpack.c.h.b16 %v539
    %v2478 = vunpack.c.l.b16 %v540
    %v2479 = vunpack.c.h.b16 %v540
    %v2480 = vunpack.c.l.b16 %v541
    %v2481 = vunpack.c.h.b16 %v541
    %v2482 = vunpack.c.l.b16 %v542
    %v2483 = vunpack.c.h.b16 %v542
    %v2484 = vunpack.c.l.b16 %v543
    %v2485 = vunpack.c.h.b16 %v543
    %v2486 = vunpack.c.l.b16 %v544
    %v2487 = vunpack.c.h.b16 %v544
    %v2488 = vunpack.c.l.b16 %v545
    %v2489 = vunpack.c.h.b16 %v545
    %v2490 = vunpack.c.l.b16 %v546
    %v2491 = vunpack.c.h.b16 %v546
    %v2492 = vunpack.c.l.b16 %v547
    %v2493 = vunpack.c.h.b16 %v547
    %v2494 = vunpack.c.l.b16 %v548
    %v2495 = vunpack.c.h.b16 %v548
    %v2496 = vunpack.c.l.b16 %v549
    %v2497 = vunpack.c.h.b16 %v549
    %v2498 = vunpack.c.l.b16 %v550
    %v2499 = vunpack.c.h.b16 %v550
    %v2500 = vunpack.c.l.b16 %v551
    %v2501 = vunpack.c.h.b16 %v551
    %v2502 = vunpack.c.l.b16 %v552
    %v2503 = vunpack.c.h.b16 %v552
    %v2504 = vunpack.c.l.b16 %v553
    %v2505 = vunpack.c.h.b16 %v553
    %v2506 = vunpack.c.l.b16 %v554
    %v2507 = vunpack.c.h.b16 %v554
    %v2508 = vunpack.c.l.b16 %v555
    %v2509 = vunpack.c.h.b16 %v555
    %v2510 = vunpack.c.l.b16 %v556
    %v2511 = vunpack.c.h.b16 %v556
    %v2512 = vunpack.c.l.b16 %v557
    %v2513 = vunpack.c.h.b16 %v557
    %v2514 = vunpack.c.l.b16 %v558
    %v2515 = vunpack.c.h.b16 %v558
    %v2516 = vunpack.c.l.b16 %v559
    %v2517 = vunpack.c.h.b16 %v559
    %v2518 = vunpack.c.l.b16 %v560
    %v2519 = vunpack.c.h.b16 %v560
    %v2520 = vunpack.c.l.b16 %v561
    %v2521 = vunpack.c.h.b16 %v561
    %v2522 = vunpack.c.l.b16 %v562
    %v2523 = vunpack.c.h.b16 %v562
    %v2524 = vunpack.c.l.b16 %v563
    %v2525 = vunpack.c.h.b16 %v563
    %v2526 = vunpack.c.l.b16 %v564
    %v2527 = vunpack.c.h.b16 %v564
    %v2528 = vunpack.c.l.b16 %v565
    %v2529 = vunpack.c.h.b16 %v565
    %v2530 = vunpack.c.l.b16 %v566
    %v2531 = vunpack.c.h.b16 %v566
    %v2532 = vunpack.c.l.b16 %v567
    %v2533 = vunpack.c.h.b16 %v567
    %v2534 = vunpack.c.l.b16 %v568
    %v2535 = vunpack.c.h.b16 %v568
    %v2536 = vunpack.c.l.b16 %v569
    %v2537 = vunpack.c.h.b16 %v569
    %v2538 = vunpack.c.l.b16 %v570
    %v2539 = vunpack.c.h.b16 %v570
    %v2540 = vunpack.c.l.b16 %v571
    %v2541 = vunpack.c.h.b16 %v571
    %v2542 = vunpack.c.l.b16 %v572
    %v2543 = vunpack.c.h.b16 %v572
    %v2544 = vunpack.c.l.b16 %v573
    %v2545 = vunpack.c.h.b16 %v573
    %v2546 = vunpack.c.l.b16 %v574
    %v2547 = vunpack.c.h.b16 %v574
    %v2548 = vunpack.c.l.b16 %v575
    %v2549 = vunpack.c.h.b16 %v575
    %v2550 = vunpack.c.l.b16 %v576
    %v2551 = vunpack.c.h.b16 %v576
    %v2552 = vunpack.c.l.b16 %v577
    %v2553 = vunpack.c.h.b16 %v577
    %v2554 = vunpack.c.l.b16 %v578
    %v2555 = vunpack.c.h.b16 %v578
    %v2556 = vunpack.c.l.b16 %v579
    %v2557 = vunpack.c.h.b16 %v579
    %v2558 = vunpack.c.l.b16 %v580
    %v2559 = vunpack.c.h.b16 %v580
    %v2560 = vunpack.c.l.b16 %v581
    %v2561 = vunpack.c.h.b16 %v581
    %v2562 = vunpack.c.l.b16 %v582
    %v2563 = vunpack.c.h.b16 %v582
    %v2564 = vunpack.c.l.b16 %v583
    %v2565 = vunpack.c.h.b16 %v583
    %v2566 = vunpack.c.l.b16 %v584
    %v2567 = vunpack.c.h.b16 %v584
    %v2568 = vunpack.c.l.b16 %v585
    %v2569 = vunpack.c.h.b16 %v585
    %v2570 = vunpack.c.l.b16 %v586
    %v2571 = vunpack.c.h.b16 %v586
    %v2572 = vunpack.c.l.b16 %v587
    %v2573 = vunpack.c.h.b16 %v587
    %v2574 = vunpack.c.l.b16 %v588
    %v2575 = vunpack.c.h.b16 %v588
    %v2576 = vunpack.c.l.b16 %v589
    %v2577 = vunpack.c.h.b16 %v589
    %v2578 = vunpack.c.l.b16 %v590
    %v2579 = vunpack.c.h.b16 %v590
    %v2580 = vunpack.c.l.b16 %v591
    %v2581 = vunpack.c.h.b16 %v591
    %v2582 = vunpack.c.l.b16 %v592
    %v2583 = vunpack.c.h.b16 %v592
    %v2584 = vunpack.c.l.b16 %v593
    %v2585 = vunpack.c.h.b16 %v593
    %v2586 = vunpack.c.l.b16 %v594
    %v2587 = vunpack.c.h.b16 %v594
    %v2588 = vunpack.c.l.b16 %v595
    %v2589 = vunpack.c.h.b16 %v595
    %v2590 = vunpack.c.l.b16 %v596
    %v2591 = vunpack.c.h.b16 %v596
    %v2592 = vunpack.c.l.b16 %v597
    %v2593 = vunpack.c.h.b16 %v597
    %v2594 = vunpack.c.l.b16 %v598
    %v2595 = vunpack.c.h.b16 %v598
    %v2596 = vunpack.c.l.b16 %v599
    %v2597 = vunpack.c.h.b16 %v599
    %v2598 = vunpack.c.l.b16 %v600
    %v2599 = vunpack.c.h.b16 %v600
    %v2600 = vunpack.c.l.b16 %v601
    %v2601 = vunpack.c.h.b16 %v601
    %v2602 = vunpack.c.l.b16 %v602
    %v2603 = vunpack.c.h.b16 %v602
    %v2604 = vpack.c.b16 %v1454, %v1452
    %v2605 = vpack.c.b16 %v1455, %v1453
    %v2606 = vpack.c.b16 %v1458, %v1456
    %v2607 = vpack.c.b16 %v1459, %v1457
    %v2608 = vpack.c.b16 %v1462, %v1460
    %v2609 = vpack.c.b16 %v1463, %v1461
    %v2610 = vpack.c.b16 %v1466, %v1464
    %v2611 = vpack.c.b16 %v1467, %v1465
    %v2612 = vpack.c.b16 %v1470, %v1468
    %v2613 = vpack.c.b16 %v1471, %v1469
    %v2614 = vpack.c.b16 %v1474, %v1472
    %v2615 = vpack.c.b16 %v1475, %v1473
    %v2616 = vpack.c.b16 %v1478, %v1476
    %v2617 = vpack.c.b16 %v1479, %v1477
    %v2618 = vpack.c.b16 %v1482, %v1480
    %v2619 = vpack.c.b16 %v1483, %v1481
    %v2620 = vpack.c.b16 %v1486, %v1484
    %v2621 = vpack.c.b16 %v1487, %v1485
    %v2622 = vpack.c.b16 %v1490, %v1488
    %v2623 = vpack.c.b16 %v1491, %v1489
    %v2624 = vpack.c.b16 %v1494, %v1492
    %v2625 = vpack.c.b16 %v1495, %v1493
    %v2626 = vpack.c.b16 %v1498, %v1496
    %v2627 = vpack.c.b16 %v1499, %v1497
    %v2628 = vpack.c.b16 %v1502, %v1500
    %v2629 = vpack.c.b16 %v1503, %v1501
    %v2630 = vpack.c.b16 %v1506, %v1504
    %v2631 = vpack.c.b16 %v1507, %v1505
    %v2632 = vpack.c.b16 %v1510, %v1508
    %v2633 = vpack.c.b16 %v1511, %v1509
    %v2634 = vpack.c.b16 %v1514, %v1512
    %v2635 = vpack.c.b16 %v1515, %v1513
    %v2636 = vpack.c.b16 %v1518, %v1516
    %v2637 = vpack.c.b16 %v1519, %v1517
    %v2638 = vpack.c.b16 %v1522, %v1520
    %v2639 = vpack.c.b16 %v1523, %v1521
    %v2640 = vpack.c.b16 %v1526, %v1524
    %v2641 = vpack.c.b16 %v1527, %v1525
    %v2642 = vpack.c.b16 %v1530, %v1528
    %v2643 = vpack.c.b16 %v1531, %v1529
    %v2644 = vpack.c.b16 %v1534, %v1532
    %v2645 = vpack.c.b16 %v1535, %v1533
    %v2646 = vpack.c.b16 %v1538, %v1536
    %v2647 = vpack.c.b16 %v1539, %v1537
    %v2648 = vpack.c.b16 %v1542, %v1540
    %v2649 = vpack.c.b16 %v1543, %v1541
    %v2650 = vpack.c.b16 %v1546, %v1544
    %v2651 = vpack.c.b16 %v1547, %v1545
    %v2652 = vpack.c.b16 %v1550, %v1548
    %v2653 = vpack.c.b16 %v1551, %v1549
    %v2654 = vpack.c.b16 %v1554, %v1552
    %v2655 = vpack.c.b16 %v1555, %v1553
    %v2656 = vpack.c.b16 %v1558, %v1556
    %v2657 = vpack.c.b16 %v1559, %v1557
    %v2658 = vpack.c.b16 %v1562, %v1560
    %v2659 = vpack.c.b16 %v1563, %v1561
    %v2660 = vpack.c.b16 %v1566, %v1564
    %v2661 = vpack.c.b16 %v1567, %v1565
    %v2662 = vpack.c.b16 %v1570, %v1568
    %v2663 = vpack.c.b16 %v1571, %v1569
    %v2664 = vpack.c.b16 %v1574, %v1572
    %v2665 = vpack.c.b16 %v1575, %v1573
    %v2666 = vpack.c.b16 %v1578, %v1576
    %v2667 = vpack.c.b16 %v1579, %v1577
    %v2668 = vpack.c.b16 %v1582, %v1580
    %v2669 = vpack.c.b16 %v1583, %v1581
    %v2670 = vpack.c.b16 %v1586, %v1584
    %v2671 = vpack.c.b16 %v1587, %v1585
    %v2672 = vpack.c.b16 %v1590, %v1588
    %v2673 = vpack.c.b16 %v1591, %v1589
    %v2674 = vpack.c.b16 %v1594, %v1592
    %v2675 = vpack.c.b16 %v1595, %v1593
    %v2676 = vpack.c.b16 %v1598, %v1596
    %v2677 = vpack.c.b16 %v1599, %v1597
    %v2678 = vpack.c.b16 %v1602, %v1600
    %v2679 = vpack.c.b16 %v1603, %v1601
    %v2680 = vpack.c.b16 %v1606, %v1604
    %v2681 = vpack.c.b16 %v1607, %v1605
    %v2682 = vpack.c.b16 %v1610, %v1608
    %v2683 = vpack.c.b16 %v1611, %v1609
    %v2684 = vpack.c.b16 %v1614, %v1612
    %v2685 = vpack.c.b16 %v1615, %v1613
    %v2686 = vpack.c.b16 %v1618, %v1616
    %v2687 = vpack.c.b16 %v1619, %v1617
    %v2688 = vpack.c.b16 %v1622, %v1620
    %v2689 = vpack.c.b16 %v1623, %v1621
    %v2690 = vpack.c.b16 %v1626, %v1624
    %v2691 = vpack.c.b16 %v1627, %v1625
    %v2692 = vpack.c.b16 %v1630, %v1628
    %v2693 = vpack.c.b16 %v1631, %v1629
    %v2694 = vpack.c.b16 %v1634, %v1632
    %v2695 = vpack.c.b16 %v1635, %v1633
    %v2696 = vpack.c.b16 %v1638, %v1636
    %v2697 = vpack.c.b16 %v1639, %v1637
    %v2698 = vpack.c.b16 %v1642, %v1640
    %v2699 = vpack.c.b16 %v1643, %v1641
    %v2700 = vpack.c.b16 %v1646, %v1644
    %v2701 = vpack.c.b16 %v1647, %v1645
    %v2702 = vpack.c.b16 %v1650, %v1648
    %v2703 = vpack.c.b16 %v1651, %v1649
    %v2704 = vpack.c.b16 %v1654, %v1652
    %v2705 = vpack.c.b16 %v1655, %v1653
    %v2706 = vpack.c.b16 %v1658, %v1656
    %v2707 = vpack.c.b16 %v1659, %v1657
    %v2708 = vpack.c.b16 %v1662, %v1660
    %v2709 = vpack.c.b16 %v1663, %v1661
    %v2710 = vpack.c.b16 %v1666, %v1664
    %v2711 = vpack.c.b16 %v1667, %v1665
    %v2712 = vpack.c.b16 %v1670, %v1668
    %v2713 = vpack.c.b16 %v1671, %v1669
    %v2714 = vpack.c.b16 %v1674, %v1672
    %v2715 = vpack.c.b16 %v1675, %v1673
    %v2716 = vpack.c.b16 %v1678, %v1676
    %v2717 = vpack.c.b16 %v1679, %v1677
    %v2718 = vpack.c.b16 %v1682, %v1680
    %v2719 = vpack.c.b16 %v1683, %v1681
    %v2720 = vpack.c.b16 %v1686, %v1684
    %v2721 = vpack.c.b16 %v1687, %v1685
    %v2722 = vpack.c.b16 %v1690, %v1688
    %v2723 = vpack.c.b16 %v1691, %v1689
    %v2724 = vpack.c.b16 %v1694, %v1692
    %v2725 = vpack.c.b16 %v1695, %v1693
    %v2726 = vpack.c.b16 %v1698, %v1696
    %v2727 = vpack.c.b16 %v1699, %v1697
    %v2728 = vpack.c.b16 %v1702, %v1700
    %v2729 = vpack.c.b16 %v1703, %v1701
    %v2730 = vpack.c.b16 %v1706, %v1704
    %v2731 = vpack.c.b16 %v1707, %v1705
    %v2732 = vpack.c.b16 %v1710, %v1708
    %v2733 = vpack.c.b16 %v1711, %v1709
    %v2734 = vpack.c.b16 %v1714, %v1712
    %v2735 = vpack.c.b16 %v1715, %v1713
    %v2736 = vpack.c.b16 %v1718, %v1716
    %v2737 = vpack.c.b16 %v1719, %v1717
    %v2738 = vpack.c.b16 %v1722, %v1720
    %v2739 = vpack.c.b16 %v1723, %v1721
    %v2740 = vpack.c.b16 %v1726, %v1724
    %v2741 = vpack.c.b16 %v1727, %v1725
    %v2742 = vpack.c.b16 %v1730, %v1728
    %v2743 = vpack.c.b16 %v1731, %v1729
    %v2744 = vpack.c.b16 %v1734, %v1732
    %v2745 = vpack.c.b16 %v1735, %v1733
    %v2746 = vpack.c.b16 %v1738, %v1736
    %v2747 = vpack.c.b16 %v1739, %v1737
    %v2748 = vpack.c.b16 %v1742, %v1740
    %v2749 = vpack.c.b16 %v1743, %v1741
    %v2750 = vpack.c.b16 %v1746, %v1744
    %v2751 = vpack.c.b16 %v1747, %v1745
    %v2752 = vpack.c.b16 %v1750, %v1748
    %v2753 = vpack.c.b16 %v1751, %v1749
    %v2754 = vpack.c.b16 %v1754, %v1752
    %v2755 = vpack.c.b16 %v1755, %v1753
    %v2756 = vpack.c.b16 %v1758, %v1756
    %v2757 = vpack.c.b16 %v1759, %v1757
    %v2758 = vpack.c.b16 %v1762, %v1760
    %v2759 = vpack.c.b16 %v1763, %v1761
    %v2760 = vpack.c.b16 %v1766, %v1764
    %v2761 = vpack.c.b16 %v1767, %v1765
    %v2762 = vpack.c.b16 %v1770, %v1768
    %v2763 = vpack.c.b16 %v1771, %v1769
    %v2764 = vpack.c.b16 %v1774, %v1772
    %v2765 = vpack.c.b16 %v1775, %v1773
    %v2766 = vpack.c.b16 %v1778, %v1776
    %v2767 = vpack.c.b16 %v1779, %v1777
    %v2768 = vpack.c.b16 %v1782, %v1780
    %v2769 = vpack.c.b16 %v1783, %v1781
    %v2770 = vpack.c.b16 %v1786, %v1784
    %v2771 = vpack.c.b16 %v1787, %v1785
    %v2772 = vpack.c.b16 %v1790, %v1788
    %v2773 = vpack.c.b16 %v1791, %v1789
    %v2774 = vpack.c.b16 %v1794, %v1792
    %v2775 = vpack.c.b16 %v1795, %v1793
    %v2776 = vpack.c.b16 %v1798, %v1796
    %v2777 = vpack.c.b16 %v1799, %v1797
    %v2778 = vpack.c.b16 %v1802, %v1800
    %v2779 = vpack.c.b16 %v1803, %v1801
    %v2780 = vpack.c.b16 %v1806, %v1804
    %v2781 = vpack.c.b16 %v1807, %v1805
    %v2782 = vpack.c.b16 %v1810, %v1808
    %v2783 = vpack.c.b16 %v1811, %v1809
    %v2784 = vpack.c.b16 %v1814, %v1812
    %v2785 = vpack.c.b16 %v1815, %v1813
    %v2786 = vpack.c.b16 %v1818, %v1816
    %v2787 = vpack.c.b16 %v1819, %v1817
    %v2788 = vpack.c.b16 %v1822, %v1820
    %v2789 = vpack.c.b16 %v1823, %v1821
    %v2790 = vpack.c.b16 %v1826, %v1824
    %v2791 = vpack.c.b16 %v1827, %v1825
    %v2792 = vpack.c.b16 %v1830, %v1828
    %v2793 = vpack.c.b16 %v1831, %v1829
    %v2794 = vpack.c.b16 %v1834, %v1832
    %v2795 = vpack.c.b16 %v1835, %v1833
    %v2796 = vpack.c.b16 %v1838, %v1836
    %v2797 = vpack.c.b16 %v1839, %v1837
    %v2798 = vpack.c.b16 %v1842, %v1840
    %v2799 = vpack.c.b16 %v1843, %v1841
    %v2800 = vpack.c.b16 %v1846, %v1844
    %v2801 = vpack.c.b16 %v1847, %v1845
    %v2802 = vpack.c.b16 %v1850, %v1848
    %v2803 = vpack.c.b16 %v1851, %v1849
    %v2804 = vpack.c.b16 %v1854, %v1852
    %v2805 = vpack.c.b16 %v1855, %v1853
    %v2806 = vpack.c.b16 %v1858, %v1856
    %v2807 = vpack.c.b16 %v1859, %v1857
    %v2808 = vpack.c.b16 %v1862, %v1860
    %v2809 = vpack.c.b16 %v1863, %v1861
    %v2810 = vpack.c.b16 %v1866, %v1864
    %v2811 = vpack.c.b16 %v1867, %v1865
    %v2812 = vpack.c.b16 %v1870, %v1868
    %v2813 = vpack.c.b16 %v1871, %v1869
    %v2814 = vpack.c.b16 %v1874, %v1872
    %v2815 = vpack.c.b16 %v1875, %v1873
    %v2816 = vpack.c.b16 %v1878, %v1876
    %v2817 = vpack.c.b16 %v1879, %v1877
    %v2818 = vpack.c.b16 %v1882, %v1880
    %v2819 = vpack.c.b16 %v1883, %v1881
    %v2820 = vpack.c.b16 %v1886, %v1884
    %v2821 = vpack.c.b16 %v1887, %v1885
    %v2822 = vpack.c.b16 %v1890, %v1888
    %v2823 = vpack.c.b16 %v1891, %v1889
    %v2824 = vpack.c.b16 %v1894, %v1892
    %v2825 = vpack.c.b16 %v1895, %v1893
    %v2826 = vpack.c.b16 %v1898, %v1896
    %v2827 = vpack.c.b16 %v1899, %v1897
    %v2828 = vpack.c.b16 %v1902, %v1900
    %v2829 = vpack.c.b16 %v1903, %v1901
    %v2830 = vpack.c.b16 %v1906, %v1904
    %v2831 = vpack.c.b16 %v1907, %v1905
    %v2832 = vpack.c.b16 %v1910, %v1908
    %v2833 = vpack.c.b16 %v1911, %v1909
    %v2834 = vpack.c.b16 %v1914, %v1912
    %v2835 = vpack.c.b16 %v1915, %v1913
    %v2836 = vpack.c.b16 %v1918, %v1916
    %v2837 = vpack.c.b16 %v1919, %v1917
    %v2838 = vpack.c.b16 %v1922, %v1920
    %v2839 = vpack.c.b16 %v1923, %v1921
    %v2840 = vpack.c.b16 %v1926, %v1924
    %v2841 = vpack.c.b16 %v1927, %v1925
    %v2842 = vpack.c.b16 %v1930, %v1928
    %v2843 = vpack.c.b16 %v1931, %v1929
    %v2844 = vpack.c.b16 %v1934, %v1932
    %v2845 = vpack.c.b16 %v1935, %v1933
    %v2846 = vpack.c.b16 %v1938, %v1936
    %v2847 = vpack.c.b16 %v1939, %v1937
    %v2848 = vpack.c.b16 %v1942, %v1940
    %v2849 = vpack.c.b16 %v1943, %v1941
    %v2850 = vpack.c.b16 %v1946, %v1944
    %v2851 = vpack.c.b16 %v1947, %v1945
    %v2852 = vpack.c.b16 %v1950, %v1948
    %v2853 = vpack.c.b16 %v1951, %v1949
    %v2854 = vpack.c.b16 %v1954, %v1952
    %v2855 = vpack.c.b16 %v1955, %v1953
    %v2856 = vpack.c.b16 %v1958, %v1956
    %v2857 = vpack.c.b16 %v1959, %v1957
    %v2858 = vpack.c.b16 %v1962, %v1960
    %v2859 = vpack.c.b16 %v1963, %v1961
    %v2860 = vpack.c.b16 %v1966, %v1964
    %v2861 = vpack.c.b16 %v1967, %v1965
    %v2862 = vpack.c.b16 %v1970, %v1968
    %v2863 = vpack.c.b16 %v1971, %v1969
    %v2864 = vpack.c.b16 %v1974, %v1972
    %v2865 = vpack.c.b16 %v1975, %v1973
    %v2866 = vpack.c.b16 %v1978, %v1976
    %v2867 = vpack.c.b16 %v1979, %v1977
    %v2868 = vpack.c.b16 %v1982, %v1980
    %v2869 = vpack.c.b16 %v1983, %v1981
    %v2870 = vpack.c.b16 %v1986, %v1984
    %v2871 = vpack.c.b16 %v1987, %v1985
    %v2872 = vpack.c.b16 %v1990, %v1988
    %v2873 = vpack.c.b16 %v1991, %v1989
    %v2874 = vpack.c.b16 %v1994, %v1992
    %v2875 = vpack.c.b16 %v1995, %v1993
    %v2876 = vpack.c.b16 %v1998, %v1996
    %v2877 = vpack.c.b16 %v1999, %v1997
    %v2878 = vpack.c.b16 %v2002, %v2000
    %v2879 = vpack.c.b16 %v2003, %v2001
    %v2880 = vpack.c.b16 %v2006, %v2004
    %v2881 = vpack.c.b16 %v2007, %v2005
    %v2882 = vpack.c.b16 %v2010, %v2008
    %v2883 = vpack.c.b16 %v2011, %v2009
    %v2884 = vpack.c.b16 %v2014, %v2012
    %v2885 = vpack.c.b16 %v2015, %v2013
    %v2886 = vpack.c.b16 %v2018, %v2016
    %v2887 = vpack.c.b16 %v2019, %v2017
    %v2888 = vpack.c.b16 %v2022, %v2020
    %v2889 = vpack.c.b16 %v2023, %v2021
    %v2890 = vpack.c.b16 %v2026, %v2024
    %v2891 = vpack.c.b16 %v2027, %v2025
    %v2892 = vpack.c.b16 %v2030, %v2028
    %v2893 = vpack.c.b16 %v2031, %v2029
    %v2894 = vpack.c.b16 %v2034, %v2032
    %v2895 = vpack.c.b16 %v2035, %v2033
    %v2896 = vpack.c.b16 %v2038, %v2036
    %v2897 = vpack.c.b16 %v2039, %v2037
    %v2898 = vpack.c.b16 %v2042, %v2040
    %v2899 = vpack.c.b16 %v2043, %v2041
    %v2900 = vpack.c.b16 %v2046, %v2044
    %v2901 = vpack.c.b16 %v2047, %v2045
    %v2902 = vpack.c.b16 %v2050, %v2048
    %v2903 = vpack.c.b16 %v2051, %v2049
    %v2904 = vpack.c.b16 %v2054, %v2052
    %v2905 = vpack.c.b16 %v2055, %v2053
    %v2906 = vpack.c.b16 %v2058, %v2056
    %v2907 = vpack.c.b16 %v2059, %v2057
    %v2908 = vpack.c.b16 %v2062, %v2060
    %v2909 = vpack.c.b16 %v2063, %v2061
    %v2910 = vpack.c.b16 %v2066, %v2064
    %v2911 = vpack.c.b16 %v2067, %v2065
    %v2912 = vpack.c.b16 %v2070, %v2068
    %v2913 = vpack.c.b16 %v2071, %v2069
    %v2914 = vpack.c.b16 %v2074, %v2072
    %v2915 = vpack.c.b16 %v2075, %v2073
    %v2916 = vpack.c.b16 %v2078, %v2076
    %v2917 = vpack.c.b16 %v2079, %v2077
    %v2918 = vpack.c.b16 %v2082, %v2080
    %v2919 = vpack.c.b16 %v2083, %v2081
    %v2920 = vpack.c.b16 %v2086, %v2084
    %v2921 = vpack.c.b16 %v2087, %v2085
    %v2922 = vpack.c.b16 %v2090, %v2088
    %v2923 = vpack.c.b16 %v2091, %v2089
    %v2924 = vpack.c.b16 %v2094, %v2092
    %v2925 = vpack.c.b16 %v2095, %v2093
    %v2926 = vpack.c.b16 %v2098, %v2096
    %v2927 = vpack.c.b16 %v2099, %v2097
    %v2928 = vpack.c.b16 %v2102, %v2100
    %v2929 = vpack.c.b16 %v2103, %v2101
    %v2930 = vpack.c.b16 %v2106, %v2104
    %v2931 = vpack.c.b16 %v2107, %v2105
    %v2932 = vpack.c.b16 %v2110, %v2108
    %v2933 = vpack.c.b16 %v2111, %v2109
    %v2934 = vpack.c.b16 %v2114, %v2112
    %v2935 = vpack.c.b16 %v2115, %v2113
    %v2936 = vpack.c.b16 %v2118, %v2116
    %v2937 = vpack.c.b16 %v2119, %v2117
    %v2938 = vpack.c.b16 %v2122, %v2120
    %v2939 = vpack.c.b16 %v2123, %v2121
    %v2940 = vpack.c.b16 %v2126, %v2124
    %v2941 = vpack.c.b16 %v2127, %v2125
    %v2942 = vpack.c.b16 %v2130, %v2128
    %v2943 = vpack.c.b16 %v2131, %v2129
    %v2944 = vpack.c.b16 %v2134, %v2132
    %v2945 = vpack.c.b16 %v2135, %v2133
    %v2946 = vpack.c.b16 %v2138, %v2136
    %v2947 = vpack.c.b16 %v2139, %v2137
    %v2948 = vpack.c.b16 %v2142, %v2140
    %v2949 = vpack.c.b16 %v2143, %v2141
    %v2950 = vpack.c.b16 %v2146, %v2144
    %v2951 = vpack.c.b16 %v2147, %v2145
    %v2952 = vpack.c.b16 %v2150, %v2148
    %v2953 = vpack.c.b16 %v2151, %v2149
    %v2954 = vpack.c.b16 %v2154, %v2152
    %v2955 = vpack.c.b16 %v2155, %v2153
    %v2956 = vpack.c.b16 %v2158, %v2156
    %v2957 = vpack.c.b16 %v2159, %v2157
    %v2958 = vpack.c.b16 %v2162, %v2160
    %v2959 = vpack.c.b16 %v2163, %v2161
    %v2960 = vpack.c.b16 %v2166, %v2164
    %v2961 = vpack.c.b16 %v2167, %v2165
    %v2962 = vpack.c.b16 %v2170, %v2168
    %v2963 = vpack.c.b16 %v2171, %v2169
    %v2964 = vpack.c.b16 %v2174, %v2172
    %v2965 = vpack.c.b16 %v2175, %v2173
    %v2966 = vpack.c.b16 %v2178, %v2176
    %v2967 = vpack.c.b16 %v2179, %v2177
    %v2968 = vpack.c.b16 %v2182, %v2180
    %v2969 = vpack.c.b16 %v2183, %v2181
    %v2970 = vpack.c.b16 %v2186, %v2184
    %v2971 = vpack.c.b16 %v2187, %v2185
    %v2972 = vpack.c.b16 %v2190, %v2188
    %v2973 = vpack.c.b16 %v2191, %v2189
    %v2974 = vpack.c.b16 %v2194, %v2192
    %v2975 = vpack.c.b16 %v2195, %v2193
    %v2976 = vpack.c.b16 %v2198, %v2196
    %v2977 = vpack.c.b16 %v2199, %v2197
    %v2978 = vpack.c.b16 %v2202, %v2200
    %v2979 = vpack.c.b16 %v2203, %v2201
    %v2980 = vpack.c.b16 %v2206, %v2204
    %v2981 = vpack.c.b16 %v2207, %v2205
    %v2982 = vpack.c.b16 %v2210, %v2208
    %v2983 = vpack.c.b16 %v2211, %v2209
    %v2984 = vpack.c.b16 %v2214, %v2212
    %v2985 = vpack.c.b16 %v2215, %v2213
    %v2986 = vpack.c.b16 %v2218, %v2216
    %v2987 = vpack.c.b16 %v2219, %v2217
    %v2988 = vpack.c.b16 %v2222, %v2220
    %v2989 = vpack.c.b16 %v2223, %v2221
    %v2990 = vpack.c.b16 %v2226, %v2224
    %v2991 = vpack.c.b16 %v2227, %v2225
    %v2992 = vpack.c.b16 %v2230, %v2228
    %v2993 = vpack.c.b16 %v2231, %v2229
    %v2994 = vpack.c.b16 %v2234, %v2232
    %v2995 = vpack.c.b16 %v2235, %v2233
    %v2996 = vpack.c.b16 %v2238, %v2236
    %v2997 = vpack.c.b16 %v2239, %v2237
    %v2998 = vpack.c.b16 %v2242, %v2240
    %v2999 = vpack.c.b16 %v2243, %v2241
    %v3000 = vpack.c.b16 %v2246, %v2244
    %v3001 = vpack.c.b16 %v2247, %v2245
    %v3002 = vpack.c.b16 %v2250, %v2248
    %v3003 = vpack.c.b16 %v2251, %v2249
    %v3004 = vpack.c.b16 %v2254, %v2252
    %v3005 = vpack.c.b16 %v2255, %v2253
    %v3006 = vpack.c.b16 %v2258, %v2256
    %v3007 = vpack.c.b16 %v2259, %v2257
    %v3008 = vpack.c.b16 %v2262, %v2260
    %v3009 = vpack.c.b16 %v2263, %v2261
    %v3010 = vpack.c.b16 %v2266, %v2264
    %v3011 = vpack.c.b16 %v2267, %v2265
    %v3012 = vpack.c.b16 %v2270, %v2268
    %v3013 = vpack.c.b16 %v2271, %v2269
    %v3014 = vpack.c.b16 %v2274, %v2272
    %v3015 = vpack.c.b16 %v2275, %v2273
    %v3016 = vpack.c.b16 %v2278, %v2276
    %v3017 = vpack.c.b16 %v2279, %v2277
    %v3018 = vpack.c.b16 %v2282, %v2280
    %v3019 = vpack.c.b16 %v2283, %v2281
    %v3020 = vpack.c.b16 %v2286, %v2284
    %v3021 = vpack.c.b16 %v2287, %v2285
    %v3022 = vpack.c.b16 %v2290, %v2288
    %v3023 = vpack.c.b16 %v2291, %v2289
    %v3024 = vpack.c.b16 %v2294, %v2292
    %v3025 = vpack.c.b16 %v2295, %v2293
    %v3026 = vpack.c.b16 %v2298, %v2296
    %v3027 = vpack.c.b16 %v2299, %v2297
    %v3028 = vpack.c.b16 %v2302, %v2300
    %v3029 = vpack.c.b16 %v2303, %v2301
    %v3030 = vpack.c.b16 %v2306, %v2304
    %v3031 = vpack.c.b16 %v2307, %v2305
    %v3032 = vpack.c.b16 %v2310, %v2308
    %v3033 = vpack.c.b16 %v2311, %v2309
    %v3034 = vpack.c.b16 %v2314, %v2312
    %v3035 = vpack.c.b16 %v2315, %v2313
    %v3036 = vpack.c.b16 %v2318, %v2316
    %v3037 = vpack.c.b16 %v2319, %v2317
    %v3038 = vpack.c.b16 %v2322, %v2320
    %v3039 = vpack.c.b16 %v2323, %v2321
    %v3040 = vpack.c.b16 %v2326, %v2324
    %v3041 = vpack.c.b16 %v2327, %v2325
    %v3042 = vpack.c.b16 %v2330, %v2328
    %v3043 = vpack.c.b16 %v2331, %v2329
    %v3044 = vpack.c.b16 %v2334, %v2332
    %v3045 = vpack.c.b16 %v2335, %v2333
    %v3046 = vpack.c.b16 %v2338, %v2336
    %v3047 = vpack.c.b16 %v2339, %v2337
    %v3048 = vpack.c.b16 %v2342, %v2340
    %v3049 = vpack.c.b16 %v2343, %v2341
    %v3050 = vpack.c.b16 %v2346, %v2344
    %v3051 = vpack.c.b16 %v2347, %v2345
    %v3052 = vpack.c.b16 %v2350, %v2348
    %v3053 = vpack.c.b16 %v2351, %v2349
    %v3054 = vpack.c.b16 %v2354, %v2352
    %v3055 = vpack.c.b16 %v2355, %v2353
    %v3056 = vpack.c.b16 %v2358, %v2356
    %v3057 = vpack.c.b16 %v2359, %v2357
    %v3058 = vpack.c.b16 %v2362, %v2360
    %v3059 = vpack.c.b16 %v2363, %v2361
    %v3060 = vpack.c.b16 %v2366, %v2364
    %v3061 = vpack.c.b16 %v2367, %v2365
    %v3062 = vpack.c.b16 %v2370, %v2368
    %v3063 = vpack.c.b16 %v2371, %v2369
    %v3064 = vpack.c.b16 %v2374, %v2372
    %v3065 = vpack.c.b16 %v2375, %v2373
    %v3066 = vpack.c.b16 %v2378, %v2376
    %v3067 = vpack.c.b16 %v2379, %v2377
    %v3068 = vpack.c.b16 %v2382, %v2380
    %v3069 = vpack.c.b16 %v2383, %v2381
    %v3070 = vpack.c.b16 %v2386, %v2384
    %v3071 = vpack.c.b16 %v2387, %v2385
    %v3072 = vpack.c.b16 %v2390, %v2388
    %v3073 = vpack.c.b16 %v2391, %v2389
    %v3074 = vpack.c.b16 %v2394, %v2392
    %v3075 = vpack.c.b16 %v2395, %v2393
    %v3076 = vpack.c.b16 %v2398, %v2396
    %v3077 = vpack.c.b16 %v2399, %v2397
    %v3078 = vpack.c.b16 %v2402, %v2400
    %v3079 = vpack.c.b16 %v2403, %v2401
    %v3080 = vpack.c.b16 %v2406, %v2404
    %v3081 = vpack.c.b16 %v2407, %v2405
    %v3082 = vpack.c.b16 %v2410, %v2408
    %v3083 = vpack.c.b16 %v2411, %v2409
    %v3084 = vpack.c.b16 %v2414, %v2412
    %v3085 = vpack.c.b16 %v2415, %v2413
    %v3086 = vpack.c.b16 %v2418, %v2416
    %v3087 = vpack.c.b16 %v2419, %v2417
    %v3088 = vpack.c.b16 %v2422, %v2420
    %v3089 = vpack.c.b16 %v2423, %v2421
    %v3090 = vpack.c.b16 %v2426, %v2424
    %v3091 = vpack.c.b16 %v2427, %v2425
    %v3092 = vpack.c.b16 %v2430, %v2428
    %v3093 = vpack.c.b16 %v2431, %v2429
    %v3094 = vpack.c.b16 %v2434, %v2432
    %v3095 = vpack.c.b16 %v2435, %v2433
    %v3096 = vpack.c.b16 %v2438, %v2436
    %v3097 = vpack.c.b16 %v2439, %v2437
    %v3098 = vpack.c.b16 %v2442, %v2440
    %v3099 = vpack.c.b16 %v2443, %v2441
    %v3100 = vpack.c.b16 %v2446, %v2444
    %v3101 = vpack.c.b16 %v2447, %v2445
    %v3102 = vpack.c.b16 %v2450, %v2448
    %v3103 = vpack.c.b16 %v2451, %v2449
    %v3104 = vpack.c.b16 %v2454, %v2452
    %v3105 = vpack.c.b16 %v2455, %v2453
    %v3106 = vpack.c.b16 %v2458, %v2456
    %v3107 = vpack.c.b16 %v2459, %v2457
    %v3108 = vpack.c.b16 %v2462, %v2460
    %v3109 = vpack.c.b16 %v2463, %v2461
    %v3110 = vpack.c.b16 %v2466, %v2464
    %v3111 = vpack.c.b16 %v2467, %v2465
    %v3112 = vpack.c.b16 %v2470, %v2468
    %v3113 = vpack.c.b16 %v2471, %v2469
    %v3114 = vpack.c.b16 %v2474, %v2472
    %v3115 = vpack.c.b16 %v2475, %v2473
    %v3116 = vpack.c.b16 %v2478, %v2476
    %v3117 = vpack.c.b16 %v2479, %v2477
    %v3118 = vpack.c.b16 %v2482, %v2480
    %v3119 = vpack.c.b16 %v2483, %v2481
    %v3120 = vpack.c.b16 %v2486, %v2484
    %v3121 = vpack.c.b16 %v2487, %v2485
    %v3122 = vpack.c.b16 %v2490, %v2488
    %v3123 = vpack.c.b16 %v2491, %v2489
    %v3124 = vpack.c.b16 %v2494, %v2492
    %v3125 = vpack.c.b16 %v2495, %v2493
    %v3126 = vpack.c.b16 %v2498, %v2496
    %v3127 = vpack.c.b16 %v2499, %v2497
    %v3128 = vpack.c.b16 %v2502, %v2500
    %v3129 = vpack.c.b16 %v2503, %v2501
    %v3130 = vpack.c.b16 %v2506, %v2504
    %v3131 = vpack.c.b16 %v2507, %v2505
    %v3132 = vpack.c.b16 %v2510, %v2508
    %v3133 = vpack.c.b16 %v2511, %v2509
    %v3134 = vpack.c.b16 %v2514, %v2512
    %v3135 = vpack.c.b16 %v2515, %v2513
    %v3136 = vpack.c.b16 %v2518, %v2516
    %v3137 = vpack.c.b16 %v2519, %v2517
    %v3138 = vpack.c.b16 %v2522, %v2520
    %v3139 = vpack.c.b16 %v2523, %v2521
    %v3140 = vpack.c.b16 %v2526, %v2524
    %v3141 = vpack.c.b16 %v2527, %v2525
    %v3142 = vpack.c.b16 %v2530, %v2528
    %v3143 = vpack.c.b16 %v2531, %v2529
    %v3144 = vpack.c.b16 %v2534, %v2532
    %v3145 = vpack.c.b16 %v2535, %v2533
    %v3146 = vpack.c.b16 %v2538, %v2536
    %v3147 = vpack.c.b16 %v2539, %v2537
    %v3148 = vpack.c.b16 %v2542, %v2540
    %v3149 = vpack.c.b16 %v2543, %v2541
    %v3150 = vpack.c.b16 %v2546, %v2544
    %v3151 = vpack.c.b16 %v2547, %v2545
    %v3152 = vpack.c.b16 %v2550, %v2548
    %v3153 = vpack.c.b16 %v2551, %v2549
    %v3154 = vpack.c.b16 %v2554, %v2552
    %v3155 = vpack.c.b16 %v2555, %v2553
    %v3156 = vpack.c.b16 %v2558, %v2556
    %v3157 = vpack.c.b16 %v2559, %v2557
    %v3158 = vpack.c.b16 %v2562, %v2560
    %v3159 = vpack.c.b16 %v2563, %v2561
    %v3160 = vpack.c.b16 %v2566, %v2564
    %v3161 = vpack.c.b16 %v2567, %v2565
    %v3162 = vpack.c.b16 %v2570, %v2568
    %v3163 = vpack.c.b16 %v2571, %v2569
    %v3164 = vpack.c.b16 %v2574, %v2572
    %v3165 = vpack.c.b16 %v2575, %v2573
    %v3166 = vpack.c.b16 %v2578, %v2576
    %v3167 = vpack.c.b16 %v2579, %v2577
    %v3168 = vpack.c.b16 %v2582, %v2580
    %v3169 = vpack.c.b16 %v2583, %v2581
    %v3170 = vpack.c.b16 %v2586, %v2584
    %v3171 = vpack.c.b16 %v2587, %v2585
    %v3172 = vpack.c.b16 %v2590, %v2588
    %v3173 = vpack.c.b16 %v2591, %v2589
    %v3174 = vpack.c.b16 %v2594, %v2592
    %v3175 = vpack.c.b16 %v2595, %v2593
    %v3176 = vpack.c.b16 %v2598, %v2596
    %v3177 = vpack.c.b16 %v2599, %v2597
    %v3178 = vpack.c.b16 %v2602, %v2600
    %v3179 = vpack.c.b16 %v2603, %v2601
    %3756 = vmatprep.subr.bf16.mxu0 %v2619
    %3757 = vmatpush1.bf16.msra.mxu0 %v2618
    %3758 = vmatprep.subr.bf16.mxu0 %v2617
    %3759 = vmatpush1.bf16.msra.mxu0 %v2616
    %3760 = vmatprep.subr.bf16.mxu0 %v2615
    %3761 = vmatpush1.bf16.msra.mxu0 %v2614
    %3762 = vmatprep.subr.bf16.mxu0 %v2613
    %3763 = vmatpush1.bf16.msra.mxu0 %v2612
    %3764 = vmatprep.subr.bf16.mxu0 %v2611
    %3765 = vmatpush1.bf16.msra.mxu0 %v2610
    %3766 = vmatprep.subr.bf16.mxu0 %v2609
    %3767 = vmatpush1.bf16.msra.mxu0 %v2608
    %3768 = vmatprep.subr.bf16.mxu0 %v2607
    %3769 = vmatpush1.bf16.msra.mxu0 %v2606
    %3770 = vmatprep.subr.bf16.mxu0 %v2605
    %3771 = vmatpush1.bf16.msra.mxu0 %v2604
    %3772 = vmatprep.subr.bf16.mxu0 %v2635
    %3773 = vmatpush2.bf16.msra.mxu0 %v2634
    %3774 = vmatprep.subr.bf16.mxu0 %v2633
    %3775 = vmatpush2.bf16.msra.mxu0 %v2632
    %3776 = vmatprep.subr.bf16.mxu0 %v2631
    %3777 = vmatpush2.bf16.msra.mxu0 %v2630
    %3778 = vmatprep.subr.bf16.mxu0 %v2629
    %3779 = vmatpush2.bf16.msra.mxu0 %v2628
    %3780 = vmatprep.subr.bf16.mxu0 %v2627
    %3781 = vmatpush2.bf16.msra.mxu0 %v2626
    %3782 = vmatprep.subr.bf16.mxu0 %v2625
    %3783 = vmatpush2.bf16.msra.mxu0 %v2624
    %3784 = vmatprep.subr.bf16.mxu0 %v2623
    %3785 = vmatpush2.bf16.msra.mxu0 %v2622
    %3786 = vmatprep.subr.bf16.mxu0 %v2621
    %3787 = vmatpush2.bf16.msra.mxu0 %v2620
    %3788 = vmatprep.mubr.bf16.mxu0 %v657
    %3789 = vmatmul.mubr.bf16.gmra.mxu0 %v643
    %v3790 = vpop.f32.mrf.mxu0
    %v3791 = vadd.f32 %v608, %v3790
    %v3792 = vpop.f32.mrf.mxu0
    %v3793 = vadd.f32 %v612, %v3792
    %v3794 = vpop.f32.mrf.mxu0
    %v3795 = vpop.f32.mrf.mxu0
    %3796 = vdwg.mxu0
    %3797 = vmatprep.subr.bf16.mxu0 %v2651
    %3798 = vmatpush1.bf16.msra.mxu0 %v2650
    %3799 = vmatprep.subr.bf16.mxu0 %v2649
    %3800 = vmatpush1.bf16.msra.mxu0 %v2648
    %3801 = vmatprep.subr.bf16.mxu0 %v2647
    %3802 = vmatpush1.bf16.msra.mxu0 %v2646
    %3803 = vmatprep.subr.bf16.mxu0 %v2645
    %3804 = vmatpush1.bf16.msra.mxu0 %v2644
    %3805 = vmatprep.subr.bf16.mxu0 %v2643
    %3806 = vmatpush1.bf16.msra.mxu0 %v2642
    %3807 = vmatprep.subr.bf16.mxu0 %v2641
    %3808 = vmatpush1.bf16.msra.mxu0 %v2640
    %3809 = vmatprep.subr.bf16.mxu0 %v2639
    %3810 = vmatpush1.bf16.msra.mxu0 %v2638
    %3811 = vmatprep.subr.bf16.mxu0 %v2637
    %3812 = vmatpush1.bf16.msra.mxu0 %v2636
    %3813 = vmatprep.subr.bf16.mxu0 %v2667
    %3814 = vmatpush2.bf16.msra.mxu0 %v2666
    %3815 = vmatprep.subr.bf16.mxu0 %v2665
    %3816 = vmatpush2.bf16.msra.mxu0 %v2664
    %3817 = vmatprep.subr.bf16.mxu0 %v2663
    %3818 = vmatpush2.bf16.msra.mxu0 %v2662
    %3819 = vmatprep.subr.bf16.mxu0 %v2661
    %3820 = vmatpush2.bf16.msra.mxu0 %v2660
    %3821 = vmatprep.subr.bf16.mxu0 %v2659
    %3822 = vmatpush2.bf16.msra.mxu0 %v2658
    %3823 = vmatprep.subr.bf16.mxu0 %v2657
    %3824 = vmatpush2.bf16.msra.mxu0 %v2656
    %3825 = vmatprep.subr.bf16.mxu0 %v2655
    %3826 = vmatpush2.bf16.msra.mxu0 %v2654
    %3827 = vmatprep.subr.bf16.mxu0 %v2653
    %3828 = vmatpush2.bf16.msra.mxu0 %v2652
    %3829 = vmatprep.mubr.bf16.mxu0 %v667
    %3830 = vmatmul.mubr.bf16.gmra.mxu0 %v665
    %v3831 = vpop.f32.mrf.mxu0
    %v3832 = vadd.f32 %v3791, %v3831
    %v3833 = vpop.f32.mrf.mxu0
    %v3834 = vadd.f32 %v3793, %v3833
    %v3835 = vpop.f32.mrf.mxu0
    %v3836 = vpop.f32.mrf.mxu0
    %3837 = vdwg.mxu0
    %3838 = vmatprep.subr.bf16.mxu0 %v2683
    %3839 = vmatpush1.bf16.msra.mxu0 %v2682
    %3840 = vmatprep.subr.bf16.mxu0 %v2681
    %3841 = vmatpush1.bf16.msra.mxu0 %v2680
    %3842 = vmatprep.subr.bf16.mxu0 %v2679
    %3843 = vmatpush1.bf16.msra.mxu0 %v2678
    %3844 = vmatprep.subr.bf16.mxu0 %v2677
    %3845 = vmatpush1.bf16.msra.mxu0 %v2676
    %3846 = vmatprep.subr.bf16.mxu0 %v2675
    %3847 = vmatpush1.bf16.msra.mxu0 %v2674
    %3848 = vmatprep.subr.bf16.mxu0 %v2673
    %3849 = vmatpush1.bf16.msra.mxu0 %v2672
    %3850 = vmatprep.subr.bf16.mxu0 %v2671
    %3851 = vmatpush1.bf16.msra.mxu0 %v2670
    %3852 = vmatprep.subr.bf16.mxu0 %v2669
    %3853 = vmatpush1.bf16.msra.mxu0 %v2668
    %3854 = vmatprep.subr.bf16.mxu0 %v2699
    %3855 = vmatpush2.bf16.msra.mxu0 %v2698
    %3856 = vmatprep.subr.bf16.mxu0 %v2697
    %3857 = vmatpush2.bf16.msra.mxu0 %v2696
    %3858 = vmatprep.subr.bf16.mxu0 %v2695
    %3859 = vmatpush2.bf16.msra.mxu0 %v2694
    %3860 = vmatprep.subr.bf16.mxu0 %v2693
    %3861 = vmatpush2.bf16.msra.mxu0 %v2692
    %3862 = vmatprep.subr.bf16.mxu0 %v2691
    %3863 = vmatpush2.bf16.msra.mxu0 %v2690
    %3864 = vmatprep.subr.bf16.mxu0 %v2689
    %3865 = vmatpush2.bf16.msra.mxu0 %v2688
    %3866 = vmatprep.subr.bf16.mxu0 %v2687
    %3867 = vmatpush2.bf16.msra.mxu0 %v2686
    %3868 = vmatprep.subr.bf16.mxu0 %v2685
    %3869 = vmatpush2.bf16.msra.mxu0 %v2684
    %3870 = vmatprep.mubr.bf16.mxu0 %v664
    %3871 = vmatmul.mubr.bf16.gmra.mxu0 %v650
    %v3872 = vpop.f32.mrf.mxu0
    %v3873 = vadd.f32 %v3832, %v3872
    %v3874 = vpop.f32.mrf.mxu0
    %v3875 = vadd.f32 %v3834, %v3874
    %v3876 = vpop.f32.mrf.mxu0
    %v3877 = vpop.f32.mrf.mxu0
    %3878 = vdwg.mxu0
    %3879 = vmatprep.subr.bf16.mxu0 %v2715
    %3880 = vmatpush1.bf16.msra.mxu0 %v2714
    %3881 = vmatprep.subr.bf16.mxu0 %v2713
    %3882 = vmatpush1.bf16.msra.mxu0 %v2712
    %3883 = vmatprep.subr.bf16.mxu0 %v2711
    %3884 = vmatpush1.bf16.msra.mxu0 %v2710
    %3885 = vmatprep.subr.bf16.mxu0 %v2709
    %3886 = vmatpush1.bf16.msra.mxu0 %v2708
    %3887 = vmatprep.subr.bf16.mxu0 %v2707
    %3888 = vmatpush1.bf16.msra.mxu0 %v2706
    %3889 = vmatprep.subr.bf16.mxu0 %v2705
    %3890 = vmatpush1.bf16.msra.mxu0 %v2704
    %3891 = vmatprep.subr.bf16.mxu0 %v2703
    %3892 = vmatpush1.bf16.msra.mxu0 %v2702
    %3893 = vmatprep.subr.bf16.mxu0 %v2701
    %3894 = vmatpush1.bf16.msra.mxu0 %v2700
    %3895 = vmatprep.subr.bf16.mxu0 %v2731
    %3896 = vmatpush2.bf16.msra.mxu0 %v2730
    %3897 = vmatprep.subr.bf16.mxu0 %v2729
    %3898 = vmatpush2.bf16.msra.mxu0 %v2728
    %3899 = vmatprep.subr.bf16.mxu0 %v2727
    %3900 = vmatpush2.bf16.msra.mxu0 %v2726
    %3901 = vmatprep.subr.bf16.mxu0 %v2725
    %3902 = vmatpush2.bf16.msra.mxu0 %v2724
    %3903 = vmatprep.subr.bf16.mxu0 %v2723
    %3904 = vmatpush2.bf16.msra.mxu0 %v2722
    %3905 = vmatprep.subr.bf16.mxu0 %v2721
    %3906 = vmatpush2.bf16.msra.mxu0 %v2720
    %3907 = vmatprep.subr.bf16.mxu0 %v2719
    %3908 = vmatpush2.bf16.msra.mxu0 %v2718
    %3909 = vmatprep.subr.bf16.mxu0 %v2717
    %3910 = vmatpush2.bf16.msra.mxu0 %v2716
    %3911 = vmatprep.mubr.bf16.mxu0 %v668
    %3912 = vmatmul.mubr.bf16.gmra.mxu0 %v666
    %v3913 = vpop.f32.mrf.mxu0
    %v3914 = vadd.f32 %v3873, %v3913
    %v3915 = vpop.f32.mrf.mxu0
    %v3916 = vadd.f32 %v3875, %v3915
    %v3917 = vpop.f32.mrf.mxu0
    %v3918 = vpop.f32.mrf.mxu0
    %3919 = vdwg.mxu0
    %3920 = vmatprep.subr.bf16.mxu0 %v2747
    %3921 = vmatpush1.bf16.msra.mxu0 %v2746
    %3922 = vmatprep.subr.bf16.mxu0 %v2745
    %3923 = vmatpush1.bf16.msra.mxu0 %v2744
    %3924 = vmatprep.subr.bf16.mxu0 %v2743
    %3925 = vmatpush1.bf16.msra.mxu0 %v2742
    %3926 = vmatprep.subr.bf16.mxu0 %v2741
    %3927 = vmatpush1.bf16.msra.mxu0 %v2740
    %3928 = vmatprep.subr.bf16.mxu0 %v2739
    %3929 = vmatpush1.bf16.msra.mxu0 %v2738
    %3930 = vmatprep.subr.bf16.mxu0 %v2737
    %3931 = vmatpush1.bf16.msra.mxu0 %v2736
    %3932 = vmatprep.subr.bf16.mxu0 %v2735
    %3933 = vmatpush1.bf16.msra.mxu0 %v2734
    %3934 = vmatprep.subr.bf16.mxu0 %v2733
    %3935 = vmatpush1.bf16.msra.mxu0 %v2732
    %3936 = vmatprep.subr.bf16.mxu0 %v2763
    %3937 = vmatpush2.bf16.msra.mxu0 %v2762
    %3938 = vmatprep.subr.bf16.mxu0 %v2761
    %3939 = vmatpush2.bf16.msra.mxu0 %v2760
    %3940 = vmatprep.subr.bf16.mxu0 %v2759
    %3941 = vmatpush2.bf16.msra.mxu0 %v2758
    %3942 = vmatprep.subr.bf16.mxu0 %v2757
    %3943 = vmatpush2.bf16.msra.mxu0 %v2756
    %3944 = vmatprep.subr.bf16.mxu0 %v2755
    %3945 = vmatpush2.bf16.msra.mxu0 %v2754
    %3946 = vmatprep.subr.bf16.mxu0 %v2753
    %3947 = vmatpush2.bf16.msra.mxu0 %v2752
    %3948 = vmatprep.subr.bf16.mxu0 %v2751
    %3949 = vmatpush2.bf16.msra.mxu0 %v2750
    %3950 = vmatprep.subr.bf16.mxu0 %v2749
    %3951 = vmatpush2.bf16.msra.mxu0 %v2748
    %3952 = vmatprep.mubr.bf16.mxu0 %v706
    %3953 = vmatmul.mubr.bf16.gmra.mxu0 %v692
    %v3954 = vpop.f32.mrf.mxu0
    %v3955 = vadd.f32 %v3914, %v3954
    %v3956 = vpop.f32.mrf.mxu0
    %v3957 = vadd.f32 %v3916, %v3956
    %v3958 = vpop.f32.mrf.mxu0
    %v3959 = vpop.f32.mrf.mxu0
    %3960 = vdwg.mxu0
    %3961 = vmatprep.subr.bf16.mxu0 %v2779
    %3962 = vmatpush1.bf16.msra.mxu0 %v2778
    %3963 = vmatprep.subr.bf16.mxu0 %v2777
    %3964 = vmatpush1.bf16.msra.mxu0 %v2776
    %3965 = vmatprep.subr.bf16.mxu0 %v2775
    %3966 = vmatpush1.bf16.msra.mxu0 %v2774
    %3967 = vmatprep.subr.bf16.mxu0 %v2773
    %3968 = vmatpush1.bf16.msra.mxu0 %v2772
    %3969 = vmatprep.subr.bf16.mxu0 %v2771
    %3970 = vmatpush1.bf16.msra.mxu0 %v2770
    %3971 = vmatprep.subr.bf16.mxu0 %v2769
    %3972 = vmatpush1.bf16.msra.mxu0 %v2768
    %3973 = vmatprep.subr.bf16.mxu0 %v2767
    %3974 = vmatpush1.bf16.msra.mxu0 %v2766
    %3975 = vmatprep.subr.bf16.mxu0 %v2765
    %3976 = vmatpush1.bf16.msra.mxu0 %v2764
    %3977 = vmatprep.subr.bf16.mxu0 %v2795
    %3978 = vmatpush2.bf16.msra.mxu0 %v2794
    %3979 = vmatprep.subr.bf16.mxu0 %v2793
    %3980 = vmatpush2.bf16.msra.mxu0 %v2792
    %3981 = vmatprep.subr.bf16.mxu0 %v2791
    %3982 = vmatpush2.bf16.msra.mxu0 %v2790
    %3983 = vmatprep.subr.bf16.mxu0 %v2789
    %3984 = vmatpush2.bf16.msra.mxu0 %v2788
    %3985 = vmatprep.subr.bf16.mxu0 %v2787
    %3986 = vmatpush2.bf16.msra.mxu0 %v2786
    %3987 = vmatprep.subr.bf16.mxu0 %v2785
    %3988 = vmatpush2.bf16.msra.mxu0 %v2784
    %3989 = vmatprep.subr.bf16.mxu0 %v2783
    %3990 = vmatpush2.bf16.msra.mxu0 %v2782
    %3991 = vmatprep.subr.bf16.mxu0 %v2781
    %3992 = vmatpush2.bf16.msra.mxu0 %v2780
    %3993 = vmatprep.mubr.bf16.mxu0 %v716
    %3994 = vmatmul.mubr.bf16.gmra.mxu0 %v714
    %v3995 = vpop.f32.mrf.mxu0
    %v3996 = vadd.f32 %v3955, %v3995
    %v3997 = vpop.f32.mrf.mxu0
    %v3998 = vadd.f32 %v3957, %v3997
    %v3999 = vpop.f32.mrf.mxu0
    %v4000 = vpop.f32.mrf.mxu0
    %4001 = vdwg.mxu0
    %4002 = vmatprep.subr.bf16.mxu0 %v2811
    %4003 = vmatpush1.bf16.msra.mxu0 %v2810
    %4004 = vmatprep.subr.bf16.mxu0 %v2809
    %4005 = vmatpush1.bf16.msra.mxu0 %v2808
    %4006 = vmatprep.subr.bf16.mxu0 %v2807
    %4007 = vmatpush1.bf16.msra.mxu0 %v2806
    %4008 = vmatprep.subr.bf16.mxu0 %v2805
    %4009 = vmatpush1.bf16.msra.mxu0 %v2804
    %4010 = vmatprep.subr.bf16.mxu0 %v2803
    %4011 = vmatpush1.bf16.msra.mxu0 %v2802
    %4012 = vmatprep.subr.bf16.mxu0 %v2801
    %4013 = vmatpush1.bf16.msra.mxu0 %v2800
    %4014 = vmatprep.subr.bf16.mxu0 %v2799
    %4015 = vmatpush1.bf16.msra.mxu0 %v2798
    %4016 = vmatprep.subr.bf16.mxu0 %v2797
    %4017 = vmatpush1.bf16.msra.mxu0 %v2796
    %4018 = vmatprep.subr.bf16.mxu0 %v2827
    %4019 = vmatpush2.bf16.msra.mxu0 %v2826
    %4020 = vmatprep.subr.bf16.mxu0 %v2825
    %4021 = vmatpush2.bf16.msra.mxu0 %v2824
    %4022 = vmatprep.subr.bf16.mxu0 %v2823
    %4023 = vmatpush2.bf16.msra.mxu0 %v2822
    %4024 = vmatprep.subr.bf16.mxu0 %v2821
    %4025 = vmatpush2.bf16.msra.mxu0 %v2820
    %4026 = vmatprep.subr.bf16.mxu0 %v2819
    %4027 = vmatpush2.bf16.msra.mxu0 %v2818
    %4028 = vmatprep.subr.bf16.mxu0 %v2817
    %4029 = vmatpush2.bf16.msra.mxu0 %v2816
    %4030 = vmatprep.subr.bf16.mxu0 %v2815
    %4031 = vmatpush2.bf16.msra.mxu0 %v2814
    %4032 = vmatprep.subr.bf16.mxu0 %v2813
    %4033 = vmatpush2.bf16.msra.mxu0 %v2812
    %4034 = vmatprep.mubr.bf16.mxu0 %v713
    %4035 = vmatmul.mubr.bf16.gmra.mxu0 %v699
    %v4036 = vpop.f32.mrf.mxu0
    %v4037 = vadd.f32 %v3996, %v4036
    %v4038 = vpop.f32.mrf.mxu0
    %v4039 = vadd.f32 %v3998, %v4038
    %v4040 = vpop.f32.mrf.mxu0
    %v4041 = vpop.f32.mrf.mxu0
    %4042 = vdwg.mxu0
    %4043 = vmatprep.subr.bf16.mxu0 %v2843
    %4044 = vmatpush1.bf16.msra.mxu0 %v2842
    %4045 = vmatprep.subr.bf16.mxu0 %v2841
    %4046 = vmatpush1.bf16.msra.mxu0 %v2840
    %4047 = vmatprep.subr.bf16.mxu0 %v2839
    %4048 = vmatpush1.bf16.msra.mxu0 %v2838
    %4049 = vmatprep.subr.bf16.mxu0 %v2837
    %4050 = vmatpush1.bf16.msra.mxu0 %v2836
    %4051 = vmatprep.subr.bf16.mxu0 %v2835
    %4052 = vmatpush1.bf16.msra.mxu0 %v2834
    %4053 = vmatprep.subr.bf16.mxu0 %v2833
    %4054 = vmatpush1.bf16.msra.mxu0 %v2832
    %4055 = vmatprep.subr.bf16.mxu0 %v2831
    %4056 = vmatpush1.bf16.msra.mxu0 %v2830
    %4057 = vmatprep.subr.bf16.mxu0 %v2829
    %4058 = vmatpush1.bf16.msra.mxu0 %v2828
    %4059 = vmatprep.subr.bf16.mxu0 %v2859
    %4060 = vmatpush2.bf16.msra.mxu0 %v2858
    %4061 = vmatprep.subr.bf16.mxu0 %v2857
    %4062 = vmatpush2.bf16.msra.mxu0 %v2856
    %4063 = vmatprep.subr.bf16.mxu0 %v2855
    %4064 = vmatpush2.bf16.msra.mxu0 %v2854
    %4065 = vmatprep.subr.bf16.mxu0 %v2853
    %4066 = vmatpush2.bf16.msra.mxu0 %v2852
    %4067 = vmatprep.subr.bf16.mxu0 %v2851
    %4068 = vmatpush2.bf16.msra.mxu0 %v2850
    %4069 = vmatprep.subr.bf16.mxu0 %v2849
    %4070 = vmatpush2.bf16.msra.mxu0 %v2848
    %4071 = vmatprep.subr.bf16.mxu0 %v2847
    %4072 = vmatpush2.bf16.msra.mxu0 %v2846
    %4073 = vmatprep.subr.bf16.mxu0 %v2845
    %4074 = vmatpush2.bf16.msra.mxu0 %v2844
    %4075 = vmatprep.mubr.bf16.mxu0 %v717
    %4076 = vmatmul.mubr.bf16.gmra.mxu0 %v715
    %v4077 = vpop.f32.mrf.mxu0
    %v4078 = vadd.f32 %v4037, %v4077
    %v4079 = vpop.f32.mrf.mxu0
    %v4080 = vadd.f32 %v4039, %v4079
    %v4081 = vpop.f32.mrf.mxu0
    %v4082 = vpop.f32.mrf.mxu0
    %4083 = vdwg.mxu0
    %4084 = vmatprep.subr.bf16.mxu0 %v2875
    %4085 = vmatpush1.bf16.msra.mxu0 %v2874
    %4086 = vmatprep.subr.bf16.mxu0 %v2873
    %4087 = vmatpush1.bf16.msra.mxu0 %v2872
    %4088 = vmatprep.subr.bf16.mxu0 %v2871
    %4089 = vmatpush1.bf16.msra.mxu0 %v2870
    %4090 = vmatprep.subr.bf16.mxu0 %v2869
    %4091 = vmatpush1.bf16.msra.mxu0 %v2868
    %4092 = vmatprep.subr.bf16.mxu0 %v2867
    %4093 = vmatpush1.bf16.msra.mxu0 %v2866
    %4094 = vmatprep.subr.bf16.mxu0 %v2865
    %4095 = vmatpush1.bf16.msra.mxu0 %v2864
    %4096 = vmatprep.subr.bf16.mxu0 %v2863
    %4097 = vmatpush1.bf16.msra.mxu0 %v2862
    %4098 = vmatprep.subr.bf16.mxu0 %v2861
    %4099 = vmatpush1.bf16.msra.mxu0 %v2860
    %4100 = vmatprep.subr.bf16.mxu0 %v2891
    %4101 = vmatpush2.bf16.msra.mxu0 %v2890
    %4102 = vmatprep.subr.bf16.mxu0 %v2889
    %4103 = vmatpush2.bf16.msra.mxu0 %v2888
    %4104 = vmatprep.subr.bf16.mxu0 %v2887
    %4105 = vmatpush2.bf16.msra.mxu0 %v2886
    %4106 = vmatprep.subr.bf16.mxu0 %v2885
    %4107 = vmatpush2.bf16.msra.mxu0 %v2884
    %4108 = vmatprep.subr.bf16.mxu0 %v2883
    %4109 = vmatpush2.bf16.msra.mxu0 %v2882
    %4110 = vmatprep.subr.bf16.mxu0 %v2881
    %4111 = vmatpush2.bf16.msra.mxu0 %v2880
    %4112 = vmatprep.subr.bf16.mxu0 %v2879
    %4113 = vmatpush2.bf16.msra.mxu0 %v2878
    %4114 = vmatprep.subr.bf16.mxu0 %v2877
    %4115 = vmatpush2.bf16.msra.mxu0 %v2876
    %4116 = vmatprep.mubr.bf16.mxu0 %v755
    %4117 = vmatmul.mubr.bf16.gmra.mxu0 %v741
    %v4118 = vpop.f32.mrf.mxu0
    %v4119 = vadd.f32 %v4078, %v4118
    %v4120 = vpop.f32.mrf.mxu0
    %v4121 = vadd.f32 %v4080, %v4120
    %v4122 = vpop.f32.mrf.mxu0
    %v4123 = vpop.f32.mrf.mxu0
    %4124 = vdwg.mxu0
    %4125 = vmatprep.subr.bf16.mxu0 %v2907
    %4126 = vmatpush1.bf16.msra.mxu0 %v2906
    %4127 = vmatprep.subr.bf16.mxu0 %v2905
    %4128 = vmatpush1.bf16.msra.mxu0 %v2904
    %4129 = vmatprep.subr.bf16.mxu0 %v2903
    %4130 = vmatpush1.bf16.msra.mxu0 %v2902
    %4131 = vmatprep.subr.bf16.mxu0 %v2901
    %4132 = vmatpush1.bf16.msra.mxu0 %v2900
    %4133 = vmatprep.subr.bf16.mxu0 %v2899
    %4134 = vmatpush1.bf16.msra.mxu0 %v2898
    %4135 = vmatprep.subr.bf16.mxu0 %v2897
    %4136 = vmatpush1.bf16.msra.mxu0 %v2896
    %4137 = vmatprep.subr.bf16.mxu0 %v2895
    %4138 = vmatpush1.bf16.msra.mxu0 %v2894
    %4139 = vmatprep.subr.bf16.mxu0 %v2893
    %4140 = vmatpush1.bf16.msra.mxu0 %v2892
    %4141 = vmatprep.subr.bf16.mxu0 %v2923
    %4142 = vmatpush2.bf16.msra.mxu0 %v2922
    %4143 = vmatprep.subr.bf16.mxu0 %v2921
    %4144 = vmatpush2.bf16.msra.mxu0 %v2920
    %4145 = vmatprep.subr.bf16.mxu0 %v2919
    %4146 = vmatpush2.bf16.msra.mxu0 %v2918
    %4147 = vmatprep.subr.bf16.mxu0 %v2917
    %4148 = vmatpush2.bf16.msra.mxu0 %v2916
    %4149 = vmatprep.subr.bf16.mxu0 %v2915
    %4150 = vmatpush2.bf16.msra.mxu0 %v2914
    %4151 = vmatprep.subr.bf16.mxu0 %v2913
    %4152 = vmatpush2.bf16.msra.mxu0 %v2912
    %4153 = vmatprep.subr.bf16.mxu0 %v2911
    %4154 = vmatpush2.bf16.msra.mxu0 %v2910
    %4155 = vmatprep.subr.bf16.mxu0 %v2909
    %4156 = vmatpush2.bf16.msra.mxu0 %v2908
    %4157 = vmatprep.mubr.bf16.mxu0 %v765
    %4158 = vmatmul.mubr.bf16.gmra.mxu0 %v763
    %v4159 = vpop.f32.mrf.mxu0
    %v4160 = vadd.f32 %v4119, %v4159
    %v4161 = vpop.f32.mrf.mxu0
    %v4162 = vadd.f32 %v4121, %v4161
    %v4163 = vpop.f32.mrf.mxu0
    %v4164 = vpop.f32.mrf.mxu0
    %4165 = vdwg.mxu0
    %4166 = vmatprep.subr.bf16.mxu0 %v2939
    %4167 = vmatpush1.bf16.msra.mxu0 %v2938
    %4168 = vmatprep.subr.bf16.mxu0 %v2937
    %4169 = vmatpush1.bf16.msra.mxu0 %v2936
    %4170 = vmatprep.subr.bf16.mxu0 %v2935
    %4171 = vmatpush1.bf16.msra.mxu0 %v2934
    %4172 = vmatprep.subr.bf16.mxu0 %v2933
    %4173 = vmatpush1.bf16.msra.mxu0 %v2932
    %4174 = vmatprep.subr.bf16.mxu0 %v2931
    %4175 = vmatpush1.bf16.msra.mxu0 %v2930
    %4176 = vmatprep.subr.bf16.mxu0 %v2929
    %4177 = vmatpush1.bf16.msra.mxu0 %v2928
    %4178 = vmatprep.subr.bf16.mxu0 %v2927
    %4179 = vmatpush1.bf16.msra.mxu0 %v2926
    %4180 = vmatprep.subr.bf16.mxu0 %v2925
    %4181 = vmatpush1.bf16.msra.mxu0 %v2924
    %4182 = vmatprep.subr.bf16.mxu0 %v2955
    %4183 = vmatpush2.bf16.msra.mxu0 %v2954
    %4184 = vmatprep.subr.bf16.mxu0 %v2953
    %4185 = vmatpush2.bf16.msra.mxu0 %v2952
    %4186 = vmatprep.subr.bf16.mxu0 %v2951
    %4187 = vmatpush2.bf16.msra.mxu0 %v2950
    %4188 = vmatprep.subr.bf16.mxu0 %v2949
    %4189 = vmatpush2.bf16.msra.mxu0 %v2948
    %4190 = vmatprep.subr.bf16.mxu0 %v2947
    %4191 = vmatpush2.bf16.msra.mxu0 %v2946
    %4192 = vmatprep.subr.bf16.mxu0 %v2945
    %4193 = vmatpush2.bf16.msra.mxu0 %v2944
    %4194 = vmatprep.subr.bf16.mxu0 %v2943
    %4195 = vmatpush2.bf16.msra.mxu0 %v2942
    %4196 = vmatprep.subr.bf16.mxu0 %v2941
    %4197 = vmatpush2.bf16.msra.mxu0 %v2940
    %4198 = vmatprep.mubr.bf16.mxu0 %v762
    %4199 = vmatmul.mubr.bf16.gmra.mxu0 %v748
    %v4200 = vpop.f32.mrf.mxu0
    %v4201 = vadd.f32 %v4160, %v4200
    %v4202 = vpop.f32.mrf.mxu0
    %v4203 = vadd.f32 %v4162, %v4202
    %v4204 = vpop.f32.mrf.mxu0
    %v4205 = vpop.f32.mrf.mxu0
    %4206 = vdwg.mxu0
    %4207 = vmatprep.subr.bf16.mxu0 %v2971
    %4208 = vmatpush1.bf16.msra.mxu0 %v2970
    %4209 = vmatprep.subr.bf16.mxu0 %v2969
    %4210 = vmatpush1.bf16.msra.mxu0 %v2968
    %4211 = vmatprep.subr.bf16.mxu0 %v2967
    %4212 = vmatpush1.bf16.msra.mxu0 %v2966
    %4213 = vmatprep.subr.bf16.mxu0 %v2965
    %4214 = vmatpush1.bf16.msra.mxu0 %v2964
    %4215 = vmatprep.subr.bf16.mxu0 %v2963
    %4216 = vmatpush1.bf16.msra.mxu0 %v2962
    %4217 = vmatprep.subr.bf16.mxu0 %v2961
    %4218 = vmatpush1.bf16.msra.mxu0 %v2960
    %4219 = vmatprep.subr.bf16.mxu0 %v2959
    %4220 = vmatpush1.bf16.msra.mxu0 %v2958
    %4221 = vmatprep.subr.bf16.mxu0 %v2957
    %4222 = vmatpush1.bf16.msra.mxu0 %v2956
    %4223 = vmatprep.subr.bf16.mxu0 %v2987
    %4224 = vmatpush2.bf16.msra.mxu0 %v2986
    %4225 = vmatprep.subr.bf16.mxu0 %v2985
    %4226 = vmatpush2.bf16.msra.mxu0 %v2984
    %4227 = vmatprep.subr.bf16.mxu0 %v2983
    %4228 = vmatpush2.bf16.msra.mxu0 %v2982
    %4229 = vmatprep.subr.bf16.mxu0 %v2981
    %4230 = vmatpush2.bf16.msra.mxu0 %v2980
    %4231 = vmatprep.subr.bf16.mxu0 %v2979
    %4232 = vmatpush2.bf16.msra.mxu0 %v2978
    %4233 = vmatprep.subr.bf16.mxu0 %v2977
    %4234 = vmatpush2.bf16.msra.mxu0 %v2976
    %4235 = vmatprep.subr.bf16.mxu0 %v2975
    %4236 = vmatpush2.bf16.msra.mxu0 %v2974
    %4237 = vmatprep.subr.bf16.mxu0 %v2973
    %4238 = vmatpush2.bf16.msra.mxu0 %v2972
    %4239 = vmatprep.mubr.bf16.mxu0 %v766
    %4240 = vmatmul.mubr.bf16.gmra.mxu0 %v764
    %v4241 = vpop.f32.mrf.mxu0
    %v4242 = vadd.f32 %v4201, %v4241
    %v4243 = vpop.f32.mrf.mxu0
    %v4244 = vadd.f32 %v4203, %v4243
    %v4245 = vpop.f32.mrf.mxu0
    %v4246 = vpop.f32.mrf.mxu0
    %4247 = vdwg.mxu0
    %4248 = vmatprep.subr.bf16.mxu0 %v3003
    %4249 = vmatpush1.bf16.msra.mxu0 %v3002
    %4250 = vmatprep.subr.bf16.mxu0 %v3001
    %4251 = vmatpush1.bf16.msra.mxu0 %v3000
    %4252 = vmatprep.subr.bf16.mxu0 %v2999
    %4253 = vmatpush1.bf16.msra.mxu0 %v2998
    %4254 = vmatprep.subr.bf16.mxu0 %v2997
    %4255 = vmatpush1.bf16.msra.mxu0 %v2996
    %4256 = vmatprep.subr.bf16.mxu0 %v2995
    %4257 = vmatpush1.bf16.msra.mxu0 %v2994
    %4258 = vmatprep.subr.bf16.mxu0 %v2993
    %4259 = vmatpush1.bf16.msra.mxu0 %v2992
    %4260 = vmatprep.subr.bf16.mxu0 %v2991
    %4261 = vmatpush1.bf16.msra.mxu0 %v2990
    %4262 = vmatprep.subr.bf16.mxu0 %v2989
    %4263 = vmatpush1.bf16.msra.mxu0 %v2988
    %4264 = vmatprep.subr.bf16.mxu0 %v3019
    %4265 = vmatpush2.bf16.msra.mxu0 %v3018
    %4266 = vmatprep.subr.bf16.mxu0 %v3017
    %4267 = vmatpush2.bf16.msra.mxu0 %v3016
    %4268 = vmatprep.subr.bf16.mxu0 %v3015
    %4269 = vmatpush2.bf16.msra.mxu0 %v3014
    %4270 = vmatprep.subr.bf16.mxu0 %v3013
    %4271 = vmatpush2.bf16.msra.mxu0 %v3012
    %4272 = vmatprep.subr.bf16.mxu0 %v3011
    %4273 = vmatpush2.bf16.msra.mxu0 %v3010
    %4274 = vmatprep.subr.bf16.mxu0 %v3009
    %4275 = vmatpush2.bf16.msra.mxu0 %v3008
    %4276 = vmatprep.subr.bf16.mxu0 %v3007
    %4277 = vmatpush2.bf16.msra.mxu0 %v3006
    %4278 = vmatprep.subr.bf16.mxu0 %v3005
    %4279 = vmatpush2.bf16.msra.mxu0 %v3004
    %4280 = vmatprep.mubr.bf16.mxu0 %v804
    %4281 = vmatmul.mubr.bf16.gmra.mxu0 %v790
    %v4282 = vpop.f32.mrf.mxu0
    %v4283 = vadd.f32 %v4242, %v4282
    %v4284 = vpop.f32.mrf.mxu0
    %v4285 = vadd.f32 %v4244, %v4284
    %v4286 = vpop.f32.mrf.mxu0
    %v4287 = vpop.f32.mrf.mxu0
    %4288 = vdwg.mxu0
    %4289 = vmatprep.subr.bf16.mxu0 %v3035
    %4290 = vmatpush1.bf16.msra.mxu0 %v3034
    %4291 = vmatprep.subr.bf16.mxu0 %v3033
    %4292 = vmatpush1.bf16.msra.mxu0 %v3032
    %4293 = vmatprep.subr.bf16.mxu0 %v3031
    %4294 = vmatpush1.bf16.msra.mxu0 %v3030
    %4295 = vmatprep.subr.bf16.mxu0 %v3029
    %4296 = vmatpush1.bf16.msra.mxu0 %v3028
    %4297 = vmatprep.subr.bf16.mxu0 %v3027
    %4298 = vmatpush1.bf16.msra.mxu0 %v3026
    %4299 = vmatprep.subr.bf16.mxu0 %v3025
    %4300 = vmatpush1.bf16.msra.mxu0 %v3024
    %4301 = vmatprep.subr.bf16.mxu0 %v3023
    %4302 = vmatpush1.bf16.msra.mxu0 %v3022
    %4303 = vmatprep.subr.bf16.mxu0 %v3021
    %4304 = vmatpush1.bf16.msra.mxu0 %v3020
    %4305 = vmatprep.subr.bf16.mxu0 %v3051
    %4306 = vmatpush2.bf16.msra.mxu0 %v3050
    %4307 = vmatprep.subr.bf16.mxu0 %v3049
    %4308 = vmatpush2.bf16.msra.mxu0 %v3048
    %4309 = vmatprep.subr.bf16.mxu0 %v3047
    %4310 = vmatpush2.bf16.msra.mxu0 %v3046
    %4311 = vmatprep.subr.bf16.mxu0 %v3045
    %4312 = vmatpush2.bf16.msra.mxu0 %v3044
    %4313 = vmatprep.subr.bf16.mxu0 %v3043
    %4314 = vmatpush2.bf16.msra.mxu0 %v3042
    %4315 = vmatprep.subr.bf16.mxu0 %v3041
    %4316 = vmatpush2.bf16.msra.mxu0 %v3040
    %4317 = vmatprep.subr.bf16.mxu0 %v3039
    %4318 = vmatpush2.bf16.msra.mxu0 %v3038
    %4319 = vmatprep.subr.bf16.mxu0 %v3037
    %4320 = vmatpush2.bf16.msra.mxu0 %v3036
    %4321 = vmatprep.mubr.bf16.mxu0 %v814
    %4322 = vmatmul.mubr.bf16.gmra.mxu0 %v812
    %v4323 = vpop.f32.mrf.mxu0
    %v4324 = vadd.f32 %v4283, %v4323
    %v4325 = vpop.f32.mrf.mxu0
    %v4326 = vadd.f32 %v4285, %v4325
    %v4327 = vpop.f32.mrf.mxu0
    %v4328 = vpop.f32.mrf.mxu0
    %4329 = vdwg.mxu0
    %4330 = vmatprep.subr.bf16.mxu0 %v3067
    %4331 = vmatpush1.bf16.msra.mxu0 %v3066
    %4332 = vmatprep.subr.bf16.mxu0 %v3065
    %4333 = vmatpush1.bf16.msra.mxu0 %v3064
    %4334 = vmatprep.subr.bf16.mxu0 %v3063
    %4335 = vmatpush1.bf16.msra.mxu0 %v3062
    %4336 = vmatprep.subr.bf16.mxu0 %v3061
    %4337 = vmatpush1.bf16.msra.mxu0 %v3060
    %4338 = vmatprep.subr.bf16.mxu0 %v3059
    %4339 = vmatpush1.bf16.msra.mxu0 %v3058
    %4340 = vmatprep.subr.bf16.mxu0 %v3057
    %4341 = vmatpush1.bf16.msra.mxu0 %v3056
    %4342 = vmatprep.subr.bf16.mxu0 %v3055
    %4343 = vmatpush1.bf16.msra.mxu0 %v3054
    %4344 = vmatprep.subr.bf16.mxu0 %v3053
    %4345 = vmatpush1.bf16.msra.mxu0 %v3052
    %4346 = vmatprep.subr.bf16.mxu0 %v3083
    %4347 = vmatpush2.bf16.msra.mxu0 %v3082
    %4348 = vmatprep.subr.bf16.mxu0 %v3081
    %4349 = vmatpush2.bf16.msra.mxu0 %v3080
    %4350 = vmatprep.subr.bf16.mxu0 %v3079
    %4351 = vmatpush2.bf16.msra.mxu0 %v3078
    %4352 = vmatprep.subr.bf16.mxu0 %v3077
    %4353 = vmatpush2.bf16.msra.mxu0 %v3076
    %4354 = vmatprep.subr.bf16.mxu0 %v3075
    %4355 = vmatpush2.bf16.msra.mxu0 %v3074
    %4356 = vmatprep.subr.bf16.mxu0 %v3073
    %4357 = vmatpush2.bf16.msra.mxu0 %v3072
    %4358 = vmatprep.subr.bf16.mxu0 %v3071
    %4359 = vmatpush2.bf16.msra.mxu0 %v3070
    %4360 = vmatprep.subr.bf16.mxu0 %v3069
    %4361 = vmatpush2.bf16.msra.mxu0 %v3068
    %4362 = vmatprep.mubr.bf16.mxu0 %v811
    %4363 = vmatmul.mubr.bf16.gmra.mxu0 %v797
    %v4364 = vpop.f32.mrf.mxu0
    %v4365 = vadd.f32 %v4324, %v4364
    %v4366 = vpop.f32.mrf.mxu0
    %v4367 = vadd.f32 %v4326, %v4366
    %v4368 = vpop.f32.mrf.mxu0
    %v4369 = vpop.f32.mrf.mxu0
    %4370 = vdwg.mxu0
    %4371 = vmatprep.subr.bf16.mxu0 %v3099
    %4372 = vmatpush1.bf16.msra.mxu0 %v3098
    %4373 = vmatprep.subr.bf16.mxu0 %v3097
    %4374 = vmatpush1.bf16.msra.mxu0 %v3096
    %4375 = vmatprep.subr.bf16.mxu0 %v3095
    %4376 = vmatpush1.bf16.msra.mxu0 %v3094
    %4377 = vmatprep.subr.bf16.mxu0 %v3093
    %4378 = vmatpush1.bf16.msra.mxu0 %v3092
    %4379 = vmatprep.subr.bf16.mxu0 %v3091
    %4380 = vmatpush1.bf16.msra.mxu0 %v3090
    %4381 = vmatprep.subr.bf16.mxu0 %v3089
    %4382 = vmatpush1.bf16.msra.mxu0 %v3088
    %4383 = vmatprep.subr.bf16.mxu0 %v3087
    %4384 = vmatpush1.bf16.msra.mxu0 %v3086
    %4385 = vmatprep.subr.bf16.mxu0 %v3085
    %4386 = vmatpush1.bf16.msra.mxu0 %v3084
    %4387 = vmatprep.subr.bf16.mxu0 %v3115
    %4388 = vmatpush2.bf16.msra.mxu0 %v3114
    %4389 = vmatprep.subr.bf16.mxu0 %v3113
    %4390 = vmatpush2.bf16.msra.mxu0 %v3112
    %4391 = vmatprep.subr.bf16.mxu0 %v3111
    %4392 = vmatpush2.bf16.msra.mxu0 %v3110
    %4393 = vmatprep.subr.bf16.mxu0 %v3109
    %4394 = vmatpush2.bf16.msra.mxu0 %v3108
    %4395 = vmatprep.subr.bf16.mxu0 %v3107
    %4396 = vmatpush2.bf16.msra.mxu0 %v3106
    %4397 = vmatprep.subr.bf16.mxu0 %v3105
    %4398 = vmatpush2.bf16.msra.mxu0 %v3104
    %4399 = vmatprep.subr.bf16.mxu0 %v3103
    %4400 = vmatpush2.bf16.msra.mxu0 %v3102
    %4401 = vmatprep.subr.bf16.mxu0 %v3101
    %4402 = vmatpush2.bf16.msra.mxu0 %v3100
    %4403 = vmatprep.mubr.bf16.mxu0 %v815
    %4404 = vmatmul.mubr.bf16.gmra.mxu0 %v813
    %v4405 = vpop.f32.mrf.mxu0
    %v4406 = vadd.f32 %v4365, %v4405
    %v4407 = vpop.f32.mrf.mxu0
    %v4408 = vadd.f32 %v4367, %v4407
    %v4409 = vpop.f32.mrf.mxu0
    %v4410 = vpop.f32.mrf.mxu0
    %4411 = vdwg.mxu0
    %4412 = vmatprep.subr.bf16.mxu0 %v3131
    %4413 = vmatpush1.bf16.msra.mxu0 %v3130
    %4414 = vmatprep.subr.bf16.mxu0 %v3129
    %4415 = vmatpush1.bf16.msra.mxu0 %v3128
    %4416 = vmatprep.subr.bf16.mxu0 %v3127
    %4417 = vmatpush1.bf16.msra.mxu0 %v3126
    %4418 = vmatprep.subr.bf16.mxu0 %v3125
    %4419 = vmatpush1.bf16.msra.mxu0 %v3124
    %4420 = vmatprep.subr.bf16.mxu0 %v3123
    %4421 = vmatpush1.bf16.msra.mxu0 %v3122
    %4422 = vmatprep.subr.bf16.mxu0 %v3121
    %4423 = vmatpush1.bf16.msra.mxu0 %v3120
    %4424 = vmatprep.subr.bf16.mxu0 %v3119
    %4425 = vmatpush1.bf16.msra.mxu0 %v3118
    %4426 = vmatprep.subr.bf16.mxu0 %v3117
    %4427 = vmatpush1.bf16.msra.mxu0 %v3116
    %4428 = vmatprep.subr.bf16.mxu0 %v3147
    %4429 = vmatpush2.bf16.msra.mxu0 %v3146
    %4430 = vmatprep.subr.bf16.mxu0 %v3145
    %4431 = vmatpush2.bf16.msra.mxu0 %v3144
    %4432 = vmatprep.subr.bf16.mxu0 %v3143
    %4433 = vmatpush2.bf16.msra.mxu0 %v3142
    %4434 = vmatprep.subr.bf16.mxu0 %v3141
    %4435 = vmatpush2.bf16.msra.mxu0 %v3140
    %4436 = vmatprep.subr.bf16.mxu0 %v3139
    %4437 = vmatpush2.bf16.msra.mxu0 %v3138
    %4438 = vmatprep.subr.bf16.mxu0 %v3137
    %4439 = vmatpush2.bf16.msra.mxu0 %v3136
    %4440 = vmatprep.subr.bf16.mxu0 %v3135
    %4441 = vmatpush2.bf16.msra.mxu0 %v3134
    %4442 = vmatprep.subr.bf16.mxu0 %v3133
    %4443 = vmatpush2.bf16.msra.mxu0 %v3132
    %4444 = vmatprep.mubr.bf16.mxu0 %v837
    %4445 = vmatmul.mubr.bf16.gmra.mxu0 %v830
    %v4446 = vpop.f32.mrf.mxu0
    %v4447 = vadd.f32 %v4406, %v4446
    %v4448 = vpop.f32.mrf.mxu0
    %v4449 = vadd.f32 %v4408, %v4448
    %v4450 = vpop.f32.mrf.mxu0
    %v4451 = vpop.f32.mrf.mxu0
    %4452 = vdwg.mxu0
    %4453 = vmatprep.subr.bf16.mxu0 %v3163
    %4454 = vmatpush1.bf16.msra.mxu0 %v3162
    %4455 = vmatprep.subr.bf16.mxu0 %v3161
    %4456 = vmatpush1.bf16.msra.mxu0 %v3160
    %4457 = vmatprep.subr.bf16.mxu0 %v3159
    %4458 = vmatpush1.bf16.msra.mxu0 %v3158
    %4459 = vmatprep.subr.bf16.mxu0 %v3157
    %4460 = vmatpush1.bf16.msra.mxu0 %v3156
    %4461 = vmatprep.subr.bf16.mxu0 %v3155
    %4462 = vmatpush1.bf16.msra.mxu0 %v3154
    %4463 = vmatprep.subr.bf16.mxu0 %v3153
    %4464 = vmatpush1.bf16.msra.mxu0 %v3152
    %4465 = vmatprep.subr.bf16.mxu0 %v3151
    %4466 = vmatpush1.bf16.msra.mxu0 %v3150
    %4467 = vmatprep.subr.bf16.mxu0 %v3149
    %4468 = vmatpush1.bf16.msra.mxu0 %v3148
    %4469 = vmatprep.subr.bf16.mxu0 %v3179
    %4470 = vmatpush2.bf16.msra.mxu0 %v3178
    %4471 = vmatprep.subr.bf16.mxu0 %v3177
    %4472 = vmatpush2.bf16.msra.mxu0 %v3176
    %4473 = vmatprep.subr.bf16.mxu0 %v3175
    %4474 = vmatpush2.bf16.msra.mxu0 %v3174
    %4475 = vmatprep.subr.bf16.mxu0 %v3173
    %4476 = vmatpush2.bf16.msra.mxu0 %v3172
    %4477 = vmatprep.subr.bf16.mxu0 %v3171
    %4478 = vmatpush2.bf16.msra.mxu0 %v3170
    %4479 = vmatprep.subr.bf16.mxu0 %v3169
    %4480 = vmatpush2.bf16.msra.mxu0 %v3168
    %4481 = vmatprep.subr.bf16.mxu0 %v3167
    %4482 = vmatpush2.bf16.msra.mxu0 %v3166
    %4483 = vmatprep.subr.bf16.mxu0 %v3165
    %4484 = vmatpush2.bf16.msra.mxu0 %v3164
    %4485 = vmatprep.mubr.bf16.mxu0 %v839
    %4486 = vmatmul.mubr.bf16.gmra.mxu0 %v838
    %v4487 = vpop.f32.mrf.mxu0
    %v4488 = vadd.f32 %v4447, %v4487
    %v4489 = vpop.f32.mrf.mxu0
    %v4490 = vadd.f32 %v4449, %v4489
    %v4491 = vpop.f32.mrf.mxu0
    %v4492 = vpop.f32.mrf.mxu0
    %4493 = vdwg.mxu0
    %v4494 = vmax.f32 %v4488, 0.0
    %v4495 = vmax.f32 %v4490, 0.0
    %v4496 = vpack.c.bf16 %v4494, %v4494
    %v4497 = vpack.c.bf16 %v4495, %v4495
    %v4498 = vld [vmem:[%s3] sm:$0xf]
    %v4499 = vld [vmem:[%s3 + $0x4] sm:$0xf]
    %v4500 = vld [vmem:[%s3 + $0x8] sm:$0xf]
    %v4501 = vld [vmem:[%s3 + $0xc] sm:$0xf]
    %v4502 = vld [vmem:[%s3 + $0x10] sm:$0xf]
    %v4503 = vld [vmem:[%s3 + $0x14] sm:$0xf]
    %v4504 = vld [vmem:[%s3 + $0x18] sm:$0xf]
    %v4505 = vld [vmem:[%s3 + $0x1c] sm:$0xf]
    %v4506 = vld [vmem:[%s3 + $0x20] sm:$0xf]
    %v4507 = vld [vmem:[%s3 + $0x24] sm:$0xf]
    %v4508 = vld [vmem:[%s3 + $0x28] sm:$0xf]
    %v4509 = vld [vmem:[%s3 + $0x2c] sm:$0xf]
    %v4510 = vld [vmem:[%s3 + $0x30] sm:$0xf]
    %v4511 = vld [vmem:[%s3 + $0x34] sm:$0xf]
    %v4512 = vld [vmem:[%s3 + $0x38] sm:$0xf]
    %v4513 = vld [vmem:[%s3 + $0x3c] sm:$0xf]
    %v4514 = vld [vmem:[%s3 + $0x40] sm:$0xf]
    %v4515 = vld [vmem:[%s3 + $0x44] sm:$0xf]
    %v4516 = vld [vmem:[%s3 + $0x48] sm:$0xf]
    %v4517 = vld [vmem:[%s3 + $0x4c] sm:$0xf]
    %v4518 = vld [vmem:[%s3 + $0x50] sm:$0xf]
    %v4519 = vld [vmem:[%s3 + $0x54] sm:$0xf]
    %v4520 = vld [vmem:[%s3 + $0x58] sm:$0xf]
    %v4521 = vld [vmem:[%s3 + $0x5c] sm:$0xf]
    %v4522 = vld [vmem:[%s3 + $0x60] sm:$0xf]
    %v4523 = vld [vmem:[%s3 + $0x64] sm:$0xf]
    %v4524 = vld [vmem:[%s3 + $0x68] sm:$0xf]
    %v4525 = vld [vmem:[%s3 + $0x6c] sm:$0xf]
    %v4526 = vld [vmem:[%s3 + $0x70] sm:$0xf]
    %v4527 = vld [vmem:[%s3 + $0x74] sm:$0xf]
    %v4528 = vld [vmem:[%s3 + $0x78] sm:$0xf]
    %v4529 = vld [vmem:[%s3 + $0x7c] sm:$0xf]
    %v4530 = vld [vmem:[%s4] sm:$0x1]
    %v4532 = vlaneseq
    %v4533 = vshrl.u32 %v4532, 7
    %v4534 = vsub.s32 0, %v4533
    %v4535 = vrot.slane %v4530, %v4534
    %v4569 = vunpack.c.l.b16 %v4498
    %v4570 = vunpack.c.l.b16 %v4499
    %v4571 = vunpack.c.l.b16 %v4500
    %v4572 = vunpack.c.l.b16 %v4501
    %v4573 = vunpack.c.l.b16 %v4502
    %v4574 = vunpack.c.l.b16 %v4503
    %v4575 = vunpack.c.l.b16 %v4504
    %v4576 = vunpack.c.l.b16 %v4505
    %v4577 = vunpack.c.l.b16 %v4506
    %v4578 = vunpack.c.l.b16 %v4507
    %v4579 = vunpack.c.l.b16 %v4508
    %v4580 = vunpack.c.l.b16 %v4509
    %v4581 = vunpack.c.l.b16 %v4510
    %v4582 = vunpack.c.l.b16 %v4511
    %v4583 = vunpack.c.l.b16 %v4512
    %v4584 = vunpack.c.l.b16 %v4513
    %v4585 = vunpack.c.l.b16 %v4514
    %v4586 = vunpack.c.l.b16 %v4515
    %v4587 = vunpack.c.l.b16 %v4516
    %v4588 = vunpack.c.l.b16 %v4517
    %v4589 = vunpack.c.l.b16 %v4518
    %v4590 = vunpack.c.l.b16 %v4519
    %v4591 = vunpack.c.l.b16 %v4520
    %v4592 = vunpack.c.l.b16 %v4521
    %v4593 = vunpack.c.l.b16 %v4522
    %v4594 = vunpack.c.l.b16 %v4523
    %v4595 = vunpack.c.l.b16 %v4524
    %v4596 = vunpack.c.l.b16 %v4525
    %v4597 = vunpack.c.l.b16 %v4526
    %v4598 = vunpack.c.l.b16 %v4527
    %v4599 = vunpack.c.l.b16 %v4528
    %v4600 = vunpack.c.l.b16 %v4529
    %v4601 = vpack.c.b16 %v4570, %v4569
    %v4602 = vpack.c.b16 %v4572, %v4571
    %v4603 = vpack.c.b16 %v4574, %v4573
    %v4604 = vpack.c.b16 %v4576, %v4575
    %v4605 = vpack.c.b16 %v4578, %v4577
    %v4606 = vpack.c.b16 %v4580, %v4579
    %v4607 = vpack.c.b16 %v4582, %v4581
    %v4608 = vpack.c.b16 %v4584, %v4583
    %v4609 = vpack.c.b16 %v4586, %v4585
    %v4610 = vpack.c.b16 %v4588, %v4587
    %v4611 = vpack.c.b16 %v4590, %v4589
    %v4612 = vpack.c.b16 %v4592, %v4591
    %v4613 = vpack.c.b16 %v4594, %v4593
    %v4614 = vpack.c.b16 %v4596, %v4595
    %v4615 = vpack.c.b16 %v4598, %v4597
    %v4616 = vpack.c.b16 %v4600, %v4599
    %4633 = vmatprep.subr.bf16.mxu0 0
    %4634 = vmatpush1.bf16.msra.mxu0 %v4608
    %4635 = vmatprep.subr.bf16.mxu0 0
    %4636 = vmatpush1.bf16.msra.mxu0 %v4607
    %4637 = vmatprep.subr.bf16.mxu0 0
    %4638 = vmatpush1.bf16.msra.mxu0 %v4606
    %4639 = vmatprep.subr.bf16.mxu0 0
    %4640 = vmatpush1.bf16.msra.mxu0 %v4605
    %4641 = vmatprep.subr.bf16.mxu0 0
    %4642 = vmatpush1.bf16.msra.mxu0 %v4604
    %4643 = vmatprep.subr.bf16.mxu0 0
    %4644 = vmatpush1.bf16.msra.mxu0 %v4603
    %4645 = vmatprep.subr.bf16.mxu0 0
    %4646 = vmatpush1.bf16.msra.mxu0 %v4602
    %4647 = vmatprep.subr.bf16.mxu0 0
    %4648 = vmatpush1.bf16.msra.mxu0 %v4601
    %4649 = vmatprep.subr.bf16.mxu0 0
    %4650 = vmatpush2.bf16.msra.mxu0 %v4616
    %4651 = vmatprep.subr.bf16.mxu0 0
    %4652 = vmatpush2.bf16.msra.mxu0 %v4615
    %4653 = vmatprep.subr.bf16.mxu0 0
    %4654 = vmatpush2.bf16.msra.mxu0 %v4614
    %4655 = vmatprep.subr.bf16.mxu0 0
    %4656 = vmatpush2.bf16.msra.mxu0 %v4613
    %4657 = vmatprep.subr.bf16.mxu0 0
    %4658 = vmatpush2.bf16.msra.mxu0 %v4612
    %4659 = vmatprep.subr.bf16.mxu0 0
    %4660 = vmatpush2.bf16.msra.mxu0 %v4611
    %4661 = vmatprep.subr.bf16.mxu0 0
    %4662 = vmatpush2.bf16.msra.mxu0 %v4610
    %4663 = vmatprep.subr.bf16.mxu0 0
    %4664 = vmatpush2.bf16.msra.mxu0 %v4609
    %4665 = vmatprep.mubr.bf16.mxu0 %v4497
    %4666 = vmatmul.mubr.bf16.gmra.mxu0 %v4496
    %v4667 = vpop.f32.mrf.mxu0
    %v4668 = vadd.f32 %v4535, %v4667
    %v4669 = vpop.f32.mrf.mxu0
    %v4670 = vpop.f32.mrf.mxu0
    %v4671 = vpop.f32.mrf.mxu0
    %4672 = vdwg.mxu0
    %vm4673 = vcmask 50176
    %4674 = vst.msk [vmem:[#allocation2] sm:$0x3] %vm4673, %v4668
    // Predicated region
    $region22: #{emotion_cnn_forward.7} parent=1 // pred_check
      _
    $region23: #{emotion_cnn_forward.7} parent=1 // pred_check_branch
      %4676 = sbr.rel (0) target = $region25
    $region24: #{emotion_cnn_forward.7} parent=1 // pred_region
      %s4678 = ssub.s32 32, 32
      %4679 = vsyncadd [#allocation3], %s4678
      %s4681 = sshll.u32 [#allocation2], 4
      %s4682 = int_to_ptr.vmem [resolvable:$true] %s4681
      %4684 = dma.vmem_to_hbm [thread:$0]  %s4682, 32, %s5, [#allocation3]
    $region25: #{emotion_cnn_forward.7} parent=1 // pred_fallthru
      _
    // Predicated region
    $region26: #{emotion_cnn_forward.7} parent=1 // pred_check
      _
    $region27: #{emotion_cnn_forward.7} parent=1 // pred_check_branch
      %4686 = sbr.rel (0) target = $region29
    $region28: #{emotion_cnn_forward.7} parent=1 // pred_region
      %4687 = dma.done [#allocation3], 32
    $region29: #{emotion_cnn_forward.7} parent=1 // pred_fallthru
      _
    %4688 = vsyncpa [#allocation3], 1

</llo_original>
